<compile_context>
chip_gen: v6e
topology: v6e:2x2x1
jax: 0.10.0
libtpu: 0.0.40
codegen_flags: <defaults>
</compile_context>

<pallas_src>
import functools
import math

import jax
import jax.numpy as jnp
from jax.experimental import pallas as pl
from jax.experimental.pallas import tpu as pltpu

LN_EPS = 1e-5          # PyTorch nn.LayerNorm default
NEG_INF = -1e30


def _round_up(n, m):
    return ((n + m - 1) // m) * m


# ----------------------------------------------------------------------------
# In-kernel helpers
# ----------------------------------------------------------------------------
def _bf16(x):
    return x.astype(jnp.bfloat16)


def _erf(x):
    # Abramowitz & Stegun 7.1.26 (max abs error 1.5e-7); exp + VALU ops only.
    t = 1.0 / (1.0 + 0.3275911 * jnp.abs(x))
    poly = ((((1.061405429 * t - 1.453152027) * t + 1.421413741) * t
             - 0.284496736) * t + 0.254829592) * t
    y = 1.0 - poly * jnp.exp(-x * x)
    return jnp.where(x >= 0.0, y, -y)


def _gelu(x):
    # exact (erf-form) GELU, matching torch.nn.GELU() defaults
    return 0.5 * x * (1.0 + _erf(x * 0.7071067811865476))


def _ln(x, ln_ref, d_real):
    """LayerNorm over the last (lane-padded) dim of x (rows, P).

    ln_ref is (3, P): [gamma; beta; valid-lane mask].  Padded lanes of x are
    exactly zero and gamma/beta are zero-padded, so this equals an unpadded
    LayerNorm over d_real features (padded output lanes stay zero)."""
    g = ln_ref[...]
    w, b, vmask = g[0:1, :], g[1:2, :], g[2:3, :]
    inv_d = 1.0 / float(d_real)
    mu = jnp.sum(x, axis=-1, keepdims=True) * inv_d        # pads are 0 -> exact mean
    dm = (x - mu) * vmask
    var = jnp.sum(dm * dm, axis=-1, keepdims=True) * inv_d
    return dm * jax.lax.rsqrt(var + LN_EPS) * w + b


def _softmax(s):
    s = s - jnp.max(s, axis=-1, keepdims=True)
    e = jnp.exp(s)
    return e * pl.reciprocal(jnp.sum(e, axis=-1, keepdims=True), approx=True)


def _res_block(x, amask, aln, wqkv, bqkv, wo, bo, mln, w1, b1, w2, b2,
               *, n_head, d_real):
    """ResidualAttentionBlock on x: (N, P) rows holding independent sequences;
    sequence structure / key padding is encoded in the additive mask `amask`."""
    N, P = x.shape
    hd = d_real // n_head
    scale = float(hd) ** -0.25

    # ---- multi-head self-attention: exact hd contraction per head ----
    xl = _ln(x, aln, d_real)
    qkv = jnp.dot(_bf16(xl), wqkv[...], preferred_element_type=jnp.float32) + bqkv[...]
    wo_full = wo[...]                                  # (P, P) bf16, loaded once
    attn = None
    for h in range(n_head):                            # n_head==1 -> single clean path
        lo = h * hd
        q_h = _bf16(qkv[:, lo:lo + hd] * scale)
        k_h = _bf16(qkv[:, P + lo:P + lo + hd] * scale)
        v_h = _bf16(qkv[:, 2 * P + lo:2 * P + lo + hd])
        s = jnp.einsum('nd,md->nm', q_h, k_h,
                       preferred_element_type=jnp.float32) + amask        # (N, N)
        wgt = _softmax(s)
        o_h = jnp.dot(_bf16(wgt), v_h, preferred_element_type=jnp.float32)   # (N, hd)
        c = jnp.dot(_bf16(o_h), wo_full[lo:lo + hd, :],
                    preferred_element_type=jnp.float32)                      # (N, P)
        attn = c if attn is None else attn + c
    x = x + attn + bo[...]

    # ---- MLP ----
    xl2 = _ln(x, mln, d_real)
    h1 = jnp.dot(_bf16(xl2), w1[...], preferred_element_type=jnp.float32) + b1[...]
    h1 = _gelu(h1)
    return x + jnp.dot(_bf16(h1), w2[...], preferred_element_type=jnp.float32) + b2[...]


# ----------------------------------------------------------------------------
# Fused ATModel kernel: one grid step == seg_batch audio segments
# ----------------------------------------------------------------------------
def at_fused_kernel(x_ref, tmask_ref, avg_ref, lmask_ref, lmean_ref,
                    d_ln, d_w, d_b,
                    t_aln, t_wqkv, t_bqkv, t_wo, t_bo, t_mln, t_w1, t_b1, t_w2, t_b2,
                    l_aln, l_wqkv, l_bqkv, l_wo, l_bo, l_mln, l_w1, l_b1, l_w2, l_b2,
                    h_ln, h_w, h_b,
                    o_ref,
                    *, n_tatt, n_latt, rep_dim, ird):
    x = x_ref[0].astype(jnp.float32)                         # (SB*L*W_pad, P_in)

    # down_layer: LayerNorm + Linear (rep_dim -> inter_rep_dim)
    y = _ln(x, d_ln, rep_dim)
    h = jnp.dot(_bf16(y), d_w[...], preferred_element_type=jnp.float32) + d_b[...]

    # time transformer: SB*L independent windows of length W_pad (block-diag mask)
    h = _res_block(h, tmask_ref[...], t_aln, t_wqkv, t_bqkv, t_wo, t_bo,
                   t_mln, t_w1, t_b1, t_w2, t_b2, n_head=n_tatt, d_real=ird)

    # window mean: precomputed (SB*L, N) averaging matrix (pad rows carry weight 0)
    m = jnp.dot(avg_ref[...], h, preferred_element_type=jnp.float32)      # (SB*L, P)

    # layer transformer: SB independent sequences over the whisper layers
    z = _res_block(m, lmask_ref[...], l_aln, l_wqkv, l_bqkv, l_wo, l_bo,
                   l_mln, l_w1, l_b1, l_w2, l_b2, n_head=n_latt, d_real=ird)

    # layer mean + classification head (LayerNorm + Linear)
    zm = jnp.dot(lmean_ref[...], z, preferred_element_type=jnp.float32)   # (SB, P)
    p = _ln(zm, h_ln, ird)
    o_ref[0] = jnp.dot(_bf16(p), h_w[...], preferred_element_type=jnp.float32) + h_b[...]


# ----------------------------------------------------------------------------
# Parameter packing: pad feature dims to 128, fuse QKV, stack LN, bf16 weights
# ----------------------------------------------------------------------------
def _pad2(a, rows, cols):
    r, c = a.shape
    return jnp.pad(a, ((0, rows - r), (0, cols - c)))


def _prep_ln(w, b, P):
    valid = jnp.ones_like(w)
    return _pad2(jnp.concatenate([w, b, valid], axis=0), 3, P)          # (3, P) f32


def _prep_block(p, P, PH):
    aln = _prep_ln(p["aln_w"], p["aln_b"], P)
    wqkv = jnp.concatenate([_pad2(p["wq"], P, P), _pad2(p["wk"], P, P),
                            _pad2(p["wv"], P, P)], axis=1).astype(jnp.bfloat16)  # (P, 3P)
    bqkv = jnp.concatenate([_pad2(p["bq"], 1, P), jnp.zeros((1, P), jnp.float32),
                            _pad2(p["bv"], 1, P)], axis=1)                       # (1, 3P)
    wo = _pad2(p["wo"], P, P).astype(jnp.bfloat16)
    bo = _pad2(p["bo"], 1, P)
    mln = _prep_ln(p["mln_w"], p["mln_b"], P)
    w1 = _pad2(p["w1"], P, PH).astype(jnp.bfloat16)
    b1 = _pad2(p["b1"], 1, PH)
    w2 = _pad2(p["w2"], PH, P).astype(jnp.bfloat16)
    b2 = _pad2(p["b2"], 1, P)
    return [aln, wqkv, bqkv, wo, bo, mln, w1, b1, w2, b2]


def prepare_kernel_params(params, rep_dim, ird, label_dim):
    P_in = _round_up(rep_dim, 128)
    P = _round_up(ird, 128)
    PH = _round_up(4 * ird, 128)
    P_lab = _round_up(label_dim, 128)
    dp = params["down"]
    weights = [_prep_ln(dp["ln_w"], dp["ln_b"], P_in),
               _pad2(dp["w"], P_in, P).astype(jnp.bfloat16),
               _pad2(dp["b"], 1, P)]
    weights += _prep_block(params["time_tr"], P, PH)
    weights += _prep_block(params["layer_tr"], P, PH)
    hp = params["head"]
    weights += [_prep_ln(hp["ln_w"], hp["ln_b"], P),
                _pad2(hp["w"], P, P_lab).astype(jnp.bfloat16),
                _pad2(hp["b"], 1, P_lab)]
    return weights, (P_in, P, PH, P_lab)


def build_constants(L, W, W_pad, SB):
    """Host-side constant masks / averaging matrices (DMA'd once, constant specs)."""
    N = SB * L * W_pad
    R = SB * L
    col = jnp.arange(N, dtype=jnp.int32)
    blk = col // W_pad                         # window id (segment, layer) per row
    valid = (col % W_pad) < W                  # rows that exist in the reference
    tmask = jnp.where((blk[:, None] == blk[None, :]) & valid[None, :],
                      0.0, NEG_INF).astype(jnp.float32)                  # (N, N)
    rid = jnp.arange(R, dtype=jnp.int32)
    avg = jnp.where((blk[None, :] == rid[:, None]) & valid[None, :],
                    1.0 / W, 0.0).astype(jnp.float32)                    # (R, N)
    seg = rid // L
    lmask = jnp.where(seg[:, None] == seg[None, :],
                      0.0, NEG_INF).astype(jnp.float32)                  # (R, R)
    lmean = jnp.where(seg[None, :] == jnp.arange(SB)[:, None],
                      1.0 / L, 0.0).astype(jnp.float32)                  # (SB, R)
    return tmask, avg, lmask, lmean


def _const_spec(shape):
    nd = len(shape)
    return pl.BlockSpec(shape, lambda g, _nd=nd: (0,) * _nd)


# ----------------------------------------------------------------------------
# ATModel forward ('tl_down_tr_*' mode): one fused pallas_call
# ----------------------------------------------------------------------------
def at_model_forward(audio_rep, params, *, inter_rep_dim, label_dim,
                     n_tatt_head, n_latt_head, time_resolution=10, seg_batch=1):
    L, audio_len, rep_dim = audio_rep.shape
    W = int(time_resolution * 2.5)
    S = math.ceil(audio_len / W)
    SB = max(1, min(seg_batch, S))
    S_pad = _round_up(S, SB)
    G = S_pad // SB
    W_pad = _round_up(W, 8)                    # lane/sublane-friendly window length
    N_step = SB * L * W_pad

    weights, (P_in, P, PH, P_lab) = prepare_kernel_params(
        params, rep_dim, inter_rep_dim, label_dim)
    consts = build_constants(L, W, W_pad, SB)

    # wrapper-side layout plumbing: [L, audio_len, D] -> [G, SB*L*W_pad, P_in] (bf16)
    x = audio_rep.astype(jnp.float32)
    x = jnp.pad(x, ((0, 0), (0, S * W - audio_len), (0, 0)))      # reference padding
    x = x.reshape(L, S, W, rep_dim)
    x = jnp.pad(x, ((0, 0), (0, S_pad - S), (0, W_pad - W), (0, P_in - rep_dim)))
    x = x.transpose(1, 0, 2, 3).reshape(G, N_step, P_in).astype(jnp.bfloat16)

    kernel = functools.partial(
        at_fused_kernel, n_tatt=n_tatt_head, n_latt=n_latt_head,
        rep_dim=rep_dim, ird=inter_rep_dim)

    in_specs = [pl.BlockSpec((1, N_step, P_in), lambda g: (g, 0, 0))]
    in_specs += [_const_spec(a.shape) for a in consts]
    in_specs += [_const_spec(w.shape) for w in weights]

    out = pl.pallas_call(
        kernel,
        out_shape=jax.ShapeDtypeStruct((G, SB, P_lab), jnp.float32),
        grid_spec=pltpu.PrefetchScalarGridSpec(
            num_scalar_prefetch=0,
            grid=(G,),
            in_specs=in_specs,
            out_specs=pl.BlockSpec((1, SB, P_lab), lambda g: (g, 0, 0)),
        ),
        compiler_params=pltpu.CompilerParams(dimension_semantics=("parallel",)),
    )(x, *consts, *weights)

    return out.reshape(G * SB, P_lab)[:S, :label_dim]


# ----------------------------------------------------------------------------
# Parameter init (deterministic, synthetic; linear weights stored as (in, out))
# ----------------------------------------------------------------------------
def _init_linear(key, d_in, d_out, bias=True):
    kw, kb = jax.random.split(key)
    w = 0.02 * jax.random.normal(kw, (d_in, d_out), jnp.float32)
    b = 0.02 * jax.random.normal(kb, (1, d_out), jnp.float32) if bias else None
    return w, b


def _init_ln(key, d):
    kw, kb = jax.random.split(key)
    w = 1.0 + 0.01 * jax.random.normal(kw, (1, d), jnp.float32)
    b = 0.01 * jax.random.normal(kb, (1, d), jnp.float32)
    return w, b


def _init_res_block(key, d):
    ks = jax.random.split(key, 8)
    aln_w, aln_b = _init_ln(ks[0], d)
    wq, bq = _init_linear(ks[1], d, d)
    wk, _ = _init_linear(ks[2], d, d, bias=False)
    wv, bv = _init_linear(ks[3], d, d)
    wo, bo = _init_linear(ks[4], d, d)
    mln_w, mln_b = _init_ln(ks[5], d)
    w1, b1 = _init_linear(ks[6], d, 4 * d)
    w2, b2 = _init_linear(ks[7], 4 * d, d)
    return dict(aln_w=aln_w, aln_b=aln_b, wq=wq, bq=bq, wk=wk, wv=wv, bv=bv,
                wo=wo, bo=bo, mln_w=mln_w, mln_b=mln_b,
                w1=w1, b1=b1, w2=w2, b2=b2)


def init_at_model_params(key, rep_dim, inter_rep_dim, label_dim):
    k1, k2, k3, k4, k5, k6 = jax.random.split(key, 6)
    down_ln_w, down_ln_b = _init_ln(k1, rep_dim)
    down_w, down_b = _init_linear(k2, rep_dim, inter_rep_dim)
    head_ln_w, head_ln_b = _init_ln(k5, inter_rep_dim)
    head_w, head_b = _init_linear(k6, inter_rep_dim, label_dim)
    return dict(
        down=dict(ln_w=down_ln_w, ln_b=down_ln_b, w=down_w, b=down_b),
        time_tr=_init_res_block(k3, inter_rep_dim),
        layer_tr=_init_res_block(k4, inter_rep_dim),
        head=dict(ln_w=head_ln_w, ln_b=head_ln_b, w=head_w, b=head_b),
    )


# ----------------------------------------------------------------------------
# Pure-JAX reference (mirrors the PyTorch ATModel forward) for validation
# ----------------------------------------------------------------------------
def _ref_layer_norm(x, w, b):
    mu = jnp.mean(x, axis=-1, keepdims=True)
    var = jnp.mean((x - mu) ** 2, axis=-1, keepdims=True)
    return (x - mu) / jnp.sqrt(var + LN_EPS) * w + b


def _ref_mha(x, p, n_head):
    B, T, D = x.shape
    q = x @ p["wq"] + p["bq"]
    k = x @ p["wk"]
    v = x @ p["wv"] + p["bv"]
    hd = D // n_head
    scale = hd ** (-0.25)
    q = q.reshape(B, T, n_head, hd).transpose(0, 2, 1, 3) * scale
    k = k.reshape(B, T, n_head, hd).transpose(0, 2, 3, 1) * scale
    v = v.reshape(B, T, n_head, hd).transpose(0, 2, 1, 3)
    w = jax.nn.softmax(q @ k, axis=-1)
    wv = (w @ v).transpose(0, 2, 1, 3).reshape(B, T, D)
    return wv @ p["wo"] + p["bo"]


def _ref_block(x, p, n_head):
    x = x + _ref_mha(_ref_layer_norm(x, p["aln_w"], p["aln_b"]), p, n_head)
    h = _ref_layer_norm(x, p["mln_w"], p["mln_b"])
    h = jax.nn.gelu(h @ p["w1"] + p["b1"], approximate=False)
    return x + h @ p["w2"] + p["b2"]


def at_model_reference(audio_rep, params, *, inter_rep_dim, n_tatt_head,
                       n_latt_head, time_resolution=10):
    L, a_len, D = audio_rep.shape
    W = int(time_resolution * 2.5)
    S = math.ceil(a_len / W)
    x = jnp.pad(audio_rep.astype(jnp.float32), ((0, 0), (0, S * W - a_len), (0, 0)))
    x = x.reshape(L, S, W, D).transpose(1, 0, 2, 3).reshape(S * L, W, D)
    dp = params["down"]
    x = _ref_layer_norm(x, dp["ln_w"], dp["ln_b"]) @ dp["w"] + dp["b"]
    x = _ref_block(x, params["time_tr"], n_tatt_head)
    x = jnp.mean(x, axis=1).reshape(S, L, inter_rep_dim)
    x = _ref_block(x, params["layer_tr"], n_latt_head)
    x = jnp.mean(x, axis=1)
    hp = params["head"]
    return _ref_layer_norm(x, hp["ln_w"], hp["ln_b"]) @ hp["w"] + hp["b"]


# ----------------------------------------------------------------------------
# Main
# ----------------------------------------------------------------------------
if __name__ == "__main__":
    # Small synthetic config consistent with mode 'tl_down_tr_64_1_4'
    n_layer = 4
    audio_len = 80          # -> decision_window=25, num_segment=4 (20 pad rows in last)
    rep_dim = 128
    inter_rep_dim = 64
    label_dim = 32
    n_tatt_head = 1
    n_latt_head = 4
    time_resolution = 10
    seg_batch = 2           # 2 segments per grid step -> grid=(2,), even TC split

    key = jax.random.PRNGKey(0)
    k_in, k_params = jax.random.split(key)
    audio_rep = jax.random.normal(k_in, (n_layer, audio_len, rep_dim), jnp.float32)
    params = init_at_model_params(k_params, rep_dim, inter_rep_dim, label_dim)

    pred = at_model_forward(
        audio_rep, params,
        inter_rep_dim=inter_rep_dim,
        label_dim=label_dim,
        n_tatt_head=n_tatt_head,
        n_latt_head=n_latt_head,
        time_resolution=time_resolution,
        seg_batch=seg_batch,
    )
    pred = jax.block_until_ready(pred)

    num_segment = math.ceil(audio_len / int(time_resolution * 2.5))
    assert pred.shape == (num_segment, label_dim), pred.shape
    assert bool(jnp.all(jnp.isfinite(pred)))

    ref = at_model_reference(
        audio_rep, params,
        inter_rep_dim=inter_rep_dim,
        n_tatt_head=n_tatt_head,
        n_latt_head=n_latt_head,
        time_resolution=time_resolution,
    )
    max_err = float(jnp.max(jnp.abs(pred - ref)))
    assert bool(jnp.allclose(pred, ref, rtol=2e-2, atol=2e-2)), f"max abs err {max_err}"

    print("KERNEL_OK")
</pallas_src>

<mosaic_0001>
module attributes {stable_mosaic.version = 11 : i64} {
  func.func @at_fused_kernel(%arg0: i32, %arg1: memref<1x256x128xbf16, #tpu.memory_space<vmem>>, %arg2: memref<256x256xf32, #tpu.memory_space<vmem>>, %arg3: memref<8x256xf32, #tpu.memory_space<vmem>>, %arg4: memref<8x8xf32, #tpu.memory_space<vmem>>, %arg5: memref<2x8xf32, #tpu.memory_space<vmem>>, %arg6: memref<3x128xf32, #tpu.memory_space<vmem>>, %arg7: memref<128x128xbf16, #tpu.memory_space<vmem>>, %arg8: memref<1x128xf32, #tpu.memory_space<vmem>>, %arg9: memref<3x128xf32, #tpu.memory_space<vmem>>, %arg10: memref<128x384xbf16, #tpu.memory_space<vmem>>, %arg11: memref<1x384xf32, #tpu.memory_space<vmem>>, %arg12: memref<128x128xbf16, #tpu.memory_space<vmem>>, %arg13: memref<1x128xf32, #tpu.memory_space<vmem>>, %arg14: memref<3x128xf32, #tpu.memory_space<vmem>>, %arg15: memref<128x256xbf16, #tpu.memory_space<vmem>>, %arg16: memref<1x256xf32, #tpu.memory_space<vmem>>, %arg17: memref<256x128xbf16, #tpu.memory_space<vmem>>, %arg18: memref<1x128xf32, #tpu.memory_space<vmem>>, %arg19: memref<3x128xf32, #tpu.memory_space<vmem>>, %arg20: memref<128x384xbf16, #tpu.memory_space<vmem>>, %arg21: memref<1x384xf32, #tpu.memory_space<vmem>>, %arg22: memref<128x128xbf16, #tpu.memory_space<vmem>>, %arg23: memref<1x128xf32, #tpu.memory_space<vmem>>, %arg24: memref<3x128xf32, #tpu.memory_space<vmem>>, %arg25: memref<128x256xbf16, #tpu.memory_space<vmem>>, %arg26: memref<1x256xf32, #tpu.memory_space<vmem>>, %arg27: memref<256x128xbf16, #tpu.memory_space<vmem>>, %arg28: memref<1x128xf32, #tpu.memory_space<vmem>>, %arg29: memref<3x128xf32, #tpu.memory_space<vmem>>, %arg30: memref<128x128xbf16, #tpu.memory_space<vmem>>, %arg31: memref<1x128xf32, #tpu.memory_space<vmem>>, %arg32: memref<1x2x128xf32, #tpu.memory_space<vmem>>) attributes {dimension_semantics = [#tpu.dimension_semantics<parallel>], iteration_bounds = array<i64: 2>, scalar_prefetch = 0 : i64, scratch_operands = 0 : i64, tpu.core_type = #tpu.core_type<tc>, window_params = [{transform_indices = @transform_0, window_bounds = array<i64: 1, 256, 128>}, {pipeline_mode = #tpu.pipeline_mode<synchronous>, transform_indices = @transform_1, window_bounds = array<i64: 256, 256>}, {pipeline_mode = #tpu.pipeline_mode<synchronous>, transform_indices = @transform_2, window_bounds = array<i64: 8, 256>}, {pipeline_mode = #tpu.pipeline_mode<synchronous>, transform_indices = @transform_3, window_bounds = array<i64: 8, 8>}, {pipeline_mode = #tpu.pipeline_mode<synchronous>, transform_indices = @transform_4, window_bounds = array<i64: 2, 8>}, {pipeline_mode = #tpu.pipeline_mode<synchronous>, transform_indices = @transform_5, window_bounds = array<i64: 3, 128>}, {pipeline_mode = #tpu.pipeline_mode<synchronous>, transform_indices = @transform_6, window_bounds = array<i64: 128, 128>}, {pipeline_mode = #tpu.pipeline_mode<synchronous>, transform_indices = @transform_7, window_bounds = array<i64: 1, 128>}, {pipeline_mode = #tpu.pipeline_mode<synchronous>, transform_indices = @transform_8, window_bounds = array<i64: 3, 128>}, {pipeline_mode = #tpu.pipeline_mode<synchronous>, transform_indices = @transform_9, window_bounds = array<i64: 128, 384>}, {pipeline_mode = #tpu.pipeline_mode<synchronous>, transform_indices = @transform_10, window_bounds = array<i64: 1, 384>}, {pipeline_mode = #tpu.pipeline_mode<synchronous>, transform_indices = @transform_11, window_bounds = array<i64: 128, 128>}, {pipeline_mode = #tpu.pipeline_mode<synchronous>, transform_indices = @transform_12, window_bounds = array<i64: 1, 128>}, {pipeline_mode = #tpu.pipeline_mode<synchronous>, transform_indices = @transform_13, window_bounds = array<i64: 3, 128>}, {pipeline_mode = #tpu.pipeline_mode<synchronous>, transform_indices = @transform_14, window_bounds = array<i64: 128, 256>}, {pipeline_mode = #tpu.pipeline_mode<synchronous>, transform_indices = @transform_15, window_bounds = array<i64: 1, 256>}, {pipeline_mode = #tpu.pipeline_mode<synchronous>, transform_indices = @transform_16, window_bounds = array<i64: 256, 128>}, {pipeline_mode = #tpu.pipeline_mode<synchronous>, transform_indices = @transform_17, window_bounds = array<i64: 1, 128>}, {pipeline_mode = #tpu.pipeline_mode<synchronous>, transform_indices = @transform_18, window_bounds = array<i64: 3, 128>}, {pipeline_mode = #tpu.pipeline_mode<synchronous>, transform_indices = @transform_19, window_bounds = array<i64: 128, 384>}, {pipeline_mode = #tpu.pipeline_mode<synchronous>, transform_indices = @transform_20, window_bounds = array<i64: 1, 384>}, {pipeline_mode = #tpu.pipeline_mode<synchronous>, transform_indices = @transform_21, window_bounds = array<i64: 128, 128>}, {pipeline_mode = #tpu.pipeline_mode<synchronous>, transform_indices = @transform_22, window_bounds = array<i64: 1, 128>}, {pipeline_mode = #tpu.pipeline_mode<synchronous>, transform_indices = @transform_23, window_bounds = array<i64: 3, 128>}, {pipeline_mode = #tpu.pipeline_mode<synchronous>, transform_indices = @transform_24, window_bounds = array<i64: 128, 256>}, {pipeline_mode = #tpu.pipeline_mode<synchronous>, transform_indices = @transform_25, window_bounds = array<i64: 1, 256>}, {pipeline_mode = #tpu.pipeline_mode<synchronous>, transform_indices = @transform_26, window_bounds = array<i64: 256, 128>}, {pipeline_mode = #tpu.pipeline_mode<synchronous>, transform_indices = @transform_27, window_bounds = array<i64: 1, 128>}, {pipeline_mode = #tpu.pipeline_mode<synchronous>, transform_indices = @transform_28, window_bounds = array<i64: 3, 128>}, {pipeline_mode = #tpu.pipeline_mode<synchronous>, transform_indices = @transform_29, window_bounds = array<i64: 128, 128>}, {pipeline_mode = #tpu.pipeline_mode<synchronous>, transform_indices = @transform_30, window_bounds = array<i64: 1, 128>}, {transform_indices = @transform_31, window_bounds = array<i64: 1, 2, 128>}]} {
    %c0 = arith.constant 0 : index
    %c0_0 = arith.constant 0 : index
    %c0_1 = arith.constant 0 : index
    %0 = vector.load %arg1[%c0, %c0_0, %c0_1] : memref<1x256x128xbf16, #tpu.memory_space<vmem>>, vector<1x256x128xbf16>
    %1 = vector.shape_cast %0 : vector<1x256x128xbf16> to vector<256x128xbf16>
    %2 = arith.extf %1 : vector<256x128xbf16> to vector<256x128xf32>
    %c0_2 = arith.constant 0 : index
    %c0_3 = arith.constant 0 : index
    %3 = vector.load %arg6[%c0_2, %c0_3] : memref<3x128xf32, #tpu.memory_space<vmem>>, vector<3x128xf32>
    %4 = vector.extract_strided_slice %3 {offsets = [0, 0], sizes = [1, 128], strides = [1, 1]} : vector<3x128xf32> to vector<1x128xf32>
    %5 = vector.extract_strided_slice %3 {offsets = [1, 0], sizes = [1, 128], strides = [1, 1]} : vector<3x128xf32> to vector<1x128xf32>
    %6 = vector.extract_strided_slice %3 {offsets = [2, 0], sizes = [1, 128], strides = [1, 1]} : vector<3x128xf32> to vector<1x128xf32>
    %cst = arith.constant dense<0.000000e+00> : vector<256xf32>
    %7 = vector.multi_reduction <add>, %2, %cst [1] : vector<256x128xf32> to vector<256xf32>
    %8 = vector.shape_cast %7 : vector<256xf32> to vector<256x1xf32>
    %cst_4 = arith.constant 7.812500e-03 : f32
    %9 = vector.broadcast %cst_4 : f32 to vector<256x1xf32>
    %10 = arith.mulf %8, %9 : vector<256x1xf32>
    %11 = vector.broadcast %10 : vector<256x1xf32> to vector<256x128xf32>
    %12 = arith.subf %2, %11 : vector<256x128xf32>
    %13 = vector.broadcast %6 : vector<1x128xf32> to vector<256x128xf32>
    %14 = arith.mulf %12, %13 : vector<256x128xf32>
    %15 = arith.mulf %14, %14 : vector<256x128xf32>
    %cst_5 = arith.constant dense<0.000000e+00> : vector<256xf32>
    %16 = vector.multi_reduction <add>, %15, %cst_5 [1] : vector<256x128xf32> to vector<256xf32>
    %17 = vector.shape_cast %16 : vector<256xf32> to vector<256x1xf32>
    %cst_6 = arith.constant 7.812500e-03 : f32
    %18 = vector.broadcast %cst_6 : f32 to vector<256x1xf32>
    %19 = arith.mulf %17, %18 : vector<256x1xf32>
    %cst_7 = arith.constant 9.99999974E-6 : f32
    %20 = vector.broadcast %cst_7 : f32 to vector<256x1xf32>
    %21 = arith.addf %19, %20 : vector<256x1xf32>
    %22 = math.rsqrt %21 : vector<256x1xf32>
    %23 = vector.broadcast %22 : vector<256x1xf32> to vector<256x128xf32>
    %24 = arith.mulf %14, %23 : vector<256x128xf32>
    %25 = vector.broadcast %4 : vector<1x128xf32> to vector<256x128xf32>
    %26 = arith.mulf %24, %25 : vector<256x128xf32>
    %27 = vector.broadcast %5 : vector<1x128xf32> to vector<256x128xf32>
    %28 = arith.addf %26, %27 : vector<256x128xf32>
    %29 = arith.truncf %28 : vector<256x128xf32> to vector<256x128xbf16>
    %c0_8 = arith.constant 0 : index
    %c0_9 = arith.constant 0 : index
    %30 = vector.load %arg7[%c0_8, %c0_9] : memref<128x128xbf16, #tpu.memory_space<vmem>>, vector<128x128xbf16>
    %cst_10 = arith.constant dense<0.000000e+00> : vector<256x128xf32>
    %31 = tpu.matmul %29, %30, %cst_10 {dimension_numbers = #tpu.dot_dimension_numbers<[1], [0], [0], [1], [0, 0, 1, 1], [], []>} : vector<256x128xbf16>, vector<128x128xbf16>, vector<256x128xf32> -> vector<256x128xf32>
    %c0_11 = arith.constant 0 : index
    %c0_12 = arith.constant 0 : index
    %32 = vector.load %arg8[%c0_11, %c0_12] : memref<1x128xf32, #tpu.memory_space<vmem>>, vector<1x128xf32>
    %33 = vector.broadcast %32 : vector<1x128xf32> to vector<256x128xf32>
    %34 = arith.addf %31, %33 : vector<256x128xf32>
    %c0_13 = arith.constant 0 : index
    %c0_14 = arith.constant 0 : index
    %35 = vector.load %arg2[%c0_13, %c0_14] : memref<256x256xf32, #tpu.memory_space<vmem>>, vector<256x256xf32>
    %c0_15 = arith.constant 0 : index
    %c0_16 = arith.constant 0 : index
    %36 = vector.load %arg9[%c0_15, %c0_16] : memref<3x128xf32, #tpu.memory_space<vmem>>, vector<3x128xf32>
    %37 = vector.extract_strided_slice %36 {offsets = [0, 0], sizes = [1, 128], strides = [1, 1]} : vector<3x128xf32> to vector<1x128xf32>
    %38 = vector.extract_strided_slice %36 {offsets = [1, 0], sizes = [1, 128], strides = [1, 1]} : vector<3x128xf32> to vector<1x128xf32>
    %39 = vector.extract_strided_slice %36 {offsets = [2, 0], sizes = [1, 128], strides = [1, 1]} : vector<3x128xf32> to vector<1x128xf32>
    %cst_17 = arith.constant dense<0.000000e+00> : vector<256xf32>
    %40 = vector.multi_reduction <add>, %34, %cst_17 [1] : vector<256x128xf32> to vector<256xf32>
    %41 = vector.shape_cast %40 : vector<256xf32> to vector<256x1xf32>
    %cst_18 = arith.constant 1.562500e-02 : f32
    %42 = vector.broadcast %cst_18 : f32 to vector<256x1xf32>
    %43 = arith.mulf %41, %42 : vector<256x1xf32>
    %44 = vector.broadcast %43 : vector<256x1xf32> to vector<256x128xf32>
    %45 = arith.subf %34, %44 : vector<256x128xf32>
    %46 = vector.broadcast %39 : vector<1x128xf32> to vector<256x128xf32>
    %47 = arith.mulf %45, %46 : vector<256x128xf32>
    %48 = arith.mulf %47, %47 : vector<256x128xf32>
    %cst_19 = arith.constant dense<0.000000e+00> : vector<256xf32>
    %49 = vector.multi_reduction <add>, %48, %cst_19 [1] : vector<256x128xf32> to vector<256xf32>
    %50 = vector.shape_cast %49 : vector<256xf32> to vector<256x1xf32>
    %cst_20 = arith.constant 1.562500e-02 : f32
    %51 = vector.broadcast %cst_20 : f32 to vector<256x1xf32>
    %52 = arith.mulf %50, %51 : vector<256x1xf32>
    %cst_21 = arith.constant 9.99999974E-6 : f32
    %53 = vector.broadcast %cst_21 : f32 to vector<256x1xf32>
    %54 = arith.addf %52, %53 : vector<256x1xf32>
    %55 = math.rsqrt %54 : vector<256x1xf32>
    %56 = vector.broadcast %55 : vector<256x1xf32> to vector<256x128xf32>
    %57 = arith.mulf %47, %56 : vector<256x128xf32>
    %58 = vector.broadcast %37 : vector<1x128xf32> to vector<256x128xf32>
    %59 = arith.mulf %57, %58 : vector<256x128xf32>
    %60 = vector.broadcast %38 : vector<1x128xf32> to vector<256x128xf32>
    %61 = arith.addf %59, %60 : vector<256x128xf32>
    %62 = arith.truncf %61 : vector<256x128xf32> to vector<256x128xbf16>
    %c0_22 = arith.constant 0 : index
    %c0_23 = arith.constant 0 : index
    %63 = vector.load %arg10[%c0_22, %c0_23] : memref<128x384xbf16, #tpu.memory_space<vmem>>, vector<128x384xbf16>
    %cst_24 = arith.constant dense<0.000000e+00> : vector<256x384xf32>
    %64 = tpu.matmul %62, %63, %cst_24 {dimension_numbers = #tpu.dot_dimension_numbers<[1], [0], [0], [1], [0, 0, 1, 1], [], []>} : vector<256x128xbf16>, vector<128x384xbf16>, vector<256x384xf32> -> vector<256x384xf32>
    %c0_25 = arith.constant 0 : index
    %c0_26 = arith.constant 0 : index
    %65 = vector.load %arg11[%c0_25, %c0_26] : memref<1x384xf32, #tpu.memory_space<vmem>>, vector<1x384xf32>
    %66 = vector.broadcast %65 : vector<1x384xf32> to vector<256x384xf32>
    %67 = arith.addf %64, %66 : vector<256x384xf32>
    %c0_27 = arith.constant 0 : index
    %c0_28 = arith.constant 0 : index
    %68 = vector.load %arg12[%c0_27, %c0_28] : memref<128x128xbf16, #tpu.memory_space<vmem>>, vector<128x128xbf16>
    %69 = vector.extract_strided_slice %67 {offsets = [0, 0], sizes = [256, 64], strides = [1, 1]} : vector<256x384xf32> to vector<256x64xf32>
    %cst_29 = arith.constant 0.353553385 : f32
    %70 = vector.broadcast %cst_29 : f32 to vector<256x64xf32>
    %71 = arith.mulf %69, %70 : vector<256x64xf32>
    %72 = arith.truncf %71 : vector<256x64xf32> to vector<256x64xbf16>
    %73 = vector.extract_strided_slice %67 {offsets = [0, 128], sizes = [256, 64], strides = [1, 1]} : vector<256x384xf32> to vector<256x64xf32>
    %cst_30 = arith.constant 0.353553385 : f32
    %74 = vector.broadcast %cst_30 : f32 to vector<256x64xf32>
    %75 = arith.mulf %73, %74 : vector<256x64xf32>
    %76 = arith.truncf %75 : vector<256x64xf32> to vector<256x64xbf16>
    %77 = vector.extract_strided_slice %67 {offsets = [0, 256], sizes = [256, 64], strides = [1, 1]} : vector<256x384xf32> to vector<256x64xf32>
    %78 = arith.truncf %77 : vector<256x64xf32> to vector<256x64xbf16>
    "tpu.trace_start"() <{level = 10 : i32, message = "nd,md->nm"}> : () -> ()
    %cst_31 = arith.constant dense<0.000000e+00> : vector<256x256xf32>
    %79 = tpu.matmul %72, %76, %cst_31 {dimension_numbers = #tpu.dot_dimension_numbers<[1], [1], [0], [0], [0, 0, 1, 0], [], []>} : vector<256x64xbf16>, vector<256x64xbf16>, vector<256x256xf32> -> vector<256x256xf32>
    "tpu.trace_stop"() : () -> ()
    %80 = arith.addf %79, %35 : vector<256x256xf32>
    %cst_32 = arith.constant dense<0xFF800000> : vector<256xf32>
    %81 = vector.multi_reduction <maximumf>, %80, %cst_32 [1] : vector<256x256xf32> to vector<256xf32>
    %82 = vector.shape_cast %81 : vector<256xf32> to vector<256x1xf32>
    %83 = vector.broadcast %82 : vector<256x1xf32> to vector<256x256xf32>
    %84 = arith.subf %80, %83 : vector<256x256xf32>
    %85 = math.exp %84 : vector<256x256xf32>
    %cst_33 = arith.constant dense<0.000000e+00> : vector<256xf32>
    %86 = vector.multi_reduction <add>, %85, %cst_33 [1] : vector<256x256xf32> to vector<256xf32>
    %87 = vector.shape_cast %86 : vector<256xf32> to vector<256x1xf32>
    %88 = tpu.reciprocal %87 {approx = true} : vector<256x1xf32> -> vector<256x1xf32>
    %89 = vector.broadcast %88 : vector<256x1xf32> to vector<256x256xf32>
    %90 = arith.mulf %85, %89 : vector<256x256xf32>
    %91 = arith.truncf %90 : vector<256x256xf32> to vector<256x256xbf16>
    %cst_34 = arith.constant dense<0.000000e+00> : vector<256x64xf32>
    %92 = tpu.matmul %91, %78, %cst_34 {dimension_numbers = #tpu.dot_dimension_numbers<[1], [0], [0], [1], [0, 0, 1, 1], [], []>} : vector<256x256xbf16>, vector<256x64xbf16>, vector<256x64xf32> -> vector<256x64xf32>
    %93 = arith.truncf %92 : vector<256x64xf32> to vector<256x64xbf16>
    %94 = vector.extract_strided_slice %68 {offsets = [0, 0], sizes = [64, 128], strides = [1, 1]} : vector<128x128xbf16> to vector<64x128xbf16>
    %cst_35 = arith.constant dense<0.000000e+00> : vector<256x128xf32>
    %95 = tpu.matmul %93, %94, %cst_35 {dimension_numbers = #tpu.dot_dimension_numbers<[1], [0], [0], [1], [0, 0, 1, 1], [], []>} : vector<256x64xbf16>, vector<64x128xbf16>, vector<256x128xf32> -> vector<256x128xf32>
    %96 = arith.addf %34, %95 : vector<256x128xf32>
    %c0_36 = arith.constant 0 : index
    %c0_37 = arith.constant 0 : index
    %97 = vector.load %arg13[%c0_36, %c0_37] : memref<1x128xf32, #tpu.memory_space<vmem>>, vector<1x128xf32>
    %98 = vector.broadcast %97 : vector<1x128xf32> to vector<256x128xf32>
    %99 = arith.addf %96, %98 : vector<256x128xf32>
    %c0_38 = arith.constant 0 : index
    %c0_39 = arith.constant 0 : index
    %100 = vector.load %arg14[%c0_38, %c0_39] : memref<3x128xf32, #tpu.memory_space<vmem>>, vector<3x128xf32>
    %101 = vector.extract_strided_slice %100 {offsets = [0, 0], sizes = [1, 128], strides = [1, 1]} : vector<3x128xf32> to vector<1x128xf32>
    %102 = vector.extract_strided_slice %100 {offsets = [1, 0], sizes = [1, 128], strides = [1, 1]} : vector<3x128xf32> to vector<1x128xf32>
    %103 = vector.extract_strided_slice %100 {offsets = [2, 0], sizes = [1, 128], strides = [1, 1]} : vector<3x128xf32> to vector<1x128xf32>
    %cst_40 = arith.constant dense<0.000000e+00> : vector<256xf32>
    %104 = vector.multi_reduction <add>, %99, %cst_40 [1] : vector<256x128xf32> to vector<256xf32>
    %105 = vector.shape_cast %104 : vector<256xf32> to vector<256x1xf32>
    %cst_41 = arith.constant 1.562500e-02 : f32
    %106 = vector.broadcast %cst_41 : f32 to vector<256x1xf32>
    %107 = arith.mulf %105, %106 : vector<256x1xf32>
    %108 = vector.broadcast %107 : vector<256x1xf32> to vector<256x128xf32>
    %109 = arith.subf %99, %108 : vector<256x128xf32>
    %110 = vector.broadcast %103 : vector<1x128xf32> to vector<256x128xf32>
    %111 = arith.mulf %109, %110 : vector<256x128xf32>
    %112 = arith.mulf %111, %111 : vector<256x128xf32>
    %cst_42 = arith.constant dense<0.000000e+00> : vector<256xf32>
    %113 = vector.multi_reduction <add>, %112, %cst_42 [1] : vector<256x128xf32> to vector<256xf32>
    %114 = vector.shape_cast %113 : vector<256xf32> to vector<256x1xf32>
    %cst_43 = arith.constant 1.562500e-02 : f32
    %115 = vector.broadcast %cst_43 : f32 to vector<256x1xf32>
    %116 = arith.mulf %114, %115 : vector<256x1xf32>
    %cst_44 = arith.constant 9.99999974E-6 : f32
    %117 = vector.broadcast %cst_44 : f32 to vector<256x1xf32>
    %118 = arith.addf %116, %117 : vector<256x1xf32>
    %119 = math.rsqrt %118 : vector<256x1xf32>
    %120 = vector.broadcast %119 : vector<256x1xf32> to vector<256x128xf32>
    %121 = arith.mulf %111, %120 : vector<256x128xf32>
    %122 = vector.broadcast %101 : vector<1x128xf32> to vector<256x128xf32>
    %123 = arith.mulf %121, %122 : vector<256x128xf32>
    %124 = vector.broadcast %102 : vector<1x128xf32> to vector<256x128xf32>
    %125 = arith.addf %123, %124 : vector<256x128xf32>
    %126 = arith.truncf %125 : vector<256x128xf32> to vector<256x128xbf16>
    %c0_45 = arith.constant 0 : index
    %c0_46 = arith.constant 0 : index
    %127 = vector.load %arg15[%c0_45, %c0_46] : memref<128x256xbf16, #tpu.memory_space<vmem>>, vector<128x256xbf16>
    %cst_47 = arith.constant dense<0.000000e+00> : vector<256x256xf32>
    %128 = tpu.matmul %126, %127, %cst_47 {dimension_numbers = #tpu.dot_dimension_numbers<[1], [0], [0], [1], [0, 0, 1, 1], [], []>} : vector<256x128xbf16>, vector<128x256xbf16>, vector<256x256xf32> -> vector<256x256xf32>
    %c0_48 = arith.constant 0 : index
    %c0_49 = arith.constant 0 : index
    %129 = vector.load %arg16[%c0_48, %c0_49] : memref<1x256xf32, #tpu.memory_space<vmem>>, vector<1x256xf32>
    %130 = vector.broadcast %129 : vector<1x256xf32> to vector<256x256xf32>
    %131 = arith.addf %128, %130 : vector<256x256xf32>
    %cst_50 = arith.constant 5.000000e-01 : f32
    %132 = vector.broadcast %cst_50 : f32 to vector<256x256xf32>
    %133 = arith.mulf %132, %131 : vector<256x256xf32>
    %cst_51 = arith.constant 0.707106769 : f32
    %134 = vector.broadcast %cst_51 : f32 to vector<256x256xf32>
    %135 = arith.mulf %131, %134 : vector<256x256xf32>
    %136 = math.absf %135 : vector<256x256xf32>
    %cst_52 = arith.constant 0.327591091 : f32
    %137 = vector.broadcast %cst_52 : f32 to vector<256x256xf32>
    %138 = arith.mulf %137, %136 : vector<256x256xf32>
    %cst_53 = arith.constant 1.000000e+00 : f32
    %139 = vector.broadcast %cst_53 : f32 to vector<256x256xf32>
    %140 = arith.addf %139, %138 : vector<256x256xf32>
    %cst_54 = arith.constant 1.000000e+00 : f32
    %141 = vector.broadcast %cst_54 : f32 to vector<256x256xf32>
    %142 = arith.divf %141, %140 : vector<256x256xf32>
    %cst_55 = arith.constant 1.06140542 : f32
    %143 = vector.broadcast %cst_55 : f32 to vector<256x256xf32>
    %144 = arith.mulf %143, %142 : vector<256x256xf32>
    %cst_56 = arith.constant 1.45315206 : f32
    %145 = vector.broadcast %cst_56 : f32 to vector<256x256xf32>
    %146 = arith.subf %144, %145 : vector<256x256xf32>
    %147 = arith.mulf %146, %142 : vector<256x256xf32>
    %cst_57 = arith.constant 1.42141378 : f32
    %148 = vector.broadcast %cst_57 : f32 to vector<256x256xf32>
    %149 = arith.addf %147, %148 : vector<256x256xf32>
    %150 = arith.mulf %149, %142 : vector<256x256xf32>
    %cst_58 = arith.constant 0.284496725 : f32
    %151 = vector.broadcast %cst_58 : f32 to vector<256x256xf32>
    %152 = arith.subf %150, %151 : vector<256x256xf32>
    %153 = arith.mulf %152, %142 : vector<256x256xf32>
    %cst_59 = arith.constant 0.254829586 : f32
    %154 = vector.broadcast %cst_59 : f32 to vector<256x256xf32>
    %155 = arith.addf %153, %154 : vector<256x256xf32>
    %156 = arith.mulf %155, %142 : vector<256x256xf32>
    %cst_60 = arith.constant 0.000000e+00 : f32
    %157 = vector.broadcast %cst_60 : f32 to vector<256x256xf32>
    %158 = arith.subf %157, %135 : vector<256x256xf32>
    %159 = arith.mulf %158, %135 : vector<256x256xf32>
    %160 = math.exp %159 : vector<256x256xf32>
    %161 = arith.mulf %156, %160 : vector<256x256xf32>
    %cst_61 = arith.constant 1.000000e+00 : f32
    %162 = vector.broadcast %cst_61 : f32 to vector<256x256xf32>
    %163 = arith.subf %162, %161 : vector<256x256xf32>
    %cst_62 = arith.constant 0.000000e+00 : f32
    %164 = vector.broadcast %cst_62 : f32 to vector<256x256xf32>
    %165 = arith.cmpf oge, %135, %164 : vector<256x256xf32>
    %cst_63 = arith.constant 0.000000e+00 : f32
    %166 = vector.broadcast %cst_63 : f32 to vector<256x256xf32>
    %167 = arith.subf %166, %163 : vector<256x256xf32>
    %168 = arith.select %165, %163, %167 : vector<256x256xi1>, vector<256x256xf32>
    %cst_64 = arith.constant 1.000000e+00 : f32
    %169 = vector.broadcast %cst_64 : f32 to vector<256x256xf32>
    %170 = arith.addf %169, %168 : vector<256x256xf32>
    %171 = arith.mulf %133, %170 : vector<256x256xf32>
    %172 = arith.truncf %171 : vector<256x256xf32> to vector<256x256xbf16>
    %c0_65 = arith.constant 0 : index
    %c0_66 = arith.constant 0 : index
    %173 = vector.load %arg17[%c0_65, %c0_66] : memref<256x128xbf16, #tpu.memory_space<vmem>>, vector<256x128xbf16>
    %cst_67 = arith.constant dense<0.000000e+00> : vector<256x128xf32>
    %174 = tpu.matmul %172, %173, %cst_67 {dimension_numbers = #tpu.dot_dimension_numbers<[1], [0], [0], [1], [0, 0, 1, 1], [], []>} : vector<256x256xbf16>, vector<256x128xbf16>, vector<256x128xf32> -> vector<256x128xf32>
    %175 = arith.addf %99, %174 : vector<256x128xf32>
    %c0_68 = arith.constant 0 : index
    %c0_69 = arith.constant 0 : index
    %176 = vector.load %arg18[%c0_68, %c0_69] : memref<1x128xf32, #tpu.memory_space<vmem>>, vector<1x128xf32>
    %177 = vector.broadcast %176 : vector<1x128xf32> to vector<256x128xf32>
    %178 = arith.addf %175, %177 : vector<256x128xf32>
    %c0_70 = arith.constant 0 : index
    %c0_71 = arith.constant 0 : index
    %179 = vector.load %arg3[%c0_70, %c0_71] : memref<8x256xf32, #tpu.memory_space<vmem>>, vector<8x256xf32>
    %cst_72 = arith.constant dense<0.000000e+00> : vector<8x128xf32>
    %180 = tpu.matmul %179, %178, %cst_72 {dimension_numbers = #tpu.dot_dimension_numbers<[1], [0], [0], [1], [0, 0, 1, 1], [], []>} : vector<8x256xf32>, vector<256x128xf32>, vector<8x128xf32> -> vector<8x128xf32>
    %c0_73 = arith.constant 0 : index
    %c0_74 = arith.constant 0 : index
    %181 = vector.load %arg4[%c0_73, %c0_74] : memref<8x8xf32, #tpu.memory_space<vmem>>, vector<8x8xf32>
    %c0_75 = arith.constant 0 : index
    %c0_76 = arith.constant 0 : index
    %182 = vector.load %arg19[%c0_75, %c0_76] : memref<3x128xf32, #tpu.memory_space<vmem>>, vector<3x128xf32>
    %183 = vector.extract_strided_slice %182 {offsets = [0, 0], sizes = [1, 128], strides = [1, 1]} : vector<3x128xf32> to vector<1x128xf32>
    %184 = vector.extract_strided_slice %182 {offsets = [1, 0], sizes = [1, 128], strides = [1, 1]} : vector<3x128xf32> to vector<1x128xf32>
    %185 = vector.extract_strided_slice %182 {offsets = [2, 0], sizes = [1, 128], strides = [1, 1]} : vector<3x128xf32> to vector<1x128xf32>
    %cst_77 = arith.constant dense<0.000000e+00> : vector<8xf32>
    %186 = vector.multi_reduction <add>, %180, %cst_77 [1] : vector<8x128xf32> to vector<8xf32>
    %187 = vector.shape_cast %186 : vector<8xf32> to vector<8x1xf32>
    %cst_78 = arith.constant 1.562500e-02 : f32
    %188 = vector.broadcast %cst_78 : f32 to vector<8x1xf32>
    %189 = arith.mulf %187, %188 : vector<8x1xf32>
    %190 = vector.broadcast %189 : vector<8x1xf32> to vector<8x128xf32>
    %191 = arith.subf %180, %190 : vector<8x128xf32>
    %192 = vector.broadcast %185 : vector<1x128xf32> to vector<8x128xf32>
    %193 = arith.mulf %191, %192 : vector<8x128xf32>
    %194 = arith.mulf %193, %193 : vector<8x128xf32>
    %cst_79 = arith.constant dense<0.000000e+00> : vector<8xf32>
    %195 = vector.multi_reduction <add>, %194, %cst_79 [1] : vector<8x128xf32> to vector<8xf32>
    %196 = vector.shape_cast %195 : vector<8xf32> to vector<8x1xf32>
    %cst_80 = arith.constant 1.562500e-02 : f32
    %197 = vector.broadcast %cst_80 : f32 to vector<8x1xf32>
    %198 = arith.mulf %196, %197 : vector<8x1xf32>
    %cst_81 = arith.constant 9.99999974E-6 : f32
    %199 = vector.broadcast %cst_81 : f32 to vector<8x1xf32>
    %200 = arith.addf %198, %199 : vector<8x1xf32>
    %201 = math.rsqrt %200 : vector<8x1xf32>
    %202 = vector.broadcast %201 : vector<8x1xf32> to vector<8x128xf32>
    %203 = arith.mulf %193, %202 : vector<8x128xf32>
    %204 = vector.broadcast %183 : vector<1x128xf32> to vector<8x128xf32>
    %205 = arith.mulf %203, %204 : vector<8x128xf32>
    %206 = vector.broadcast %184 : vector<1x128xf32> to vector<8x128xf32>
    %207 = arith.addf %205, %206 : vector<8x128xf32>
    %208 = arith.truncf %207 : vector<8x128xf32> to vector<8x128xbf16>
    %c0_82 = arith.constant 0 : index
    %c0_83 = arith.constant 0 : index
    %209 = vector.load %arg20[%c0_82, %c0_83] : memref<128x384xbf16, #tpu.memory_space<vmem>>, vector<128x384xbf16>
    %cst_84 = arith.constant dense<0.000000e+00> : vector<8x384xf32>
    %210 = tpu.matmul %208, %209, %cst_84 {dimension_numbers = #tpu.dot_dimension_numbers<[1], [0], [0], [1], [0, 0, 1, 1], [], []>} : vector<8x128xbf16>, vector<128x384xbf16>, vector<8x384xf32> -> vector<8x384xf32>
    %c0_85 = arith.constant 0 : index
    %c0_86 = arith.constant 0 : index
    %211 = vector.load %arg21[%c0_85, %c0_86] : memref<1x384xf32, #tpu.memory_space<vmem>>, vector<1x384xf32>
    %212 = vector.broadcast %211 : vector<1x384xf32> to vector<8x384xf32>
    %213 = arith.addf %210, %212 : vector<8x384xf32>
    %c0_87 = arith.constant 0 : index
    %c0_88 = arith.constant 0 : index
    %214 = vector.load %arg22[%c0_87, %c0_88] : memref<128x128xbf16, #tpu.memory_space<vmem>>, vector<128x128xbf16>
    %215 = vector.extract_strided_slice %213 {offsets = [0, 0], sizes = [8, 16], strides = [1, 1]} : vector<8x384xf32> to vector<8x16xf32>
    %cst_89 = arith.constant 5.000000e-01 : f32
    %216 = vector.broadcast %cst_89 : f32 to vector<8x16xf32>
    %217 = arith.mulf %215, %216 : vector<8x16xf32>
    %218 = arith.truncf %217 : vector<8x16xf32> to vector<8x16xbf16>
    %219 = vector.extract_strided_slice %213 {offsets = [0, 128], sizes = [8, 16], strides = [1, 1]} : vector<8x384xf32> to vector<8x16xf32>
    %cst_90 = arith.constant 5.000000e-01 : f32
    %220 = vector.broadcast %cst_90 : f32 to vector<8x16xf32>
    %221 = arith.mulf %219, %220 : vector<8x16xf32>
    %222 = arith.truncf %221 : vector<8x16xf32> to vector<8x16xbf16>
    %223 = vector.extract_strided_slice %213 {offsets = [0, 256], sizes = [8, 16], strides = [1, 1]} : vector<8x384xf32> to vector<8x16xf32>
    %224 = arith.truncf %223 : vector<8x16xf32> to vector<8x16xbf16>
    "tpu.trace_start"() <{level = 10 : i32, message = "nd,md->nm"}> : () -> ()
    %cst_91 = arith.constant dense<0.000000e+00> : vector<8x8xf32>
    %225 = tpu.matmul %218, %222, %cst_91 {dimension_numbers = #tpu.dot_dimension_numbers<[1], [1], [0], [0], [0, 0, 1, 0], [], []>} : vector<8x16xbf16>, vector<8x16xbf16>, vector<8x8xf32> -> vector<8x8xf32>
    "tpu.trace_stop"() : () -> ()
    %226 = arith.addf %225, %181 : vector<8x8xf32>
    %cst_92 = arith.constant dense<0xFF800000> : vector<8xf32>
    %227 = vector.multi_reduction <maximumf>, %226, %cst_92 [1] : vector<8x8xf32> to vector<8xf32>
    %228 = vector.shape_cast %227 : vector<8xf32> to vector<8x1xf32>
    %229 = vector.broadcast %228 : vector<8x1xf32> to vector<8x8xf32>
    %230 = arith.subf %226, %229 : vector<8x8xf32>
    %231 = math.exp %230 : vector<8x8xf32>
    %cst_93 = arith.constant dense<0.000000e+00> : vector<8xf32>
    %232 = vector.multi_reduction <add>, %231, %cst_93 [1] : vector<8x8xf32> to vector<8xf32>
    %233 = vector.shape_cast %232 : vector<8xf32> to vector<8x1xf32>
    %234 = tpu.reciprocal %233 {approx = true} : vector<8x1xf32> -> vector<8x1xf32>
    %235 = vector.broadcast %234 : vector<8x1xf32> to vector<8x8xf32>
    %236 = arith.mulf %231, %235 : vector<8x8xf32>
    %237 = arith.truncf %236 : vector<8x8xf32> to vector<8x8xbf16>
    %cst_94 = arith.constant dense<0.000000e+00> : vector<8x16xf32>
    %238 = tpu.matmul %237, %224, %cst_94 {dimension_numbers = #tpu.dot_dimension_numbers<[1], [0], [0], [1], [0, 0, 1, 1], [], []>} : vector<8x8xbf16>, vector<8x16xbf16>, vector<8x16xf32> -> vector<8x16xf32>
    %239 = arith.truncf %238 : vector<8x16xf32> to vector<8x16xbf16>
    %240 = vector.extract_strided_slice %214 {offsets = [0, 0], sizes = [16, 128], strides = [1, 1]} : vector<128x128xbf16> to vector<16x128xbf16>
    %cst_95 = arith.constant dense<0.000000e+00> : vector<8x128xf32>
    %241 = tpu.matmul %239, %240, %cst_95 {dimension_numbers = #tpu.dot_dimension_numbers<[1], [0], [0], [1], [0, 0, 1, 1], [], []>} : vector<8x16xbf16>, vector<16x128xbf16>, vector<8x128xf32> -> vector<8x128xf32>
    %242 = vector.extract_strided_slice %213 {offsets = [0, 16], sizes = [8, 16], strides = [1, 1]} : vector<8x384xf32> to vector<8x16xf32>
    %cst_96 = arith.constant 5.000000e-01 : f32
    %243 = vector.broadcast %cst_96 : f32 to vector<8x16xf32>
    %244 = arith.mulf %242, %243 : vector<8x16xf32>
    %245 = arith.truncf %244 : vector<8x16xf32> to vector<8x16xbf16>
    %246 = vector.extract_strided_slice %213 {offsets = [0, 144], sizes = [8, 16], strides = [1, 1]} : vector<8x384xf32> to vector<8x16xf32>
    %cst_97 = arith.constant 5.000000e-01 : f32
    %247 = vector.broadcast %cst_97 : f32 to vector<8x16xf32>
    %248 = arith.mulf %246, %247 : vector<8x16xf32>
    %249 = arith.truncf %248 : vector<8x16xf32> to vector<8x16xbf16>
    %250 = vector.extract_strided_slice %213 {offsets = [0, 272], sizes = [8, 16], strides = [1, 1]} : vector<8x384xf32> to vector<8x16xf32>
    %251 = arith.truncf %250 : vector<8x16xf32> to vector<8x16xbf16>
    "tpu.trace_start"() <{level = 10 : i32, message = "nd,md->nm"}> : () -> ()
    %cst_98 = arith.constant dense<0.000000e+00> : vector<8x8xf32>
    %252 = tpu.matmul %245, %249, %cst_98 {dimension_numbers = #tpu.dot_dimension_numbers<[1], [1], [0], [0], [0, 0, 1, 0], [], []>} : vector<8x16xbf16>, vector<8x16xbf16>, vector<8x8xf32> -> vector<8x8xf32>
    "tpu.trace_stop"() : () -> ()
    %253 = arith.addf %252, %181 : vector<8x8xf32>
    %cst_99 = arith.constant dense<0xFF800000> : vector<8xf32>
    %254 = vector.multi_reduction <maximumf>, %253, %cst_99 [1] : vector<8x8xf32> to vector<8xf32>
    %255 = vector.shape_cast %254 : vector<8xf32> to vector<8x1xf32>
    %256 = vector.broadcast %255 : vector<8x1xf32> to vector<8x8xf32>
    %257 = arith.subf %253, %256 : vector<8x8xf32>
    %258 = math.exp %257 : vector<8x8xf32>
    %cst_100 = arith.constant dense<0.000000e+00> : vector<8xf32>
    %259 = vector.multi_reduction <add>, %258, %cst_100 [1] : vector<8x8xf32> to vector<8xf32>
    %260 = vector.shape_cast %259 : vector<8xf32> to vector<8x1xf32>
    %261 = tpu.reciprocal %260 {approx = true} : vector<8x1xf32> -> vector<8x1xf32>
    %262 = vector.broadcast %261 : vector<8x1xf32> to vector<8x8xf32>
    %263 = arith.mulf %258, %262 : vector<8x8xf32>
    %264 = arith.truncf %263 : vector<8x8xf32> to vector<8x8xbf16>
    %cst_101 = arith.constant dense<0.000000e+00> : vector<8x16xf32>
    %265 = tpu.matmul %264, %251, %cst_101 {dimension_numbers = #tpu.dot_dimension_numbers<[1], [0], [0], [1], [0, 0, 1, 1], [], []>} : vector<8x8xbf16>, vector<8x16xbf16>, vector<8x16xf32> -> vector<8x16xf32>
    %266 = arith.truncf %265 : vector<8x16xf32> to vector<8x16xbf16>
    %267 = vector.extract_strided_slice %214 {offsets = [16, 0], sizes = [16, 128], strides = [1, 1]} : vector<128x128xbf16> to vector<16x128xbf16>
    %cst_102 = arith.constant dense<0.000000e+00> : vector<8x128xf32>
    %268 = tpu.matmul %266, %267, %cst_102 {dimension_numbers = #tpu.dot_dimension_numbers<[1], [0], [0], [1], [0, 0, 1, 1], [], []>} : vector<8x16xbf16>, vector<16x128xbf16>, vector<8x128xf32> -> vector<8x128xf32>
    %269 = arith.addf %241, %268 : vector<8x128xf32>
    %270 = vector.extract_strided_slice %213 {offsets = [0, 32], sizes = [8, 16], strides = [1, 1]} : vector<8x384xf32> to vector<8x16xf32>
    %cst_103 = arith.constant 5.000000e-01 : f32
    %271 = vector.broadcast %cst_103 : f32 to vector<8x16xf32>
    %272 = arith.mulf %270, %271 : vector<8x16xf32>
    %273 = arith.truncf %272 : vector<8x16xf32> to vector<8x16xbf16>
    %274 = vector.extract_strided_slice %213 {offsets = [0, 160], sizes = [8, 16], strides = [1, 1]} : vector<8x384xf32> to vector<8x16xf32>
    %cst_104 = arith.constant 5.000000e-01 : f32
    %275 = vector.broadcast %cst_104 : f32 to vector<8x16xf32>
    %276 = arith.mulf %274, %275 : vector<8x16xf32>
    %277 = arith.truncf %276 : vector<8x16xf32> to vector<8x16xbf16>
    %278 = vector.extract_strided_slice %213 {offsets = [0, 288], sizes = [8, 16], strides = [1, 1]} : vector<8x384xf32> to vector<8x16xf32>
    %279 = arith.truncf %278 : vector<8x16xf32> to vector<8x16xbf16>
    "tpu.trace_start"() <{level = 10 : i32, message = "nd,md->nm"}> : () -> ()
    %cst_105 = arith.constant dense<0.000000e+00> : vector<8x8xf32>
    %280 = tpu.matmul %273, %277, %cst_105 {dimension_numbers = #tpu.dot_dimension_numbers<[1], [1], [0], [0], [0, 0, 1, 0], [], []>} : vector<8x16xbf16>, vector<8x16xbf16>, vector<8x8xf32> -> vector<8x8xf32>
    "tpu.trace_stop"() : () -> ()
    %281 = arith.addf %280, %181 : vector<8x8xf32>
    %cst_106 = arith.constant dense<0xFF800000> : vector<8xf32>
    %282 = vector.multi_reduction <maximumf>, %281, %cst_106 [1] : vector<8x8xf32> to vector<8xf32>
    %283 = vector.shape_cast %282 : vector<8xf32> to vector<8x1xf32>
    %284 = vector.broadcast %283 : vector<8x1xf32> to vector<8x8xf32>
    %285 = arith.subf %281, %284 : vector<8x8xf32>
    %286 = math.exp %285 : vector<8x8xf32>
    %cst_107 = arith.constant dense<0.000000e+00> : vector<8xf32>
    %287 = vector.multi_reduction <add>, %286, %cst_107 [1] : vector<8x8xf32> to vector<8xf32>
    %288 = vector.shape_cast %287 : vector<8xf32> to vector<8x1xf32>
    %289 = tpu.reciprocal %288 {approx = true} : vector<8x1xf32> -> vector<8x1xf32>
    %290 = vector.broadcast %289 : vector<8x1xf32> to vector<8x8xf32>
    %291 = arith.mulf %286, %290 : vector<8x8xf32>
    %292 = arith.truncf %291 : vector<8x8xf32> to vector<8x8xbf16>
    %cst_108 = arith.constant dense<0.000000e+00> : vector<8x16xf32>
    %293 = tpu.matmul %292, %279, %cst_108 {dimension_numbers = #tpu.dot_dimension_numbers<[1], [0], [0], [1], [0, 0, 1, 1], [], []>} : vector<8x8xbf16>, vector<8x16xbf16>, vector<8x16xf32> -> vector<8x16xf32>
    %294 = arith.truncf %293 : vector<8x16xf32> to vector<8x16xbf16>
    %295 = vector.extract_strided_slice %214 {offsets = [32, 0], sizes = [16, 128], strides = [1, 1]} : vector<128x128xbf16> to vector<16x128xbf16>
    %cst_109 = arith.constant dense<0.000000e+00> : vector<8x128xf32>
    %296 = tpu.matmul %294, %295, %cst_109 {dimension_numbers = #tpu.dot_dimension_numbers<[1], [0], [0], [1], [0, 0, 1, 1], [], []>} : vector<8x16xbf16>, vector<16x128xbf16>, vector<8x128xf32> -> vector<8x128xf32>
    %297 = arith.addf %269, %296 : vector<8x128xf32>
    %298 = vector.extract_strided_slice %213 {offsets = [0, 48], sizes = [8, 16], strides = [1, 1]} : vector<8x384xf32> to vector<8x16xf32>
    %cst_110 = arith.constant 5.000000e-01 : f32
    %299 = vector.broadcast %cst_110 : f32 to vector<8x16xf32>
    %300 = arith.mulf %298, %299 : vector<8x16xf32>
    %301 = arith.truncf %300 : vector<8x16xf32> to vector<8x16xbf16>
    %302 = vector.extract_strided_slice %213 {offsets = [0, 176], sizes = [8, 16], strides = [1, 1]} : vector<8x384xf32> to vector<8x16xf32>
    %cst_111 = arith.constant 5.000000e-01 : f32
    %303 = vector.broadcast %cst_111 : f32 to vector<8x16xf32>
    %304 = arith.mulf %302, %303 : vector<8x16xf32>
    %305 = arith.truncf %304 : vector<8x16xf32> to vector<8x16xbf16>
    %306 = vector.extract_strided_slice %213 {offsets = [0, 304], sizes = [8, 16], strides = [1, 1]} : vector<8x384xf32> to vector<8x16xf32>
    %307 = arith.truncf %306 : vector<8x16xf32> to vector<8x16xbf16>
    "tpu.trace_start"() <{level = 10 : i32, message = "nd,md->nm"}> : () -> ()
    %cst_112 = arith.constant dense<0.000000e+00> : vector<8x8xf32>
    %308 = tpu.matmul %301, %305, %cst_112 {dimension_numbers = #tpu.dot_dimension_numbers<[1], [1], [0], [0], [0, 0, 1, 0], [], []>} : vector<8x16xbf16>, vector<8x16xbf16>, vector<8x8xf32> -> vector<8x8xf32>
    "tpu.trace_stop"() : () -> ()
    %309 = arith.addf %308, %181 : vector<8x8xf32>
    %cst_113 = arith.constant dense<0xFF800000> : vector<8xf32>
    %310 = vector.multi_reduction <maximumf>, %309, %cst_113 [1] : vector<8x8xf32> to vector<8xf32>
    %311 = vector.shape_cast %310 : vector<8xf32> to vector<8x1xf32>
    %312 = vector.broadcast %311 : vector<8x1xf32> to vector<8x8xf32>
    %313 = arith.subf %309, %312 : vector<8x8xf32>
    %314 = math.exp %313 : vector<8x8xf32>
    %cst_114 = arith.constant dense<0.000000e+00> : vector<8xf32>
    %315 = vector.multi_reduction <add>, %314, %cst_114 [1] : vector<8x8xf32> to vector<8xf32>
    %316 = vector.shape_cast %315 : vector<8xf32> to vector<8x1xf32>
    %317 = tpu.reciprocal %316 {approx = true} : vector<8x1xf32> -> vector<8x1xf32>
    %318 = vector.broadcast %317 : vector<8x1xf32> to vector<8x8xf32>
    %319 = arith.mulf %314, %318 : vector<8x8xf32>
    %320 = arith.truncf %319 : vector<8x8xf32> to vector<8x8xbf16>
    %cst_115 = arith.constant dense<0.000000e+00> : vector<8x16xf32>
    %321 = tpu.matmul %320, %307, %cst_115 {dimension_numbers = #tpu.dot_dimension_numbers<[1], [0], [0], [1], [0, 0, 1, 1], [], []>} : vector<8x8xbf16>, vector<8x16xbf16>, vector<8x16xf32> -> vector<8x16xf32>
    %322 = arith.truncf %321 : vector<8x16xf32> to vector<8x16xbf16>
    %323 = vector.extract_strided_slice %214 {offsets = [48, 0], sizes = [16, 128], strides = [1, 1]} : vector<128x128xbf16> to vector<16x128xbf16>
    %cst_116 = arith.constant dense<0.000000e+00> : vector<8x128xf32>
    %324 = tpu.matmul %322, %323, %cst_116 {dimension_numbers = #tpu.dot_dimension_numbers<[1], [0], [0], [1], [0, 0, 1, 1], [], []>} : vector<8x16xbf16>, vector<16x128xbf16>, vector<8x128xf32> -> vector<8x128xf32>
    %325 = arith.addf %297, %324 : vector<8x128xf32>
    %326 = arith.addf %180, %325 : vector<8x128xf32>
    %c0_117 = arith.constant 0 : index
    %c0_118 = arith.constant 0 : index
    %327 = vector.load %arg23[%c0_117, %c0_118] : memref<1x128xf32, #tpu.memory_space<vmem>>, vector<1x128xf32>
    %328 = vector.broadcast %327 : vector<1x128xf32> to vector<8x128xf32>
    %329 = arith.addf %326, %328 : vector<8x128xf32>
    %c0_119 = arith.constant 0 : index
    %c0_120 = arith.constant 0 : index
    %330 = vector.load %arg24[%c0_119, %c0_120] : memref<3x128xf32, #tpu.memory_space<vmem>>, vector<3x128xf32>
    %331 = vector.extract_strided_slice %330 {offsets = [0, 0], sizes = [1, 128], strides = [1, 1]} : vector<3x128xf32> to vector<1x128xf32>
    %332 = vector.extract_strided_slice %330 {offsets = [1, 0], sizes = [1, 128], strides = [1, 1]} : vector<3x128xf32> to vector<1x128xf32>
    %333 = vector.extract_strided_slice %330 {offsets = [2, 0], sizes = [1, 128], strides = [1, 1]} : vector<3x128xf32> to vector<1x128xf32>
    %cst_121 = arith.constant dense<0.000000e+00> : vector<8xf32>
    %334 = vector.multi_reduction <add>, %329, %cst_121 [1] : vector<8x128xf32> to vector<8xf32>
    %335 = vector.shape_cast %334 : vector<8xf32> to vector<8x1xf32>
    %cst_122 = arith.constant 1.562500e-02 : f32
    %336 = vector.broadcast %cst_122 : f32 to vector<8x1xf32>
    %337 = arith.mulf %335, %336 : vector<8x1xf32>
    %338 = vector.broadcast %337 : vector<8x1xf32> to vector<8x128xf32>
    %339 = arith.subf %329, %338 : vector<8x128xf32>
    %340 = vector.broadcast %333 : vector<1x128xf32> to vector<8x128xf32>
    %341 = arith.mulf %339, %340 : vector<8x128xf32>
    %342 = arith.mulf %341, %341 : vector<8x128xf32>
    %cst_123 = arith.constant dense<0.000000e+00> : vector<8xf32>
    %343 = vector.multi_reduction <add>, %342, %cst_123 [1] : vector<8x128xf32> to vector<8xf32>
    %344 = vector.shape_cast %343 : vector<8xf32> to vector<8x1xf32>
    %cst_124 = arith.constant 1.562500e-02 : f32
    %345 = vector.broadcast %cst_124 : f32 to vector<8x1xf32>
    %346 = arith.mulf %344, %345 : vector<8x1xf32>
    %cst_125 = arith.constant 9.99999974E-6 : f32
    %347 = vector.broadcast %cst_125 : f32 to vector<8x1xf32>
    %348 = arith.addf %346, %347 : vector<8x1xf32>
    %349 = math.rsqrt %348 : vector<8x1xf32>
    %350 = vector.broadcast %349 : vector<8x1xf32> to vector<8x128xf32>
    %351 = arith.mulf %341, %350 : vector<8x128xf32>
    %352 = vector.broadcast %331 : vector<1x128xf32> to vector<8x128xf32>
    %353 = arith.mulf %351, %352 : vector<8x128xf32>
    %354 = vector.broadcast %332 : vector<1x128xf32> to vector<8x128xf32>
    %355 = arith.addf %353, %354 : vector<8x128xf32>
    %356 = arith.truncf %355 : vector<8x128xf32> to vector<8x128xbf16>
    %c0_126 = arith.constant 0 : index
    %c0_127 = arith.constant 0 : index
    %357 = vector.load %arg25[%c0_126, %c0_127] : memref<128x256xbf16, #tpu.memory_space<vmem>>, vector<128x256xbf16>
    %cst_128 = arith.constant dense<0.000000e+00> : vector<8x256xf32>
    %358 = tpu.matmul %356, %357, %cst_128 {dimension_numbers = #tpu.dot_dimension_numbers<[1], [0], [0], [1], [0, 0, 1, 1], [], []>} : vector<8x128xbf16>, vector<128x256xbf16>, vector<8x256xf32> -> vector<8x256xf32>
    %c0_129 = arith.constant 0 : index
    %c0_130 = arith.constant 0 : index
    %359 = vector.load %arg26[%c0_129, %c0_130] : memref<1x256xf32, #tpu.memory_space<vmem>>, vector<1x256xf32>
    %360 = vector.broadcast %359 : vector<1x256xf32> to vector<8x256xf32>
    %361 = arith.addf %358, %360 : vector<8x256xf32>
    %cst_131 = arith.constant 5.000000e-01 : f32
    %362 = vector.broadcast %cst_131 : f32 to vector<8x256xf32>
    %363 = arith.mulf %362, %361 : vector<8x256xf32>
    %cst_132 = arith.constant 0.707106769 : f32
    %364 = vector.broadcast %cst_132 : f32 to vector<8x256xf32>
    %365 = arith.mulf %361, %364 : vector<8x256xf32>
    %366 = math.absf %365 : vector<8x256xf32>
    %cst_133 = arith.constant 0.327591091 : f32
    %367 = vector.broadcast %cst_133 : f32 to vector<8x256xf32>
    %368 = arith.mulf %367, %366 : vector<8x256xf32>
    %cst_134 = arith.constant 1.000000e+00 : f32
    %369 = vector.broadcast %cst_134 : f32 to vector<8x256xf32>
    %370 = arith.addf %369, %368 : vector<8x256xf32>
    %cst_135 = arith.constant 1.000000e+00 : f32
    %371 = vector.broadcast %cst_135 : f32 to vector<8x256xf32>
    %372 = arith.divf %371, %370 : vector<8x256xf32>
    %cst_136 = arith.constant 1.06140542 : f32
    %373 = vector.broadcast %cst_136 : f32 to vector<8x256xf32>
    %374 = arith.mulf %373, %372 : vector<8x256xf32>
    %cst_137 = arith.constant 1.45315206 : f32
    %375 = vector.broadcast %cst_137 : f32 to vector<8x256xf32>
    %376 = arith.subf %374, %375 : vector<8x256xf32>
    %377 = arith.mulf %376, %372 : vector<8x256xf32>
    %cst_138 = arith.constant 1.42141378 : f32
    %378 = vector.broadcast %cst_138 : f32 to vector<8x256xf32>
    %379 = arith.addf %377, %378 : vector<8x256xf32>
    %380 = arith.mulf %379, %372 : vector<8x256xf32>
    %cst_139 = arith.constant 0.284496725 : f32
    %381 = vector.broadcast %cst_139 : f32 to vector<8x256xf32>
    %382 = arith.subf %380, %381 : vector<8x256xf32>
    %383 = arith.mulf %382, %372 : vector<8x256xf32>
    %cst_140 = arith.constant 0.254829586 : f32
    %384 = vector.broadcast %cst_140 : f32 to vector<8x256xf32>
    %385 = arith.addf %383, %384 : vector<8x256xf32>
    %386 = arith.mulf %385, %372 : vector<8x256xf32>
    %cst_141 = arith.constant 0.000000e+00 : f32
    %387 = vector.broadcast %cst_141 : f32 to vector<8x256xf32>
    %388 = arith.subf %387, %365 : vector<8x256xf32>
    %389 = arith.mulf %388, %365 : vector<8x256xf32>
    %390 = math.exp %389 : vector<8x256xf32>
    %391 = arith.mulf %386, %390 : vector<8x256xf32>
    %cst_142 = arith.constant 1.000000e+00 : f32
    %392 = vector.broadcast %cst_142 : f32 to vector<8x256xf32>
    %393 = arith.subf %392, %391 : vector<8x256xf32>
    %cst_143 = arith.constant 0.000000e+00 : f32
    %394 = vector.broadcast %cst_143 : f32 to vector<8x256xf32>
    %395 = arith.cmpf oge, %365, %394 : vector<8x256xf32>
    %cst_144 = arith.constant 0.000000e+00 : f32
    %396 = vector.broadcast %cst_144 : f32 to vector<8x256xf32>
    %397 = arith.subf %396, %393 : vector<8x256xf32>
    %398 = arith.select %395, %393, %397 : vector<8x256xi1>, vector<8x256xf32>
    %cst_145 = arith.constant 1.000000e+00 : f32
    %399 = vector.broadcast %cst_145 : f32 to vector<8x256xf32>
    %400 = arith.addf %399, %398 : vector<8x256xf32>
    %401 = arith.mulf %363, %400 : vector<8x256xf32>
    %402 = arith.truncf %401 : vector<8x256xf32> to vector<8x256xbf16>
    %c0_146 = arith.constant 0 : index
    %c0_147 = arith.constant 0 : index
    %403 = vector.load %arg27[%c0_146, %c0_147] : memref<256x128xbf16, #tpu.memory_space<vmem>>, vector<256x128xbf16>
    %cst_148 = arith.constant dense<0.000000e+00> : vector<8x128xf32>
    %404 = tpu.matmul %402, %403, %cst_148 {dimension_numbers = #tpu.dot_dimension_numbers<[1], [0], [0], [1], [0, 0, 1, 1], [], []>} : vector<8x256xbf16>, vector<256x128xbf16>, vector<8x128xf32> -> vector<8x128xf32>
    %405 = arith.addf %329, %404 : vector<8x128xf32>
    %c0_149 = arith.constant 0 : index
    %c0_150 = arith.constant 0 : index
    %406 = vector.load %arg28[%c0_149, %c0_150] : memref<1x128xf32, #tpu.memory_space<vmem>>, vector<1x128xf32>
    %407 = vector.broadcast %406 : vector<1x128xf32> to vector<8x128xf32>
    %408 = arith.addf %405, %407 : vector<8x128xf32>
    %c0_151 = arith.constant 0 : index
    %c0_152 = arith.constant 0 : index
    %409 = vector.load %arg5[%c0_151, %c0_152] : memref<2x8xf32, #tpu.memory_space<vmem>>, vector<2x8xf32>
    %cst_153 = arith.constant dense<0.000000e+00> : vector<2x128xf32>
    %410 = tpu.matmul %409, %408, %cst_153 {dimension_numbers = #tpu.dot_dimension_numbers<[1], [0], [0], [1], [0, 0, 1, 1], [], []>} : vector<2x8xf32>, vector<8x128xf32>, vector<2x128xf32> -> vector<2x128xf32>
    %c0_154 = arith.constant 0 : index
    %c0_155 = arith.constant 0 : index
    %411 = vector.load %arg29[%c0_154, %c0_155] : memref<3x128xf32, #tpu.memory_space<vmem>>, vector<3x128xf32>
    %412 = vector.extract_strided_slice %411 {offsets = [0, 0], sizes = [1, 128], strides = [1, 1]} : vector<3x128xf32> to vector<1x128xf32>
    %413 = vector.extract_strided_slice %411 {offsets = [1, 0], sizes = [1, 128], strides = [1, 1]} : vector<3x128xf32> to vector<1x128xf32>
    %414 = vector.extract_strided_slice %411 {offsets = [2, 0], sizes = [1, 128], strides = [1, 1]} : vector<3x128xf32> to vector<1x128xf32>
    %cst_156 = arith.constant dense<0.000000e+00> : vector<2xf32>
    %415 = vector.multi_reduction <add>, %410, %cst_156 [1] : vector<2x128xf32> to vector<2xf32>
    %416 = vector.shape_cast %415 : vector<2xf32> to vector<2x1xf32>
    %cst_157 = arith.constant 1.562500e-02 : f32
    %417 = vector.broadcast %cst_157 : f32 to vector<2x1xf32>
    %418 = arith.mulf %416, %417 : vector<2x1xf32>
    %419 = vector.broadcast %418 : vector<2x1xf32> to vector<2x128xf32>
    %420 = arith.subf %410, %419 : vector<2x128xf32>
    %421 = vector.broadcast %414 : vector<1x128xf32> to vector<2x128xf32>
    %422 = arith.mulf %420, %421 : vector<2x128xf32>
    %423 = arith.mulf %422, %422 : vector<2x128xf32>
    %cst_158 = arith.constant dense<0.000000e+00> : vector<2xf32>
    %424 = vector.multi_reduction <add>, %423, %cst_158 [1] : vector<2x128xf32> to vector<2xf32>
    %425 = vector.shape_cast %424 : vector<2xf32> to vector<2x1xf32>
    %cst_159 = arith.constant 1.562500e-02 : f32
    %426 = vector.broadcast %cst_159 : f32 to vector<2x1xf32>
    %427 = arith.mulf %425, %426 : vector<2x1xf32>
    %cst_160 = arith.constant 9.99999974E-6 : f32
    %428 = vector.broadcast %cst_160 : f32 to vector<2x1xf32>
    %429 = arith.addf %427, %428 : vector<2x1xf32>
    %430 = math.rsqrt %429 : vector<2x1xf32>
    %431 = vector.broadcast %430 : vector<2x1xf32> to vector<2x128xf32>
    %432 = arith.mulf %422, %431 : vector<2x128xf32>
    %433 = vector.broadcast %412 : vector<1x128xf32> to vector<2x128xf32>
    %434 = arith.mulf %432, %433 : vector<2x128xf32>
    %435 = vector.broadcast %413 : vector<1x128xf32> to vector<2x128xf32>
    %436 = arith.addf %434, %435 : vector<2x128xf32>
    %437 = arith.truncf %436 : vector<2x128xf32> to vector<2x128xbf16>
    %c0_161 = arith.constant 0 : index
    %c0_162 = arith.constant 0 : index
    %438 = vector.load %arg30[%c0_161, %c0_162] : memref<128x128xbf16, #tpu.memory_space<vmem>>, vector<128x128xbf16>
    %cst_163 = arith.constant dense<0.000000e+00> : vector<2x128xf32>
    %439 = tpu.matmul %437, %438, %cst_163 {dimension_numbers = #tpu.dot_dimension_numbers<[1], [0], [0], [1], [0, 0, 1, 1], [], []>} : vector<2x128xbf16>, vector<128x128xbf16>, vector<2x128xf32> -> vector<2x128xf32>
    %c0_164 = arith.constant 0 : index
    %c0_165 = arith.constant 0 : index
    %440 = vector.load %arg31[%c0_164, %c0_165] : memref<1x128xf32, #tpu.memory_space<vmem>>, vector<1x128xf32>
    %441 = vector.broadcast %440 : vector<1x128xf32> to vector<2x128xf32>
    %442 = arith.addf %439, %441 : vector<2x128xf32>
    %c0_166 = arith.constant 0 : index
    %c0_167 = arith.constant 0 : index
    %c0_168 = arith.constant 0 : index
    %443 = vector.load %arg32[%c0_166, %c0_167, %c0_168] : memref<1x2x128xf32, #tpu.memory_space<vmem>>, vector<1x2x128xf32>
    %444 = vector.shape_cast %443 : vector<1x2x128xf32> to vector<2x128xf32>
    %445 = vector.shape_cast %442 : vector<2x128xf32> to vector<1x2x128xf32>
    tpu.vector_store %arg32[%c0_166, %c0_167, %c0_168], %445 {strides = array<i32>} : memref<1x2x128xf32, #tpu.memory_space<vmem>>, vector<1x2x128xf32>,
    return
  }
  func.func @transform_0(%arg0: i32) -> (i32, i32, i32) {
    %c0_i32 = arith.constant 0 : i32
    %c0_i32_0 = arith.constant 0 : i32
    %c0_i32_1 = arith.constant 0 : i32
    return %arg0, %c0_i32, %c0_i32_0 : i32, i32, i32
  }
  func.func @transform_1(%arg0: i32) -> (i32, i32) {
    %c0_i32 = arith.constant 0 : i32
    %c0_i32_0 = arith.constant 0 : i32
    %c0_i32_1 = arith.constant 0 : i32
    return %c0_i32, %c0_i32_0 : i32, i32
  }
  func.func @transform_2(%arg0: i32) -> (i32, i32) {
    %c0_i32 = arith.constant 0 : i32
    %c0_i32_0 = arith.constant 0 : i32
    %c0_i32_1 = arith.constant 0 : i32
    return %c0_i32, %c0_i32_0 : i32, i32
  }
  func.func @transform_3(%arg0: i32) -> (i32, i32) {
    %c0_i32 = arith.constant 0 : i32
    %c0_i32_0 = arith.constant 0 : i32
    %c0_i32_1 = arith.constant 0 : i32
    return %c0_i32, %c0_i32_0 : i32, i32
  }
  func.func @transform_4(%arg0: i32) -> (i32, i32) {
    %c0_i32 = arith.constant 0 : i32
    %c0_i32_0 = arith.constant 0 : i32
    %c0_i32_1 = arith.constant 0 : i32
    return %c0_i32, %c0_i32_0 : i32, i32
  }
  func.func @transform_5(%arg0: i32) -> (i32, i32) {
    %c0_i32 = arith.constant 0 : i32
    %c0_i32_0 = arith.constant 0 : i32
    %c0_i32_1 = arith.constant 0 : i32
    return %c0_i32, %c0_i32_0 : i32, i32
  }
  func.func @transform_6(%arg0: i32) -> (i32, i32) {
    %c0_i32 = arith.constant 0 : i32
    %c0_i32_0 = arith.constant 0 : i32
    %c0_i32_1 = arith.constant 0 : i32
    return %c0_i32, %c0_i32_0 : i32, i32
  }
  func.func @transform_7(%arg0: i32) -> (i32, i32) {
    %c0_i32 = arith.constant 0 : i32
    %c0_i32_0 = arith.constant 0 : i32
    %c0_i32_1 = arith.constant 0 : i32
    return %c0_i32, %c0_i32_0 : i32, i32
  }
  func.func @transform_8(%arg0: i32) -> (i32, i32) {
    %c0_i32 = arith.constant 0 : i32
    %c0_i32_0 = arith.constant 0 : i32
    %c0_i32_1 = arith.constant 0 : i32
    return %c0_i32, %c0_i32_0 : i32, i32
  }
  func.func @transform_9(%arg0: i32) -> (i32, i32) {
    %c0_i32 = arith.constant 0 : i32
    %c0_i32_0 = arith.constant 0 : i32
    %c0_i32_1 = arith.constant 0 : i32
    return %c0_i32, %c0_i32_0 : i32, i32
  }
  func.func @transform_10(%arg0: i32) -> (i32, i32) {
    %c0_i32 = arith.constant 0 : i32
    %c0_i32_0 = arith.constant 0 : i32
    %c0_i32_1 = arith.constant 0 : i32
    return %c0_i32, %c0_i32_0 : i32, i32
  }
  func.func @transform_11(%arg0: i32) -> (i32, i32) {
    %c0_i32 = arith.constant 0 : i32
    %c0_i32_0 = arith.constant 0 : i32
    %c0_i32_1 = arith.constant 0 : i32
    return %c0_i32, %c0_i32_0 : i32, i32
  }
  func.func @transform_12(%arg0: i32) -> (i32, i32) {
    %c0_i32 = arith.constant 0 : i32
    %c0_i32_0 = arith.constant 0 : i32
    %c0_i32_1 = arith.constant 0 : i32
    return %c0_i32, %c0_i32_0 : i32, i32
  }
  func.func @transform_13(%arg0: i32) -> (i32, i32) {
    %c0_i32 = arith.constant 0 : i32
    %c0_i32_0 = arith.constant 0 : i32
    %c0_i32_1 = arith.constant 0 : i32
    return %c0_i32, %c0_i32_0 : i32, i32
  }
  func.func @transform_14(%arg0: i32) -> (i32, i32) {
    %c0_i32 = arith.constant 0 : i32
    %c0_i32_0 = arith.constant 0 : i32
    %c0_i32_1 = arith.constant 0 : i32
    return %c0_i32, %c0_i32_0 : i32, i32
  }
  func.func @transform_15(%arg0: i32) -> (i32, i32) {
    %c0_i32 = arith.constant 0 : i32
    %c0_i32_0 = arith.constant 0 : i32
    %c0_i32_1 = arith.constant 0 : i32
    return %c0_i32, %c0_i32_0 : i32, i32
  }
  func.func @transform_16(%arg0: i32) -> (i32, i32) {
    %c0_i32 = arith.constant 0 : i32
    %c0_i32_0 = arith.constant 0 : i32
    %c0_i32_1 = arith.constant 0 : i32
    return %c0_i32, %c0_i32_0 : i32, i32
  }
  func.func @transform_17(%arg0: i32) -> (i32, i32) {
    %c0_i32 = arith.constant 0 : i32
    %c0_i32_0 = arith.constant 0 : i32
    %c0_i32_1 = arith.constant 0 : i32
    return %c0_i32, %c0_i32_0 : i32, i32
  }
  func.func @transform_18(%arg0: i32) -> (i32, i32) {
    %c0_i32 = arith.constant 0 : i32
    %c0_i32_0 = arith.constant 0 : i32
    %c0_i32_1 = arith.constant 0 : i32
    return %c0_i32, %c0_i32_0 : i32, i32
  }
  func.func @transform_19(%arg0: i32) -> (i32, i32) {
    %c0_i32 = arith.constant 0 : i32
    %c0_i32_0 = arith.constant 0 : i32
    %c0_i32_1 = arith.constant 0 : i32
    return %c0_i32, %c0_i32_0 : i32, i32
  }
  func.func @transform_20(%arg0: i32) -> (i32, i32) {
    %c0_i32 = arith.constant 0 : i32
    %c0_i32_0 = arith.constant 0 : i32
    %c0_i32_1 = arith.constant 0 : i32
    return %c0_i32, %c0_i32_0 : i32, i32
  }
  func.func @transform_21(%arg0: i32) -> (i32, i32) {
    %c0_i32 = arith.constant 0 : i32
    %c0_i32_0 = arith.constant 0 : i32
    %c0_i32_1 = arith.constant 0 : i32
    return %c0_i32, %c0_i32_0 : i32, i32
  }
  func.func @transform_22(%arg0: i32) -> (i32, i32) {
    %c0_i32 = arith.constant 0 : i32
    %c0_i32_0 = arith.constant 0 : i32
    %c0_i32_1 = arith.constant 0 : i32
    return %c0_i32, %c0_i32_0 : i32, i32
  }
  func.func @transform_23(%arg0: i32) -> (i32, i32) {
    %c0_i32 = arith.constant 0 : i32
    %c0_i32_0 = arith.constant 0 : i32
    %c0_i32_1 = arith.constant 0 : i32
    return %c0_i32, %c0_i32_0 : i32, i32
  }
  func.func @transform_24(%arg0: i32) -> (i32, i32) {
    %c0_i32 = arith.constant 0 : i32
    %c0_i32_0 = arith.constant 0 : i32
    %c0_i32_1 = arith.constant 0 : i32
    return %c0_i32, %c0_i32_0 : i32, i32
  }
  func.func @transform_25(%arg0: i32) -> (i32, i32) {
    %c0_i32 = arith.constant 0 : i32
    %c0_i32_0 = arith.constant 0 : i32
    %c0_i32_1 = arith.constant 0 : i32
    return %c0_i32, %c0_i32_0 : i32, i32
  }
  func.func @transform_26(%arg0: i32) -> (i32, i32) {
    %c0_i32 = arith.constant 0 : i32
    %c0_i32_0 = arith.constant 0 : i32
    %c0_i32_1 = arith.constant 0 : i32
    return %c0_i32, %c0_i32_0 : i32, i32
  }
  func.func @transform_27(%arg0: i32) -> (i32, i32) {
    %c0_i32 = arith.constant 0 : i32
    %c0_i32_0 = arith.constant 0 : i32
    %c0_i32_1 = arith.constant 0 : i32
    return %c0_i32, %c0_i32_0 : i32, i32
  }
  func.func @transform_28(%arg0: i32) -> (i32, i32) {
    %c0_i32 = arith.constant 0 : i32
    %c0_i32_0 = arith.constant 0 : i32
    %c0_i32_1 = arith.constant 0 : i32
    return %c0_i32, %c0_i32_0 : i32, i32
  }
  func.func @transform_29(%arg0: i32) -> (i32, i32) {
    %c0_i32 = arith.constant 0 : i32
    %c0_i32_0 = arith.constant 0 : i32
    %c0_i32_1 = arith.constant 0 : i32
    return %c0_i32, %c0_i32_0 : i32, i32
  }
  func.func @transform_30(%arg0: i32) -> (i32, i32) {
    %c0_i32 = arith.constant 0 : i32
    %c0_i32_0 = arith.constant 0 : i32
    %c0_i32_1 = arith.constant 0 : i32
    return %c0_i32, %c0_i32_0 : i32, i32
  }
  func.func @transform_31(%arg0: i32) -> (i32, i32, i32) {
    %c0_i32 = arith.constant 0 : i32
    %c0_i32_0 = arith.constant 0 : i32
    %c0_i32_1 = arith.constant 0 : i32
    return %arg0, %c0_i32, %c0_i32_0 : i32, i32, i32
  }
}

</mosaic_0001>

<llo_original>
// kernel: tpu_custom_call.1
$region0: #{tpu_custom_call.1}
  #allocation0 [shape = 'u32[]', space=smem, size = 0x4, offset = 0x4, fixed_abs, tag = 'smem constant byte address 0x4 - core index']
  #allocation1 [shape = 'u32[144,128]{1,0:T(1,128)}', space=vmem, size = 0x12000, scoped, tag = 'internal scratch']
  %s0 = inlined_call_operand.smem [shape: u32[32], index: -1, kind: input, shape index: {}]
  %s1 = sld [smem:[%s0]]
  %s2 = scalar_lea.smem %s0, 1
  %s3 = sld [smem:[%s2]]
  %s4 = scalar_lea.smem %s0, 2
  %s5 = sld [smem:[%s4]]
  %s6 = scalar_lea.smem %s0, 3
  %s7 = sld [smem:[%s6]]
  %s8 = scalar_lea.smem %s0, 4
  %s9 = sld [smem:[%s8]]
  %s10 = scalar_lea.smem %s0, 5
  %s11 = sld [smem:[%s10]]
  %s12 = scalar_lea.smem %s0, 6
  %s13 = sld [smem:[%s12]]
  %s14 = scalar_lea.smem %s0, 7
  %s15 = sld [smem:[%s14]]
  %s16 = scalar_lea.smem %s0, 8
  %s17 = sld [smem:[%s16]]
  %s18 = scalar_lea.smem %s0, 9
  %s19 = sld [smem:[%s18]]
  %s20 = scalar_lea.smem %s0, 10
  %s21 = sld [smem:[%s20]]
  %s22 = scalar_lea.smem %s0, 11
  %s23 = sld [smem:[%s22]]
  %s24 = scalar_lea.smem %s0, 12
  %s25 = sld [smem:[%s24]]
  %s26 = scalar_lea.smem %s0, 13
  %s27 = sld [smem:[%s26]]
  %s28 = scalar_lea.smem %s0, 14
  %s29 = sld [smem:[%s28]]
  %s30 = scalar_lea.smem %s0, 15
  %s31 = sld [smem:[%s30]]
  %s32 = scalar_lea.smem %s0, 16
  %s33 = sld [smem:[%s32]]
  %s34 = scalar_lea.smem %s0, 17
  %s35 = sld [smem:[%s34]]
  %s36 = scalar_lea.smem %s0, 18
  %s37 = sld [smem:[%s36]]
  %s38 = scalar_lea.smem %s0, 19
  %s39 = sld [smem:[%s38]]
  %s40 = scalar_lea.smem %s0, 20
  %s41 = sld [smem:[%s40]]
  %s42 = scalar_lea.smem %s0, 21
  %s43 = sld [smem:[%s42]]
  %s44 = scalar_lea.smem %s0, 22
  %s45 = sld [smem:[%s44]]
  %s46 = scalar_lea.smem %s0, 23
  %s47 = sld [smem:[%s46]]
  %s48 = scalar_lea.smem %s0, 24
  %s49 = sld [smem:[%s48]]
  %s50 = scalar_lea.smem %s0, 25
  %s51 = sld [smem:[%s50]]
  %s52 = scalar_lea.smem %s0, 26
  %s53 = sld [smem:[%s52]]
  %s54 = scalar_lea.smem %s0, 27
  %s55 = sld [smem:[%s54]]
  %s56 = scalar_lea.smem %s0, 28
  %s57 = sld [smem:[%s56]]
  %s58 = scalar_lea.smem %s0, 29
  %s59 = sld [smem:[%s58]]
  %s60 = scalar_lea.smem %s0, 30
  %s61 = sld [smem:[%s60]]
  %s62 = scalar_lea.smem %s0, 31
  %s63 = sld [smem:[%s62]]
  %s64 = sld [smem:[#allocation0]]
  $region233: #{tpu_custom_call.1} parent=0
    _
  %s66 = ssub.s32 1, %s64
  %s67 = scalar_select 0, %s66, %s64
  $region1: #{tpu_custom_call.1} parent=0
    #allocation2 [shape = 'u8[131072]{0}', space=vmem, size = 0x20000, scoped, tag = 'input window, operand 0']
    #allocation3 [shape = 's32[2]{0}', space=sflag, size = 0x8, scoped, tag = 'scoped memory for tpu_custom_call.1']
    #allocation4 [shape = 's32[2]{0}', space=sflag, size = 0x8, scoped, tag = 'scoped memory for tpu_custom_call.1']
    #allocation5 [shape = 'u8[262144]{0}', space=vmem, size = 0x40000, scoped, tag = 'input window, operand 1, single buffered']
    #allocation6 [shape = 's32[1]{0}', space=sflag, size = 0x4, scoped, tag = 'scoped memory for tpu_custom_call.1']
    #allocation7 [shape = 'u8[8192]{0}', space=vmem, size = 0x2000, scoped, tag = 'input window, operand 2, single buffered']
    #allocation8 [shape = 'u8[4096]{0}', space=vmem, size = 0x1000, scoped, tag = 'input window, operand 3, single buffered']
    #allocation9 [shape = 's32[1]{0}', space=sflag, size = 0x4, scoped, tag = 'scoped memory for tpu_custom_call.1']
    #allocation10 [shape = 'u8[1024]{0}', space=vmem, size = 0x400, scoped, tag = 'input window, operand 4, single buffered']
    #allocation11 [shape = 'u8[32768]{0}', space=vmem, size = 0x8000, scoped, tag = 'input window, operand 6, single buffered']
    #allocation12 [shape = 's32[1]{0}', space=sflag, size = 0x4, scoped, tag = 'scoped memory for tpu_custom_call.1']
    #allocation13 [shape = 'u8[512]{0}', space=vmem, size = 0x400, scoped, tag = 'input window, operand 7, single buffered']
    #allocation14 [shape = 'u8[98304]{0}', space=vmem, size = 0x18000, scoped, tag = 'input window, operand 9, single buffered']
    #allocation15 [shape = 's32[1]{0}', space=sflag, size = 0x4, scoped, tag = 'scoped memory for tpu_custom_call.1']
    #allocation16 [shape = 'u8[1536]{0}', space=vmem, size = 0x800, scoped, tag = 'input window, operand 10, single buffered']
    #allocation17 [shape = 'u8[32768]{0}', space=vmem, size = 0x8000, scoped, tag = 'input window, operand 11, single buffered']
    #allocation18 [shape = 's32[1]{0}', space=sflag, size = 0x4, scoped, tag = 'scoped memory for tpu_custom_call.1']
    #allocation19 [shape = 'u8[512]{0}', space=vmem, size = 0x400, scoped, tag = 'input window, operand 12, single buffered']
    #allocation20 [shape = 'u8[65536]{0}', space=vmem, size = 0x10000, scoped, tag = 'input window, operand 14, single buffered']
    #allocation21 [shape = 's32[1]{0}', space=sflag, size = 0x4, scoped, tag = 'scoped memory for tpu_custom_call.1']
    #allocation22 [shape = 'u8[1024]{0}', space=vmem, size = 0x400, scoped, tag = 'input window, operand 15, single buffered']
    #allocation23 [shape = 'u8[65536]{0}', space=vmem, size = 0x10000, scoped, tag = 'input window, operand 16, single buffered']
    #allocation24 [shape = 's32[1]{0}', space=sflag, size = 0x4, scoped, tag = 'scoped memory for tpu_custom_call.1']
    #allocation25 [shape = 'u8[98304]{0}', space=vmem, size = 0x18000, scoped, tag = 'input window, operand 19, single buffered']
    #allocation26 [shape = 'u8[32768]{0}', space=vmem, size = 0x8000, scoped, tag = 'input window, operand 21, single buffered']
    #allocation27 [shape = 's32[1]{0}', space=sflag, size = 0x4, scoped, tag = 'scoped memory for tpu_custom_call.1']
    #allocation28 [shape = 'u8[65536]{0}', space=vmem, size = 0x10000, scoped, tag = 'input window, operand 24, single buffered']
    #allocation29 [shape = 'u8[65536]{0}', space=vmem, size = 0x10000, scoped, tag = 'input window, operand 26, single buffered']
    #allocation30 [shape = 's32[1]{0}', space=sflag, size = 0x4, scoped, tag = 'scoped memory for tpu_custom_call.1']
    #allocation31 [shape = 'u8[32768]{0}', space=vmem, size = 0x8000, scoped, tag = 'input window, operand 29, single buffered']
    #allocation32 [shape = 'u8[2048]{0}', space=vmem, size = 0x800, scoped, tag = 'output window, operand 0']
    %68 = vsyncpa [#allocation3], 0
    %s69 = scalar_lea.sflag [#allocation3], 1
    %70 = vsyncpa %s69, 0
    %71 = vsyncpa [#allocation6], 0
    %72 = vsyncpa [#allocation9], 0
    %73 = vsyncpa [#allocation12], 0
    %74 = vsyncpa [#allocation15], 0
    %75 = vsyncpa [#allocation18], 0
    %76 = vsyncpa [#allocation21], 0
    %77 = vsyncpa [#allocation24], 0
    %78 = vsyncpa [#allocation27], 0
    %79 = vsyncpa [#allocation30], 0
    %80 = vsyncpa [#allocation4], 0
    %s81 = scalar_lea.sflag [#allocation4], 1
    %82 = vsyncpa %s81, 0
    loop: start=0, step=1, limit=4
    $region2: #{tpu_custom_call.1} parent=1 // loop_pre_header
      _
    $region3: #{tpu_custom_call.1} parent=1 // loop_header
      %s84 = sphi 0, %s88
      %p85 = scmp.ge.s32.totalorder %s84, 4
      %s94 = sphi 0, %s96
      %s97 = sphi 0, %s94
      %s98 = sphi 0, %s97
      %s114 = sphi 0, %s98
      %s118 = sphi 0, %s118
      %s120 = sphi 0, %s118
      %s121 = sphi 0, %s120
      %s135 = sphi 0, %s121
      %s139 = sphi 0, %s139
      %s141 = sphi 0, %s139
      %s142 = sphi 0, %s141
      %s156 = sphi 0, %s142
      %s160 = sphi 0, %s160
      %s162 = sphi 0, %s160
      %s163 = sphi 0, %s162
      %s177 = sphi 0, %s163
      %s181 = sphi 0, %s181
      %s183 = sphi 0, %s181
      %s184 = sphi 0, %s183
      %s198 = sphi 0, %s184
      %s202 = sphi 0, %s202
      %s204 = sphi 0, %s202
      %s205 = sphi 0, %s204
      %s219 = sphi 0, %s205
      %s223 = sphi 0, %s223
      %s225 = sphi 0, %s223
      %s226 = sphi 0, %s225
      %s240 = sphi 0, %s226
      %s244 = sphi 0, %s244
      %s246 = sphi 0, %s244
      %s247 = sphi 0, %s246
      %s261 = sphi 0, %s247
      %s265 = sphi 0, %s265
      %s267 = sphi 0, %s265
      %s268 = sphi 0, %s267
      %s282 = sphi 0, %s268
      %s286 = sphi 0, %s286
      %s288 = sphi 0, %s286
      %s289 = sphi 0, %s288
      %s303 = sphi 0, %s289
      %s307 = sphi 0, %s307
      %s309 = sphi 0, %s307
      %s310 = sphi 0, %s309
      %s324 = sphi 0, %s310
      %s328 = sphi 0, %s328
      %s330 = sphi 0, %s328
      %s331 = sphi 0, %s330
      %s345 = sphi 0, %s331
      %s349 = sphi 0, %s349
      %s351 = sphi 0, %s349
      %s352 = sphi 0, %s351
      %s366 = sphi 0, %s352
      %s370 = sphi 0, %s370
      %s372 = sphi 0, %s370
      %s373 = sphi 0, %s372
      %s387 = sphi 0, %s373
      %s391 = sphi 0, %s391
      %s393 = sphi 0, %s391
      %s394 = sphi 0, %s393
      %s408 = sphi 0, %s394
      %s412 = sphi 0, %s412
      %s414 = sphi 0, %s412
      %s415 = sphi 0, %s414
      %s429 = sphi 0, %s415
      %s433 = sphi 0, %s433
      %s435 = sphi 0, %s433
      %s436 = sphi 0, %s435
      %s450 = sphi 0, %s436
      %s454 = sphi 0, %s454
      %s456 = sphi 0, %s454
      %s457 = sphi 0, %s456
      %s471 = sphi 0, %s457
      %s475 = sphi 0, %s475
      %s477 = sphi 0, %s475
      %s478 = sphi 0, %s477
      %s492 = sphi 0, %s478
      %s496 = sphi 0, %s496
      %s498 = sphi 0, %s496
      %s499 = sphi 0, %s498
      %s513 = sphi 0, %s499
      %s517 = sphi 0, %s517
      %s519 = sphi 0, %s517
      %s520 = sphi 0, %s519
      %s534 = sphi 0, %s520
      %s538 = sphi 0, %s538
      %s540 = sphi 0, %s538
      %s541 = sphi 0, %s540
      %s555 = sphi 0, %s541
      %s559 = sphi 0, %s559
      %s561 = sphi 0, %s559
      %s562 = sphi 0, %s561
      %s576 = sphi 0, %s562
      %s580 = sphi 0, %s580
      %s582 = sphi 0, %s580
      %s583 = sphi 0, %s582
      %s597 = sphi 0, %s583
      %s601 = sphi 0, %s601
      %s603 = sphi 0, %s601
      %s604 = sphi 0, %s603
      %s618 = sphi 0, %s604
      %s622 = sphi 0, %s622
      %s624 = sphi 0, %s622
      %s625 = sphi 0, %s624
      %s639 = sphi 0, %s625
      %s643 = sphi 0, %s643
      %s645 = sphi 0, %s643
      %s646 = sphi 0, %s645
      %s660 = sphi 0, %s646
      %s664 = sphi 0, %s664
      %s666 = sphi 0, %s664
      %s667 = sphi 0, %s666
      %s681 = sphi 0, %s667
      %s685 = sphi 0, %s685
      %s687 = sphi 0, %s685
      %s688 = sphi 0, %s687
      %s702 = sphi 0, %s688
      %s706 = sphi 0, %s706
      %s708 = sphi 0, %s706
      %s709 = sphi 0, %s708
      %s723 = sphi 0, %s709
      %s727 = sphi 0, %s727
      %s729 = sphi 0, %s727
      %s730 = sphi 0, %s729
      %s744 = sphi 0, %s730
      %s750 = sphi 0, %s752
      %s753 = sphi 0, %s750
      %s754 = sphi 0, %s753
      %s770 = sphi 0, %s754
    $region4: #{tpu_custom_call.1} parent=1 // loop_header_branch
      %87 = sbr.rel (%p85) target = $region8
    $region5: #{tpu_custom_call.1} parent=1 // loop_body
      %s89 = ssub.s32 %s84, 1
      %s90 = ssub.s32 %s84, 2
      %s91 = sadd.s32 %s84, 1
      %s92 = ssub.s32 %s84, %s91
      %p93 = scmp.eq.s32.totalorder %s92, 0
      %s95 = sadd.s32 %s94, 1
      %s96 = scalar_select %p93, %s94, %s95
      %p99 = pneg %p93
      %p100 = scmp.eq.s32.totalorder %s84, 1
      %p101 = por %p99, %p100
      %p102 = scmp.ne.s32.totalorder %s94, %s97
      %p103 = scmp.eq.s32.totalorder %s84, 0
      %p104 = por %p102, %p103
      %p105 = scmp.ne.s32.totalorder %s94, %s97
      %p106 = scmp.eq.s32.totalorder %s89, 1
      %p107 = por %p105, %p106
      %p108 = scmp.ne.s32.totalorder %s97, %s98
      %p109 = scmp.eq.s32.totalorder %s89, 0
      %p110 = por %p108, %p109
      %p111 = scmp.ne.s32.totalorder %s97, %s98
      %p112 = scmp.eq.s32.totalorder %s90, 1
      %p113 = por %p111, %p112
      %p115 = scmp.ne.s32.totalorder %s98, %s114
      %p116 = scmp.eq.s32.totalorder %s90, 0
      %p117 = por %p115, %p116
      %s119 = sadd.s32 %s118, 1
      %p122 = scmp.eq.s32.totalorder %s84, 1
      %p123 = scmp.ne.s32.totalorder %s118, %s120
      %p124 = scmp.eq.s32.totalorder %s84, 0
      %p125 = por %p123, %p124
      %p126 = scmp.ne.s32.totalorder %s118, %s120
      %p127 = scmp.eq.s32.totalorder %s89, 1
      %p128 = por %p126, %p127
      %p129 = scmp.ne.s32.totalorder %s120, %s121
      %p130 = scmp.eq.s32.totalorder %s89, 0
      %p131 = por %p129, %p130
      %p132 = scmp.ne.s32.totalorder %s120, %s121
      %p133 = scmp.eq.s32.totalorder %s90, 1
      %p134 = por %p132, %p133
      %p136 = scmp.ne.s32.totalorder %s121, %s135
      %p137 = scmp.eq.s32.totalorder %s90, 0
      %p138 = por %p136, %p137
      %s140 = sadd.s32 %s139, 1
      %p143 = scmp.eq.s32.totalorder %s84, 1
      %p144 = scmp.ne.s32.totalorder %s139, %s141
      %p145 = scmp.eq.s32.totalorder %s84, 0
      %p146 = por %p144, %p145
      %p147 = scmp.ne.s32.totalorder %s139, %s141
      %p148 = scmp.eq.s32.totalorder %s89, 1
      %p149 = por %p147, %p148
      %p150 = scmp.ne.s32.totalorder %s141, %s142
      %p151 = scmp.eq.s32.totalorder %s89, 0
      %p152 = por %p150, %p151
      %p153 = scmp.ne.s32.totalorder %s141, %s142
      %p154 = scmp.eq.s32.totalorder %s90, 1
      %p155 = por %p153, %p154
      %p157 = scmp.ne.s32.totalorder %s142, %s156
      %p158 = scmp.eq.s32.totalorder %s90, 0
      %p159 = por %p157, %p158
      %s161 = sadd.s32 %s160, 1
      %p164 = scmp.eq.s32.totalorder %s84, 1
      %p165 = scmp.ne.s32.totalorder %s160, %s162
      %p166 = scmp.eq.s32.totalorder %s84, 0
      %p167 = por %p165, %p166
      %p168 = scmp.ne.s32.totalorder %s160, %s162
      %p169 = scmp.eq.s32.totalorder %s89, 1
      %p170 = por %p168, %p169
      %p171 = scmp.ne.s32.totalorder %s162, %s163
      %p172 = scmp.eq.s32.totalorder %s89, 0
      %p173 = por %p171, %p172
      %p174 = scmp.ne.s32.totalorder %s162, %s163
      %p175 = scmp.eq.s32.totalorder %s90, 1
      %p176 = por %p174, %p175
      %p178 = scmp.ne.s32.totalorder %s163, %s177
      %p179 = scmp.eq.s32.totalorder %s90, 0
      %p180 = por %p178, %p179
      %s182 = sadd.s32 %s181, 1
      %p185 = scmp.eq.s32.totalorder %s84, 1
      %p186 = scmp.ne.s32.totalorder %s181, %s183
      %p187 = scmp.eq.s32.totalorder %s84, 0
      %p188 = por %p186, %p187
      %p189 = scmp.ne.s32.totalorder %s181, %s183
      %p190 = scmp.eq.s32.totalorder %s89, 1
      %p191 = por %p189, %p190
      %p192 = scmp.ne.s32.totalorder %s183, %s184
      %p193 = scmp.eq.s32.totalorder %s89, 0
      %p194 = por %p192, %p193
      %p195 = scmp.ne.s32.totalorder %s183, %s184
      %p196 = scmp.eq.s32.totalorder %s90, 1
      %p197 = por %p195, %p196
      %p199 = scmp.ne.s32.totalorder %s184, %s198
      %p200 = scmp.eq.s32.totalorder %s90, 0
      %p201 = por %p199, %p200
      %s203 = sadd.s32 %s202, 1
      %p206 = scmp.eq.s32.totalorder %s84, 1
      %p207 = scmp.ne.s32.totalorder %s202, %s204
      %p208 = scmp.eq.s32.totalorder %s84, 0
      %p209 = por %p207, %p208
      %p210 = scmp.ne.s32.totalorder %s202, %s204
      %p211 = scmp.eq.s32.totalorder %s89, 1
      %p212 = por %p210, %p211
      %p213 = scmp.ne.s32.totalorder %s204, %s205
      %p214 = scmp.eq.s32.totalorder %s89, 0
      %p215 = por %p213, %p214
      %p216 = scmp.ne.s32.totalorder %s204, %s205
      %p217 = scmp.eq.s32.totalorder %s90, 1
      %p218 = por %p216, %p217
      %p220 = scmp.ne.s32.totalorder %s205, %s219
      %p221 = scmp.eq.s32.totalorder %s90, 0
      %p222 = por %p220, %p221
      %s224 = sadd.s32 %s223, 1
      %p227 = scmp.eq.s32.totalorder %s84, 1
      %p228 = scmp.ne.s32.totalorder %s223, %s225
      %p229 = scmp.eq.s32.totalorder %s84, 0
      %p230 = por %p228, %p229
      %p231 = scmp.ne.s32.totalorder %s223, %s225
      %p232 = scmp.eq.s32.totalorder %s89, 1
      %p233 = por %p231, %p232
      %p234 = scmp.ne.s32.totalorder %s225, %s226
      %p235 = scmp.eq.s32.totalorder %s89, 0
      %p236 = por %p234, %p235
      %p237 = scmp.ne.s32.totalorder %s225, %s226
      %p238 = scmp.eq.s32.totalorder %s90, 1
      %p239 = por %p237, %p238
      %p241 = scmp.ne.s32.totalorder %s226, %s240
      %p242 = scmp.eq.s32.totalorder %s90, 0
      %p243 = por %p241, %p242
      %s245 = sadd.s32 %s244, 1
      %p248 = scmp.eq.s32.totalorder %s84, 1
      %p249 = scmp.ne.s32.totalorder %s244, %s246
      %p250 = scmp.eq.s32.totalorder %s84, 0
      %p251 = por %p249, %p250
      %p252 = scmp.ne.s32.totalorder %s244, %s246
      %p253 = scmp.eq.s32.totalorder %s89, 1
      %p254 = por %p252, %p253
      %p255 = scmp.ne.s32.totalorder %s246, %s247
      %p256 = scmp.eq.s32.totalorder %s89, 0
      %p257 = por %p255, %p256
      %p258 = scmp.ne.s32.totalorder %s246, %s247
      %p259 = scmp.eq.s32.totalorder %s90, 1
      %p260 = por %p258, %p259
      %p262 = scmp.ne.s32.totalorder %s247, %s261
      %p263 = scmp.eq.s32.totalorder %s90, 0
      %p264 = por %p262, %p263
      %s266 = sadd.s32 %s265, 1
      %p269 = scmp.eq.s32.totalorder %s84, 1
      %p270 = scmp.ne.s32.totalorder %s265, %s267
      %p271 = scmp.eq.s32.totalorder %s84, 0
      %p272 = por %p270, %p271
      %p273 = scmp.ne.s32.totalorder %s265, %s267
      %p274 = scmp.eq.s32.totalorder %s89, 1
      %p275 = por %p273, %p274
      %p276 = scmp.ne.s32.totalorder %s267, %s268
      %p277 = scmp.eq.s32.totalorder %s89, 0
      %p278 = por %p276, %p277
      %p279 = scmp.ne.s32.totalorder %s267, %s268
      %p280 = scmp.eq.s32.totalorder %s90, 1
      %p281 = por %p279, %p280
      %p283 = scmp.ne.s32.totalorder %s268, %s282
      %p284 = scmp.eq.s32.totalorder %s90, 0
      %p285 = por %p283, %p284
      %s287 = sadd.s32 %s286, 1
      %p290 = scmp.eq.s32.totalorder %s84, 1
      %p291 = scmp.ne.s32.totalorder %s286, %s288
      %p292 = scmp.eq.s32.totalorder %s84, 0
      %p293 = por %p291, %p292
      %p294 = scmp.ne.s32.totalorder %s286, %s288
      %p295 = scmp.eq.s32.totalorder %s89, 1
      %p296 = por %p294, %p295
      %p297 = scmp.ne.s32.totalorder %s288, %s289
      %p298 = scmp.eq.s32.totalorder %s89, 0
      %p299 = por %p297, %p298
      %p300 = scmp.ne.s32.totalorder %s288, %s289
      %p301 = scmp.eq.s32.totalorder %s90, 1
      %p302 = por %p300, %p301
      %p304 = scmp.ne.s32.totalorder %s289, %s303
      %p305 = scmp.eq.s32.totalorder %s90, 0
      %p306 = por %p304, %p305
      %s308 = sadd.s32 %s307, 1
      %p311 = scmp.eq.s32.totalorder %s84, 1
      %p312 = scmp.ne.s32.totalorder %s307, %s309
      %p313 = scmp.eq.s32.totalorder %s84, 0
      %p314 = por %p312, %p313
      %p315 = scmp.ne.s32.totalorder %s307, %s309
      %p316 = scmp.eq.s32.totalorder %s89, 1
      %p317 = por %p315, %p316
      %p318 = scmp.ne.s32.totalorder %s309, %s310
      %p319 = scmp.eq.s32.totalorder %s89, 0
      %p320 = por %p318, %p319
      %p321 = scmp.ne.s32.totalorder %s309, %s310
      %p322 = scmp.eq.s32.totalorder %s90, 1
      %p323 = por %p321, %p322
      %p325 = scmp.ne.s32.totalorder %s310, %s324
      %p326 = scmp.eq.s32.totalorder %s90, 0
      %p327 = por %p325, %p326
      %s329 = sadd.s32 %s328, 1
      %p332 = scmp.eq.s32.totalorder %s84, 1
      %p333 = scmp.ne.s32.totalorder %s328, %s330
      %p334 = scmp.eq.s32.totalorder %s84, 0
      %p335 = por %p333, %p334
      %p336 = scmp.ne.s32.totalorder %s328, %s330
      %p337 = scmp.eq.s32.totalorder %s89, 1
      %p338 = por %p336, %p337
      %p339 = scmp.ne.s32.totalorder %s330, %s331
      %p340 = scmp.eq.s32.totalorder %s89, 0
      %p341 = por %p339, %p340
      %p342 = scmp.ne.s32.totalorder %s330, %s331
      %p343 = scmp.eq.s32.totalorder %s90, 1
      %p344 = por %p342, %p343
      %p346 = scmp.ne.s32.totalorder %s331, %s345
      %p347 = scmp.eq.s32.totalorder %s90, 0
      %p348 = por %p346, %p347
      %s350 = sadd.s32 %s349, 1
      %p353 = scmp.eq.s32.totalorder %s84, 1
      %p354 = scmp.ne.s32.totalorder %s349, %s351
      %p355 = scmp.eq.s32.totalorder %s84, 0
      %p356 = por %p354, %p355
      %p357 = scmp.ne.s32.totalorder %s349, %s351
      %p358 = scmp.eq.s32.totalorder %s89, 1
      %p359 = por %p357, %p358
      %p360 = scmp.ne.s32.totalorder %s351, %s352
      %p361 = scmp.eq.s32.totalorder %s89, 0
      %p362 = por %p360, %p361
      %p363 = scmp.ne.s32.totalorder %s351, %s352
      %p364 = scmp.eq.s32.totalorder %s90, 1
      %p365 = por %p363, %p364
      %p367 = scmp.ne.s32.totalorder %s352, %s366
      %p368 = scmp.eq.s32.totalorder %s90, 0
      %p369 = por %p367, %p368
      %s371 = sadd.s32 %s370, 1
      %p374 = scmp.eq.s32.totalorder %s84, 1
      %p375 = scmp.ne.s32.totalorder %s370, %s372
      %p376 = scmp.eq.s32.totalorder %s84, 0
      %p377 = por %p375, %p376
      %p378 = scmp.ne.s32.totalorder %s370, %s372
      %p379 = scmp.eq.s32.totalorder %s89, 1
      %p380 = por %p378, %p379
      %p381 = scmp.ne.s32.totalorder %s372, %s373
      %p382 = scmp.eq.s32.totalorder %s89, 0
      %p383 = por %p381, %p382
      %p384 = scmp.ne.s32.totalorder %s372, %s373
      %p385 = scmp.eq.s32.totalorder %s90, 1
      %p386 = por %p384, %p385
      %p388 = scmp.ne.s32.totalorder %s373, %s387
      %p389 = scmp.eq.s32.totalorder %s90, 0
      %p390 = por %p388, %p389
      %s392 = sadd.s32 %s391, 1
      %p395 = scmp.eq.s32.totalorder %s84, 1
      %p396 = scmp.ne.s32.totalorder %s391, %s393
      %p397 = scmp.eq.s32.totalorder %s84, 0
      %p398 = por %p396, %p397
      %p399 = scmp.ne.s32.totalorder %s391, %s393
      %p400 = scmp.eq.s32.totalorder %s89, 1
      %p401 = por %p399, %p400
      %p402 = scmp.ne.s32.totalorder %s393, %s394
      %p403 = scmp.eq.s32.totalorder %s89, 0
      %p404 = por %p402, %p403
      %p405 = scmp.ne.s32.totalorder %s393, %s394
      %p406 = scmp.eq.s32.totalorder %s90, 1
      %p407 = por %p405, %p406
      %p409 = scmp.ne.s32.totalorder %s394, %s408
      %p410 = scmp.eq.s32.totalorder %s90, 0
      %p411 = por %p409, %p410
      %s413 = sadd.s32 %s412, 1
      %p416 = scmp.eq.s32.totalorder %s84, 1
      %p417 = scmp.ne.s32.totalorder %s412, %s414
      %p418 = scmp.eq.s32.totalorder %s84, 0
      %p419 = por %p417, %p418
      %p420 = scmp.ne.s32.totalorder %s412, %s414
      %p421 = scmp.eq.s32.totalorder %s89, 1
      %p422 = por %p420, %p421
      %p423 = scmp.ne.s32.totalorder %s414, %s415
      %p424 = scmp.eq.s32.totalorder %s89, 0
      %p425 = por %p423, %p424
      %p426 = scmp.ne.s32.totalorder %s414, %s415
      %p427 = scmp.eq.s32.totalorder %s90, 1
      %p428 = por %p426, %p427
      %p430 = scmp.ne.s32.totalorder %s415, %s429
      %p431 = scmp.eq.s32.totalorder %s90, 0
      %p432 = por %p430, %p431
      %s434 = sadd.s32 %s433, 1
      %p437 = scmp.eq.s32.totalorder %s84, 1
      %p438 = scmp.ne.s32.totalorder %s433, %s435
      %p439 = scmp.eq.s32.totalorder %s84, 0
      %p440 = por %p438, %p439
      %p441 = scmp.ne.s32.totalorder %s433, %s435
      %p442 = scmp.eq.s32.totalorder %s89, 1
      %p443 = por %p441, %p442
      %p444 = scmp.ne.s32.totalorder %s435, %s436
      %p445 = scmp.eq.s32.totalorder %s89, 0
      %p446 = por %p444, %p445
      %p447 = scmp.ne.s32.totalorder %s435, %s436
      %p448 = scmp.eq.s32.totalorder %s90, 1
      %p449 = por %p447, %p448
      %p451 = scmp.ne.s32.totalorder %s436, %s450
      %p452 = scmp.eq.s32.totalorder %s90, 0
      %p453 = por %p451, %p452
      %s455 = sadd.s32 %s454, 1
      %p458 = scmp.eq.s32.totalorder %s84, 1
      %p459 = scmp.ne.s32.totalorder %s454, %s456
      %p460 = scmp.eq.s32.totalorder %s84, 0
      %p461 = por %p459, %p460
      %p462 = scmp.ne.s32.totalorder %s454, %s456
      %p463 = scmp.eq.s32.totalorder %s89, 1
      %p464 = por %p462, %p463
      %p465 = scmp.ne.s32.totalorder %s456, %s457
      %p466 = scmp.eq.s32.totalorder %s89, 0
      %p467 = por %p465, %p466
      %p468 = scmp.ne.s32.totalorder %s456, %s457
      %p469 = scmp.eq.s32.totalorder %s90, 1
      %p470 = por %p468, %p469
      %p472 = scmp.ne.s32.totalorder %s457, %s471
      %p473 = scmp.eq.s32.totalorder %s90, 0
      %p474 = por %p472, %p473
      %s476 = sadd.s32 %s475, 1
      %p479 = scmp.eq.s32.totalorder %s84, 1
      %p480 = scmp.ne.s32.totalorder %s475, %s477
      %p481 = scmp.eq.s32.totalorder %s84, 0
      %p482 = por %p480, %p481
      %p483 = scmp.ne.s32.totalorder %s475, %s477
      %p484 = scmp.eq.s32.totalorder %s89, 1
      %p485 = por %p483, %p484
      %p486 = scmp.ne.s32.totalorder %s477, %s478
      %p487 = scmp.eq.s32.totalorder %s89, 0
      %p488 = por %p486, %p487
      %p489 = scmp.ne.s32.totalorder %s477, %s478
      %p490 = scmp.eq.s32.totalorder %s90, 1
      %p491 = por %p489, %p490
      %p493 = scmp.ne.s32.totalorder %s478, %s492
      %p494 = scmp.eq.s32.totalorder %s90, 0
      %p495 = por %p493, %p494
      %s497 = sadd.s32 %s496, 1
      %p500 = scmp.eq.s32.totalorder %s84, 1
      %p501 = scmp.ne.s32.totalorder %s496, %s498
      %p502 = scmp.eq.s32.totalorder %s84, 0
      %p503 = por %p501, %p502
      %p504 = scmp.ne.s32.totalorder %s496, %s498
      %p505 = scmp.eq.s32.totalorder %s89, 1
      %p506 = por %p504, %p505
      %p507 = scmp.ne.s32.totalorder %s498, %s499
      %p508 = scmp.eq.s32.totalorder %s89, 0
      %p509 = por %p507, %p508
      %p510 = scmp.ne.s32.totalorder %s498, %s499
      %p511 = scmp.eq.s32.totalorder %s90, 1
      %p512 = por %p510, %p511
      %p514 = scmp.ne.s32.totalorder %s499, %s513
      %p515 = scmp.eq.s32.totalorder %s90, 0
      %p516 = por %p514, %p515
      %s518 = sadd.s32 %s517, 1
      %p521 = scmp.eq.s32.totalorder %s84, 1
      %p522 = scmp.ne.s32.totalorder %s517, %s519
      %p523 = scmp.eq.s32.totalorder %s84, 0
      %p524 = por %p522, %p523
      %p525 = scmp.ne.s32.totalorder %s517, %s519
      %p526 = scmp.eq.s32.totalorder %s89, 1
      %p527 = por %p525, %p526
      %p528 = scmp.ne.s32.totalorder %s519, %s520
      %p529 = scmp.eq.s32.totalorder %s89, 0
      %p530 = por %p528, %p529
      %p531 = scmp.ne.s32.totalorder %s519, %s520
      %p532 = scmp.eq.s32.totalorder %s90, 1
      %p533 = por %p531, %p532
      %p535 = scmp.ne.s32.totalorder %s520, %s534
      %p536 = scmp.eq.s32.totalorder %s90, 0
      %p537 = por %p535, %p536
      %s539 = sadd.s32 %s538, 1
      %p542 = scmp.eq.s32.totalorder %s84, 1
      %p543 = scmp.ne.s32.totalorder %s538, %s540
      %p544 = scmp.eq.s32.totalorder %s84, 0
      %p545 = por %p543, %p544
      %p546 = scmp.ne.s32.totalorder %s538, %s540
      %p547 = scmp.eq.s32.totalorder %s89, 1
      %p548 = por %p546, %p547
      %p549 = scmp.ne.s32.totalorder %s540, %s541
      %p550 = scmp.eq.s32.totalorder %s89, 0
      %p551 = por %p549, %p550
      %p552 = scmp.ne.s32.totalorder %s540, %s541
      %p553 = scmp.eq.s32.totalorder %s90, 1
      %p554 = por %p552, %p553
      %p556 = scmp.ne.s32.totalorder %s541, %s555
      %p557 = scmp.eq.s32.totalorder %s90, 0
      %p558 = por %p556, %p557
      %s560 = sadd.s32 %s559, 1
      %p563 = scmp.eq.s32.totalorder %s84, 1
      %p564 = scmp.ne.s32.totalorder %s559, %s561
      %p565 = scmp.eq.s32.totalorder %s84, 0
      %p566 = por %p564, %p565
      %p567 = scmp.ne.s32.totalorder %s559, %s561
      %p568 = scmp.eq.s32.totalorder %s89, 1
      %p569 = por %p567, %p568
      %p570 = scmp.ne.s32.totalorder %s561, %s562
      %p571 = scmp.eq.s32.totalorder %s89, 0
      %p572 = por %p570, %p571
      %p573 = scmp.ne.s32.totalorder %s561, %s562
      %p574 = scmp.eq.s32.totalorder %s90, 1
      %p575 = por %p573, %p574
      %p577 = scmp.ne.s32.totalorder %s562, %s576
      %p578 = scmp.eq.s32.totalorder %s90, 0
      %p579 = por %p577, %p578
      %s581 = sadd.s32 %s580, 1
      %p584 = scmp.eq.s32.totalorder %s84, 1
      %p585 = scmp.ne.s32.totalorder %s580, %s582
      %p586 = scmp.eq.s32.totalorder %s84, 0
      %p587 = por %p585, %p586
      %p588 = scmp.ne.s32.totalorder %s580, %s582
      %p589 = scmp.eq.s32.totalorder %s89, 1
      %p590 = por %p588, %p589
      %p591 = scmp.ne.s32.totalorder %s582, %s583
      %p592 = scmp.eq.s32.totalorder %s89, 0
      %p593 = por %p591, %p592
      %p594 = scmp.ne.s32.totalorder %s582, %s583
      %p595 = scmp.eq.s32.totalorder %s90, 1
      %p596 = por %p594, %p595
      %p598 = scmp.ne.s32.totalorder %s583, %s597
      %p599 = scmp.eq.s32.totalorder %s90, 0
      %p600 = por %p598, %p599
      %s602 = sadd.s32 %s601, 1
      %p605 = scmp.eq.s32.totalorder %s84, 1
      %p606 = scmp.ne.s32.totalorder %s601, %s603
      %p607 = scmp.eq.s32.totalorder %s84, 0
      %p608 = por %p606, %p607
      %p609 = scmp.ne.s32.totalorder %s601, %s603
      %p610 = scmp.eq.s32.totalorder %s89, 1
      %p611 = por %p609, %p610
      %p612 = scmp.ne.s32.totalorder %s603, %s604
      %p613 = scmp.eq.s32.totalorder %s89, 0
      %p614 = por %p612, %p613
      %p615 = scmp.ne.s32.totalorder %s603, %s604
      %p616 = scmp.eq.s32.totalorder %s90, 1
      %p617 = por %p615, %p616
      %p619 = scmp.ne.s32.totalorder %s604, %s618
      %p620 = scmp.eq.s32.totalorder %s90, 0
      %p621 = por %p619, %p620
      %s623 = sadd.s32 %s622, 1
      %p626 = scmp.eq.s32.totalorder %s84, 1
      %p627 = scmp.ne.s32.totalorder %s622, %s624
      %p628 = scmp.eq.s32.totalorder %s84, 0
      %p629 = por %p627, %p628
      %p630 = scmp.ne.s32.totalorder %s622, %s624
      %p631 = scmp.eq.s32.totalorder %s89, 1
      %p632 = por %p630, %p631
      %p633 = scmp.ne.s32.totalorder %s624, %s625
      %p634 = scmp.eq.s32.totalorder %s89, 0
      %p635 = por %p633, %p634
      %p636 = scmp.ne.s32.totalorder %s624, %s625
      %p637 = scmp.eq.s32.totalorder %s90, 1
      %p638 = por %p636, %p637
      %p640 = scmp.ne.s32.totalorder %s625, %s639
      %p641 = scmp.eq.s32.totalorder %s90, 0
      %p642 = por %p640, %p641
      %s644 = sadd.s32 %s643, 1
      %p647 = scmp.eq.s32.totalorder %s84, 1
      %p648 = scmp.ne.s32.totalorder %s643, %s645
      %p649 = scmp.eq.s32.totalorder %s84, 0
      %p650 = por %p648, %p649
      %p651 = scmp.ne.s32.totalorder %s643, %s645
      %p652 = scmp.eq.s32.totalorder %s89, 1
      %p653 = por %p651, %p652
      %p654 = scmp.ne.s32.totalorder %s645, %s646
      %p655 = scmp.eq.s32.totalorder %s89, 0
      %p656 = por %p654, %p655
      %p657 = scmp.ne.s32.totalorder %s645, %s646
      %p658 = scmp.eq.s32.totalorder %s90, 1
      %p659 = por %p657, %p658
      %p661 = scmp.ne.s32.totalorder %s646, %s660
      %p662 = scmp.eq.s32.totalorder %s90, 0
      %p663 = por %p661, %p662
      %s665 = sadd.s32 %s664, 1
      %p668 = scmp.eq.s32.totalorder %s84, 1
      %p669 = scmp.ne.s32.totalorder %s664, %s666
      %p670 = scmp.eq.s32.totalorder %s84, 0
      %p671 = por %p669, %p670
      %p672 = scmp.ne.s32.totalorder %s664, %s666
      %p673 = scmp.eq.s32.totalorder %s89, 1
      %p674 = por %p672, %p673
      %p675 = scmp.ne.s32.totalorder %s666, %s667
      %p676 = scmp.eq.s32.totalorder %s89, 0
      %p677 = por %p675, %p676
      %p678 = scmp.ne.s32.totalorder %s666, %s667
      %p679 = scmp.eq.s32.totalorder %s90, 1
      %p680 = por %p678, %p679
      %p682 = scmp.ne.s32.totalorder %s667, %s681
      %p683 = scmp.eq.s32.totalorder %s90, 0
      %p684 = por %p682, %p683
      %s686 = sadd.s32 %s685, 1
      %p689 = scmp.eq.s32.totalorder %s84, 1
      %p690 = scmp.ne.s32.totalorder %s685, %s687
      %p691 = scmp.eq.s32.totalorder %s84, 0
      %p692 = por %p690, %p691
      %p693 = scmp.ne.s32.totalorder %s685, %s687
      %p694 = scmp.eq.s32.totalorder %s89, 1
      %p695 = por %p693, %p694
      %p696 = scmp.ne.s32.totalorder %s687, %s688
      %p697 = scmp.eq.s32.totalorder %s89, 0
      %p698 = por %p696, %p697
      %p699 = scmp.ne.s32.totalorder %s687, %s688
      %p700 = scmp.eq.s32.totalorder %s90, 1
      %p701 = por %p699, %p700
      %p703 = scmp.ne.s32.totalorder %s688, %s702
      %p704 = scmp.eq.s32.totalorder %s90, 0
      %p705 = por %p703, %p704
      %s707 = sadd.s32 %s706, 1
      %p710 = scmp.eq.s32.totalorder %s84, 1
      %p711 = scmp.ne.s32.totalorder %s706, %s708
      %p712 = scmp.eq.s32.totalorder %s84, 0
      %p713 = por %p711, %p712
      %p714 = scmp.ne.s32.totalorder %s706, %s708
      %p715 = scmp.eq.s32.totalorder %s89, 1
      %p716 = por %p714, %p715
      %p717 = scmp.ne.s32.totalorder %s708, %s709
      %p718 = scmp.eq.s32.totalorder %s89, 0
      %p719 = por %p717, %p718
      %p720 = scmp.ne.s32.totalorder %s708, %s709
      %p721 = scmp.eq.s32.totalorder %s90, 1
      %p722 = por %p720, %p721
      %p724 = scmp.ne.s32.totalorder %s709, %s723
      %p725 = scmp.eq.s32.totalorder %s90, 0
      %p726 = por %p724, %p725
      %s728 = sadd.s32 %s727, 1
      %p731 = scmp.eq.s32.totalorder %s84, 1
      %p732 = scmp.ne.s32.totalorder %s727, %s729
      %p733 = scmp.eq.s32.totalorder %s84, 0
      %p734 = por %p732, %p733
      %p735 = scmp.ne.s32.totalorder %s727, %s729
      %p736 = scmp.eq.s32.totalorder %s89, 1
      %p737 = por %p735, %p736
      %p738 = scmp.ne.s32.totalorder %s729, %s730
      %p739 = scmp.eq.s32.totalorder %s89, 0
      %p740 = por %p738, %p739
      %p741 = scmp.ne.s32.totalorder %s729, %s730
      %p742 = scmp.eq.s32.totalorder %s90, 1
      %p743 = por %p741, %p742
      %p745 = scmp.ne.s32.totalorder %s730, %s744
      %p746 = scmp.eq.s32.totalorder %s90, 0
      %p747 = por %p745, %p746
      %s748 = ssub.s32 %s84, %s91
      %p749 = scmp.eq.s32.totalorder %s748, 0
      %s751 = sadd.s32 %s750, 1
      %s752 = scalar_select %p749, %s750, %s751
      %p755 = pneg %p749
      %p756 = scmp.eq.s32.totalorder %s84, 1
      %p757 = por %p755, %p756
      %p758 = scmp.ne.s32.totalorder %s750, %s753
      %p759 = scmp.eq.s32.totalorder %s84, 0
      %p760 = por %p758, %p759
      %p761 = scmp.ne.s32.totalorder %s750, %s753
      %p762 = scmp.eq.s32.totalorder %s89, 1
      %p763 = por %p761, %p762
      %p764 = scmp.ne.s32.totalorder %s753, %s754
      %p765 = scmp.eq.s32.totalorder %s89, 0
      %p766 = por %p764, %p765
      %p767 = scmp.ne.s32.totalorder %s753, %s754
      %p768 = scmp.eq.s32.totalorder %s90, 1
      %p769 = por %p767, %p768
      %p771 = scmp.ne.s32.totalorder %s754, %s770
      %p772 = scmp.eq.s32.totalorder %s90, 0
      %p773 = por %p771, %p772
      %p774 = scmp.le.s32.totalorder 1, %s84
      %p775 = scmp.lt.s32.totalorder %s84, 3
      %p776 = pnand %p774, %p775
      %p777 = pneg %p776
      // Predicated region
      $region9: #{tpu_custom_call.1} parent=5 // pred_check
        _
      $region10: #{tpu_custom_call.1} parent=5 // pred_check_branch
        %779 = sbr.rel (%p776) target = $region12
      $region11: #{tpu_custom_call.1} parent=5 // pred_region
        %s780 = ssub.s32 %s84, 1
        // Predicated region
        $region13: #{tpu_custom_call.1} parent=11 // pred_check
          %p781 = pneg %p131
        $region14: #{tpu_custom_call.1} parent=11 // pred_check_branch
          %783 = sbr.rel (%p781) target = $region16
        $region15: #{tpu_custom_call.1} parent=11 // pred_region
          %s785 = ssub.s32 8192, 8192
          %786 = vsyncadd [#allocation6], %s785
          %s787 = sshll.u32 [#allocation5], 4
          %s788 = int_to_ptr.vmem [resolvable:$true] %s787
          %793 = dma.hbm_to_vmem [thread:$0]  %s3, 8192, %s788, [#allocation6], 256, 256, 16
        $region16: #{tpu_custom_call.1} parent=11 // pred_fallthru
          _
        // Predicated region
        $region17: #{tpu_custom_call.1} parent=11 // pred_check
          %p794 = pneg %p152
        $region18: #{tpu_custom_call.1} parent=11 // pred_check_branch
          %796 = sbr.rel (%p794) target = $region20
        $region19: #{tpu_custom_call.1} parent=11 // pred_region
          %s798 = ssub.s32 256, 256
          %799 = vsyncadd [#allocation6], %s798
          %s801 = sshll.u32 [#allocation7], 4
          %s802 = int_to_ptr.vmem [resolvable:$true] %s801
          %804 = dma.hbm_to_vmem [thread:$0]  %s5, 256, %s802, [#allocation6]
        $region20: #{tpu_custom_call.1} parent=11 // pred_fallthru
          _
        // Predicated region
        $region21: #{tpu_custom_call.1} parent=11 // pred_check
          %p805 = pneg %p173
        $region22: #{tpu_custom_call.1} parent=11 // pred_check_branch
          %807 = sbr.rel (%p805) target = $region24
        $region23: #{tpu_custom_call.1} parent=11 // pred_region
          %s809 = ssub.s32 128, 128
          %810 = vsyncadd [#allocation9], %s809
          %s812 = sshll.u32 [#allocation8], 4
          %s813 = int_to_ptr.vmem [resolvable:$true] %s812
          %815 = dma.hbm_to_vmem [thread:$0]  %s7, 128, %s813, [#allocation9]
        $region24: #{tpu_custom_call.1} parent=11 // pred_fallthru
          _
        // Predicated region
        $region25: #{tpu_custom_call.1} parent=11 // pred_check
          %p816 = pneg %p194
        $region26: #{tpu_custom_call.1} parent=11 // pred_check_branch
          %818 = sbr.rel (%p816) target = $region28
        $region27: #{tpu_custom_call.1} parent=11 // pred_region
          %s820 = ssub.s32 32, 32
          %821 = vsyncadd [#allocation9], %s820
          %s823 = sshll.u32 [#allocation10], 4
          %s824 = int_to_ptr.vmem [resolvable:$true] %s823
          %826 = dma.hbm_to_vmem [thread:$0]  %s9, 32, %s824, [#allocation9]
        $region28: #{tpu_custom_call.1} parent=11 // pred_fallthru
          _
        // Predicated region
        $region29: #{tpu_custom_call.1} parent=11 // pred_check
          %p827 = pneg %p215
        $region30: #{tpu_custom_call.1} parent=11 // pred_check_branch
          %829 = sbr.rel (%p827) target = $region32
        $region31: #{tpu_custom_call.1} parent=11 // pred_region
          _
        $region32: #{tpu_custom_call.1} parent=11 // pred_fallthru
          _
        // Predicated region
        $region33: #{tpu_custom_call.1} parent=11 // pred_check
          %p830 = pneg %p236
        $region34: #{tpu_custom_call.1} parent=11 // pred_check_branch
          %832 = sbr.rel (%p830) target = $region36
        $region35: #{tpu_custom_call.1} parent=11 // pred_region
          %s834 = ssub.s32 1024, 1024
          %835 = vsyncadd [#allocation12], %s834
          %s836 = sshll.u32 [#allocation11], 4
          %s837 = int_to_ptr.vmem [resolvable:$true] %s836
          %842 = dma.hbm_to_vmem [thread:$0]  %s13, 1024, %s837, [#allocation12], 64, 64, 4
        $region36: #{tpu_custom_call.1} parent=11 // pred_fallthru
          _
        // Predicated region
        $region37: #{tpu_custom_call.1} parent=11 // pred_check
          %p843 = pneg %p257
        $region38: #{tpu_custom_call.1} parent=11 // pred_check_branch
          %845 = sbr.rel (%p843) target = $region40
        $region39: #{tpu_custom_call.1} parent=11 // pred_region
          %s847 = ssub.s32 16, 16
          %848 = vsyncadd [#allocation12], %s847
          %s850 = sshll.u32 [#allocation13], 4
          %s851 = int_to_ptr.vmem [resolvable:$true] %s850
          %853 = dma.hbm_to_vmem [thread:$0]  %s15, 16, %s851, [#allocation12]
        $region40: #{tpu_custom_call.1} parent=11 // pred_fallthru
          _
        // Predicated region
        $region41: #{tpu_custom_call.1} parent=11 // pred_check
          %p854 = pneg %p278
        $region42: #{tpu_custom_call.1} parent=11 // pred_check_branch
          %856 = sbr.rel (%p854) target = $region44
        $region43: #{tpu_custom_call.1} parent=11 // pred_region
          _
        $region44: #{tpu_custom_call.1} parent=11 // pred_fallthru
          _
        // Predicated region
        $region45: #{tpu_custom_call.1} parent=11 // pred_check
          %p857 = pneg %p299
        $region46: #{tpu_custom_call.1} parent=11 // pred_check_branch
          %859 = sbr.rel (%p857) target = $region48
        $region47: #{tpu_custom_call.1} parent=11 // pred_region
          %s861 = ssub.s32 3072, 3072
          %862 = vsyncadd [#allocation15], %s861
          %s863 = sshll.u32 [#allocation14], 4
          %s864 = int_to_ptr.vmem [resolvable:$true] %s863
          %869 = dma.hbm_to_vmem [thread:$0]  %s19, 3072, %s864, [#allocation15], 192, 192, 12
        $region48: #{tpu_custom_call.1} parent=11 // pred_fallthru
          _
        // Predicated region
        $region49: #{tpu_custom_call.1} parent=11 // pred_check
          %p870 = pneg %p320
        $region50: #{tpu_custom_call.1} parent=11 // pred_check_branch
          %872 = sbr.rel (%p870) target = $region52
        $region51: #{tpu_custom_call.1} parent=11 // pred_region
          %s874 = ssub.s32 48, 48
          %875 = vsyncadd [#allocation15], %s874
          %s877 = sshll.u32 [#allocation16], 4
          %s878 = int_to_ptr.vmem [resolvable:$true] %s877
          %880 = dma.hbm_to_vmem [thread:$0]  %s21, 48, %s878, [#allocation15]
        $region52: #{tpu_custom_call.1} parent=11 // pred_fallthru
          _
        // Predicated region
        $region53: #{tpu_custom_call.1} parent=11 // pred_check
          %p881 = pneg %p341
        $region54: #{tpu_custom_call.1} parent=11 // pred_check_branch
          %883 = sbr.rel (%p881) target = $region56
        $region55: #{tpu_custom_call.1} parent=11 // pred_region
          %s885 = ssub.s32 1024, 1024
          %886 = vsyncadd [#allocation18], %s885
          %s887 = sshll.u32 [#allocation17], 4
          %s888 = int_to_ptr.vmem [resolvable:$true] %s887
          %893 = dma.hbm_to_vmem [thread:$0]  %s23, 1024, %s888, [#allocation18], 64, 64, 4
        $region56: #{tpu_custom_call.1} parent=11 // pred_fallthru
          _
        // Predicated region
        $region57: #{tpu_custom_call.1} parent=11 // pred_check
          %p894 = pneg %p362
        $region58: #{tpu_custom_call.1} parent=11 // pred_check_branch
          %896 = sbr.rel (%p894) target = $region60
        $region59: #{tpu_custom_call.1} parent=11 // pred_region
          %s898 = ssub.s32 16, 16
          %899 = vsyncadd [#allocation18], %s898
          %s901 = sshll.u32 [#allocation19], 4
          %s902 = int_to_ptr.vmem [resolvable:$true] %s901
          %904 = dma.hbm_to_vmem [thread:$0]  %s25, 16, %s902, [#allocation18]
        $region60: #{tpu_custom_call.1} parent=11 // pred_fallthru
          _
        // Predicated region
        $region61: #{tpu_custom_call.1} parent=11 // pred_check
          %p905 = pneg %p383
        $region62: #{tpu_custom_call.1} parent=11 // pred_check_branch
          %907 = sbr.rel (%p905) target = $region64
        $region63: #{tpu_custom_call.1} parent=11 // pred_region
          _
        $region64: #{tpu_custom_call.1} parent=11 // pred_fallthru
          _
        // Predicated region
        $region65: #{tpu_custom_call.1} parent=11 // pred_check
          %p908 = pneg %p404
        $region66: #{tpu_custom_call.1} parent=11 // pred_check_branch
          %910 = sbr.rel (%p908) target = $region68
        $region67: #{tpu_custom_call.1} parent=11 // pred_region
          %s912 = ssub.s32 2048, 2048
          %913 = vsyncadd [#allocation21], %s912
          %s914 = sshll.u32 [#allocation20], 4
          %s915 = int_to_ptr.vmem [resolvable:$true] %s914
          %920 = dma.hbm_to_vmem [thread:$0]  %s29, 2048, %s915, [#allocation21], 128, 128, 8
        $region68: #{tpu_custom_call.1} parent=11 // pred_fallthru
          _
        // Predicated region
        $region69: #{tpu_custom_call.1} parent=11 // pred_check
          %p921 = pneg %p425
        $region70: #{tpu_custom_call.1} parent=11 // pred_check_branch
          %923 = sbr.rel (%p921) target = $region72
        $region71: #{tpu_custom_call.1} parent=11 // pred_region
          %s925 = ssub.s32 32, 32
          %926 = vsyncadd [#allocation21], %s925
          %s928 = sshll.u32 [#allocation22], 4
          %s929 = int_to_ptr.vmem [resolvable:$true] %s928
          %931 = dma.hbm_to_vmem [thread:$0]  %s31, 32, %s929, [#allocation21]
        $region72: #{tpu_custom_call.1} parent=11 // pred_fallthru
          _
        // Predicated region
        $region73: #{tpu_custom_call.1} parent=11 // pred_check
          %p932 = pneg %p446
        $region74: #{tpu_custom_call.1} parent=11 // pred_check_branch
          %934 = sbr.rel (%p932) target = $region76
        $region75: #{tpu_custom_call.1} parent=11 // pred_region
          %s936 = ssub.s32 2048, 2048
          %937 = vsyncadd [#allocation24], %s936
          %s938 = sshll.u32 [#allocation23], 4
          %s939 = int_to_ptr.vmem [resolvable:$true] %s938
          %944 = dma.hbm_to_vmem [thread:$0]  %s33, 2048, %s939, [#allocation24], 64, 64, 4
        $region76: #{tpu_custom_call.1} parent=11 // pred_fallthru
          _
        // Predicated region
        $region77: #{tpu_custom_call.1} parent=11 // pred_check
          %p945 = pneg %p467
        $region78: #{tpu_custom_call.1} parent=11 // pred_check_branch
          %947 = sbr.rel (%p945) target = $region80
        $region79: #{tpu_custom_call.1} parent=11 // pred_region
          _
        $region80: #{tpu_custom_call.1} parent=11 // pred_fallthru
          _
        // Predicated region
        $region81: #{tpu_custom_call.1} parent=11 // pred_check
          %p948 = pneg %p488
        $region82: #{tpu_custom_call.1} parent=11 // pred_check_branch
          %950 = sbr.rel (%p948) target = $region84
        $region83: #{tpu_custom_call.1} parent=11 // pred_region
          _
        $region84: #{tpu_custom_call.1} parent=11 // pred_fallthru
          _
        // Predicated region
        $region85: #{tpu_custom_call.1} parent=11 // pred_check
          %p951 = pneg %p509
        $region86: #{tpu_custom_call.1} parent=11 // pred_check_branch
          %953 = sbr.rel (%p951) target = $region88
        $region87: #{tpu_custom_call.1} parent=11 // pred_region
          %s955 = ssub.s32 3072, 3072
          %956 = vsyncadd [#allocation24], %s955
          %s957 = sshll.u32 [#allocation25], 4
          %s958 = int_to_ptr.vmem [resolvable:$true] %s957
          %963 = dma.hbm_to_vmem [thread:$0]  %s39, 3072, %s958, [#allocation24], 192, 192, 12
        $region88: #{tpu_custom_call.1} parent=11 // pred_fallthru
          _
        // Predicated region
        $region89: #{tpu_custom_call.1} parent=11 // pred_check
          %p964 = pneg %p530
        $region90: #{tpu_custom_call.1} parent=11 // pred_check_branch
          %966 = sbr.rel (%p964) target = $region92
        $region91: #{tpu_custom_call.1} parent=11 // pred_region
          _
        $region92: #{tpu_custom_call.1} parent=11 // pred_fallthru
          _
        // Predicated region
        $region93: #{tpu_custom_call.1} parent=11 // pred_check
          %p967 = pneg %p551
        $region94: #{tpu_custom_call.1} parent=11 // pred_check_branch
          %969 = sbr.rel (%p967) target = $region96
        $region95: #{tpu_custom_call.1} parent=11 // pred_region
          %s971 = ssub.s32 1024, 1024
          %972 = vsyncadd [#allocation27], %s971
          %s973 = sshll.u32 [#allocation26], 4
          %s974 = int_to_ptr.vmem [resolvable:$true] %s973
          %979 = dma.hbm_to_vmem [thread:$0]  %s43, 1024, %s974, [#allocation27], 64, 64, 4
        $region96: #{tpu_custom_call.1} parent=11 // pred_fallthru
          _
        // Predicated region
        $region97: #{tpu_custom_call.1} parent=11 // pred_check
          %p980 = pneg %p572
        $region98: #{tpu_custom_call.1} parent=11 // pred_check_branch
          %982 = sbr.rel (%p980) target = $region100
        $region99: #{tpu_custom_call.1} parent=11 // pred_region
          _
        $region100: #{tpu_custom_call.1} parent=11 // pred_fallthru
          _
        // Predicated region
        $region101: #{tpu_custom_call.1} parent=11 // pred_check
          %p983 = pneg %p593
        $region102: #{tpu_custom_call.1} parent=11 // pred_check_branch
          %985 = sbr.rel (%p983) target = $region104
        $region103: #{tpu_custom_call.1} parent=11 // pred_region
          _
        $region104: #{tpu_custom_call.1} parent=11 // pred_fallthru
          _
        // Predicated region
        $region105: #{tpu_custom_call.1} parent=11 // pred_check
          %p986 = pneg %p614
        $region106: #{tpu_custom_call.1} parent=11 // pred_check_branch
          %988 = sbr.rel (%p986) target = $region108
        $region107: #{tpu_custom_call.1} parent=11 // pred_region
          %s990 = ssub.s32 2048, 2048
          %991 = vsyncadd [#allocation27], %s990
          %s992 = sshll.u32 [#allocation28], 4
          %s993 = int_to_ptr.vmem [resolvable:$true] %s992
          %998 = dma.hbm_to_vmem [thread:$0]  %s49, 2048, %s993, [#allocation27], 128, 128, 8
        $region108: #{tpu_custom_call.1} parent=11 // pred_fallthru
          _
        // Predicated region
        $region109: #{tpu_custom_call.1} parent=11 // pred_check
          %p999 = pneg %p635
        $region110: #{tpu_custom_call.1} parent=11 // pred_check_branch
          %1001 = sbr.rel (%p999) target = $region112
        $region111: #{tpu_custom_call.1} parent=11 // pred_region
          _
        $region112: #{tpu_custom_call.1} parent=11 // pred_fallthru
          _
        // Predicated region
        $region113: #{tpu_custom_call.1} parent=11 // pred_check
          %p1002 = pneg %p656
        $region114: #{tpu_custom_call.1} parent=11 // pred_check_branch
          %1004 = sbr.rel (%p1002) target = $region116
        $region115: #{tpu_custom_call.1} parent=11 // pred_region
          %s1006 = ssub.s32 2048, 2048
          %1007 = vsyncadd [#allocation30], %s1006
          %s1008 = sshll.u32 [#allocation29], 4
          %s1009 = int_to_ptr.vmem [resolvable:$true] %s1008
          %1014 = dma.hbm_to_vmem [thread:$0]  %s53, 2048, %s1009, [#allocation30], 64, 64, 4
        $region116: #{tpu_custom_call.1} parent=11 // pred_fallthru
          _
        // Predicated region
        $region117: #{tpu_custom_call.1} parent=11 // pred_check
          %p1015 = pneg %p677
        $region118: #{tpu_custom_call.1} parent=11 // pred_check_branch
          %1017 = sbr.rel (%p1015) target = $region120
        $region119: #{tpu_custom_call.1} parent=11 // pred_region
          _
        $region120: #{tpu_custom_call.1} parent=11 // pred_fallthru
          _
        // Predicated region
        $region121: #{tpu_custom_call.1} parent=11 // pred_check
          %p1018 = pneg %p698
        $region122: #{tpu_custom_call.1} parent=11 // pred_check_branch
          %1020 = sbr.rel (%p1018) target = $region124
        $region123: #{tpu_custom_call.1} parent=11 // pred_region
          _
        $region124: #{tpu_custom_call.1} parent=11 // pred_fallthru
          _
        // Predicated region
        $region125: #{tpu_custom_call.1} parent=11 // pred_check
          %p1021 = pneg %p719
        $region126: #{tpu_custom_call.1} parent=11 // pred_check_branch
          %1023 = sbr.rel (%p1021) target = $region128
        $region127: #{tpu_custom_call.1} parent=11 // pred_region
          %s1025 = ssub.s32 1024, 1024
          %1026 = vsyncadd [#allocation30], %s1025
          %s1027 = sshll.u32 [#allocation31], 4
          %s1028 = int_to_ptr.vmem [resolvable:$true] %s1027
          %1033 = dma.hbm_to_vmem [thread:$0]  %s59, 1024, %s1028, [#allocation30], 64, 64, 4
        $region128: #{tpu_custom_call.1} parent=11 // pred_fallthru
          _
        // Predicated region
        $region129: #{tpu_custom_call.1} parent=11 // pred_check
          %p1034 = pneg %p740
        $region130: #{tpu_custom_call.1} parent=11 // pred_check_branch
          %1036 = sbr.rel (%p1034) target = $region132
        $region131: #{tpu_custom_call.1} parent=11 // pred_region
          _
        $region132: #{tpu_custom_call.1} parent=11 // pred_fallthru
          _
      $region12: #{tpu_custom_call.1} parent=5 // pred_fallthru
        _
      %p1037 = scmp.lt.s32.totalorder %s84, 2
      // Predicated region
      $region133: #{tpu_custom_call.1} parent=5 // pred_check
        %p1038 = pneg %p1037
      $region134: #{tpu_custom_call.1} parent=5 // pred_check_branch
        %1040 = sbr.rel (%p1038) target = $region136
      $region135: #{tpu_custom_call.1} parent=5 // pred_region
        // Predicated region
        $region137: #{tpu_custom_call.1} parent=135 // pred_check
          %p1041 = pneg %p104
        $region138: #{tpu_custom_call.1} parent=135 // pred_check_branch
          %1043 = sbr.rel (%p1041) target = $region140
        $region139: #{tpu_custom_call.1} parent=135 // pred_region
          %s1044 = sand.u32 %s94, 1
          %s1045 = scalar_lea.sflag [#allocation3], %s1044
          %s1046 = sand.u32 %s94, 1
          %s1047 = smul.addr %s1046, 128
          %s1048 = scalar_lea.vmem [#allocation2], %s1047
          %s1050 = ssub.s32 2048, 2048
          %1051 = vsyncadd %s1045, %s1050
          %s1052 = smul.addr %s84, 32
          %s1053 = smul.addr %s1052, 64
          %s1054 = scalar_lea.hbm %s1, %s1053
          %s1055 = sshll.u32 %s1048, 4
          %s1056 = int_to_ptr.vmem [resolvable:$true] %s1055
          %1061 = dma.hbm_to_vmem [thread:$0]  %s1054, 2048, %s1056, %s1045, 64, 64, 4
        $region140: #{tpu_custom_call.1} parent=135 // pred_fallthru
          _
      $region136: #{tpu_custom_call.1} parent=5 // pred_fallthru
        _
      %p1062 = scmp.le.s32.totalorder 1, %s84
      %p1063 = scmp.lt.s32.totalorder %s84, 3
      %p1064 = pnand %p1062, %p1063
      %p1065 = pneg %p1064
      // Predicated region
      $region141: #{tpu_custom_call.1} parent=5 // pred_check
        _
      $region142: #{tpu_custom_call.1} parent=5 // pred_check_branch
        %1067 = sbr.rel (%p1064) target = $region144
      $region143: #{tpu_custom_call.1} parent=5 // pred_region
        %s1068 = ssub.s32 %s84, 1
        %s1069 = sand.u32 %s97, 1
        %s1070 = scalar_lea.sflag [#allocation3], %s1069
        %s1071 = sand.u32 %s97, 1
        %s1072 = smul.addr %s1071, 128
        %s1073 = scalar_lea.vmem [#allocation2], %s1072
        // Predicated region
        $region145: #{tpu_custom_call.1} parent=143 // pred_check
          %p1074 = pneg %p110
        $region146: #{tpu_custom_call.1} parent=143 // pred_check_branch
          %1076 = sbr.rel (%p1074) target = $region148
        $region147: #{tpu_custom_call.1} parent=143 // pred_region
          %1077 = dma.done %s1070, 2048
        $region148: #{tpu_custom_call.1} parent=143 // pred_fallthru
          _
        // Predicated region
        $region149: #{tpu_custom_call.1} parent=143 // pred_check
          %p1078 = pneg %p131
        $region150: #{tpu_custom_call.1} parent=143 // pred_check_branch
          %1080 = sbr.rel (%p1078) target = $region152
        $region151: #{tpu_custom_call.1} parent=143 // pred_region
          %1081 = dma.done [#allocation6], 8192
        $region152: #{tpu_custom_call.1} parent=143 // pred_fallthru
          _
        // Predicated region
        $region153: #{tpu_custom_call.1} parent=143 // pred_check
          %p1082 = pneg %p152
        $region154: #{tpu_custom_call.1} parent=143 // pred_check_branch
          %1084 = sbr.rel (%p1082) target = $region156
        $region155: #{tpu_custom_call.1} parent=143 // pred_region
          %1085 = dma.done [#allocation6], 256
        $region156: #{tpu_custom_call.1} parent=143 // pred_fallthru
          _
        // Predicated region
        $region157: #{tpu_custom_call.1} parent=143 // pred_check
          %p1086 = pneg %p173
        $region158: #{tpu_custom_call.1} parent=143 // pred_check_branch
          %1088 = sbr.rel (%p1086) target = $region160
        $region159: #{tpu_custom_call.1} parent=143 // pred_region
          %1089 = dma.done [#allocation9], 128
        $region160: #{tpu_custom_call.1} parent=143 // pred_fallthru
          _
        // Predicated region
        $region161: #{tpu_custom_call.1} parent=143 // pred_check
          %p1090 = pneg %p194
        $region162: #{tpu_custom_call.1} parent=143 // pred_check_branch
          %1092 = sbr.rel (%p1090) target = $region164
        $region163: #{tpu_custom_call.1} parent=143 // pred_region
          %1093 = dma.done [#allocation9], 32
        $region164: #{tpu_custom_call.1} parent=143 // pred_fallthru
          _
        // Predicated region
        $region165: #{tpu_custom_call.1} parent=143 // pred_check
          %p1094 = pneg %p236
        $region166: #{tpu_custom_call.1} parent=143 // pred_check_branch
          %1096 = sbr.rel (%p1094) target = $region168
        $region167: #{tpu_custom_call.1} parent=143 // pred_region
          %1097 = dma.done [#allocation12], 1024
        $region168: #{tpu_custom_call.1} parent=143 // pred_fallthru
          _
        // Predicated region
        $region169: #{tpu_custom_call.1} parent=143 // pred_check
          %p1098 = pneg %p257
        $region170: #{tpu_custom_call.1} parent=143 // pred_check_branch
          %1100 = sbr.rel (%p1098) target = $region172
        $region171: #{tpu_custom_call.1} parent=143 // pred_region
          %1101 = dma.done [#allocation12], 16
        $region172: #{tpu_custom_call.1} parent=143 // pred_fallthru
          _
        // Predicated region
        $region173: #{tpu_custom_call.1} parent=143 // pred_check
          %p1102 = pneg %p299
        $region174: #{tpu_custom_call.1} parent=143 // pred_check_branch
          %1104 = sbr.rel (%p1102) target = $region176
        $region175: #{tpu_custom_call.1} parent=143 // pred_region
          %1105 = dma.done [#allocation15], 3072
        $region176: #{tpu_custom_call.1} parent=143 // pred_fallthru
          _
        // Predicated region
        $region177: #{tpu_custom_call.1} parent=143 // pred_check
          %p1106 = pneg %p320
        $region178: #{tpu_custom_call.1} parent=143 // pred_check_branch
          %1108 = sbr.rel (%p1106) target = $region180
        $region179: #{tpu_custom_call.1} parent=143 // pred_region
          %1109 = dma.done [#allocation15], 48
        $region180: #{tpu_custom_call.1} parent=143 // pred_fallthru
          _
        // Predicated region
        $region181: #{tpu_custom_call.1} parent=143 // pred_check
          %p1110 = pneg %p341
        $region182: #{tpu_custom_call.1} parent=143 // pred_check_branch
          %1112 = sbr.rel (%p1110) target = $region184
        $region183: #{tpu_custom_call.1} parent=143 // pred_region
          %1113 = dma.done [#allocation18], 1024
        $region184: #{tpu_custom_call.1} parent=143 // pred_fallthru
          _
        // Predicated region
        $region185: #{tpu_custom_call.1} parent=143 // pred_check
          %p1114 = pneg %p362
        $region186: #{tpu_custom_call.1} parent=143 // pred_check_branch
          %1116 = sbr.rel (%p1114) target = $region188
        $region187: #{tpu_custom_call.1} parent=143 // pred_region
          %1117 = dma.done [#allocation18], 16
        $region188: #{tpu_custom_call.1} parent=143 // pred_fallthru
          _
        // Predicated region
        $region189: #{tpu_custom_call.1} parent=143 // pred_check
          %p1118 = pneg %p404
        $region190: #{tpu_custom_call.1} parent=143 // pred_check_branch
          %1120 = sbr.rel (%p1118) target = $region192
        $region191: #{tpu_custom_call.1} parent=143 // pred_region
          %1121 = dma.done [#allocation21], 2048
        $region192: #{tpu_custom_call.1} parent=143 // pred_fallthru
          _
        // Predicated region
        $region193: #{tpu_custom_call.1} parent=143 // pred_check
          %p1122 = pneg %p425
        $region194: #{tpu_custom_call.1} parent=143 // pred_check_branch
          %1124 = sbr.rel (%p1122) target = $region196
        $region195: #{tpu_custom_call.1} parent=143 // pred_region
          %1125 = dma.done [#allocation21], 32
        $region196: #{tpu_custom_call.1} parent=143 // pred_fallthru
          _
        // Predicated region
        $region197: #{tpu_custom_call.1} parent=143 // pred_check
          %p1126 = pneg %p446
        $region198: #{tpu_custom_call.1} parent=143 // pred_check_branch
          %1128 = sbr.rel (%p1126) target = $region200
        $region199: #{tpu_custom_call.1} parent=143 // pred_region
          %1129 = dma.done [#allocation24], 2048
        $region200: #{tpu_custom_call.1} parent=143 // pred_fallthru
          _
        // Predicated region
        $region201: #{tpu_custom_call.1} parent=143 // pred_check
          %p1130 = pneg %p509
        $region202: #{tpu_custom_call.1} parent=143 // pred_check_branch
          %1132 = sbr.rel (%p1130) target = $region204
        $region203: #{tpu_custom_call.1} parent=143 // pred_region
          %1133 = dma.done [#allocation24], 3072
        $region204: #{tpu_custom_call.1} parent=143 // pred_fallthru
          _
        // Predicated region
        $region205: #{tpu_custom_call.1} parent=143 // pred_check
          %p1134 = pneg %p551
        $region206: #{tpu_custom_call.1} parent=143 // pred_check_branch
          %1136 = sbr.rel (%p1134) target = $region208
        $region207: #{tpu_custom_call.1} parent=143 // pred_region
          %1137 = dma.done [#allocation27], 1024
        $region208: #{tpu_custom_call.1} parent=143 // pred_fallthru
          _
        // Predicated region
        $region209: #{tpu_custom_call.1} parent=143 // pred_check
          %p1138 = pneg %p614
        $region210: #{tpu_custom_call.1} parent=143 // pred_check_branch
          %1140 = sbr.rel (%p1138) target = $region212
        $region211: #{tpu_custom_call.1} parent=143 // pred_region
          %1141 = dma.done [#allocation27], 2048
        $region212: #{tpu_custom_call.1} parent=143 // pred_fallthru
          _
        // Predicated region
        $region213: #{tpu_custom_call.1} parent=143 // pred_check
          %p1142 = pneg %p656
        $region214: #{tpu_custom_call.1} parent=143 // pred_check_branch
          %1144 = sbr.rel (%p1142) target = $region216
        $region215: #{tpu_custom_call.1} parent=143 // pred_region
          %1145 = dma.done [#allocation30], 2048
        $region216: #{tpu_custom_call.1} parent=143 // pred_fallthru
          _
        // Predicated region
        $region217: #{tpu_custom_call.1} parent=143 // pred_check
          %p1146 = pneg %p719
        $region218: #{tpu_custom_call.1} parent=143 // pred_check_branch
          %1148 = sbr.rel (%p1146) target = $region220
        $region219: #{tpu_custom_call.1} parent=143 // pred_region
          %1149 = dma.done [#allocation30], 1024
        $region220: #{tpu_custom_call.1} parent=143 // pred_fallthru
          _
        %s1150 = sand.u32 %s97, 1
        %s1151 = scalar_lea.sflag [#allocation3], %s1150
        %s1152 = sand.u32 %s97, 1
        %s1153 = smul.addr %s1152, 128
        %s1154 = scalar_lea.vmem [#allocation2], %s1153
        %p1155 = pneg %p110
        %p1156 = pneg %p107
        %p1157 = pneg %p131
        %p1158 = pneg %p128
        %p1159 = pneg %p152
        %p1160 = pneg %p149
        %p1161 = pneg %p173
        %p1162 = pneg %p170
        %p1163 = pneg %p194
        %p1164 = pneg %p191
        %p1165 = pneg %p215
        %p1166 = pneg %p212
        %p1167 = pneg %p236
        %p1168 = pneg %p233
        %p1169 = pneg %p257
        %p1170 = pneg %p254
        %p1171 = pneg %p278
        %p1172 = pneg %p275
        %p1173 = pneg %p299
        %p1174 = pneg %p296
        %p1175 = pneg %p320
        %p1176 = pneg %p317
        %p1177 = pneg %p341
        %p1178 = pneg %p338
        %p1179 = pneg %p362
        %p1180 = pneg %p359
        %p1181 = pneg %p383
        %p1182 = pneg %p380
        %p1183 = pneg %p404
        %p1184 = pneg %p401
        %p1185 = pneg %p425
        %p1186 = pneg %p422
        %p1187 = pneg %p446
        %p1188 = pneg %p443
        %p1189 = pneg %p467
        %p1190 = pneg %p464
        %p1191 = pneg %p488
        %p1192 = pneg %p485
        %p1193 = pneg %p509
        %p1194 = pneg %p506
        %p1195 = pneg %p530
        %p1196 = pneg %p527
        %p1197 = pneg %p551
        %p1198 = pneg %p548
        %p1199 = pneg %p572
        %p1200 = pneg %p569
        %p1201 = pneg %p593
        %p1202 = pneg %p590
        %p1203 = pneg %p614
        %p1204 = pneg %p611
        %p1205 = pneg %p635
        %p1206 = pneg %p632
        %p1207 = pneg %p656
        %p1208 = pneg %p653
        %p1209 = pneg %p677
        %p1210 = pneg %p674
        %p1211 = pneg %p698
        %p1212 = pneg %p695
        %p1213 = pneg %p719
        %p1214 = pneg %p716
        %p1215 = pneg %p740
        %p1216 = pneg %p737
        %p1217 = pneg %p766
        %p1218 = pneg %p763
        %s1219 = sand.u32 %s753, 1
        %s1220 = scalar_lea.sflag [#allocation4], %s1219
        %s1221 = sand.u32 %s753, 1
        %s1222 = smul.addr %s1221, 2
        %s1223 = scalar_lea.vmem [#allocation32], %s1222
        %v1225 = vld [vmem:[%s1073] sm:$0xf]
        %v1226 = vld [vmem:[%s1073 + $0x4] sm:$0xf]
        %v1227 = vld [vmem:[%s1073 + $0x8] sm:$0xf]
        %v1228 = vld [vmem:[%s1073 + $0xc] sm:$0xf]
        %v1229 = vld [vmem:[%s1073 + $0x10] sm:$0xf]
        %v1230 = vld [vmem:[%s1073 + $0x14] sm:$0xf]
        %v1231 = vld [vmem:[%s1073 + $0x18] sm:$0xf]
        %v1232 = vld [vmem:[%s1073 + $0x1c] sm:$0xf]
        %v1233 = vld [vmem:[%s1073 + $0x20] sm:$0xf]
        %v1234 = vld [vmem:[%s1073 + $0x24] sm:$0xf]
        %v1235 = vld [vmem:[%s1073 + $0x28] sm:$0xf]
        %v1236 = vld [vmem:[%s1073 + $0x2c] sm:$0xf]
        %v1237 = vld [vmem:[%s1073 + $0x30] sm:$0xf]
        %v1238 = vld [vmem:[%s1073 + $0x34] sm:$0xf]
        %v1239 = vld [vmem:[%s1073 + $0x38] sm:$0xf]
        %v1240 = vld [vmem:[%s1073 + $0x3c] sm:$0xf]
        %v1241 = vld [vmem:[%s1073 + $0x40] sm:$0xf]
        %v1242 = vld [vmem:[%s1073 + $0x44] sm:$0xf]
        %v1243 = vld [vmem:[%s1073 + $0x48] sm:$0xf]
        %v1244 = vld [vmem:[%s1073 + $0x4c] sm:$0xf]
        %v1245 = vld [vmem:[%s1073 + $0x50] sm:$0xf]
        %v1246 = vld [vmem:[%s1073 + $0x54] sm:$0xf]
        %v1247 = vld [vmem:[%s1073 + $0x58] sm:$0xf]
        %v1248 = vld [vmem:[%s1073 + $0x5c] sm:$0xf]
        %v1249 = vld [vmem:[%s1073 + $0x60] sm:$0xf]
        %v1250 = vld [vmem:[%s1073 + $0x64] sm:$0xf]
        %v1251 = vld [vmem:[%s1073 + $0x68] sm:$0xf]
        %v1252 = vld [vmem:[%s1073 + $0x6c] sm:$0xf]
        %v1253 = vld [vmem:[%s1073 + $0x70] sm:$0xf]
        %v1254 = vld [vmem:[%s1073 + $0x74] sm:$0xf]
        %v1255 = vld [vmem:[%s1073 + $0x78] sm:$0xf]
        %v1256 = vld [vmem:[%s1073 + $0x7c] sm:$0xf]
        %v1257 = vunpack.c.l.bf16 %v1225
        %v1258 = vunpack.c.l.bf16 %v1226
        %v1259 = vunpack.c.l.bf16 %v1227
        %v1260 = vunpack.c.l.bf16 %v1228
        %v1261 = vunpack.c.l.bf16 %v1229
        %v1262 = vunpack.c.l.bf16 %v1230
        %v1263 = vunpack.c.l.bf16 %v1231
        %v1264 = vunpack.c.l.bf16 %v1232
        %v1265 = vunpack.c.l.bf16 %v1233
        %v1266 = vunpack.c.l.bf16 %v1234
        %v1267 = vunpack.c.l.bf16 %v1235
        %v1268 = vunpack.c.l.bf16 %v1236
        %v1269 = vunpack.c.l.bf16 %v1237
        %v1270 = vunpack.c.l.bf16 %v1238
        %v1271 = vunpack.c.l.bf16 %v1239
        %v1272 = vunpack.c.l.bf16 %v1240
        %v1273 = vunpack.c.l.bf16 %v1241
        %v1274 = vunpack.c.l.bf16 %v1242
        %v1275 = vunpack.c.l.bf16 %v1243
        %v1276 = vunpack.c.l.bf16 %v1244
        %v1277 = vunpack.c.l.bf16 %v1245
        %v1278 = vunpack.c.l.bf16 %v1246
        %v1279 = vunpack.c.l.bf16 %v1247
        %v1280 = vunpack.c.l.bf16 %v1248
        %v1281 = vunpack.c.l.bf16 %v1249
        %v1282 = vunpack.c.l.bf16 %v1250
        %v1283 = vunpack.c.l.bf16 %v1251
        %v1284 = vunpack.c.l.bf16 %v1252
        %v1285 = vunpack.c.l.bf16 %v1253
        %v1286 = vunpack.c.l.bf16 %v1254
        %v1287 = vunpack.c.l.bf16 %v1255
        %v1288 = vunpack.c.l.bf16 %v1256
        %v1289 = vld [vmem:[%s11] sm:$0x7]
        %1290 = vadd.xlane.f32.xlu0 %v1257
        %v1291 = vpop.xlane.xlu0 %1290
        %1292 = vadd.xlane.f32.xlu0 %v1258
        %v1293 = vpop.xlane.xlu0 %1292
        %1294 = vadd.xlane.f32.xlu0 %v1259
        %v1295 = vpop.xlane.xlu0 %1294
        %1296 = vadd.xlane.f32.xlu0 %v1260
        %v1297 = vpop.xlane.xlu0 %1296
        %1298 = vadd.xlane.f32.xlu0 %v1261
        %v1299 = vpop.xlane.xlu0 %1298
        %1300 = vadd.xlane.f32.xlu0 %v1262
        %v1301 = vpop.xlane.xlu0 %1300
        %1302 = vadd.xlane.f32.xlu0 %v1263
        %v1303 = vpop.xlane.xlu0 %1302
        %1304 = vadd.xlane.f32.xlu0 %v1264
        %v1305 = vpop.xlane.xlu0 %1304
        %1306 = vadd.xlane.f32.xlu0 %v1265
        %v1307 = vpop.xlane.xlu0 %1306
        %1308 = vadd.xlane.f32.xlu0 %v1266
        %v1309 = vpop.xlane.xlu0 %1308
        %1310 = vadd.xlane.f32.xlu0 %v1267
        %v1311 = vpop.xlane.xlu0 %1310
        %1312 = vadd.xlane.f32.xlu0 %v1268
        %v1313 = vpop.xlane.xlu0 %1312
        %1314 = vadd.xlane.f32.xlu0 %v1269
        %v1315 = vpop.xlane.xlu0 %1314
        %1316 = vadd.xlane.f32.xlu0 %v1270
        %v1317 = vpop.xlane.xlu0 %1316
        %1318 = vadd.xlane.f32.xlu0 %v1271
        %v1319 = vpop.xlane.xlu0 %1318
        %1320 = vadd.xlane.f32.xlu0 %v1272
        %v1321 = vpop.xlane.xlu0 %1320
        %1322 = vadd.xlane.f32.xlu0 %v1273
        %v1323 = vpop.xlane.xlu0 %1322
        %1324 = vadd.xlane.f32.xlu0 %v1274
        %v1325 = vpop.xlane.xlu0 %1324
        %1326 = vadd.xlane.f32.xlu0 %v1275
        %v1327 = vpop.xlane.xlu0 %1326
        %1328 = vadd.xlane.f32.xlu0 %v1276
        %v1329 = vpop.xlane.xlu0 %1328
        %1330 = vadd.xlane.f32.xlu0 %v1277
        %v1331 = vpop.xlane.xlu0 %1330
        %1332 = vadd.xlane.f32.xlu0 %v1278
        %v1333 = vpop.xlane.xlu0 %1332
        %1334 = vadd.xlane.f32.xlu0 %v1279
        %v1335 = vpop.xlane.xlu0 %1334
        %1336 = vadd.xlane.f32.xlu0 %v1280
        %v1337 = vpop.xlane.xlu0 %1336
        %1338 = vadd.xlane.f32.xlu0 %v1281
        %v1339 = vpop.xlane.xlu0 %1338
        %1340 = vadd.xlane.f32.xlu0 %v1282
        %v1341 = vpop.xlane.xlu0 %1340
        %1342 = vadd.xlane.f32.xlu0 %v1283
        %v1343 = vpop.xlane.xlu0 %1342
        %1344 = vadd.xlane.f32.xlu0 %v1284
        %v1345 = vpop.xlane.xlu0 %1344
        %1346 = vadd.xlane.f32.xlu0 %v1285
        %v1347 = vpop.xlane.xlu0 %1346
        %1348 = vadd.xlane.f32.xlu0 %v1286
        %v1349 = vpop.xlane.xlu0 %1348
        %1350 = vadd.xlane.f32.xlu0 %v1287
        %v1351 = vpop.xlane.xlu0 %1350
        %1352 = vadd.xlane.f32.xlu0 %v1288
        %v1353 = vpop.xlane.xlu0 %1352
        %v1354 = vmul.f32 %v1291, 0.0078125
        %v1355 = vmul.f32 %v1293, 0.0078125
        %v1356 = vmul.f32 %v1295, 0.0078125
        %v1357 = vmul.f32 %v1297, 0.0078125
        %v1358 = vmul.f32 %v1299, 0.0078125
        %v1359 = vmul.f32 %v1301, 0.0078125
        %v1360 = vmul.f32 %v1303, 0.0078125
        %v1361 = vmul.f32 %v1305, 0.0078125
        %v1362 = vmul.f32 %v1307, 0.0078125
        %v1363 = vmul.f32 %v1309, 0.0078125
        %v1364 = vmul.f32 %v1311, 0.0078125
        %v1365 = vmul.f32 %v1313, 0.0078125
        %v1366 = vmul.f32 %v1315, 0.0078125
        %v1367 = vmul.f32 %v1317, 0.0078125
        %v1368 = vmul.f32 %v1319, 0.0078125
        %v1369 = vmul.f32 %v1321, 0.0078125
        %v1370 = vmul.f32 %v1323, 0.0078125
        %v1371 = vmul.f32 %v1325, 0.0078125
        %v1372 = vmul.f32 %v1327, 0.0078125
        %v1373 = vmul.f32 %v1329, 0.0078125
        %v1374 = vmul.f32 %v1331, 0.0078125
        %v1375 = vmul.f32 %v1333, 0.0078125
        %v1376 = vmul.f32 %v1335, 0.0078125
        %v1377 = vmul.f32 %v1337, 0.0078125
        %v1378 = vmul.f32 %v1339, 0.0078125
        %v1379 = vmul.f32 %v1341, 0.0078125
        %v1380 = vmul.f32 %v1343, 0.0078125
        %v1381 = vmul.f32 %v1345, 0.0078125
        %v1382 = vmul.f32 %v1347, 0.0078125
        %v1383 = vmul.f32 %v1349, 0.0078125
        %v1384 = vmul.f32 %v1351, 0.0078125
        %v1385 = vmul.f32 %v1353, 0.0078125
        %v1386 = vsub.f32 %v1257, %v1354
        %v1387 = vsub.f32 %v1258, %v1355
        %v1388 = vsub.f32 %v1259, %v1356
        %v1389 = vsub.f32 %v1260, %v1357
        %v1390 = vsub.f32 %v1261, %v1358
        %v1391 = vsub.f32 %v1262, %v1359
        %v1392 = vsub.f32 %v1263, %v1360
        %v1393 = vsub.f32 %v1264, %v1361
        %v1394 = vsub.f32 %v1265, %v1362
        %v1395 = vsub.f32 %v1266, %v1363
        %v1396 = vsub.f32 %v1267, %v1364
        %v1397 = vsub.f32 %v1268, %v1365
        %v1398 = vsub.f32 %v1269, %v1366
        %v1399 = vsub.f32 %v1270, %v1367
        %v1400 = vsub.f32 %v1271, %v1368
        %v1401 = vsub.f32 %v1272, %v1369
        %v1402 = vsub.f32 %v1273, %v1370
        %v1403 = vsub.f32 %v1274, %v1371
        %v1404 = vsub.f32 %v1275, %v1372
        %v1405 = vsub.f32 %v1276, %v1373
        %v1406 = vsub.f32 %v1277, %v1374
        %v1407 = vsub.f32 %v1278, %v1375
        %v1408 = vsub.f32 %v1279, %v1376
        %v1409 = vsub.f32 %v1280, %v1377
        %v1410 = vsub.f32 %v1281, %v1378
        %v1411 = vsub.f32 %v1282, %v1379
        %v1412 = vsub.f32 %v1283, %v1380
        %v1413 = vsub.f32 %v1284, %v1381
        %v1414 = vsub.f32 %v1285, %v1382
        %v1415 = vsub.f32 %v1286, %v1383
        %v1416 = vsub.f32 %v1287, %v1384
        %v1417 = vsub.f32 %v1288, %v1385
        %v1418 = vlaneseq
        %v1419 = vshrl.u32 %v1418, 7
        %v1420 = vsub.s32 2, %v1419
        %v1421 = vrot.slane %v1289, %v1420
        %v1422 = vmul.f32 %v1386, %v1421
        %v1423 = vmul.f32 %v1387, %v1421
        %v1424 = vmul.f32 %v1388, %v1421
        %v1425 = vmul.f32 %v1389, %v1421
        %v1426 = vmul.f32 %v1390, %v1421
        %v1427 = vmul.f32 %v1391, %v1421
        %v1428 = vmul.f32 %v1392, %v1421
        %v1429 = vmul.f32 %v1393, %v1421
        %v1430 = vmul.f32 %v1394, %v1421
        %v1431 = vmul.f32 %v1395, %v1421
        %v1432 = vmul.f32 %v1396, %v1421
        %v1433 = vmul.f32 %v1397, %v1421
        %v1434 = vmul.f32 %v1398, %v1421
        %v1435 = vmul.f32 %v1399, %v1421
        %v1436 = vmul.f32 %v1400, %v1421
        %v1437 = vmul.f32 %v1401, %v1421
        %v1438 = vmul.f32 %v1402, %v1421
        %v1439 = vmul.f32 %v1403, %v1421
        %v1440 = vmul.f32 %v1404, %v1421
        %v1441 = vmul.f32 %v1405, %v1421
        %v1442 = vmul.f32 %v1406, %v1421
        %v1443 = vmul.f32 %v1407, %v1421
        %v1444 = vmul.f32 %v1408, %v1421
        %v1445 = vmul.f32 %v1409, %v1421
        %v1446 = vmul.f32 %v1410, %v1421
        %v1447 = vmul.f32 %v1411, %v1421
        %v1448 = vmul.f32 %v1412, %v1421
        %v1449 = vmul.f32 %v1413, %v1421
        %v1450 = vmul.f32 %v1414, %v1421
        %v1451 = vmul.f32 %v1415, %v1421
        %v1452 = vmul.f32 %v1416, %v1421
        %v1453 = vmul.f32 %v1417, %v1421
        %v1454 = vmul.f32 %v1422, %v1422
        %v1455 = vmul.f32 %v1423, %v1423
        %v1456 = vmul.f32 %v1424, %v1424
        %v1457 = vmul.f32 %v1425, %v1425
        %v1458 = vmul.f32 %v1426, %v1426
        %v1459 = vmul.f32 %v1427, %v1427
        %v1460 = vmul.f32 %v1428, %v1428
        %v1461 = vmul.f32 %v1429, %v1429
        %v1462 = vmul.f32 %v1430, %v1430
        %v1463 = vmul.f32 %v1431, %v1431
        %v1464 = vmul.f32 %v1432, %v1432
        %v1465 = vmul.f32 %v1433, %v1433
        %v1466 = vmul.f32 %v1434, %v1434
        %v1467 = vmul.f32 %v1435, %v1435
        %v1468 = vmul.f32 %v1436, %v1436
        %v1469 = vmul.f32 %v1437, %v1437
        %v1470 = vmul.f32 %v1438, %v1438
        %v1471 = vmul.f32 %v1439, %v1439
        %v1472 = vmul.f32 %v1440, %v1440
        %v1473 = vmul.f32 %v1441, %v1441
        %v1474 = vmul.f32 %v1442, %v1442
        %v1475 = vmul.f32 %v1443, %v1443
        %v1476 = vmul.f32 %v1444, %v1444
        %v1477 = vmul.f32 %v1445, %v1445
        %v1478 = vmul.f32 %v1446, %v1446
        %v1479 = vmul.f32 %v1447, %v1447
        %v1480 = vmul.f32 %v1448, %v1448
        %v1481 = vmul.f32 %v1449, %v1449
        %v1482 = vmul.f32 %v1450, %v1450
        %v1483 = vmul.f32 %v1451, %v1451
        %v1484 = vmul.f32 %v1452, %v1452
        %v1485 = vmul.f32 %v1453, %v1453
        %1486 = vadd.xlane.f32.xlu0 %v1454
        %v1487 = vpop.xlane.xlu0 %1486
        %1488 = vadd.xlane.f32.xlu0 %v1455
        %v1489 = vpop.xlane.xlu0 %1488
        %1490 = vadd.xlane.f32.xlu0 %v1456
        %v1491 = vpop.xlane.xlu0 %1490
        %1492 = vadd.xlane.f32.xlu0 %v1457
        %v1493 = vpop.xlane.xlu0 %1492
        %1494 = vadd.xlane.f32.xlu0 %v1458
        %v1495 = vpop.xlane.xlu0 %1494
        %1496 = vadd.xlane.f32.xlu0 %v1459
        %v1497 = vpop.xlane.xlu0 %1496
        %1498 = vadd.xlane.f32.xlu0 %v1460
        %v1499 = vpop.xlane.xlu0 %1498
        %1500 = vadd.xlane.f32.xlu0 %v1461
        %v1501 = vpop.xlane.xlu0 %1500
        %1502 = vadd.xlane.f32.xlu0 %v1462
        %v1503 = vpop.xlane.xlu0 %1502
        %1504 = vadd.xlane.f32.xlu0 %v1463
        %v1505 = vpop.xlane.xlu0 %1504
        %1506 = vadd.xlane.f32.xlu0 %v1464
        %v1507 = vpop.xlane.xlu0 %1506
        %1508 = vadd.xlane.f32.xlu0 %v1465
        %v1509 = vpop.xlane.xlu0 %1508
        %1510 = vadd.xlane.f32.xlu0 %v1466
        %v1511 = vpop.xlane.xlu0 %1510
        %1512 = vadd.xlane.f32.xlu0 %v1467
        %v1513 = vpop.xlane.xlu0 %1512
        %1514 = vadd.xlane.f32.xlu0 %v1468
        %v1515 = vpop.xlane.xlu0 %1514
        %1516 = vadd.xlane.f32.xlu0 %v1469
        %v1517 = vpop.xlane.xlu0 %1516
        %1518 = vadd.xlane.f32.xlu0 %v1470
        %v1519 = vpop.xlane.xlu0 %1518
        %1520 = vadd.xlane.f32.xlu0 %v1471
        %v1521 = vpop.xlane.xlu0 %1520
        %1522 = vadd.xlane.f32.xlu0 %v1472
        %v1523 = vpop.xlane.xlu0 %1522
        %1524 = vadd.xlane.f32.xlu0 %v1473
        %v1525 = vpop.xlane.xlu0 %1524
        %1526 = vadd.xlane.f32.xlu0 %v1474
        %v1527 = vpop.xlane.xlu0 %1526
        %1528 = vadd.xlane.f32.xlu0 %v1475
        %v1529 = vpop.xlane.xlu0 %1528
        %1530 = vadd.xlane.f32.xlu0 %v1476
        %v1531 = vpop.xlane.xlu0 %1530
        %1532 = vadd.xlane.f32.xlu0 %v1477
        %v1533 = vpop.xlane.xlu0 %1532
        %1534 = vadd.xlane.f32.xlu0 %v1478
        %v1535 = vpop.xlane.xlu0 %1534
        %1536 = vadd.xlane.f32.xlu0 %v1479
        %v1537 = vpop.xlane.xlu0 %1536
        %1538 = vadd.xlane.f32.xlu0 %v1480
        %v1539 = vpop.xlane.xlu0 %1538
        %1540 = vadd.xlane.f32.xlu0 %v1481
        %v1541 = vpop.xlane.xlu0 %1540
        %1542 = vadd.xlane.f32.xlu0 %v1482
        %v1543 = vpop.xlane.xlu0 %1542
        %1544 = vadd.xlane.f32.xlu0 %v1483
        %v1545 = vpop.xlane.xlu0 %1544
        %1546 = vadd.xlane.f32.xlu0 %v1484
        %v1547 = vpop.xlane.xlu0 %1546
        %1548 = vadd.xlane.f32.xlu0 %v1485
        %v1549 = vpop.xlane.xlu0 %1548
        %v1550 = vmul.f32 %v1487, 0.0078125
        %v1551 = vmul.f32 %v1489, 0.0078125
        %v1552 = vmul.f32 %v1491, 0.0078125
        %v1553 = vmul.f32 %v1493, 0.0078125
        %v1554 = vmul.f32 %v1495, 0.0078125
        %v1555 = vmul.f32 %v1497, 0.0078125
        %v1556 = vmul.f32 %v1499, 0.0078125
        %v1557 = vmul.f32 %v1501, 0.0078125
        %v1558 = vmul.f32 %v1503, 0.0078125
        %v1559 = vmul.f32 %v1505, 0.0078125
        %v1560 = vmul.f32 %v1507, 0.0078125
        %v1561 = vmul.f32 %v1509, 0.0078125
        %v1562 = vmul.f32 %v1511, 0.0078125
        %v1563 = vmul.f32 %v1513, 0.0078125
        %v1564 = vmul.f32 %v1515, 0.0078125
        %v1565 = vmul.f32 %v1517, 0.0078125
        %v1566 = vmul.f32 %v1519, 0.0078125
        %v1567 = vmul.f32 %v1521, 0.0078125
        %v1568 = vmul.f32 %v1523, 0.0078125
        %v1569 = vmul.f32 %v1525, 0.0078125
        %v1570 = vmul.f32 %v1527, 0.0078125
        %v1571 = vmul.f32 %v1529, 0.0078125
        %v1572 = vmul.f32 %v1531, 0.0078125
        %v1573 = vmul.f32 %v1533, 0.0078125
        %v1574 = vmul.f32 %v1535, 0.0078125
        %v1575 = vmul.f32 %v1537, 0.0078125
        %v1576 = vmul.f32 %v1539, 0.0078125
        %v1577 = vmul.f32 %v1541, 0.0078125
        %v1578 = vmul.f32 %v1543, 0.0078125
        %v1579 = vmul.f32 %v1545, 0.0078125
        %v1580 = vmul.f32 %v1547, 0.0078125
        %v1581 = vmul.f32 %v1549, 0.0078125
        %v1582 = vadd.f32 %v1550, 1e-05
        %v1583 = vadd.f32 %v1551, 1e-05
        %v1584 = vadd.f32 %v1552, 1e-05
        %v1585 = vadd.f32 %v1553, 1e-05
        %v1586 = vadd.f32 %v1554, 1e-05
        %v1587 = vadd.f32 %v1555, 1e-05
        %v1588 = vadd.f32 %v1556, 1e-05
        %v1589 = vadd.f32 %v1557, 1e-05
        %v1590 = vadd.f32 %v1558, 1e-05
        %v1591 = vadd.f32 %v1559, 1e-05
        %v1592 = vadd.f32 %v1560, 1e-05
        %v1593 = vadd.f32 %v1561, 1e-05
        %v1594 = vadd.f32 %v1562, 1e-05
        %v1595 = vadd.f32 %v1563, 1e-05
        %v1596 = vadd.f32 %v1564, 1e-05
        %v1597 = vadd.f32 %v1565, 1e-05
        %v1598 = vadd.f32 %v1566, 1e-05
        %v1599 = vadd.f32 %v1567, 1e-05
        %v1600 = vadd.f32 %v1568, 1e-05
        %v1601 = vadd.f32 %v1569, 1e-05
        %v1602 = vadd.f32 %v1570, 1e-05
        %v1603 = vadd.f32 %v1571, 1e-05
        %v1604 = vadd.f32 %v1572, 1e-05
        %v1605 = vadd.f32 %v1573, 1e-05
        %v1606 = vadd.f32 %v1574, 1e-05
        %v1607 = vadd.f32 %v1575, 1e-05
        %v1608 = vadd.f32 %v1576, 1e-05
        %v1609 = vadd.f32 %v1577, 1e-05
        %v1610 = vadd.f32 %v1578, 1e-05
        %v1611 = vadd.f32 %v1579, 1e-05
        %v1612 = vadd.f32 %v1580, 1e-05
        %v1613 = vadd.f32 %v1581, 1e-05
        %v1614 = vrsqrt.pop %v1582
        %v1615 = vrsqrt.pop %v1583
        %v1616 = vrsqrt.pop %v1584
        %v1617 = vrsqrt.pop %v1585
        %v1618 = vrsqrt.pop %v1586
        %v1619 = vrsqrt.pop %v1587
        %v1620 = vrsqrt.pop %v1588
        %v1621 = vrsqrt.pop %v1589
        %v1622 = vrsqrt.pop %v1590
        %v1623 = vrsqrt.pop %v1591
        %v1624 = vrsqrt.pop %v1592
        %v1625 = vrsqrt.pop %v1593
        %v1626 = vrsqrt.pop %v1594
        %v1627 = vrsqrt.pop %v1595
        %v1628 = vrsqrt.pop %v1596
        %v1629 = vrsqrt.pop %v1597
        %v1630 = vrsqrt.pop %v1598
        %v1631 = vrsqrt.pop %v1599
        %v1632 = vrsqrt.pop %v1600
        %v1633 = vrsqrt.pop %v1601
        %v1634 = vrsqrt.pop %v1602
        %v1635 = vrsqrt.pop %v1603
        %v1636 = vrsqrt.pop %v1604
        %v1637 = vrsqrt.pop %v1605
        %v1638 = vrsqrt.pop %v1606
        %v1639 = vrsqrt.pop %v1607
        %v1640 = vrsqrt.pop %v1608
        %v1641 = vrsqrt.pop %v1609
        %v1642 = vrsqrt.pop %v1610
        %v1643 = vrsqrt.pop %v1611
        %v1644 = vrsqrt.pop %v1612
        %v1645 = vrsqrt.pop %v1613
        %v1646 = vmul.f32 %v1422, %v1614
        %v1647 = vmul.f32 %v1423, %v1615
        %v1648 = vmul.f32 %v1424, %v1616
        %v1649 = vmul.f32 %v1425, %v1617
        %v1650 = vmul.f32 %v1426, %v1618
        %v1651 = vmul.f32 %v1427, %v1619
        %v1652 = vmul.f32 %v1428, %v1620
        %v1653 = vmul.f32 %v1429, %v1621
        %v1654 = vmul.f32 %v1430, %v1622
        %v1655 = vmul.f32 %v1431, %v1623
        %v1656 = vmul.f32 %v1432, %v1624
        %v1657 = vmul.f32 %v1433, %v1625
        %v1658 = vmul.f32 %v1434, %v1626
        %v1659 = vmul.f32 %v1435, %v1627
        %v1660 = vmul.f32 %v1436, %v1628
        %v1661 = vmul.f32 %v1437, %v1629
        %v1662 = vmul.f32 %v1438, %v1630
        %v1663 = vmul.f32 %v1439, %v1631
        %v1664 = vmul.f32 %v1440, %v1632
        %v1665 = vmul.f32 %v1441, %v1633
        %v1666 = vmul.f32 %v1442, %v1634
        %v1667 = vmul.f32 %v1443, %v1635
        %v1668 = vmul.f32 %v1444, %v1636
        %v1669 = vmul.f32 %v1445, %v1637
        %v1670 = vmul.f32 %v1446, %v1638
        %v1671 = vmul.f32 %v1447, %v1639
        %v1672 = vmul.f32 %v1448, %v1640
        %v1673 = vmul.f32 %v1449, %v1641
        %v1674 = vmul.f32 %v1450, %v1642
        %v1675 = vmul.f32 %v1451, %v1643
        %v1676 = vmul.f32 %v1452, %v1644
        %v1677 = vmul.f32 %v1453, %v1645
        %v1678 = vlaneseq
        %v1679 = vshrl.u32 %v1678, 7
        %v1680 = vsub.s32 0, %v1679
        %v1681 = vrot.slane %v1289, %v1680
        %v1682 = vmul.f32 %v1646, %v1681
        %v1683 = vmul.f32 %v1647, %v1681
        %v1684 = vmul.f32 %v1648, %v1681
        %v1685 = vmul.f32 %v1649, %v1681
        %v1686 = vmul.f32 %v1650, %v1681
        %v1687 = vmul.f32 %v1651, %v1681
        %v1688 = vmul.f32 %v1652, %v1681
        %v1689 = vmul.f32 %v1653, %v1681
        %v1690 = vmul.f32 %v1654, %v1681
        %v1691 = vmul.f32 %v1655, %v1681
        %v1692 = vmul.f32 %v1656, %v1681
        %v1693 = vmul.f32 %v1657, %v1681
        %v1694 = vmul.f32 %v1658, %v1681
        %v1695 = vmul.f32 %v1659, %v1681
        %v1696 = vmul.f32 %v1660, %v1681
        %v1697 = vmul.f32 %v1661, %v1681
        %v1698 = vmul.f32 %v1662, %v1681
        %v1699 = vmul.f32 %v1663, %v1681
        %v1700 = vmul.f32 %v1664, %v1681
        %v1701 = vmul.f32 %v1665, %v1681
        %v1702 = vmul.f32 %v1666, %v1681
        %v1703 = vmul.f32 %v1667, %v1681
        %v1704 = vmul.f32 %v1668, %v1681
        %v1705 = vmul.f32 %v1669, %v1681
        %v1706 = vmul.f32 %v1670, %v1681
        %v1707 = vmul.f32 %v1671, %v1681
        %v1708 = vmul.f32 %v1672, %v1681
        %v1709 = vmul.f32 %v1673, %v1681
        %v1710 = vmul.f32 %v1674, %v1681
        %v1711 = vmul.f32 %v1675, %v1681
        %v1712 = vmul.f32 %v1676, %v1681
        %v1713 = vmul.f32 %v1677, %v1681
        %v1714 = vlaneseq
        %v1715 = vshrl.u32 %v1714, 7
        %v1716 = vsub.s32 1, %v1715
        %v1717 = vrot.slane %v1289, %v1716
        %v1718 = vadd.f32 %v1682, %v1717
        %v1719 = vadd.f32 %v1683, %v1717
        %v1720 = vadd.f32 %v1684, %v1717
        %v1721 = vadd.f32 %v1685, %v1717
        %v1722 = vadd.f32 %v1686, %v1717
        %v1723 = vadd.f32 %v1687, %v1717
        %v1724 = vadd.f32 %v1688, %v1717
        %v1725 = vadd.f32 %v1689, %v1717
        %v1726 = vadd.f32 %v1690, %v1717
        %v1727 = vadd.f32 %v1691, %v1717
        %v1728 = vadd.f32 %v1692, %v1717
        %v1729 = vadd.f32 %v1693, %v1717
        %v1730 = vadd.f32 %v1694, %v1717
        %v1731 = vadd.f32 %v1695, %v1717
        %v1732 = vadd.f32 %v1696, %v1717
        %v1733 = vadd.f32 %v1697, %v1717
        %v1734 = vadd.f32 %v1698, %v1717
        %v1735 = vadd.f32 %v1699, %v1717
        %v1736 = vadd.f32 %v1700, %v1717
        %v1737 = vadd.f32 %v1701, %v1717
        %v1738 = vadd.f32 %v1702, %v1717
        %v1739 = vadd.f32 %v1703, %v1717
        %v1740 = vadd.f32 %v1704, %v1717
        %v1741 = vadd.f32 %v1705, %v1717
        %v1742 = vadd.f32 %v1706, %v1717
        %v1743 = vadd.f32 %v1707, %v1717
        %v1744 = vadd.f32 %v1708, %v1717
        %v1745 = vadd.f32 %v1709, %v1717
        %v1746 = vadd.f32 %v1710, %v1717
        %v1747 = vadd.f32 %v1711, %v1717
        %v1748 = vadd.f32 %v1712, %v1717
        %v1749 = vadd.f32 %v1713, %v1717
        %v1750 = vpack.c.bf16 %v1719, %v1718
        %v1751 = vpack.c.bf16 %v1721, %v1720
        %v1752 = vpack.c.bf16 %v1723, %v1722
        %v1753 = vpack.c.bf16 %v1725, %v1724
        %v1754 = vpack.c.bf16 %v1727, %v1726
        %v1755 = vpack.c.bf16 %v1729, %v1728
        %v1756 = vpack.c.bf16 %v1731, %v1730
        %v1757 = vpack.c.bf16 %v1733, %v1732
        %v1758 = vpack.c.bf16 %v1735, %v1734
        %v1759 = vpack.c.bf16 %v1737, %v1736
        %v1760 = vpack.c.bf16 %v1739, %v1738
        %v1761 = vpack.c.bf16 %v1741, %v1740
        %v1762 = vpack.c.bf16 %v1743, %v1742
        %v1763 = vpack.c.bf16 %v1745, %v1744
        %v1764 = vpack.c.bf16 %v1747, %v1746
        %v1765 = vpack.c.bf16 %v1749, %v1748
        %v1766 = vld [vmem:[#allocation11] sm:$0xf]
        %v1767 = vld [vmem:[#allocation11 + $0x4] sm:$0xf]
        %v1768 = vld [vmem:[#allocation11 + $0x8] sm:$0xf]
        %v1769 = vld [vmem:[#allocation11 + $0xc] sm:$0xf]
        %v1770 = vld [vmem:[#allocation11 + $0x10] sm:$0xf]
        %v1771 = vld [vmem:[#allocation11 + $0x14] sm:$0xf]
        %v1772 = vld [vmem:[#allocation11 + $0x18] sm:$0xf]
        %v1773 = vld [vmem:[#allocation11 + $0x1c] sm:$0xf]
        %v1774 = vld [vmem:[#allocation11 + $0x20] sm:$0xf]
        %v1775 = vld [vmem:[#allocation11 + $0x24] sm:$0xf]
        %v1776 = vld [vmem:[#allocation11 + $0x28] sm:$0xf]
        %v1777 = vld [vmem:[#allocation11 + $0x2c] sm:$0xf]
        %v1778 = vld [vmem:[#allocation11 + $0x30] sm:$0xf]
        %v1779 = vld [vmem:[#allocation11 + $0x34] sm:$0xf]
        %v1780 = vld [vmem:[#allocation11 + $0x38] sm:$0xf]
        %v1781 = vld [vmem:[#allocation11 + $0x3c] sm:$0xf]
        %v1782 = vld [vmem:[#allocation13] sm:$0x1]
        %v1784 = vlaneseq
        %v1785 = vshrl.u32 %v1784, 7
        %v1786 = vsub.s32 0, %v1785
        %v1787 = vrot.slane %v1782, %v1786
        %v1805 = vunpack.c.l.b16 %v1766
        %v1806 = vunpack.c.l.b16 %v1767
        %v1807 = vunpack.c.l.b16 %v1768
        %v1808 = vunpack.c.l.b16 %v1769
        %v1809 = vunpack.c.l.b16 %v1770
        %v1810 = vunpack.c.l.b16 %v1771
        %v1811 = vunpack.c.l.b16 %v1772
        %v1812 = vunpack.c.l.b16 %v1773
        %v1813 = vunpack.c.l.b16 %v1774
        %v1814 = vunpack.c.l.b16 %v1775
        %v1815 = vunpack.c.l.b16 %v1776
        %v1816 = vunpack.c.l.b16 %v1777
        %v1817 = vunpack.c.l.b16 %v1778
        %v1818 = vunpack.c.l.b16 %v1779
        %v1819 = vunpack.c.l.b16 %v1780
        %v1820 = vunpack.c.l.b16 %v1781
        %v1821 = vpack.c.b16 %v1806, %v1805
        %v1822 = vpack.c.b16 %v1808, %v1807
        %v1823 = vpack.c.b16 %v1810, %v1809
        %v1824 = vpack.c.b16 %v1812, %v1811
        %v1825 = vpack.c.b16 %v1814, %v1813
        %v1826 = vpack.c.b16 %v1816, %v1815
        %v1827 = vpack.c.b16 %v1818, %v1817
        %v1828 = vpack.c.b16 %v1820, %v1819
        %1837 = vmatprep.subr.bf16.mxu0 0
        %1838 = vmatpush1.bf16.msra.mxu0 %v1828
        %1839 = vmatprep.subr.bf16.mxu0 0
        %1840 = vmatpush1.bf16.msra.mxu0 %v1827
        %1841 = vmatprep.subr.bf16.mxu0 0
        %1842 = vmatpush1.bf16.msra.mxu0 %v1826
        %1843 = vmatprep.subr.bf16.mxu0 0
        %1844 = vmatpush1.bf16.msra.mxu0 %v1825
        %1845 = vmatprep.subr.bf16.mxu0 0
        %1846 = vmatpush1.bf16.msra.mxu0 %v1824
        %1847 = vmatprep.subr.bf16.mxu0 0
        %1848 = vmatpush1.bf16.msra.mxu0 %v1823
        %1849 = vmatprep.subr.bf16.mxu0 0
        %1850 = vmatpush1.bf16.msra.mxu0 %v1822
        %1851 = vmatprep.subr.bf16.mxu0 0
        %1852 = vmatpush1.bf16.msra.mxu0 %v1821
        %1853 = vmatprep.subr.bf16.mxu0 0
        %1854 = vmatpush2.bf16.msra.mxu0 0
        %1855 = vmatprep.subr.bf16.mxu0 0
        %1856 = vmatpush2.bf16.msra.mxu0 0
        %1857 = vmatprep.subr.bf16.mxu0 0
        %1858 = vmatpush2.bf16.msra.mxu0 0
        %1859 = vmatprep.subr.bf16.mxu0 0
        %1860 = vmatpush2.bf16.msra.mxu0 0
        %1861 = vmatprep.subr.bf16.mxu0 0
        %1862 = vmatpush2.bf16.msra.mxu0 0
        %1863 = vmatprep.subr.bf16.mxu0 0
        %1864 = vmatpush2.bf16.msra.mxu0 0
        %1865 = vmatprep.subr.bf16.mxu0 0
        %1866 = vmatpush2.bf16.msra.mxu0 0
        %1867 = vmatprep.subr.bf16.mxu0 0
        %1868 = vmatpush2.bf16.msra.mxu0 0
        %1869 = vmatprep.mubr.bf16.mxu0 0
        %1870 = vmatmul.mubr.bf16.gmra.mxu0 %v1750
        %v1871 = vpop.f32.mrf.mxu0
        %v1872 = vadd.f32 %v1787, %v1871
        %v1873 = vpop.f32.mrf.mxu0
        %v1874 = vpop.f32.mrf.mxu0
        %v1875 = vadd.f32 %v1787, %v1874
        %v1876 = vpop.f32.mrf.mxu0
        %1877 = vmatprep.mubr.bf16.mxu0 0
        %1878 = vmatmul.mubr.bf16.gmra.mxu0 %v1751
        %v1879 = vpop.f32.mrf.mxu0
        %v1880 = vadd.f32 %v1787, %v1879
        %v1881 = vpop.f32.mrf.mxu0
        %v1882 = vpop.f32.mrf.mxu0
        %v1883 = vadd.f32 %v1787, %v1882
        %v1884 = vpop.f32.mrf.mxu0
        %1885 = vmatprep.mubr.bf16.mxu0 0
        %1886 = vmatmul.mubr.bf16.gmra.mxu0 %v1752
        %v1887 = vpop.f32.mrf.mxu0
        %v1888 = vadd.f32 %v1787, %v1887
        %v1889 = vpop.f32.mrf.mxu0
        %v1890 = vpop.f32.mrf.mxu0
        %v1891 = vadd.f32 %v1787, %v1890
        %v1892 = vpop.f32.mrf.mxu0
        %1893 = vmatprep.mubr.bf16.mxu0 0
        %1894 = vmatmul.mubr.bf16.gmra.mxu0 %v1753
        %v1895 = vpop.f32.mrf.mxu0
        %v1896 = vadd.f32 %v1787, %v1895
        %v1897 = vpop.f32.mrf.mxu0
        %v1898 = vpop.f32.mrf.mxu0
        %v1899 = vadd.f32 %v1787, %v1898
        %v1900 = vpop.f32.mrf.mxu0
        %1901 = vmatprep.mubr.bf16.mxu0 0
        %1902 = vmatmul.mubr.bf16.gmra.mxu0 %v1754
        %v1903 = vpop.f32.mrf.mxu0
        %v1904 = vadd.f32 %v1787, %v1903
        %v1905 = vpop.f32.mrf.mxu0
        %v1906 = vpop.f32.mrf.mxu0
        %v1907 = vadd.f32 %v1787, %v1906
        %v1908 = vpop.f32.mrf.mxu0
        %1909 = vmatprep.mubr.bf16.mxu0 0
        %1910 = vmatmul.mubr.bf16.gmra.mxu0 %v1755
        %v1911 = vpop.f32.mrf.mxu0
        %v1912 = vadd.f32 %v1787, %v1911
        %v1913 = vpop.f32.mrf.mxu0
        %v1914 = vpop.f32.mrf.mxu0
        %v1915 = vadd.f32 %v1787, %v1914
        %v1916 = vpop.f32.mrf.mxu0
        %1917 = vmatprep.mubr.bf16.mxu0 0
        %1918 = vmatmul.mubr.bf16.gmra.mxu0 %v1756
        %v1919 = vpop.f32.mrf.mxu0
        %v1920 = vadd.f32 %v1787, %v1919
        %v1921 = vpop.f32.mrf.mxu0
        %v1922 = vpop.f32.mrf.mxu0
        %v1923 = vadd.f32 %v1787, %v1922
        %v1924 = vpop.f32.mrf.mxu0
        %1925 = vmatprep.mubr.bf16.mxu0 0
        %1926 = vmatmul.mubr.bf16.gmra.mxu0 %v1757
        %v1927 = vpop.f32.mrf.mxu0
        %v1928 = vadd.f32 %v1787, %v1927
        %v1929 = vpop.f32.mrf.mxu0
        %v1930 = vpop.f32.mrf.mxu0
        %v1931 = vadd.f32 %v1787, %v1930
        %v1932 = vpop.f32.mrf.mxu0
        %1933 = vmatprep.mubr.bf16.mxu0 0
        %1934 = vmatmul.mubr.bf16.gmra.mxu0 %v1758
        %v1935 = vpop.f32.mrf.mxu0
        %v1936 = vadd.f32 %v1787, %v1935
        %v1937 = vpop.f32.mrf.mxu0
        %v1938 = vpop.f32.mrf.mxu0
        %v1939 = vadd.f32 %v1787, %v1938
        %v1940 = vpop.f32.mrf.mxu0
        %1941 = vmatprep.mubr.bf16.mxu0 0
        %1942 = vmatmul.mubr.bf16.gmra.mxu0 %v1759
        %v1943 = vpop.f32.mrf.mxu0
        %v1944 = vadd.f32 %v1787, %v1943
        %v1945 = vpop.f32.mrf.mxu0
        %v1946 = vpop.f32.mrf.mxu0
        %v1947 = vadd.f32 %v1787, %v1946
        %v1948 = vpop.f32.mrf.mxu0
        %1949 = vmatprep.mubr.bf16.mxu0 0
        %1950 = vmatmul.mubr.bf16.gmra.mxu0 %v1760
        %v1951 = vpop.f32.mrf.mxu0
        %v1952 = vadd.f32 %v1787, %v1951
        %v1953 = vpop.f32.mrf.mxu0
        %v1954 = vpop.f32.mrf.mxu0
        %v1955 = vadd.f32 %v1787, %v1954
        %v1956 = vpop.f32.mrf.mxu0
        %1957 = vmatprep.mubr.bf16.mxu0 0
        %1958 = vmatmul.mubr.bf16.gmra.mxu0 %v1761
        %v1959 = vpop.f32.mrf.mxu0
        %v1960 = vadd.f32 %v1787, %v1959
        %v1961 = vpop.f32.mrf.mxu0
        %v1962 = vpop.f32.mrf.mxu0
        %v1963 = vadd.f32 %v1787, %v1962
        %v1964 = vpop.f32.mrf.mxu0
        %1965 = vmatprep.mubr.bf16.mxu0 0
        %1966 = vmatmul.mubr.bf16.gmra.mxu0 %v1762
        %v1967 = vpop.f32.mrf.mxu0
        %v1968 = vadd.f32 %v1787, %v1967
        %v1969 = vpop.f32.mrf.mxu0
        %v1970 = vpop.f32.mrf.mxu0
        %v1971 = vadd.f32 %v1787, %v1970
        %v1972 = vpop.f32.mrf.mxu0
        %1973 = vmatprep.mubr.bf16.mxu0 0
        %1974 = vmatmul.mubr.bf16.gmra.mxu0 %v1763
        %v1975 = vpop.f32.mrf.mxu0
        %v1976 = vadd.f32 %v1787, %v1975
        %v1977 = vpop.f32.mrf.mxu0
        %v1978 = vpop.f32.mrf.mxu0
        %v1979 = vadd.f32 %v1787, %v1978
        %v1980 = vpop.f32.mrf.mxu0
        %1981 = vmatprep.mubr.bf16.mxu0 0
        %1982 = vmatmul.mubr.bf16.gmra.mxu0 %v1764
        %v1983 = vpop.f32.mrf.mxu0
        %v1984 = vadd.f32 %v1787, %v1983
        %v1985 = vpop.f32.mrf.mxu0
        %v1986 = vpop.f32.mrf.mxu0
        %v1987 = vadd.f32 %v1787, %v1986
        %v1988 = vpop.f32.mrf.mxu0
        %1989 = vmatprep.mubr.bf16.mxu0 0
        %1990 = vmatmul.mubr.bf16.gmra.mxu0 %v1765
        %v1991 = vpop.f32.mrf.mxu0
        %v1992 = vadd.f32 %v1787, %v1991
        %v1993 = vpop.f32.mrf.mxu0
        %v1994 = vpop.f32.mrf.mxu0
        %v1995 = vadd.f32 %v1787, %v1994
        %v1996 = vpop.f32.mrf.mxu0
        %1997 = vdwg.mxu0
        %v1998 = vld [vmem:[#allocation5] sm:$0xff]
        %v1999 = vld [vmem:[#allocation5 + $0x8] sm:$0xff]
        %v2000 = vld [vmem:[#allocation5 + $0x10] sm:$0xff]
        %v2001 = vld [vmem:[#allocation5 + $0x18] sm:$0xff]
        %v2002 = vld [vmem:[#allocation5 + $0x20] sm:$0xff]
        %v2003 = vld [vmem:[#allocation5 + $0x28] sm:$0xff]
        %v2004 = vld [vmem:[#allocation5 + $0x30] sm:$0xff]
        %v2005 = vld [vmem:[#allocation5 + $0x38] sm:$0xff]
        %v2006 = vld [vmem:[#allocation5 + $0x40] sm:$0xff]
        %v2007 = vld [vmem:[#allocation5 + $0x48] sm:$0xff]
        %v2008 = vld [vmem:[#allocation5 + $0x50] sm:$0xff]
        %v2009 = vld [vmem:[#allocation5 + $0x58] sm:$0xff]
        %v2010 = vld [vmem:[#allocation5 + $0x60] sm:$0xff]
        %v2011 = vld [vmem:[#allocation5 + $0x68] sm:$0xff]
        %v2012 = vld [vmem:[#allocation5 + $0x70] sm:$0xff]
        %v2013 = vld [vmem:[#allocation5 + $0x78] sm:$0xff]
        %v2014 = vld [vmem:[#allocation5 + $0x80] sm:$0xff]
        %v2015 = vld [vmem:[#allocation5 + $0x88] sm:$0xff]
        %v2016 = vld [vmem:[#allocation5 + $0x90] sm:$0xff]
        %v2017 = vld [vmem:[#allocation5 + $0x98] sm:$0xff]
        %v2018 = vld [vmem:[#allocation5 + $0xa0] sm:$0xff]
        %v2019 = vld [vmem:[#allocation5 + $0xa8] sm:$0xff]
        %v2020 = vld [vmem:[#allocation5 + $0xb0] sm:$0xff]
        %v2021 = vld [vmem:[#allocation5 + $0xb8] sm:$0xff]
        %v2022 = vld [vmem:[#allocation5 + $0xc0] sm:$0xff]
        %v2023 = vld [vmem:[#allocation5 + $0xc8] sm:$0xff]
        %v2024 = vld [vmem:[#allocation5 + $0xd0] sm:$0xff]
        %v2025 = vld [vmem:[#allocation5 + $0xd8] sm:$0xff]
        %v2026 = vld [vmem:[#allocation5 + $0xe0] sm:$0xff]
        %v2027 = vld [vmem:[#allocation5 + $0xe8] sm:$0xff]
        %v2028 = vld [vmem:[#allocation5 + $0xf0] sm:$0xff]
        %v2029 = vld [vmem:[#allocation5 + $0xf8] sm:$0xff]
        %v2030 = vld [vmem:[#allocation5 + $0x100] sm:$0xff]
        %v2031 = vld [vmem:[#allocation5 + $0x108] sm:$0xff]
        %v2032 = vld [vmem:[#allocation5 + $0x110] sm:$0xff]
        %v2033 = vld [vmem:[#allocation5 + $0x118] sm:$0xff]
        %v2034 = vld [vmem:[#allocation5 + $0x120] sm:$0xff]
        %v2035 = vld [vmem:[#allocation5 + $0x128] sm:$0xff]
        %v2036 = vld [vmem:[#allocation5 + $0x130] sm:$0xff]
        %v2037 = vld [vmem:[#allocation5 + $0x138] sm:$0xff]
        %v2038 = vld [vmem:[#allocation5 + $0x140] sm:$0xff]
        %v2039 = vld [vmem:[#allocation5 + $0x148] sm:$0xff]
        %v2040 = vld [vmem:[#allocation5 + $0x150] sm:$0xff]
        %v2041 = vld [vmem:[#allocation5 + $0x158] sm:$0xff]
        %v2042 = vld [vmem:[#allocation5 + $0x160] sm:$0xff]
        %v2043 = vld [vmem:[#allocation5 + $0x168] sm:$0xff]
        %v2044 = vld [vmem:[#allocation5 + $0x170] sm:$0xff]
        %v2045 = vld [vmem:[#allocation5 + $0x178] sm:$0xff]
        %v2046 = vld [vmem:[#allocation5 + $0x180] sm:$0xff]
        %v2047 = vld [vmem:[#allocation5 + $0x188] sm:$0xff]
        %v2048 = vld [vmem:[#allocation5 + $0x190] sm:$0xff]
        %v2049 = vld [vmem:[#allocation5 + $0x198] sm:$0xff]
        %v2050 = vld [vmem:[#allocation5 + $0x1a0] sm:$0xff]
        %v2051 = vld [vmem:[#allocation5 + $0x1a8] sm:$0xff]
        %v2052 = vld [vmem:[#allocation5 + $0x1b0] sm:$0xff]
        %v2053 = vld [vmem:[#allocation5 + $0x1b8] sm:$0xff]
        %v2054 = vld [vmem:[#allocation5 + $0x1c0] sm:$0xff]
        %v2055 = vld [vmem:[#allocation5 + $0x1c8] sm:$0xff]
        %v2056 = vld [vmem:[#allocation5 + $0x1d0] sm:$0xff]
        %v2057 = vld [vmem:[#allocation5 + $0x1d8] sm:$0xff]
        %v2058 = vld [vmem:[#allocation5 + $0x1e0] sm:$0xff]
        %v2059 = vld [vmem:[#allocation5 + $0x1e8] sm:$0xff]
        %v2060 = vld [vmem:[#allocation5 + $0x1f0] sm:$0xff]
        %v2061 = vld [vmem:[#allocation5 + $0x1f8] sm:$0xff]
        %v2062 = vld [vmem:[%s17] sm:$0x7]
        %2063 = vadd.xlane.f32.xlu0 %v1872
        %v2064 = vpop.xlane.xlu0 %2063
        %2065 = vadd.xlane.f32.xlu0 %v1875
        %v2066 = vpop.xlane.xlu0 %2065
        %2067 = vadd.xlane.f32.xlu0 %v1880
        %v2068 = vpop.xlane.xlu0 %2067
        %2069 = vadd.xlane.f32.xlu0 %v1883
        %v2070 = vpop.xlane.xlu0 %2069
        %2071 = vadd.xlane.f32.xlu0 %v1888
        %v2072 = vpop.xlane.xlu0 %2071
        %2073 = vadd.xlane.f32.xlu0 %v1891
        %v2074 = vpop.xlane.xlu0 %2073
        %2075 = vadd.xlane.f32.xlu0 %v1896
        %v2076 = vpop.xlane.xlu0 %2075
        %2077 = vadd.xlane.f32.xlu0 %v1899
        %v2078 = vpop.xlane.xlu0 %2077
        %2079 = vadd.xlane.f32.xlu0 %v1904
        %v2080 = vpop.xlane.xlu0 %2079
        %2081 = vadd.xlane.f32.xlu0 %v1907
        %v2082 = vpop.xlane.xlu0 %2081
        %2083 = vadd.xlane.f32.xlu0 %v1912
        %v2084 = vpop.xlane.xlu0 %2083
        %2085 = vadd.xlane.f32.xlu0 %v1915
        %v2086 = vpop.xlane.xlu0 %2085
        %2087 = vadd.xlane.f32.xlu0 %v1920
        %v2088 = vpop.xlane.xlu0 %2087
        %2089 = vadd.xlane.f32.xlu0 %v1923
        %v2090 = vpop.xlane.xlu0 %2089
        %2091 = vadd.xlane.f32.xlu0 %v1928
        %v2092 = vpop.xlane.xlu0 %2091
        %2093 = vadd.xlane.f32.xlu0 %v1931
        %v2094 = vpop.xlane.xlu0 %2093
        %2095 = vadd.xlane.f32.xlu0 %v1936
        %v2096 = vpop.xlane.xlu0 %2095
        %2097 = vadd.xlane.f32.xlu0 %v1939
        %v2098 = vpop.xlane.xlu0 %2097
        %2099 = vadd.xlane.f32.xlu0 %v1944
        %v2100 = vpop.xlane.xlu0 %2099
        %2101 = vadd.xlane.f32.xlu0 %v1947
        %v2102 = vpop.xlane.xlu0 %2101
        %2103 = vadd.xlane.f32.xlu0 %v1952
        %v2104 = vpop.xlane.xlu0 %2103
        %2105 = vadd.xlane.f32.xlu0 %v1955
        %v2106 = vpop.xlane.xlu0 %2105
        %2107 = vadd.xlane.f32.xlu0 %v1960
        %v2108 = vpop.xlane.xlu0 %2107
        %2109 = vadd.xlane.f32.xlu0 %v1963
        %v2110 = vpop.xlane.xlu0 %2109
        %2111 = vadd.xlane.f32.xlu0 %v1968
        %v2112 = vpop.xlane.xlu0 %2111
        %2113 = vadd.xlane.f32.xlu0 %v1971
        %v2114 = vpop.xlane.xlu0 %2113
        %2115 = vadd.xlane.f32.xlu0 %v1976
        %v2116 = vpop.xlane.xlu0 %2115
        %2117 = vadd.xlane.f32.xlu0 %v1979
        %v2118 = vpop.xlane.xlu0 %2117
        %2119 = vadd.xlane.f32.xlu0 %v1984
        %v2120 = vpop.xlane.xlu0 %2119
        %2121 = vadd.xlane.f32.xlu0 %v1987
        %v2122 = vpop.xlane.xlu0 %2121
        %2123 = vadd.xlane.f32.xlu0 %v1992
        %v2124 = vpop.xlane.xlu0 %2123
        %2125 = vadd.xlane.f32.xlu0 %v1995
        %v2126 = vpop.xlane.xlu0 %2125
        %v2127 = vmul.f32 %v2064, 0.015625
        %v2128 = vmul.f32 %v2066, 0.015625
        %v2129 = vmul.f32 %v2068, 0.015625
        %v2130 = vmul.f32 %v2070, 0.015625
        %v2131 = vmul.f32 %v2072, 0.015625
        %v2132 = vmul.f32 %v2074, 0.015625
        %v2133 = vmul.f32 %v2076, 0.015625
        %v2134 = vmul.f32 %v2078, 0.015625
        %v2135 = vmul.f32 %v2080, 0.015625
        %v2136 = vmul.f32 %v2082, 0.015625
        %v2137 = vmul.f32 %v2084, 0.015625
        %v2138 = vmul.f32 %v2086, 0.015625
        %v2139 = vmul.f32 %v2088, 0.015625
        %v2140 = vmul.f32 %v2090, 0.015625
        %v2141 = vmul.f32 %v2092, 0.015625
        %v2142 = vmul.f32 %v2094, 0.015625
        %v2143 = vmul.f32 %v2096, 0.015625
        %v2144 = vmul.f32 %v2098, 0.015625
        %v2145 = vmul.f32 %v2100, 0.015625
        %v2146 = vmul.f32 %v2102, 0.015625
        %v2147 = vmul.f32 %v2104, 0.015625
        %v2148 = vmul.f32 %v2106, 0.015625
        %v2149 = vmul.f32 %v2108, 0.015625
        %v2150 = vmul.f32 %v2110, 0.015625
        %v2151 = vmul.f32 %v2112, 0.015625
        %v2152 = vmul.f32 %v2114, 0.015625
        %v2153 = vmul.f32 %v2116, 0.015625
        %v2154 = vmul.f32 %v2118, 0.015625
        %v2155 = vmul.f32 %v2120, 0.015625
        %v2156 = vmul.f32 %v2122, 0.015625
        %v2157 = vmul.f32 %v2124, 0.015625
        %v2158 = vmul.f32 %v2126, 0.015625
        %v2159 = vsub.f32 %v1872, %v2127
        %v2160 = vsub.f32 %v1875, %v2128
        %v2161 = vsub.f32 %v1880, %v2129
        %v2162 = vsub.f32 %v1883, %v2130
        %v2163 = vsub.f32 %v1888, %v2131
        %v2164 = vsub.f32 %v1891, %v2132
        %v2165 = vsub.f32 %v1896, %v2133
        %v2166 = vsub.f32 %v1899, %v2134
        %v2167 = vsub.f32 %v1904, %v2135
        %v2168 = vsub.f32 %v1907, %v2136
        %v2169 = vsub.f32 %v1912, %v2137
        %v2170 = vsub.f32 %v1915, %v2138
        %v2171 = vsub.f32 %v1920, %v2139
        %v2172 = vsub.f32 %v1923, %v2140
        %v2173 = vsub.f32 %v1928, %v2141
        %v2174 = vsub.f32 %v1931, %v2142
        %v2175 = vsub.f32 %v1936, %v2143
        %v2176 = vsub.f32 %v1939, %v2144
        %v2177 = vsub.f32 %v1944, %v2145
        %v2178 = vsub.f32 %v1947, %v2146
        %v2179 = vsub.f32 %v1952, %v2147
        %v2180 = vsub.f32 %v1955, %v2148
        %v2181 = vsub.f32 %v1960, %v2149
        %v2182 = vsub.f32 %v1963, %v2150
        %v2183 = vsub.f32 %v1968, %v2151
        %v2184 = vsub.f32 %v1971, %v2152
        %v2185 = vsub.f32 %v1976, %v2153
        %v2186 = vsub.f32 %v1979, %v2154
        %v2187 = vsub.f32 %v1984, %v2155
        %v2188 = vsub.f32 %v1987, %v2156
        %v2189 = vsub.f32 %v1992, %v2157
        %v2190 = vsub.f32 %v1995, %v2158
        %v2191 = vlaneseq
        %v2192 = vshrl.u32 %v2191, 7
        %v2193 = vsub.s32 2, %v2192
        %v2194 = vrot.slane %v2062, %v2193
        %v2195 = vmul.f32 %v2159, %v2194
        %v2196 = vmul.f32 %v2160, %v2194
        %v2197 = vmul.f32 %v2161, %v2194
        %v2198 = vmul.f32 %v2162, %v2194
        %v2199 = vmul.f32 %v2163, %v2194
        %v2200 = vmul.f32 %v2164, %v2194
        %v2201 = vmul.f32 %v2165, %v2194
        %v2202 = vmul.f32 %v2166, %v2194
        %v2203 = vmul.f32 %v2167, %v2194
        %v2204 = vmul.f32 %v2168, %v2194
        %v2205 = vmul.f32 %v2169, %v2194
        %v2206 = vmul.f32 %v2170, %v2194
        %v2207 = vmul.f32 %v2171, %v2194
        %v2208 = vmul.f32 %v2172, %v2194
        %v2209 = vmul.f32 %v2173, %v2194
        %v2210 = vmul.f32 %v2174, %v2194
        %v2211 = vmul.f32 %v2175, %v2194
        %v2212 = vmul.f32 %v2176, %v2194
        %v2213 = vmul.f32 %v2177, %v2194
        %v2214 = vmul.f32 %v2178, %v2194
        %v2215 = vmul.f32 %v2179, %v2194
        %v2216 = vmul.f32 %v2180, %v2194
        %v2217 = vmul.f32 %v2181, %v2194
        %v2218 = vmul.f32 %v2182, %v2194
        %v2219 = vmul.f32 %v2183, %v2194
        %v2220 = vmul.f32 %v2184, %v2194
        %v2221 = vmul.f32 %v2185, %v2194
        %v2222 = vmul.f32 %v2186, %v2194
        %v2223 = vmul.f32 %v2187, %v2194
        %v2224 = vmul.f32 %v2188, %v2194
        %v2225 = vmul.f32 %v2189, %v2194
        %v2226 = vmul.f32 %v2190, %v2194
        %v2227 = vmul.f32 %v2195, %v2195
        %v2228 = vmul.f32 %v2196, %v2196
        %v2229 = vmul.f32 %v2197, %v2197
        %v2230 = vmul.f32 %v2198, %v2198
        %v2231 = vmul.f32 %v2199, %v2199
        %v2232 = vmul.f32 %v2200, %v2200
        %v2233 = vmul.f32 %v2201, %v2201
        %v2234 = vmul.f32 %v2202, %v2202
        %v2235 = vmul.f32 %v2203, %v2203
        %v2236 = vmul.f32 %v2204, %v2204
        %v2237 = vmul.f32 %v2205, %v2205
        %v2238 = vmul.f32 %v2206, %v2206
        %v2239 = vmul.f32 %v2207, %v2207
        %v2240 = vmul.f32 %v2208, %v2208
        %v2241 = vmul.f32 %v2209, %v2209
        %v2242 = vmul.f32 %v2210, %v2210
        %v2243 = vmul.f32 %v2211, %v2211
        %v2244 = vmul.f32 %v2212, %v2212
        %v2245 = vmul.f32 %v2213, %v2213
        %v2246 = vmul.f32 %v2214, %v2214
        %v2247 = vmul.f32 %v2215, %v2215
        %v2248 = vmul.f32 %v2216, %v2216
        %v2249 = vmul.f32 %v2217, %v2217
        %v2250 = vmul.f32 %v2218, %v2218
        %v2251 = vmul.f32 %v2219, %v2219
        %v2252 = vmul.f32 %v2220, %v2220
        %v2253 = vmul.f32 %v2221, %v2221
        %v2254 = vmul.f32 %v2222, %v2222
        %v2255 = vmul.f32 %v2223, %v2223
        %v2256 = vmul.f32 %v2224, %v2224
        %v2257 = vmul.f32 %v2225, %v2225
        %v2258 = vmul.f32 %v2226, %v2226
        %2259 = vadd.xlane.f32.xlu0 %v2227
        %v2260 = vpop.xlane.xlu0 %2259
        %2261 = vadd.xlane.f32.xlu0 %v2228
        %v2262 = vpop.xlane.xlu0 %2261
        %2263 = vadd.xlane.f32.xlu0 %v2229
        %v2264 = vpop.xlane.xlu0 %2263
        %2265 = vadd.xlane.f32.xlu0 %v2230
        %v2266 = vpop.xlane.xlu0 %2265
        %2267 = vadd.xlane.f32.xlu0 %v2231
        %v2268 = vpop.xlane.xlu0 %2267
        %2269 = vadd.xlane.f32.xlu0 %v2232
        %v2270 = vpop.xlane.xlu0 %2269
        %2271 = vadd.xlane.f32.xlu0 %v2233
        %v2272 = vpop.xlane.xlu0 %2271
        %2273 = vadd.xlane.f32.xlu0 %v2234
        %v2274 = vpop.xlane.xlu0 %2273
        %2275 = vadd.xlane.f32.xlu0 %v2235
        %v2276 = vpop.xlane.xlu0 %2275
        %2277 = vadd.xlane.f32.xlu0 %v2236
        %v2278 = vpop.xlane.xlu0 %2277
        %2279 = vadd.xlane.f32.xlu0 %v2237
        %v2280 = vpop.xlane.xlu0 %2279
        %2281 = vadd.xlane.f32.xlu0 %v2238
        %v2282 = vpop.xlane.xlu0 %2281
        %2283 = vadd.xlane.f32.xlu0 %v2239
        %v2284 = vpop.xlane.xlu0 %2283
        %2285 = vadd.xlane.f32.xlu0 %v2240
        %v2286 = vpop.xlane.xlu0 %2285
        %2287 = vadd.xlane.f32.xlu0 %v2241
        %v2288 = vpop.xlane.xlu0 %2287
        %2289 = vadd.xlane.f32.xlu0 %v2242
        %v2290 = vpop.xlane.xlu0 %2289
        %2291 = vadd.xlane.f32.xlu0 %v2243
        %v2292 = vpop.xlane.xlu0 %2291
        %2293 = vadd.xlane.f32.xlu0 %v2244
        %v2294 = vpop.xlane.xlu0 %2293
        %2295 = vadd.xlane.f32.xlu0 %v2245
        %v2296 = vpop.xlane.xlu0 %2295
        %2297 = vadd.xlane.f32.xlu0 %v2246
        %v2298 = vpop.xlane.xlu0 %2297
        %2299 = vadd.xlane.f32.xlu0 %v2247
        %v2300 = vpop.xlane.xlu0 %2299
        %2301 = vadd.xlane.f32.xlu0 %v2248
        %v2302 = vpop.xlane.xlu0 %2301
        %2303 = vadd.xlane.f32.xlu0 %v2249
        %v2304 = vpop.xlane.xlu0 %2303
        %2305 = vadd.xlane.f32.xlu0 %v2250
        %v2306 = vpop.xlane.xlu0 %2305
        %2307 = vadd.xlane.f32.xlu0 %v2251
        %v2308 = vpop.xlane.xlu0 %2307
        %2309 = vadd.xlane.f32.xlu0 %v2252
        %v2310 = vpop.xlane.xlu0 %2309
        %2311 = vadd.xlane.f32.xlu0 %v2253
        %v2312 = vpop.xlane.xlu0 %2311
        %2313 = vadd.xlane.f32.xlu0 %v2254
        %v2314 = vpop.xlane.xlu0 %2313
        %2315 = vadd.xlane.f32.xlu0 %v2255
        %v2316 = vpop.xlane.xlu0 %2315
        %2317 = vadd.xlane.f32.xlu0 %v2256
        %v2318 = vpop.xlane.xlu0 %2317
        %2319 = vadd.xlane.f32.xlu0 %v2257
        %v2320 = vpop.xlane.xlu0 %2319
        %2321 = vadd.xlane.f32.xlu0 %v2258
        %v2322 = vpop.xlane.xlu0 %2321
        %v2323 = vmul.f32 %v2260, 0.015625
        %v2324 = vmul.f32 %v2262, 0.015625
        %v2325 = vmul.f32 %v2264, 0.015625
        %v2326 = vmul.f32 %v2266, 0.015625
        %v2327 = vmul.f32 %v2268, 0.015625
        %v2328 = vmul.f32 %v2270, 0.015625
        %v2329 = vmul.f32 %v2272, 0.015625
        %v2330 = vmul.f32 %v2274, 0.015625
        %v2331 = vmul.f32 %v2276, 0.015625
        %v2332 = vmul.f32 %v2278, 0.015625
        %v2333 = vmul.f32 %v2280, 0.015625
        %v2334 = vmul.f32 %v2282, 0.015625
        %v2335 = vmul.f32 %v2284, 0.015625
        %v2336 = vmul.f32 %v2286, 0.015625
        %v2337 = vmul.f32 %v2288, 0.015625
        %v2338 = vmul.f32 %v2290, 0.015625
        %v2339 = vmul.f32 %v2292, 0.015625
        %v2340 = vmul.f32 %v2294, 0.015625
        %v2341 = vmul.f32 %v2296, 0.015625
        %v2342 = vmul.f32 %v2298, 0.015625
        %v2343 = vmul.f32 %v2300, 0.015625
        %v2344 = vmul.f32 %v2302, 0.015625
        %v2345 = vmul.f32 %v2304, 0.015625
        %v2346 = vmul.f32 %v2306, 0.015625
        %v2347 = vmul.f32 %v2308, 0.015625
        %v2348 = vmul.f32 %v2310, 0.015625
        %v2349 = vmul.f32 %v2312, 0.015625
        %v2350 = vmul.f32 %v2314, 0.015625
        %v2351 = vmul.f32 %v2316, 0.015625
        %v2352 = vmul.f32 %v2318, 0.015625
        %v2353 = vmul.f32 %v2320, 0.015625
        %v2354 = vmul.f32 %v2322, 0.015625
        %v2355 = vadd.f32 %v2323, 1e-05
        %v2356 = vadd.f32 %v2324, 1e-05
        %v2357 = vadd.f32 %v2325, 1e-05
        %v2358 = vadd.f32 %v2326, 1e-05
        %v2359 = vadd.f32 %v2327, 1e-05
        %v2360 = vadd.f32 %v2328, 1e-05
        %v2361 = vadd.f32 %v2329, 1e-05
        %v2362 = vadd.f32 %v2330, 1e-05
        %v2363 = vadd.f32 %v2331, 1e-05
        %v2364 = vadd.f32 %v2332, 1e-05
        %v2365 = vadd.f32 %v2333, 1e-05
        %v2366 = vadd.f32 %v2334, 1e-05
        %v2367 = vadd.f32 %v2335, 1e-05
        %v2368 = vadd.f32 %v2336, 1e-05
        %v2369 = vadd.f32 %v2337, 1e-05
        %v2370 = vadd.f32 %v2338, 1e-05
        %v2371 = vadd.f32 %v2339, 1e-05
        %v2372 = vadd.f32 %v2340, 1e-05
        %v2373 = vadd.f32 %v2341, 1e-05
        %v2374 = vadd.f32 %v2342, 1e-05
        %v2375 = vadd.f32 %v2343, 1e-05
        %v2376 = vadd.f32 %v2344, 1e-05
        %v2377 = vadd.f32 %v2345, 1e-05
        %v2378 = vadd.f32 %v2346, 1e-05
        %v2379 = vadd.f32 %v2347, 1e-05
        %v2380 = vadd.f32 %v2348, 1e-05
        %v2381 = vadd.f32 %v2349, 1e-05
        %v2382 = vadd.f32 %v2350, 1e-05
        %v2383 = vadd.f32 %v2351, 1e-05
        %v2384 = vadd.f32 %v2352, 1e-05
        %v2385 = vadd.f32 %v2353, 1e-05
        %v2386 = vadd.f32 %v2354, 1e-05
        %v2387 = vrsqrt.pop %v2355
        %v2388 = vrsqrt.pop %v2356
        %v2389 = vrsqrt.pop %v2357
        %v2390 = vrsqrt.pop %v2358
        %v2391 = vrsqrt.pop %v2359
        %v2392 = vrsqrt.pop %v2360
        %v2393 = vrsqrt.pop %v2361
        %v2394 = vrsqrt.pop %v2362
        %v2395 = vrsqrt.pop %v2363
        %v2396 = vrsqrt.pop %v2364
        %v2397 = vrsqrt.pop %v2365
        %v2398 = vrsqrt.pop %v2366
        %v2399 = vrsqrt.pop %v2367
        %v2400 = vrsqrt.pop %v2368
        %v2401 = vrsqrt.pop %v2369
        %v2402 = vrsqrt.pop %v2370
        %v2403 = vrsqrt.pop %v2371
        %v2404 = vrsqrt.pop %v2372
        %v2405 = vrsqrt.pop %v2373
        %v2406 = vrsqrt.pop %v2374
        %v2407 = vrsqrt.pop %v2375
        %v2408 = vrsqrt.pop %v2376
        %v2409 = vrsqrt.pop %v2377
        %v2410 = vrsqrt.pop %v2378
        %v2411 = vrsqrt.pop %v2379
        %v2412 = vrsqrt.pop %v2380
        %v2413 = vrsqrt.pop %v2381
        %v2414 = vrsqrt.pop %v2382
        %v2415 = vrsqrt.pop %v2383
        %v2416 = vrsqrt.pop %v2384
        %v2417 = vrsqrt.pop %v2385
        %v2418 = vrsqrt.pop %v2386
        %v2419 = vmul.f32 %v2195, %v2387
        %v2420 = vmul.f32 %v2196, %v2388
        %v2421 = vmul.f32 %v2197, %v2389
        %v2422 = vmul.f32 %v2198, %v2390
        %v2423 = vmul.f32 %v2199, %v2391
        %v2424 = vmul.f32 %v2200, %v2392
        %v2425 = vmul.f32 %v2201, %v2393
        %v2426 = vmul.f32 %v2202, %v2394
        %v2427 = vmul.f32 %v2203, %v2395
        %v2428 = vmul.f32 %v2204, %v2396
        %v2429 = vmul.f32 %v2205, %v2397
        %v2430 = vmul.f32 %v2206, %v2398
        %v2431 = vmul.f32 %v2207, %v2399
        %v2432 = vmul.f32 %v2208, %v2400
        %v2433 = vmul.f32 %v2209, %v2401
        %v2434 = vmul.f32 %v2210, %v2402
        %v2435 = vmul.f32 %v2211, %v2403
        %v2436 = vmul.f32 %v2212, %v2404
        %v2437 = vmul.f32 %v2213, %v2405
        %v2438 = vmul.f32 %v2214, %v2406
        %v2439 = vmul.f32 %v2215, %v2407
        %v2440 = vmul.f32 %v2216, %v2408
        %v2441 = vmul.f32 %v2217, %v2409
        %v2442 = vmul.f32 %v2218, %v2410
        %v2443 = vmul.f32 %v2219, %v2411
        %v2444 = vmul.f32 %v2220, %v2412
        %v2445 = vmul.f32 %v2221, %v2413
        %v2446 = vmul.f32 %v2222, %v2414
        %v2447 = vmul.f32 %v2223, %v2415
        %v2448 = vmul.f32 %v2224, %v2416
        %v2449 = vmul.f32 %v2225, %v2417
        %v2450 = vmul.f32 %v2226, %v2418
        %v2451 = vlaneseq
        %v2452 = vshrl.u32 %v2451, 7
        %v2453 = vsub.s32 0, %v2452
        %v2454 = vrot.slane %v2062, %v2453
        %v2455 = vmul.f32 %v2419, %v2454
        %v2456 = vmul.f32 %v2420, %v2454
        %v2457 = vmul.f32 %v2421, %v2454
        %v2458 = vmul.f32 %v2422, %v2454
        %v2459 = vmul.f32 %v2423, %v2454
        %v2460 = vmul.f32 %v2424, %v2454
        %v2461 = vmul.f32 %v2425, %v2454
        %v2462 = vmul.f32 %v2426, %v2454
        %v2463 = vmul.f32 %v2427, %v2454
        %v2464 = vmul.f32 %v2428, %v2454
        %v2465 = vmul.f32 %v2429, %v2454
        %v2466 = vmul.f32 %v2430, %v2454
        %v2467 = vmul.f32 %v2431, %v2454
        %v2468 = vmul.f32 %v2432, %v2454
        %v2469 = vmul.f32 %v2433, %v2454
        %v2470 = vmul.f32 %v2434, %v2454
        %v2471 = vmul.f32 %v2435, %v2454
        %v2472 = vmul.f32 %v2436, %v2454
        %v2473 = vmul.f32 %v2437, %v2454
        %v2474 = vmul.f32 %v2438, %v2454
        %v2475 = vmul.f32 %v2439, %v2454
        %v2476 = vmul.f32 %v2440, %v2454
        %v2477 = vmul.f32 %v2441, %v2454
        %v2478 = vmul.f32 %v2442, %v2454
        %v2479 = vmul.f32 %v2443, %v2454
        %v2480 = vmul.f32 %v2444, %v2454
        %v2481 = vmul.f32 %v2445, %v2454
        %v2482 = vmul.f32 %v2446, %v2454
        %v2483 = vmul.f32 %v2447, %v2454
        %v2484 = vmul.f32 %v2448, %v2454
        %v2485 = vmul.f32 %v2449, %v2454
        %v2486 = vmul.f32 %v2450, %v2454
        %v2487 = vlaneseq
        %v2488 = vshrl.u32 %v2487, 7
        %v2489 = vsub.s32 1, %v2488
        %v2490 = vrot.slane %v2062, %v2489
        %v2491 = vadd.f32 %v2455, %v2490
        %v2492 = vadd.f32 %v2456, %v2490
        %v2493 = vadd.f32 %v2457, %v2490
        %v2494 = vadd.f32 %v2458, %v2490
        %v2495 = vadd.f32 %v2459, %v2490
        %v2496 = vadd.f32 %v2460, %v2490
        %v2497 = vadd.f32 %v2461, %v2490
        %v2498 = vadd.f32 %v2462, %v2490
        %v2499 = vadd.f32 %v2463, %v2490
        %v2500 = vadd.f32 %v2464, %v2490
        %v2501 = vadd.f32 %v2465, %v2490
        %v2502 = vadd.f32 %v2466, %v2490
        %v2503 = vadd.f32 %v2467, %v2490
        %v2504 = vadd.f32 %v2468, %v2490
        %v2505 = vadd.f32 %v2469, %v2490
        %v2506 = vadd.f32 %v2470, %v2490
        %v2507 = vadd.f32 %v2471, %v2490
        %v2508 = vadd.f32 %v2472, %v2490
        %v2509 = vadd.f32 %v2473, %v2490
        %v2510 = vadd.f32 %v2474, %v2490
        %v2511 = vadd.f32 %v2475, %v2490
        %v2512 = vadd.f32 %v2476, %v2490
        %v2513 = vadd.f32 %v2477, %v2490
        %v2514 = vadd.f32 %v2478, %v2490
        %v2515 = vadd.f32 %v2479, %v2490
        %v2516 = vadd.f32 %v2480, %v2490
        %v2517 = vadd.f32 %v2481, %v2490
        %v2518 = vadd.f32 %v2482, %v2490
        %v2519 = vadd.f32 %v2483, %v2490
        %v2520 = vadd.f32 %v2484, %v2490
        %v2521 = vadd.f32 %v2485, %v2490
        %v2522 = vadd.f32 %v2486, %v2490
        %v2523 = vpack.c.bf16 %v2492, %v2491
        %v2524 = vpack.c.bf16 %v2494, %v2493
        %v2525 = vpack.c.bf16 %v2496, %v2495
        %v2526 = vpack.c.bf16 %v2498, %v2497
        %v2527 = vpack.c.bf16 %v2500, %v2499
        %v2528 = vpack.c.bf16 %v2502, %v2501
        %v2529 = vpack.c.bf16 %v2504, %v2503
        %v2530 = vpack.c.bf16 %v2506, %v2505
        %v2531 = vpack.c.bf16 %v2508, %v2507
        %v2532 = vpack.c.bf16 %v2510, %v2509
        %v2533 = vpack.c.bf16 %v2512, %v2511
        %v2534 = vpack.c.bf16 %v2514, %v2513
        %v2535 = vpack.c.bf16 %v2516, %v2515
        %v2536 = vpack.c.bf16 %v2518, %v2517
        %v2537 = vpack.c.bf16 %v2520, %v2519
        %v2538 = vpack.c.bf16 %v2522, %v2521
        %v2539 = vld [vmem:[#allocation14] sm:$0xff]
        %v2540 = vld [vmem:[#allocation14 + $0x8] sm:$0xf]
        %v2541 = vld [vmem:[#allocation14 + $0xc] sm:$0xff]
        %v2542 = vld [vmem:[#allocation14 + $0x14] sm:$0xf]
        %v2543 = vld [vmem:[#allocation14 + $0x18] sm:$0xff]
        %v2544 = vld [vmem:[#allocation14 + $0x20] sm:$0xf]
        %v2545 = vld [vmem:[#allocation14 + $0x24] sm:$0xff]
        %v2546 = vld [vmem:[#allocation14 + $0x2c] sm:$0xf]
        %v2547 = vld [vmem:[#allocation14 + $0x30] sm:$0xff]
        %v2548 = vld [vmem:[#allocation14 + $0x38] sm:$0xf]
        %v2549 = vld [vmem:[#allocation14 + $0x3c] sm:$0xff]
        %v2550 = vld [vmem:[#allocation14 + $0x44] sm:$0xf]
        %v2551 = vld [vmem:[#allocation14 + $0x48] sm:$0xff]
        %v2552 = vld [vmem:[#allocation14 + $0x50] sm:$0xf]
        %v2553 = vld [vmem:[#allocation14 + $0x54] sm:$0xff]
        %v2554 = vld [vmem:[#allocation14 + $0x5c] sm:$0xf]
        %v2555 = vld [vmem:[#allocation14 + $0x60] sm:$0xff]
        %v2556 = vld [vmem:[#allocation14 + $0x68] sm:$0xf]
        %v2557 = vld [vmem:[#allocation14 + $0x6c] sm:$0xff]
        %v2558 = vld [vmem:[#allocation14 + $0x74] sm:$0xf]
        %v2559 = vld [vmem:[#allocation14 + $0x78] sm:$0xff]
        %v2560 = vld [vmem:[#allocation14 + $0x80] sm:$0xf]
        %v2561 = vld [vmem:[#allocation14 + $0x84] sm:$0xff]
        %v2562 = vld [vmem:[#allocation14 + $0x8c] sm:$0xf]
        %v2563 = vld [vmem:[#allocation14 + $0x90] sm:$0xff]
        %v2564 = vld [vmem:[#allocation14 + $0x98] sm:$0xf]
        %v2565 = vld [vmem:[#allocation14 + $0x9c] sm:$0xff]
        %v2566 = vld [vmem:[#allocation14 + $0xa4] sm:$0xf]
        %v2567 = vld [vmem:[#allocation14 + $0xa8] sm:$0xff]
        %v2568 = vld [vmem:[#allocation14 + $0xb0] sm:$0xf]
        %v2569 = vld [vmem:[#allocation14 + $0xb4] sm:$0xff]
        %v2570 = vld [vmem:[#allocation14 + $0xbc] sm:$0xf]
        %v2571 = vld [vmem:[#allocation16] sm:$0x7]
        %v2573 = vlaneseq
        %v2574 = vshrl.u32 %v2573, 7
        %v2575 = vsub.s32 0, %v2574
        %v2576 = vrot.slane %v2571, %v2575
        %v2577 = vlaneseq
        %v2578 = vshrl.u32 %v2577, 7
        %v2579 = vsub.s32 1, %v2578
        %v2580 = vrot.slane %v2571, %v2579
        %v2581 = vlaneseq
        %v2582 = vshrl.u32 %v2581, 7
        %v2583 = vsub.s32 2, %v2582
        %v2584 = vrot.slane %v2571, %v2583
        %v2620 = vunpack.c.l.b16 %v2539
        %v2621 = vunpack.c.h.b16 %v2539
        %v2622 = vunpack.c.l.b16 %v2540
        %v2623 = vunpack.c.l.b16 %v2541
        %v2624 = vunpack.c.h.b16 %v2541
        %v2625 = vunpack.c.l.b16 %v2542
        %v2626 = vunpack.c.l.b16 %v2543
        %v2627 = vunpack.c.h.b16 %v2543
        %v2628 = vunpack.c.l.b16 %v2544
        %v2629 = vunpack.c.l.b16 %v2545
        %v2630 = vunpack.c.h.b16 %v2545
        %v2631 = vunpack.c.l.b16 %v2546
        %v2632 = vunpack.c.l.b16 %v2547
        %v2633 = vunpack.c.h.b16 %v2547
        %v2634 = vunpack.c.l.b16 %v2548
        %v2635 = vunpack.c.l.b16 %v2549
        %v2636 = vunpack.c.h.b16 %v2549
        %v2637 = vunpack.c.l.b16 %v2550
        %v2638 = vunpack.c.l.b16 %v2551
        %v2639 = vunpack.c.h.b16 %v2551
        %v2640 = vunpack.c.l.b16 %v2552
        %v2641 = vunpack.c.l.b16 %v2553
        %v2642 = vunpack.c.h.b16 %v2553
        %v2643 = vunpack.c.l.b16 %v2554
        %v2644 = vunpack.c.l.b16 %v2555
        %v2645 = vunpack.c.h.b16 %v2555
        %v2646 = vunpack.c.l.b16 %v2556
        %v2647 = vunpack.c.l.b16 %v2557
        %v2648 = vunpack.c.h.b16 %v2557
        %v2649 = vunpack.c.l.b16 %v2558
        %v2650 = vunpack.c.l.b16 %v2559
        %v2651 = vunpack.c.h.b16 %v2559
        %v2652 = vunpack.c.l.b16 %v2560
        %v2653 = vunpack.c.l.b16 %v2561
        %v2654 = vunpack.c.h.b16 %v2561
        %v2655 = vunpack.c.l.b16 %v2562
        %v2656 = vunpack.c.l.b16 %v2563
        %v2657 = vunpack.c.h.b16 %v2563
        %v2658 = vunpack.c.l.b16 %v2564
        %v2659 = vunpack.c.l.b16 %v2565
        %v2660 = vunpack.c.h.b16 %v2565
        %v2661 = vunpack.c.l.b16 %v2566
        %v2662 = vunpack.c.l.b16 %v2567
        %v2663 = vunpack.c.h.b16 %v2567
        %v2664 = vunpack.c.l.b16 %v2568
        %v2665 = vunpack.c.l.b16 %v2569
        %v2666 = vunpack.c.h.b16 %v2569
        %v2667 = vunpack.c.l.b16 %v2570
        %v2668 = vpack.c.b16 %v2623, %v2620
        %v2669 = vpack.c.b16 %v2624, %v2621
        %v2670 = vpack.c.b16 %v2625, %v2622
        %v2671 = vpack.c.b16 %v2629, %v2626
        %v2672 = vpack.c.b16 %v2630, %v2627
        %v2673 = vpack.c.b16 %v2631, %v2628
        %v2674 = vpack.c.b16 %v2635, %v2632
        %v2675 = vpack.c.b16 %v2636, %v2633
        %v2676 = vpack.c.b16 %v2637, %v2634
        %v2677 = vpack.c.b16 %v2641, %v2638
        %v2678 = vpack.c.b16 %v2642, %v2639
        %v2679 = vpack.c.b16 %v2643, %v2640
        %v2680 = vpack.c.b16 %v2647, %v2644
        %v2681 = vpack.c.b16 %v2648, %v2645
        %v2682 = vpack.c.b16 %v2649, %v2646
        %v2683 = vpack.c.b16 %v2653, %v2650
        %v2684 = vpack.c.b16 %v2654, %v2651
        %v2685 = vpack.c.b16 %v2655, %v2652
        %v2686 = vpack.c.b16 %v2659, %v2656
        %v2687 = vpack.c.b16 %v2660, %v2657
        %v2688 = vpack.c.b16 %v2661, %v2658
        %v2689 = vpack.c.b16 %v2665, %v2662
        %v2690 = vpack.c.b16 %v2666, %v2663
        %v2691 = vpack.c.b16 %v2667, %v2664
        %2716 = vmatprep.subr.bf16.mxu0 %v2690
        %2717 = vmatpush1.bf16.msra.mxu0 %v2689
        %2718 = vmatprep.subr.bf16.mxu0 %v2687
        %2719 = vmatpush1.bf16.msra.mxu0 %v2686
        %2720 = vmatprep.subr.bf16.mxu0 %v2684
        %2721 = vmatpush1.bf16.msra.mxu0 %v2683
        %2722 = vmatprep.subr.bf16.mxu0 %v2681
        %2723 = vmatpush1.bf16.msra.mxu0 %v2680
        %2724 = vmatprep.subr.bf16.mxu0 %v2678
        %2725 = vmatpush1.bf16.msra.mxu0 %v2677
        %2726 = vmatprep.subr.bf16.mxu0 %v2675
        %2727 = vmatpush1.bf16.msra.mxu0 %v2674
        %2728 = vmatprep.subr.bf16.mxu0 %v2672
        %2729 = vmatpush1.bf16.msra.mxu0 %v2671
        %2730 = vmatprep.subr.bf16.mxu0 %v2669
        %2731 = vmatpush1.bf16.msra.mxu0 %v2668
        %2732 = vmatprep.subr.bf16.mxu0 0
        %2733 = vmatpush2.bf16.msra.mxu0 0
        %2734 = vmatprep.subr.bf16.mxu0 0
        %2735 = vmatpush2.bf16.msra.mxu0 0
        %2736 = vmatprep.subr.bf16.mxu0 0
        %2737 = vmatpush2.bf16.msra.mxu0 0
        %2738 = vmatprep.subr.bf16.mxu0 0
        %2739 = vmatpush2.bf16.msra.mxu0 0
        %2740 = vmatprep.subr.bf16.mxu0 0
        %2741 = vmatpush2.bf16.msra.mxu0 0
        %2742 = vmatprep.subr.bf16.mxu0 0
        %2743 = vmatpush2.bf16.msra.mxu0 0
        %2744 = vmatprep.subr.bf16.mxu0 0
        %2745 = vmatpush2.bf16.msra.mxu0 0
        %2746 = vmatprep.subr.bf16.mxu0 0
        %2747 = vmatpush2.bf16.msra.mxu0 0
        %2748 = vmatprep.mubr.bf16.mxu0 0
        %2749 = vmatmul.mubr.bf16.gmra.mxu0 %v2523
        %v2750 = vpop.f32.mrf.mxu0
        %v2751 = vadd.f32 %v2576, %v2750
        %v2752 = vpop.f32.mrf.mxu0
        %v2753 = vadd.f32 %v2580, %v2752
        %v2754 = vpop.f32.mrf.mxu0
        %v2755 = vadd.f32 %v2576, %v2754
        %v2756 = vpop.f32.mrf.mxu0
        %v2757 = vadd.f32 %v2580, %v2756
        %2758 = vmatprep.mubr.bf16.mxu0 0
        %2759 = vmatmul.mubr.bf16.gmra.mxu0 %v2524
        %v2760 = vpop.f32.mrf.mxu0
        %v2761 = vadd.f32 %v2576, %v2760
        %v2762 = vpop.f32.mrf.mxu0
        %v2763 = vadd.f32 %v2580, %v2762
        %v2764 = vpop.f32.mrf.mxu0
        %v2765 = vadd.f32 %v2576, %v2764
        %v2766 = vpop.f32.mrf.mxu0
        %v2767 = vadd.f32 %v2580, %v2766
        %2768 = vmatprep.mubr.bf16.mxu0 0
        %2769 = vmatmul.mubr.bf16.gmra.mxu0 %v2525
        %v2770 = vpop.f32.mrf.mxu0
        %v2771 = vadd.f32 %v2576, %v2770
        %v2772 = vpop.f32.mrf.mxu0
        %v2773 = vadd.f32 %v2580, %v2772
        %v2774 = vpop.f32.mrf.mxu0
        %v2775 = vadd.f32 %v2576, %v2774
        %v2776 = vpop.f32.mrf.mxu0
        %v2777 = vadd.f32 %v2580, %v2776
        %2778 = vmatprep.mubr.bf16.mxu0 0
        %2779 = vmatmul.mubr.bf16.gmra.mxu0 %v2526
        %v2780 = vpop.f32.mrf.mxu0
        %v2781 = vadd.f32 %v2576, %v2780
        %v2782 = vpop.f32.mrf.mxu0
        %v2783 = vadd.f32 %v2580, %v2782
        %v2784 = vpop.f32.mrf.mxu0
        %v2785 = vadd.f32 %v2576, %v2784
        %v2786 = vpop.f32.mrf.mxu0
        %v2787 = vadd.f32 %v2580, %v2786
        %2788 = vmatprep.mubr.bf16.mxu0 0
        %2789 = vmatmul.mubr.bf16.gmra.mxu0 %v2527
        %v2790 = vpop.f32.mrf.mxu0
        %v2791 = vadd.f32 %v2576, %v2790
        %v2792 = vpop.f32.mrf.mxu0
        %v2793 = vadd.f32 %v2580, %v2792
        %v2794 = vpop.f32.mrf.mxu0
        %v2795 = vadd.f32 %v2576, %v2794
        %v2796 = vpop.f32.mrf.mxu0
        %v2797 = vadd.f32 %v2580, %v2796
        %2798 = vmatprep.mubr.bf16.mxu0 0
        %2799 = vmatmul.mubr.bf16.gmra.mxu0 %v2528
        %v2800 = vpop.f32.mrf.mxu0
        %v2801 = vadd.f32 %v2576, %v2800
        %v2802 = vpop.f32.mrf.mxu0
        %v2803 = vadd.f32 %v2580, %v2802
        %v2804 = vpop.f32.mrf.mxu0
        %v2805 = vadd.f32 %v2576, %v2804
        %v2806 = vpop.f32.mrf.mxu0
        %v2807 = vadd.f32 %v2580, %v2806
        %2808 = vmatprep.mubr.bf16.mxu0 0
        %2809 = vmatmul.mubr.bf16.gmra.mxu0 %v2529
        %v2810 = vpop.f32.mrf.mxu0
        %v2811 = vadd.f32 %v2576, %v2810
        %v2812 = vpop.f32.mrf.mxu0
        %v2813 = vadd.f32 %v2580, %v2812
        %v2814 = vpop.f32.mrf.mxu0
        %v2815 = vadd.f32 %v2576, %v2814
        %v2816 = vpop.f32.mrf.mxu0
        %v2817 = vadd.f32 %v2580, %v2816
        %2818 = vmatprep.mubr.bf16.mxu0 0
        %2819 = vmatmul.mubr.bf16.gmra.mxu0 %v2530
        %v2820 = vpop.f32.mrf.mxu0
        %v2821 = vadd.f32 %v2576, %v2820
        %v2822 = vpop.f32.mrf.mxu0
        %v2823 = vadd.f32 %v2580, %v2822
        %v2824 = vpop.f32.mrf.mxu0
        %v2825 = vadd.f32 %v2576, %v2824
        %v2826 = vpop.f32.mrf.mxu0
        %v2827 = vadd.f32 %v2580, %v2826
        %2828 = vmatprep.mubr.bf16.mxu0 0
        %2829 = vmatmul.mubr.bf16.gmra.mxu0 %v2531
        %v2830 = vpop.f32.mrf.mxu0
        %v2831 = vadd.f32 %v2576, %v2830
        %v2832 = vpop.f32.mrf.mxu0
        %v2833 = vadd.f32 %v2580, %v2832
        %v2834 = vpop.f32.mrf.mxu0
        %v2835 = vadd.f32 %v2576, %v2834
        %v2836 = vpop.f32.mrf.mxu0
        %v2837 = vadd.f32 %v2580, %v2836
        %2838 = vmatprep.mubr.bf16.mxu0 0
        %2839 = vmatmul.mubr.bf16.gmra.mxu0 %v2532
        %v2840 = vpop.f32.mrf.mxu0
        %v2841 = vadd.f32 %v2576, %v2840
        %v2842 = vpop.f32.mrf.mxu0
        %v2843 = vadd.f32 %v2580, %v2842
        %v2844 = vpop.f32.mrf.mxu0
        %v2845 = vadd.f32 %v2576, %v2844
        %v2846 = vpop.f32.mrf.mxu0
        %v2847 = vadd.f32 %v2580, %v2846
        %2848 = vmatprep.mubr.bf16.mxu0 0
        %2849 = vmatmul.mubr.bf16.gmra.mxu0 %v2533
        %v2850 = vpop.f32.mrf.mxu0
        %v2851 = vadd.f32 %v2576, %v2850
        %v2852 = vpop.f32.mrf.mxu0
        %v2853 = vadd.f32 %v2580, %v2852
        %v2854 = vpop.f32.mrf.mxu0
        %v2855 = vadd.f32 %v2576, %v2854
        %v2856 = vpop.f32.mrf.mxu0
        %v2857 = vadd.f32 %v2580, %v2856
        %2858 = vmatprep.mubr.bf16.mxu0 0
        %2859 = vmatmul.mubr.bf16.gmra.mxu0 %v2534
        %v2860 = vpop.f32.mrf.mxu0
        %v2861 = vadd.f32 %v2576, %v2860
        %v2862 = vpop.f32.mrf.mxu0
        %v2863 = vadd.f32 %v2580, %v2862
        %v2864 = vpop.f32.mrf.mxu0
        %v2865 = vadd.f32 %v2576, %v2864
        %v2866 = vpop.f32.mrf.mxu0
        %v2867 = vadd.f32 %v2580, %v2866
        %2868 = vmatprep.mubr.bf16.mxu0 0
        %2869 = vmatmul.mubr.bf16.gmra.mxu0 %v2535
        %v2870 = vpop.f32.mrf.mxu0
        %v2871 = vadd.f32 %v2576, %v2870
        %v2872 = vpop.f32.mrf.mxu0
        %v2873 = vadd.f32 %v2580, %v2872
        %v2874 = vpop.f32.mrf.mxu0
        %v2875 = vadd.f32 %v2576, %v2874
        %v2876 = vpop.f32.mrf.mxu0
        %v2877 = vadd.f32 %v2580, %v2876
        %2878 = vmatprep.mubr.bf16.mxu0 0
        %2879 = vmatmul.mubr.bf16.gmra.mxu0 %v2536
        %v2880 = vpop.f32.mrf.mxu0
        %v2881 = vadd.f32 %v2576, %v2880
        %v2882 = vpop.f32.mrf.mxu0
        %v2883 = vadd.f32 %v2580, %v2882
        %v2884 = vpop.f32.mrf.mxu0
        %v2885 = vadd.f32 %v2576, %v2884
        %v2886 = vpop.f32.mrf.mxu0
        %v2887 = vadd.f32 %v2580, %v2886
        %2888 = vmatprep.mubr.bf16.mxu0 0
        %2889 = vmatmul.mubr.bf16.gmra.mxu0 %v2537
        %v2890 = vpop.f32.mrf.mxu0
        %v2891 = vadd.f32 %v2576, %v2890
        %v2892 = vpop.f32.mrf.mxu0
        %v2893 = vadd.f32 %v2580, %v2892
        %v2894 = vpop.f32.mrf.mxu0
        %v2895 = vadd.f32 %v2576, %v2894
        %v2896 = vpop.f32.mrf.mxu0
        %v2897 = vadd.f32 %v2580, %v2896
        %2898 = vmatprep.mubr.bf16.mxu0 0
        %2899 = vmatmul.mubr.bf16.gmra.mxu0 %v2538
        %v2900 = vpop.f32.mrf.mxu0
        %v2901 = vadd.f32 %v2576, %v2900
        %v2902 = vpop.f32.mrf.mxu0
        %v2903 = vadd.f32 %v2580, %v2902
        %v2904 = vpop.f32.mrf.mxu0
        %v2905 = vadd.f32 %v2576, %v2904
        %v2906 = vpop.f32.mrf.mxu0
        %v2907 = vadd.f32 %v2580, %v2906
        %2908 = vdwg.mxu0
        %2909 = vmatprep.subr.bf16.mxu0 0
        %2910 = vmatpush1.bf16.msra.mxu0 %v2691
        %2911 = vmatprep.subr.bf16.mxu0 0
        %2912 = vmatpush1.bf16.msra.mxu0 %v2688
        %2913 = vmatprep.subr.bf16.mxu0 0
        %2914 = vmatpush1.bf16.msra.mxu0 %v2685
        %2915 = vmatprep.subr.bf16.mxu0 0
        %2916 = vmatpush1.bf16.msra.mxu0 %v2682
        %2917 = vmatprep.subr.bf16.mxu0 0
        %2918 = vmatpush1.bf16.msra.mxu0 %v2679
        %2919 = vmatprep.subr.bf16.mxu0 0
        %2920 = vmatpush1.bf16.msra.mxu0 %v2676
        %2921 = vmatprep.subr.bf16.mxu0 0
        %2922 = vmatpush1.bf16.msra.mxu0 %v2673
        %2923 = vmatprep.subr.bf16.mxu0 0
        %2924 = vmatpush1.bf16.msra.mxu0 %v2670
        %2925 = vmatprep.subr.bf16.mxu0 0
        %2926 = vmatpush2.bf16.msra.mxu0 0
        %2927 = vmatprep.subr.bf16.mxu0 0
        %2928 = vmatpush2.bf16.msra.mxu0 0
        %2929 = vmatprep.subr.bf16.mxu0 0
        %2930 = vmatpush2.bf16.msra.mxu0 0
        %2931 = vmatprep.subr.bf16.mxu0 0
        %2932 = vmatpush2.bf16.msra.mxu0 0
        %2933 = vmatprep.subr.bf16.mxu0 0
        %2934 = vmatpush2.bf16.msra.mxu0 0
        %2935 = vmatprep.subr.bf16.mxu0 0
        %2936 = vmatpush2.bf16.msra.mxu0 0
        %2937 = vmatprep.subr.bf16.mxu0 0
        %2938 = vmatpush2.bf16.msra.mxu0 0
        %2939 = vmatprep.subr.bf16.mxu0 0
        %2940 = vmatpush2.bf16.msra.mxu0 0
        %2941 = vmatprep.mubr.bf16.mxu0 0
        %2942 = vmatmul.mubr.bf16.gmra.mxu0 %v2523
        %v2943 = vpop.f32.mrf.mxu0
        %v2944 = vadd.f32 %v2584, %v2943
        %v2945 = vpop.f32.mrf.mxu0
        %v2946 = vpop.f32.mrf.mxu0
        %v2947 = vadd.f32 %v2584, %v2946
        %v2948 = vpop.f32.mrf.mxu0
        %2949 = vmatprep.mubr.bf16.mxu0 0
        %2950 = vmatmul.mubr.bf16.gmra.mxu0 %v2524
        %v2951 = vpop.f32.mrf.mxu0
        %v2952 = vadd.f32 %v2584, %v2951
        %v2953 = vpop.f32.mrf.mxu0
        %v2954 = vpop.f32.mrf.mxu0
        %v2955 = vadd.f32 %v2584, %v2954
        %v2956 = vpop.f32.mrf.mxu0
        %2957 = vmatprep.mubr.bf16.mxu0 0
        %2958 = vmatmul.mubr.bf16.gmra.mxu0 %v2525
        %v2959 = vpop.f32.mrf.mxu0
        %v2960 = vadd.f32 %v2584, %v2959
        %v2961 = vpop.f32.mrf.mxu0
        %v2962 = vpop.f32.mrf.mxu0
        %v2963 = vadd.f32 %v2584, %v2962
        %v2964 = vpop.f32.mrf.mxu0
        %2965 = vmatprep.mubr.bf16.mxu0 0
        %2966 = vmatmul.mubr.bf16.gmra.mxu0 %v2526
        %v2967 = vpop.f32.mrf.mxu0
        %v2968 = vadd.f32 %v2584, %v2967
        %v2969 = vpop.f32.mrf.mxu0
        %v2970 = vpop.f32.mrf.mxu0
        %v2971 = vadd.f32 %v2584, %v2970
        %v2972 = vpop.f32.mrf.mxu0
        %2973 = vmatprep.mubr.bf16.mxu0 0
        %2974 = vmatmul.mubr.bf16.gmra.mxu0 %v2527
        %v2975 = vpop.f32.mrf.mxu0
        %v2976 = vadd.f32 %v2584, %v2975
        %v2977 = vpop.f32.mrf.mxu0
        %v2978 = vpop.f32.mrf.mxu0
        %v2979 = vadd.f32 %v2584, %v2978
        %v2980 = vpop.f32.mrf.mxu0
        %2981 = vmatprep.mubr.bf16.mxu0 0
        %2982 = vmatmul.mubr.bf16.gmra.mxu0 %v2528
        %v2983 = vpop.f32.mrf.mxu0
        %v2984 = vadd.f32 %v2584, %v2983
        %v2985 = vpop.f32.mrf.mxu0
        %v2986 = vpop.f32.mrf.mxu0
        %v2987 = vadd.f32 %v2584, %v2986
        %v2988 = vpop.f32.mrf.mxu0
        %2989 = vmatprep.mubr.bf16.mxu0 0
        %2990 = vmatmul.mubr.bf16.gmra.mxu0 %v2529
        %v2991 = vpop.f32.mrf.mxu0
        %v2992 = vadd.f32 %v2584, %v2991
        %v2993 = vpop.f32.mrf.mxu0
        %v2994 = vpop.f32.mrf.mxu0
        %v2995 = vadd.f32 %v2584, %v2994
        %v2996 = vpop.f32.mrf.mxu0
        %2997 = vmatprep.mubr.bf16.mxu0 0
        %2998 = vmatmul.mubr.bf16.gmra.mxu0 %v2530
        %v2999 = vpop.f32.mrf.mxu0
        %v3000 = vadd.f32 %v2584, %v2999
        %v3001 = vpop.f32.mrf.mxu0
        %v3002 = vpop.f32.mrf.mxu0
        %v3003 = vadd.f32 %v2584, %v3002
        %v3004 = vpop.f32.mrf.mxu0
        %3005 = vmatprep.mubr.bf16.mxu0 0
        %3006 = vmatmul.mubr.bf16.gmra.mxu0 %v2531
        %v3007 = vpop.f32.mrf.mxu0
        %v3008 = vadd.f32 %v2584, %v3007
        %v3009 = vpop.f32.mrf.mxu0
        %v3010 = vpop.f32.mrf.mxu0
        %v3011 = vadd.f32 %v2584, %v3010
        %v3012 = vpop.f32.mrf.mxu0
        %3013 = vmatprep.mubr.bf16.mxu0 0
        %3014 = vmatmul.mubr.bf16.gmra.mxu0 %v2532
        %v3015 = vpop.f32.mrf.mxu0
        %v3016 = vadd.f32 %v2584, %v3015
        %v3017 = vpop.f32.mrf.mxu0
        %v3018 = vpop.f32.mrf.mxu0
        %v3019 = vadd.f32 %v2584, %v3018
        %v3020 = vpop.f32.mrf.mxu0
        %3021 = vmatprep.mubr.bf16.mxu0 0
        %3022 = vmatmul.mubr.bf16.gmra.mxu0 %v2533
        %v3023 = vpop.f32.mrf.mxu0
        %v3024 = vadd.f32 %v2584, %v3023
        %v3025 = vpop.f32.mrf.mxu0
        %v3026 = vpop.f32.mrf.mxu0
        %v3027 = vadd.f32 %v2584, %v3026
        %v3028 = vpop.f32.mrf.mxu0
        %3029 = vmatprep.mubr.bf16.mxu0 0
        %3030 = vmatmul.mubr.bf16.gmra.mxu0 %v2534
        %v3031 = vpop.f32.mrf.mxu0
        %v3032 = vadd.f32 %v2584, %v3031
        %v3033 = vpop.f32.mrf.mxu0
        %v3034 = vpop.f32.mrf.mxu0
        %v3035 = vadd.f32 %v2584, %v3034
        %v3036 = vpop.f32.mrf.mxu0
        %3037 = vmatprep.mubr.bf16.mxu0 0
        %3038 = vmatmul.mubr.bf16.gmra.mxu0 %v2535
        %v3039 = vpop.f32.mrf.mxu0
        %v3040 = vadd.f32 %v2584, %v3039
        %v3041 = vpop.f32.mrf.mxu0
        %v3042 = vpop.f32.mrf.mxu0
        %v3043 = vadd.f32 %v2584, %v3042
        %v3044 = vpop.f32.mrf.mxu0
        %3045 = vmatprep.mubr.bf16.mxu0 0
        %3046 = vmatmul.mubr.bf16.gmra.mxu0 %v2536
        %v3047 = vpop.f32.mrf.mxu0
        %v3048 = vadd.f32 %v2584, %v3047
        %v3049 = vpop.f32.mrf.mxu0
        %v3050 = vpop.f32.mrf.mxu0
        %v3051 = vadd.f32 %v2584, %v3050
        %v3052 = vpop.f32.mrf.mxu0
        %3053 = vmatprep.mubr.bf16.mxu0 0
        %3054 = vmatmul.mubr.bf16.gmra.mxu0 %v2537
        %v3055 = vpop.f32.mrf.mxu0
        %v3056 = vadd.f32 %v2584, %v3055
        %v3057 = vpop.f32.mrf.mxu0
        %v3058 = vpop.f32.mrf.mxu0
        %v3059 = vadd.f32 %v2584, %v3058
        %v3060 = vpop.f32.mrf.mxu0
        %3061 = vmatprep.mubr.bf16.mxu0 0
        %3062 = vmatmul.mubr.bf16.gmra.mxu0 %v2538
        %v3063 = vpop.f32.mrf.mxu0
        %v3064 = vadd.f32 %v2584, %v3063
        %v3065 = vpop.f32.mrf.mxu0
        %v3066 = vpop.f32.mrf.mxu0
        %v3067 = vadd.f32 %v2584, %v3066
        %v3068 = vpop.f32.mrf.mxu0
        %3069 = vdwg.mxu0
        %v3070 = vld [vmem:[#allocation17] sm:$0xf]
        %v3071 = vld [vmem:[#allocation17 + $0x4] sm:$0xf]
        %v3072 = vld [vmem:[#allocation17 + $0x8] sm:$0xf]
        %v3073 = vld [vmem:[#allocation17 + $0xc] sm:$0xf]
        %v3074 = vld [vmem:[#allocation17 + $0x10] sm:$0xf]
        %v3075 = vld [vmem:[#allocation17 + $0x14] sm:$0xf]
        %v3076 = vld [vmem:[#allocation17 + $0x18] sm:$0xf]
        %v3077 = vld [vmem:[#allocation17 + $0x1c] sm:$0xf]
        %v3078 = vmul.f32 %v2751, 0.35355338
        %v3079 = vmul.f32 %v2755, 0.35355338
        %v3080 = vmul.f32 %v2761, 0.35355338
        %v3081 = vmul.f32 %v2765, 0.35355338
        %v3082 = vmul.f32 %v2771, 0.35355338
        %v3083 = vmul.f32 %v2775, 0.35355338
        %v3084 = vmul.f32 %v2781, 0.35355338
        %v3085 = vmul.f32 %v2785, 0.35355338
        %v3086 = vmul.f32 %v2791, 0.35355338
        %v3087 = vmul.f32 %v2795, 0.35355338
        %v3088 = vmul.f32 %v2801, 0.35355338
        %v3089 = vmul.f32 %v2805, 0.35355338
        %v3090 = vmul.f32 %v2811, 0.35355338
        %v3091 = vmul.f32 %v2815, 0.35355338
        %v3092 = vmul.f32 %v2821, 0.35355338
        %v3093 = vmul.f32 %v2825, 0.35355338
        %v3094 = vmul.f32 %v2831, 0.35355338
        %v3095 = vmul.f32 %v2835, 0.35355338
        %v3096 = vmul.f32 %v2841, 0.35355338
        %v3097 = vmul.f32 %v2845, 0.35355338
        %v3098 = vmul.f32 %v2851, 0.35355338
        %v3099 = vmul.f32 %v2855, 0.35355338
        %v3100 = vmul.f32 %v2861, 0.35355338
        %v3101 = vmul.f32 %v2865, 0.35355338
        %v3102 = vmul.f32 %v2871, 0.35355338
        %v3103 = vmul.f32 %v2875, 0.35355338
        %v3104 = vmul.f32 %v2881, 0.35355338
        %v3105 = vmul.f32 %v2885, 0.35355338
        %v3106 = vmul.f32 %v2891, 0.35355338
        %v3107 = vmul.f32 %v2895, 0.35355338
        %v3108 = vmul.f32 %v2901, 0.35355338
        %v3109 = vmul.f32 %v2905, 0.35355338
        %v3110 = vpack.c.bf16 %v3079, %v3078
        %v3111 = vpack.c.bf16 %v3081, %v3080
        %v3112 = vpack.c.bf16 %v3083, %v3082
        %v3113 = vpack.c.bf16 %v3085, %v3084
        %v3114 = vpack.c.bf16 %v3087, %v3086
        %v3115 = vpack.c.bf16 %v3089, %v3088
        %v3116 = vpack.c.bf16 %v3091, %v3090
        %v3117 = vpack.c.bf16 %v3093, %v3092
        %v3118 = vpack.c.bf16 %v3095, %v3094
        %v3119 = vpack.c.bf16 %v3097, %v3096
        %v3120 = vpack.c.bf16 %v3099, %v3098
        %v3121 = vpack.c.bf16 %v3101, %v3100
        %v3122 = vpack.c.bf16 %v3103, %v3102
        %v3123 = vpack.c.bf16 %v3105, %v3104
        %v3124 = vpack.c.bf16 %v3107, %v3106
        %v3125 = vpack.c.bf16 %v3109, %v3108
        %v3126 = vmul.f32 %v2753, 0.35355338
        %v3127 = vmul.f32 %v2757, 0.35355338
        %v3128 = vmul.f32 %v2763, 0.35355338
        %v3129 = vmul.f32 %v2767, 0.35355338
        %v3130 = vmul.f32 %v2773, 0.35355338
        %v3131 = vmul.f32 %v2777, 0.35355338
        %v3132 = vmul.f32 %v2783, 0.35355338
        %v3133 = vmul.f32 %v2787, 0.35355338
        %v3134 = vmul.f32 %v2793, 0.35355338
        %v3135 = vmul.f32 %v2797, 0.35355338
        %v3136 = vmul.f32 %v2803, 0.35355338
        %v3137 = vmul.f32 %v2807, 0.35355338
        %v3138 = vmul.f32 %v2813, 0.35355338
        %v3139 = vmul.f32 %v2817, 0.35355338
        %v3140 = vmul.f32 %v2823, 0.35355338
        %v3141 = vmul.f32 %v2827, 0.35355338
        %v3142 = vmul.f32 %v2833, 0.35355338
        %v3143 = vmul.f32 %v2837, 0.35355338
        %v3144 = vmul.f32 %v2843, 0.35355338
        %v3145 = vmul.f32 %v2847, 0.35355338
        %v3146 = vmul.f32 %v2853, 0.35355338
        %v3147 = vmul.f32 %v2857, 0.35355338
        %v3148 = vmul.f32 %v2863, 0.35355338
        %v3149 = vmul.f32 %v2867, 0.35355338
        %v3150 = vmul.f32 %v2873, 0.35355338
        %v3151 = vmul.f32 %v2877, 0.35355338
        %v3152 = vmul.f32 %v2883, 0.35355338
        %v3153 = vmul.f32 %v2887, 0.35355338
        %v3154 = vmul.f32 %v2893, 0.35355338
        %v3155 = vmul.f32 %v2897, 0.35355338
        %v3156 = vmul.f32 %v2903, 0.35355338
        %v3157 = vmul.f32 %v2907, 0.35355338
        %v3158 = vpack.c.bf16 %v3127, %v3126
        %v3159 = vpack.c.bf16 %v3129, %v3128
        %v3160 = vpack.c.bf16 %v3131, %v3130
        %v3161 = vpack.c.bf16 %v3133, %v3132
        %v3162 = vpack.c.bf16 %v3135, %v3134
        %v3163 = vpack.c.bf16 %v3137, %v3136
        %v3164 = vpack.c.bf16 %v3139, %v3138
        %v3165 = vpack.c.bf16 %v3141, %v3140
        %v3166 = vpack.c.bf16 %v3143, %v3142
        %v3167 = vpack.c.bf16 %v3145, %v3144
        %v3168 = vpack.c.bf16 %v3147, %v3146
        %v3169 = vpack.c.bf16 %v3149, %v3148
        %v3170 = vpack.c.bf16 %v3151, %v3150
        %v3171 = vpack.c.bf16 %v3153, %v3152
        %v3172 = vpack.c.bf16 %v3155, %v3154
        %v3173 = vpack.c.bf16 %v3157, %v3156
        %v3174 = vpack.c.bf16 %v2947, %v2944
        %v3175 = vpack.c.bf16 %v2955, %v2952
        %v3176 = vpack.c.bf16 %v2963, %v2960
        %v3177 = vpack.c.bf16 %v2971, %v2968
        %v3178 = vpack.c.bf16 %v2979, %v2976
        %v3179 = vpack.c.bf16 %v2987, %v2984
        %v3180 = vpack.c.bf16 %v2995, %v2992
        %v3181 = vpack.c.bf16 %v3003, %v3000
        %v3182 = vpack.c.bf16 %v3011, %v3008
        %v3183 = vpack.c.bf16 %v3019, %v3016
        %v3184 = vpack.c.bf16 %v3027, %v3024
        %v3185 = vpack.c.bf16 %v3035, %v3032
        %v3186 = vpack.c.bf16 %v3043, %v3040
        %v3187 = vpack.c.bf16 %v3051, %v3048
        %v3188 = vpack.c.bf16 %v3059, %v3056
        %v3189 = vpack.c.bf16 %v3067, %v3064
        %vm3190 = vcmask 523264
        %v3192 = vsel %vm3190, %v3110, 0
        %v3195 = vsel %vm3190, %v3111, 0
        %v3198 = vsel %vm3190, %v3112, 0
        %v3201 = vsel %vm3190, %v3113, 0
        %v3204 = vsel %vm3190, %v3114, 0
        %v3207 = vsel %vm3190, %v3115, 0
        %v3210 = vsel %vm3190, %v3116, 0
        %v3213 = vsel %vm3190, %v3117, 0
        %v3216 = vsel %vm3190, %v3118, 0
        %v3219 = vsel %vm3190, %v3119, 0
        %v3222 = vsel %vm3190, %v3120, 0
        %v3225 = vsel %vm3190, %v3121, 0
        %v3228 = vsel %vm3190, %v3122, 0
        %v3231 = vsel %vm3190, %v3123, 0
        %v3234 = vsel %vm3190, %v3124, 0
        %v3237 = vsel %vm3190, %v3125, 0
        %v3240 = vsel %vm3190, %v3158, 0
        %v3243 = vsel %vm3190, %v3159, 0
        %v3246 = vsel %vm3190, %v3160, 0
        %v3249 = vsel %vm3190, %v3161, 0
        %v3252 = vsel %vm3190, %v3162, 0
        %v3255 = vsel %vm3190, %v3163, 0
        %v3258 = vsel %vm3190, %v3164, 0
        %v3261 = vsel %vm3190, %v3165, 0
        %v3264 = vsel %vm3190, %v3166, 0
        %v3267 = vsel %vm3190, %v3167, 0
        %v3270 = vsel %vm3190, %v3168, 0
        %v3273 = vsel %vm3190, %v3169, 0
        %v3276 = vsel %vm3190, %v3170, 0
        %v3279 = vsel %vm3190, %v3171, 0
        %v3282 = vsel %vm3190, %v3172, 0
        %v3285 = vsel %vm3190, %v3173, 0
        %3287 = vmatprep.subr.bf16.mxu0 0
        %3288 = vmatpush1.bf16.xpose.msra.mxu0 %v3261
        %3289 = vmatprep.subr.bf16.mxu0 0
        %3290 = vmatpush1.bf16.xpose.msra.mxu0 %v3258
        %3291 = vmatprep.subr.bf16.mxu0 0
        %3292 = vmatpush1.bf16.xpose.msra.mxu0 %v3255
        %3293 = vmatprep.subr.bf16.mxu0 0
        %3294 = vmatpush1.bf16.xpose.msra.mxu0 %v3252
        %3295 = vmatprep.subr.bf16.mxu0 0
        %3296 = vmatpush1.bf16.xpose.msra.mxu0 %v3249
        %3297 = vmatprep.subr.bf16.mxu0 0
        %3298 = vmatpush1.bf16.xpose.msra.mxu0 %v3246
        %3299 = vmatprep.subr.bf16.mxu0 0
        %3300 = vmatpush1.bf16.xpose.msra.mxu0 %v3243
        %3301 = vmatprep.subr.bf16.mxu0 0
        %3302 = vmatpush1.bf16.xpose.msra.mxu0 %v3240
        %3303 = vmatprep.subr.bf16.mxu0 0
        %3304 = vmatpush2.bf16.xpose.msra.mxu0 %v3285
        %3305 = vmatprep.subr.bf16.mxu0 0
        %3306 = vmatpush2.bf16.xpose.msra.mxu0 %v3282
        %3307 = vmatprep.subr.bf16.mxu0 0
        %3308 = vmatpush2.bf16.xpose.msra.mxu0 %v3279
        %3309 = vmatprep.subr.bf16.mxu0 0
        %3310 = vmatpush2.bf16.xpose.msra.mxu0 %v3276
        %3311 = vmatprep.subr.bf16.mxu0 0
        %3312 = vmatpush2.bf16.xpose.msra.mxu0 %v3273
        %3313 = vmatprep.subr.bf16.mxu0 0
        %3314 = vmatpush2.bf16.xpose.msra.mxu0 %v3270
        %3315 = vmatprep.subr.bf16.mxu0 0
        %3316 = vmatpush2.bf16.xpose.msra.mxu0 %v3267
        %3317 = vmatprep.subr.bf16.mxu0 0
        %3318 = vmatpush2.bf16.xpose.msra.mxu0 %v3264
        %3319 = vmatprep.mubr.bf16.mxu0 0
        %3320 = vmatmul.mubr.bf16.gmra.mxu0 %v3192
        %v3321 = vpop.f32.mrf.mxu0
        %v3322 = vadd.f32 %v1998, %v3321
        %v3323 = vpop.f32.mrf.mxu0
        %v3324 = vadd.f32 %v1999, %v3323
        %v3325 = vpop.f32.mrf.mxu0
        %v3326 = vadd.f32 %v2000, %v3325
        %v3327 = vpop.f32.mrf.mxu0
        %v3328 = vadd.f32 %v2001, %v3327
        %3329 = vmatprep.mubr.bf16.mxu0 0
        %3330 = vmatmul.mubr.bf16.gmra.mxu0 %v3195
        %v3331 = vpop.f32.mrf.mxu0
        %v3332 = vadd.f32 %v2002, %v3331
        %v3333 = vpop.f32.mrf.mxu0
        %v3334 = vadd.f32 %v2003, %v3333
        %v3335 = vpop.f32.mrf.mxu0
        %v3336 = vadd.f32 %v2004, %v3335
        %v3337 = vpop.f32.mrf.mxu0
        %v3338 = vadd.f32 %v2005, %v3337
        %3339 = vmatprep.mubr.bf16.mxu0 0
        %3340 = vmatmul.mubr.bf16.gmra.mxu0 %v3198
        %v3341 = vpop.f32.mrf.mxu0
        %v3342 = vadd.f32 %v2006, %v3341
        %v3343 = vpop.f32.mrf.mxu0
        %v3344 = vadd.f32 %v2007, %v3343
        %v3345 = vpop.f32.mrf.mxu0
        %v3346 = vadd.f32 %v2008, %v3345
        %v3347 = vpop.f32.mrf.mxu0
        %v3348 = vadd.f32 %v2009, %v3347
        %3349 = vmatprep.mubr.bf16.mxu0 0
        %3350 = vmatmul.mubr.bf16.gmra.mxu0 %v3201
        %v3351 = vpop.f32.mrf.mxu0
        %v3352 = vadd.f32 %v2010, %v3351
        %v3353 = vpop.f32.mrf.mxu0
        %v3354 = vadd.f32 %v2011, %v3353
        %v3355 = vpop.f32.mrf.mxu0
        %v3356 = vadd.f32 %v2012, %v3355
        %v3357 = vpop.f32.mrf.mxu0
        %v3358 = vadd.f32 %v2013, %v3357
        %3359 = vmatprep.mubr.bf16.mxu0 0
        %3360 = vmatmul.mubr.bf16.gmra.mxu0 %v3204
        %v3361 = vpop.f32.mrf.mxu0
        %v3362 = vadd.f32 %v2014, %v3361
        %v3363 = vpop.f32.mrf.mxu0
        %v3364 = vadd.f32 %v2015, %v3363
        %v3365 = vpop.f32.mrf.mxu0
        %v3366 = vadd.f32 %v2016, %v3365
        %v3367 = vpop.f32.mrf.mxu0
        %v3368 = vadd.f32 %v2017, %v3367
        %3369 = vmatprep.mubr.bf16.mxu0 0
        %3370 = vmatmul.mubr.bf16.gmra.mxu0 %v3207
        %v3371 = vpop.f32.mrf.mxu0
        %v3372 = vadd.f32 %v2018, %v3371
        %v3373 = vpop.f32.mrf.mxu0
        %v3374 = vadd.f32 %v2019, %v3373
        %v3375 = vpop.f32.mrf.mxu0
        %v3376 = vadd.f32 %v2020, %v3375
        %v3377 = vpop.f32.mrf.mxu0
        %v3378 = vadd.f32 %v2021, %v3377
        %3379 = vmatprep.mubr.bf16.mxu0 0
        %3380 = vmatmul.mubr.bf16.gmra.mxu0 %v3210
        %v3381 = vpop.f32.mrf.mxu0
        %v3382 = vadd.f32 %v2022, %v3381
        %v3383 = vpop.f32.mrf.mxu0
        %v3384 = vadd.f32 %v2023, %v3383
        %v3385 = vpop.f32.mrf.mxu0
        %v3386 = vadd.f32 %v2024, %v3385
        %v3387 = vpop.f32.mrf.mxu0
        %v3388 = vadd.f32 %v2025, %v3387
        %3389 = vmatprep.mubr.bf16.mxu0 0
        %3390 = vmatmul.mubr.bf16.gmra.mxu0 %v3213
        %v3391 = vpop.f32.mrf.mxu0
        %v3392 = vadd.f32 %v2026, %v3391
        %v3393 = vpop.f32.mrf.mxu0
        %v3394 = vadd.f32 %v2027, %v3393
        %v3395 = vpop.f32.mrf.mxu0
        %v3396 = vadd.f32 %v2028, %v3395
        %v3397 = vpop.f32.mrf.mxu0
        %v3398 = vadd.f32 %v2029, %v3397
        %3399 = vmatprep.mubr.bf16.mxu0 0
        %3400 = vmatmul.mubr.bf16.gmra.mxu0 %v3216
        %v3401 = vpop.f32.mrf.mxu0
        %v3402 = vadd.f32 %v2030, %v3401
        %v3403 = vpop.f32.mrf.mxu0
        %v3404 = vadd.f32 %v2031, %v3403
        %v3405 = vpop.f32.mrf.mxu0
        %v3406 = vadd.f32 %v2032, %v3405
        %v3407 = vpop.f32.mrf.mxu0
        %v3408 = vadd.f32 %v2033, %v3407
        %3409 = vmatprep.mubr.bf16.mxu0 0
        %3410 = vmatmul.mubr.bf16.gmra.mxu0 %v3219
        %v3411 = vpop.f32.mrf.mxu0
        %v3412 = vadd.f32 %v2034, %v3411
        %v3413 = vpop.f32.mrf.mxu0
        %v3414 = vadd.f32 %v2035, %v3413
        %v3415 = vpop.f32.mrf.mxu0
        %v3416 = vadd.f32 %v2036, %v3415
        %v3417 = vpop.f32.mrf.mxu0
        %v3418 = vadd.f32 %v2037, %v3417
        %3419 = vmatprep.mubr.bf16.mxu0 0
        %3420 = vmatmul.mubr.bf16.gmra.mxu0 %v3222
        %v3421 = vpop.f32.mrf.mxu0
        %v3422 = vadd.f32 %v2038, %v3421
        %v3423 = vpop.f32.mrf.mxu0
        %v3424 = vadd.f32 %v2039, %v3423
        %v3425 = vpop.f32.mrf.mxu0
        %v3426 = vadd.f32 %v2040, %v3425
        %v3427 = vpop.f32.mrf.mxu0
        %v3428 = vadd.f32 %v2041, %v3427
        %3429 = vmatprep.mubr.bf16.mxu0 0
        %3430 = vmatmul.mubr.bf16.gmra.mxu0 %v3225
        %v3431 = vpop.f32.mrf.mxu0
        %v3432 = vadd.f32 %v2042, %v3431
        %v3433 = vpop.f32.mrf.mxu0
        %v3434 = vadd.f32 %v2043, %v3433
        %v3435 = vpop.f32.mrf.mxu0
        %v3436 = vadd.f32 %v2044, %v3435
        %v3437 = vpop.f32.mrf.mxu0
        %v3438 = vadd.f32 %v2045, %v3437
        %3439 = vmatprep.mubr.bf16.mxu0 0
        %3440 = vmatmul.mubr.bf16.gmra.mxu0 %v3228
        %v3441 = vpop.f32.mrf.mxu0
        %v3442 = vadd.f32 %v2046, %v3441
        %v3443 = vpop.f32.mrf.mxu0
        %v3444 = vadd.f32 %v2047, %v3443
        %v3445 = vpop.f32.mrf.mxu0
        %v3446 = vadd.f32 %v2048, %v3445
        %v3447 = vpop.f32.mrf.mxu0
        %v3448 = vadd.f32 %v2049, %v3447
        %3449 = vmatprep.mubr.bf16.mxu0 0
        %3450 = vmatmul.mubr.bf16.gmra.mxu0 %v3231
        %v3451 = vpop.f32.mrf.mxu0
        %v3452 = vadd.f32 %v2050, %v3451
        %v3453 = vpop.f32.mrf.mxu0
        %v3454 = vadd.f32 %v2051, %v3453
        %v3455 = vpop.f32.mrf.mxu0
        %v3456 = vadd.f32 %v2052, %v3455
        %v3457 = vpop.f32.mrf.mxu0
        %v3458 = vadd.f32 %v2053, %v3457
        %3459 = vmatprep.mubr.bf16.mxu0 0
        %3460 = vmatmul.mubr.bf16.gmra.mxu0 %v3234
        %v3461 = vpop.f32.mrf.mxu0
        %v3462 = vadd.f32 %v2054, %v3461
        %v3463 = vpop.f32.mrf.mxu0
        %v3464 = vadd.f32 %v2055, %v3463
        %v3465 = vpop.f32.mrf.mxu0
        %v3466 = vadd.f32 %v2056, %v3465
        %v3467 = vpop.f32.mrf.mxu0
        %v3468 = vadd.f32 %v2057, %v3467
        %3469 = vmatprep.mubr.bf16.mxu0 0
        %3470 = vmatmul.mubr.bf16.gmra.mxu0 %v3237
        %v3471 = vpop.f32.mrf.mxu0
        %v3472 = vadd.f32 %v2058, %v3471
        %v3473 = vpop.f32.mrf.mxu0
        %v3474 = vadd.f32 %v2059, %v3473
        %v3475 = vpop.f32.mrf.mxu0
        %v3476 = vadd.f32 %v2060, %v3475
        %v3477 = vpop.f32.mrf.mxu0
        %v3478 = vadd.f32 %v2061, %v3477
        %3479 = vdwg.mxu0
        %v3480 = vmax.f32 %v3322, %v3324
        %3481 = vmax.xlane.f32.xlu0 %v3480
        %v3482 = vpop.xlane.xlu0 %3481
        %v3483 = vmax.f32 %v3326, %v3328
        %3484 = vmax.xlane.f32.xlu0 %v3483
        %v3485 = vpop.xlane.xlu0 %3484
        %v3486 = vmax.f32 %v3332, %v3334
        %3487 = vmax.xlane.f32.xlu0 %v3486
        %v3488 = vpop.xlane.xlu0 %3487
        %v3489 = vmax.f32 %v3336, %v3338
        %3490 = vmax.xlane.f32.xlu0 %v3489
        %v3491 = vpop.xlane.xlu0 %3490
        %v3492 = vmax.f32 %v3342, %v3344
        %3493 = vmax.xlane.f32.xlu0 %v3492
        %v3494 = vpop.xlane.xlu0 %3493
        %v3495 = vmax.f32 %v3346, %v3348
        %3496 = vmax.xlane.f32.xlu0 %v3495
        %v3497 = vpop.xlane.xlu0 %3496
        %v3498 = vmax.f32 %v3352, %v3354
        %3499 = vmax.xlane.f32.xlu0 %v3498
        %v3500 = vpop.xlane.xlu0 %3499
        %v3501 = vmax.f32 %v3356, %v3358
        %3502 = vmax.xlane.f32.xlu0 %v3501
        %v3503 = vpop.xlane.xlu0 %3502
        %v3504 = vmax.f32 %v3362, %v3364
        %3505 = vmax.xlane.f32.xlu0 %v3504
        %v3506 = vpop.xlane.xlu0 %3505
        %v3507 = vmax.f32 %v3366, %v3368
        %3508 = vmax.xlane.f32.xlu0 %v3507
        %v3509 = vpop.xlane.xlu0 %3508
        %v3510 = vmax.f32 %v3372, %v3374
        %3511 = vmax.xlane.f32.xlu0 %v3510
        %v3512 = vpop.xlane.xlu0 %3511
        %v3513 = vmax.f32 %v3376, %v3378
        %3514 = vmax.xlane.f32.xlu0 %v3513
        %v3515 = vpop.xlane.xlu0 %3514
        %v3516 = vmax.f32 %v3382, %v3384
        %3517 = vmax.xlane.f32.xlu0 %v3516
        %v3518 = vpop.xlane.xlu0 %3517
        %v3519 = vmax.f32 %v3386, %v3388
        %3520 = vmax.xlane.f32.xlu0 %v3519
        %v3521 = vpop.xlane.xlu0 %3520
        %v3522 = vmax.f32 %v3392, %v3394
        %3523 = vmax.xlane.f32.xlu0 %v3522
        %v3524 = vpop.xlane.xlu0 %3523
        %v3525 = vmax.f32 %v3396, %v3398
        %3526 = vmax.xlane.f32.xlu0 %v3525
        %v3527 = vpop.xlane.xlu0 %3526
        %v3528 = vmax.f32 %v3402, %v3404
        %3529 = vmax.xlane.f32.xlu0 %v3528
        %v3530 = vpop.xlane.xlu0 %3529
        %v3531 = vmax.f32 %v3406, %v3408
        %3532 = vmax.xlane.f32.xlu0 %v3531
        %v3533 = vpop.xlane.xlu0 %3532
        %v3534 = vmax.f32 %v3412, %v3414
        %3535 = vmax.xlane.f32.xlu0 %v3534
        %v3536 = vpop.xlane.xlu0 %3535
        %v3537 = vmax.f32 %v3416, %v3418
        %3538 = vmax.xlane.f32.xlu0 %v3537
        %v3539 = vpop.xlane.xlu0 %3538
        %v3540 = vmax.f32 %v3422, %v3424
        %3541 = vmax.xlane.f32.xlu0 %v3540
        %v3542 = vpop.xlane.xlu0 %3541
        %v3543 = vmax.f32 %v3426, %v3428
        %3544 = vmax.xlane.f32.xlu0 %v3543
        %v3545 = vpop.xlane.xlu0 %3544
        %v3546 = vmax.f32 %v3432, %v3434
        %3547 = vmax.xlane.f32.xlu0 %v3546
        %v3548 = vpop.xlane.xlu0 %3547
        %v3549 = vmax.f32 %v3436, %v3438
        %3550 = vmax.xlane.f32.xlu0 %v3549
        %v3551 = vpop.xlane.xlu0 %3550
        %v3552 = vmax.f32 %v3442, %v3444
        %3553 = vmax.xlane.f32.xlu0 %v3552
        %v3554 = vpop.xlane.xlu0 %3553
        %v3555 = vmax.f32 %v3446, %v3448
        %3556 = vmax.xlane.f32.xlu0 %v3555
        %v3557 = vpop.xlane.xlu0 %3556
        %v3558 = vmax.f32 %v3452, %v3454
        %3559 = vmax.xlane.f32.xlu0 %v3558
        %v3560 = vpop.xlane.xlu0 %3559
        %v3561 = vmax.f32 %v3456, %v3458
        %3562 = vmax.xlane.f32.xlu0 %v3561
        %v3563 = vpop.xlane.xlu0 %3562
        %v3564 = vmax.f32 %v3462, %v3464
        %3565 = vmax.xlane.f32.xlu0 %v3564
        %v3566 = vpop.xlane.xlu0 %3565
        %v3567 = vmax.f32 %v3466, %v3468
        %3568 = vmax.xlane.f32.xlu0 %v3567
        %v3569 = vpop.xlane.xlu0 %3568
        %v3570 = vmax.f32 %v3472, %v3474
        %3571 = vmax.xlane.f32.xlu0 %v3570
        %v3572 = vpop.xlane.xlu0 %3571
        %v3573 = vmax.f32 %v3476, %v3478
        %3574 = vmax.xlane.f32.xlu0 %v3573
        %v3575 = vpop.xlane.xlu0 %3574
        %v3576 = vsub.f32 %v3322, %v3482
        %v3577 = vsub.f32 %v3324, %v3482
        %v3578 = vsub.f32 %v3326, %v3485
        %v3579 = vsub.f32 %v3328, %v3485
        %v3580 = vsub.f32 %v3332, %v3488
        %v3581 = vsub.f32 %v3334, %v3488
        %v3582 = vsub.f32 %v3336, %v3491
        %v3583 = vsub.f32 %v3338, %v3491
        %v3584 = vsub.f32 %v3342, %v3494
        %v3585 = vsub.f32 %v3344, %v3494
        %v3586 = vsub.f32 %v3346, %v3497
        %v3587 = vsub.f32 %v3348, %v3497
        %v3588 = vsub.f32 %v3352, %v3500
        %v3589 = vsub.f32 %v3354, %v3500
        %v3590 = vsub.f32 %v3356, %v3503
        %v3591 = vsub.f32 %v3358, %v3503
        %v3592 = vsub.f32 %v3362, %v3506
        %v3593 = vsub.f32 %v3364, %v3506
        %v3594 = vsub.f32 %v3366, %v3509
        %v3595 = vsub.f32 %v3368, %v3509
        %v3596 = vsub.f32 %v3372, %v3512
        %v3597 = vsub.f32 %v3374, %v3512
        %v3598 = vsub.f32 %v3376, %v3515
        %v3599 = vsub.f32 %v3378, %v3515
        %v3600 = vsub.f32 %v3382, %v3518
        %v3601 = vsub.f32 %v3384, %v3518
        %v3602 = vsub.f32 %v3386, %v3521
        %v3603 = vsub.f32 %v3388, %v3521
        %v3604 = vsub.f32 %v3392, %v3524
        %v3605 = vsub.f32 %v3394, %v3524
        %v3606 = vsub.f32 %v3396, %v3527
        %v3607 = vsub.f32 %v3398, %v3527
        %v3608 = vsub.f32 %v3402, %v3530
        %v3609 = vsub.f32 %v3404, %v3530
        %v3610 = vsub.f32 %v3406, %v3533
        %v3611 = vsub.f32 %v3408, %v3533
        %v3612 = vsub.f32 %v3412, %v3536
        %v3613 = vsub.f32 %v3414, %v3536
        %v3614 = vsub.f32 %v3416, %v3539
        %v3615 = vsub.f32 %v3418, %v3539
        %v3616 = vsub.f32 %v3422, %v3542
        %v3617 = vsub.f32 %v3424, %v3542
        %v3618 = vsub.f32 %v3426, %v3545
        %v3619 = vsub.f32 %v3428, %v3545
        %v3620 = vsub.f32 %v3432, %v3548
        %v3621 = vsub.f32 %v3434, %v3548
        %v3622 = vsub.f32 %v3436, %v3551
        %v3623 = vsub.f32 %v3438, %v3551
        %v3624 = vsub.f32 %v3442, %v3554
        %v3625 = vsub.f32 %v3444, %v3554
        %v3626 = vsub.f32 %v3446, %v3557
        %v3627 = vsub.f32 %v3448, %v3557
        %v3628 = vsub.f32 %v3452, %v3560
        %v3629 = vsub.f32 %v3454, %v3560
        %v3630 = vsub.f32 %v3456, %v3563
        %v3631 = vsub.f32 %v3458, %v3563
        %v3632 = vsub.f32 %v3462, %v3566
        %v3633 = vsub.f32 %v3464, %v3566
        %v3634 = vsub.f32 %v3466, %v3569
        %v3635 = vsub.f32 %v3468, %v3569
        %v3636 = vsub.f32 %v3472, %v3572
        %v3637 = vsub.f32 %v3474, %v3572
        %v3638 = vsub.f32 %v3476, %v3575
        %v3639 = vsub.f32 %v3478, %v3575
        %v3640 = vmul.f32 %v3576, 1.442695
        %v3641 = vpow.pop %v3640
        %v3642 = vmul.f32 %v3577, 1.442695
        %v3643 = vpow.pop %v3642
        %v3644 = vmul.f32 %v3578, 1.442695
        %v3645 = vpow.pop %v3644
        %v3646 = vmul.f32 %v3579, 1.442695
        %v3647 = vpow.pop %v3646
        %v3648 = vmul.f32 %v3580, 1.442695
        %v3649 = vpow.pop %v3648
        %v3650 = vmul.f32 %v3581, 1.442695
        %v3651 = vpow.pop %v3650
        %v3652 = vmul.f32 %v3582, 1.442695
        %v3653 = vpow.pop %v3652
        %v3654 = vmul.f32 %v3583, 1.442695
        %v3655 = vpow.pop %v3654
        %v3656 = vmul.f32 %v3584, 1.442695
        %v3657 = vpow.pop %v3656
        %v3658 = vmul.f32 %v3585, 1.442695
        %v3659 = vpow.pop %v3658
        %v3660 = vmul.f32 %v3586, 1.442695
        %v3661 = vpow.pop %v3660
        %v3662 = vmul.f32 %v3587, 1.442695
        %v3663 = vpow.pop %v3662
        %v3664 = vmul.f32 %v3588, 1.442695
        %v3665 = vpow.pop %v3664
        %v3666 = vmul.f32 %v3589, 1.442695
        %v3667 = vpow.pop %v3666
        %v3668 = vmul.f32 %v3590, 1.442695
        %v3669 = vpow.pop %v3668
        %v3670 = vmul.f32 %v3591, 1.442695
        %v3671 = vpow.pop %v3670
        %v3672 = vmul.f32 %v3592, 1.442695
        %v3673 = vpow.pop %v3672
        %v3674 = vmul.f32 %v3593, 1.442695
        %v3675 = vpow.pop %v3674
        %v3676 = vmul.f32 %v3594, 1.442695
        %v3677 = vpow.pop %v3676
        %v3678 = vmul.f32 %v3595, 1.442695
        %v3679 = vpow.pop %v3678
        %v3680 = vmul.f32 %v3596, 1.442695
        %v3681 = vpow.pop %v3680
        %v3682 = vmul.f32 %v3597, 1.442695
        %v3683 = vpow.pop %v3682
        %v3684 = vmul.f32 %v3598, 1.442695
        %v3685 = vpow.pop %v3684
        %v3686 = vmul.f32 %v3599, 1.442695
        %v3687 = vpow.pop %v3686
        %v3688 = vmul.f32 %v3600, 1.442695
        %v3689 = vpow.pop %v3688
        %v3690 = vmul.f32 %v3601, 1.442695
        %v3691 = vpow.pop %v3690
        %v3692 = vmul.f32 %v3602, 1.442695
        %v3693 = vpow.pop %v3692
        %v3694 = vmul.f32 %v3603, 1.442695
        %v3695 = vpow.pop %v3694
        %v3696 = vmul.f32 %v3604, 1.442695
        %v3697 = vpow.pop %v3696
        %v3698 = vmul.f32 %v3605, 1.442695
        %v3699 = vpow.pop %v3698
        %v3700 = vmul.f32 %v3606, 1.442695
        %v3701 = vpow.pop %v3700
        %v3702 = vmul.f32 %v3607, 1.442695
        %v3703 = vpow.pop %v3702
        %v3704 = vmul.f32 %v3608, 1.442695
        %v3705 = vpow.pop %v3704
        %v3706 = vmul.f32 %v3609, 1.442695
        %v3707 = vpow.pop %v3706
        %v3708 = vmul.f32 %v3610, 1.442695
        %v3709 = vpow.pop %v3708
        %v3710 = vmul.f32 %v3611, 1.442695
        %v3711 = vpow.pop %v3710
        %v3712 = vmul.f32 %v3612, 1.442695
        %v3713 = vpow.pop %v3712
        %v3714 = vmul.f32 %v3613, 1.442695
        %v3715 = vpow.pop %v3714
        %v3716 = vmul.f32 %v3614, 1.442695
        %v3717 = vpow.pop %v3716
        %v3718 = vmul.f32 %v3615, 1.442695
        %v3719 = vpow.pop %v3718
        %v3720 = vmul.f32 %v3616, 1.442695
        %v3721 = vpow.pop %v3720
        %v3722 = vmul.f32 %v3617, 1.442695
        %v3723 = vpow.pop %v3722
        %v3724 = vmul.f32 %v3618, 1.442695
        %v3725 = vpow.pop %v3724
        %v3726 = vmul.f32 %v3619, 1.442695
        %v3727 = vpow.pop %v3726
        %v3728 = vmul.f32 %v3620, 1.442695
        %v3729 = vpow.pop %v3728
        %v3730 = vmul.f32 %v3621, 1.442695
        %v3731 = vpow.pop %v3730
        %v3732 = vmul.f32 %v3622, 1.442695
        %v3733 = vpow.pop %v3732
        %v3734 = vmul.f32 %v3623, 1.442695
        %v3735 = vpow.pop %v3734
        %v3736 = vmul.f32 %v3624, 1.442695
        %v3737 = vpow.pop %v3736
        %v3738 = vmul.f32 %v3625, 1.442695
        %v3739 = vpow.pop %v3738
        %v3740 = vmul.f32 %v3626, 1.442695
        %v3741 = vpow.pop %v3740
        %v3742 = vmul.f32 %v3627, 1.442695
        %v3743 = vpow.pop %v3742
        %v3744 = vmul.f32 %v3628, 1.442695
        %v3745 = vpow.pop %v3744
        %v3746 = vmul.f32 %v3629, 1.442695
        %v3747 = vpow.pop %v3746
        %v3748 = vmul.f32 %v3630, 1.442695
        %v3749 = vpow.pop %v3748
        %v3750 = vmul.f32 %v3631, 1.442695
        %v3751 = vpow.pop %v3750
        %v3752 = vmul.f32 %v3632, 1.442695
        %v3753 = vpow.pop %v3752
        %v3754 = vmul.f32 %v3633, 1.442695
        %v3755 = vpow.pop %v3754
        %v3756 = vmul.f32 %v3634, 1.442695
        %v3757 = vpow.pop %v3756
        %v3758 = vmul.f32 %v3635, 1.442695
        %v3759 = vpow.pop %v3758
        %v3760 = vmul.f32 %v3636, 1.442695
        %v3761 = vpow.pop %v3760
        %v3762 = vmul.f32 %v3637, 1.442695
        %v3763 = vpow.pop %v3762
        %v3764 = vmul.f32 %v3638, 1.442695
        %v3765 = vpow.pop %v3764
        %v3766 = vmul.f32 %v3639, 1.442695
        %v3767 = vpow.pop %v3766
        %v3768 = vadd.f32 %v3641, %v3643
        %3769 = vadd.xlane.f32.xlu0 %v3768
        %v3770 = vpop.xlane.xlu0 %3769
        %v3771 = vadd.f32 %v3645, %v3647
        %3772 = vadd.xlane.f32.xlu0 %v3771
        %v3773 = vpop.xlane.xlu0 %3772
        %v3774 = vadd.f32 %v3649, %v3651
        %3775 = vadd.xlane.f32.xlu0 %v3774
        %v3776 = vpop.xlane.xlu0 %3775
        %v3777 = vadd.f32 %v3653, %v3655
        %3778 = vadd.xlane.f32.xlu0 %v3777
        %v3779 = vpop.xlane.xlu0 %3778
        %v3780 = vadd.f32 %v3657, %v3659
        %3781 = vadd.xlane.f32.xlu0 %v3780
        %v3782 = vpop.xlane.xlu0 %3781
        %v3783 = vadd.f32 %v3661, %v3663
        %3784 = vadd.xlane.f32.xlu0 %v3783
        %v3785 = vpop.xlane.xlu0 %3784
        %v3786 = vadd.f32 %v3665, %v3667
        %3787 = vadd.xlane.f32.xlu0 %v3786
        %v3788 = vpop.xlane.xlu0 %3787
        %v3789 = vadd.f32 %v3669, %v3671
        %3790 = vadd.xlane.f32.xlu0 %v3789
        %v3791 = vpop.xlane.xlu0 %3790
        %v3792 = vadd.f32 %v3673, %v3675
        %3793 = vadd.xlane.f32.xlu0 %v3792
        %v3794 = vpop.xlane.xlu0 %3793
        %v3795 = vadd.f32 %v3677, %v3679
        %3796 = vadd.xlane.f32.xlu0 %v3795
        %v3797 = vpop.xlane.xlu0 %3796
        %v3798 = vadd.f32 %v3681, %v3683
        %3799 = vadd.xlane.f32.xlu0 %v3798
        %v3800 = vpop.xlane.xlu0 %3799
        %v3801 = vadd.f32 %v3685, %v3687
        %3802 = vadd.xlane.f32.xlu0 %v3801
        %v3803 = vpop.xlane.xlu0 %3802
        %v3804 = vadd.f32 %v3689, %v3691
        %3805 = vadd.xlane.f32.xlu0 %v3804
        %v3806 = vpop.xlane.xlu0 %3805
        %v3807 = vadd.f32 %v3693, %v3695
        %3808 = vadd.xlane.f32.xlu0 %v3807
        %v3809 = vpop.xlane.xlu0 %3808
        %v3810 = vadd.f32 %v3697, %v3699
        %3811 = vadd.xlane.f32.xlu0 %v3810
        %v3812 = vpop.xlane.xlu0 %3811
        %v3813 = vadd.f32 %v3701, %v3703
        %3814 = vadd.xlane.f32.xlu0 %v3813
        %v3815 = vpop.xlane.xlu0 %3814
        %v3816 = vadd.f32 %v3705, %v3707
        %3817 = vadd.xlane.f32.xlu0 %v3816
        %v3818 = vpop.xlane.xlu0 %3817
        %v3819 = vadd.f32 %v3709, %v3711
        %3820 = vadd.xlane.f32.xlu0 %v3819
        %v3821 = vpop.xlane.xlu0 %3820
        %v3822 = vadd.f32 %v3713, %v3715
        %3823 = vadd.xlane.f32.xlu0 %v3822
        %v3824 = vpop.xlane.xlu0 %3823
        %v3825 = vadd.f32 %v3717, %v3719
        %3826 = vadd.xlane.f32.xlu0 %v3825
        %v3827 = vpop.xlane.xlu0 %3826
        %v3828 = vadd.f32 %v3721, %v3723
        %3829 = vadd.xlane.f32.xlu0 %v3828
        %v3830 = vpop.xlane.xlu0 %3829
        %v3831 = vadd.f32 %v3725, %v3727
        %3832 = vadd.xlane.f32.xlu0 %v3831
        %v3833 = vpop.xlane.xlu0 %3832
        %v3834 = vadd.f32 %v3729, %v3731
        %3835 = vadd.xlane.f32.xlu0 %v3834
        %v3836 = vpop.xlane.xlu0 %3835
        %v3837 = vadd.f32 %v3733, %v3735
        %3838 = vadd.xlane.f32.xlu0 %v3837
        %v3839 = vpop.xlane.xlu0 %3838
        %v3840 = vadd.f32 %v3737, %v3739
        %3841 = vadd.xlane.f32.xlu0 %v3840
        %v3842 = vpop.xlane.xlu0 %3841
        %v3843 = vadd.f32 %v3741, %v3743
        %3844 = vadd.xlane.f32.xlu0 %v3843
        %v3845 = vpop.xlane.xlu0 %3844
        %v3846 = vadd.f32 %v3745, %v3747
        %3847 = vadd.xlane.f32.xlu0 %v3846
        %v3848 = vpop.xlane.xlu0 %3847
        %v3849 = vadd.f32 %v3749, %v3751
        %3850 = vadd.xlane.f32.xlu0 %v3849
        %v3851 = vpop.xlane.xlu0 %3850
        %v3852 = vadd.f32 %v3753, %v3755
        %3853 = vadd.xlane.f32.xlu0 %v3852
        %v3854 = vpop.xlane.xlu0 %3853
        %v3855 = vadd.f32 %v3757, %v3759
        %3856 = vadd.xlane.f32.xlu0 %v3855
        %v3857 = vpop.xlane.xlu0 %3856
        %v3858 = vadd.f32 %v3761, %v3763
        %3859 = vadd.xlane.f32.xlu0 %v3858
        %v3860 = vpop.xlane.xlu0 %3859
        %v3861 = vadd.f32 %v3765, %v3767
        %3862 = vadd.xlane.f32.xlu0 %v3861
        %v3863 = vpop.xlane.xlu0 %3862
        %v3864 = vrcp.pop %v3770
        %v3865 = vrcp.pop %v3773
        %v3866 = vrcp.pop %v3776
        %v3867 = vrcp.pop %v3779
        %v3868 = vrcp.pop %v3782
        %v3869 = vrcp.pop %v3785
        %v3870 = vrcp.pop %v3788
        %v3871 = vrcp.pop %v3791
        %v3872 = vrcp.pop %v3794
        %v3873 = vrcp.pop %v3797
        %v3874 = vrcp.pop %v3800
        %v3875 = vrcp.pop %v3803
        %v3876 = vrcp.pop %v3806
        %v3877 = vrcp.pop %v3809
        %v3878 = vrcp.pop %v3812
        %v3879 = vrcp.pop %v3815
        %v3880 = vrcp.pop %v3818
        %v3881 = vrcp.pop %v3821
        %v3882 = vrcp.pop %v3824
        %v3883 = vrcp.pop %v3827
        %v3884 = vrcp.pop %v3830
        %v3885 = vrcp.pop %v3833
        %v3886 = vrcp.pop %v3836
        %v3887 = vrcp.pop %v3839
        %v3888 = vrcp.pop %v3842
        %v3889 = vrcp.pop %v3845
        %v3890 = vrcp.pop %v3848
        %v3891 = vrcp.pop %v3851
        %v3892 = vrcp.pop %v3854
        %v3893 = vrcp.pop %v3857
        %v3894 = vrcp.pop %v3860
        %v3895 = vrcp.pop %v3863
        %v3896 = vmul.f32 %v3641, %v3864
        %v3897 = vmul.f32 %v3643, %v3864
        %v3898 = vmul.f32 %v3645, %v3865
        %v3899 = vmul.f32 %v3647, %v3865
        %v3900 = vmul.f32 %v3649, %v3866
        %v3901 = vmul.f32 %v3651, %v3866
        %v3902 = vmul.f32 %v3653, %v3867
        %v3903 = vmul.f32 %v3655, %v3867
        %v3904 = vmul.f32 %v3657, %v3868
        %v3905 = vmul.f32 %v3659, %v3868
        %v3906 = vmul.f32 %v3661, %v3869
        %v3907 = vmul.f32 %v3663, %v3869
        %v3908 = vmul.f32 %v3665, %v3870
        %v3909 = vmul.f32 %v3667, %v3870
        %v3910 = vmul.f32 %v3669, %v3871
        %v3911 = vmul.f32 %v3671, %v3871
        %v3912 = vmul.f32 %v3673, %v3872
        %v3913 = vmul.f32 %v3675, %v3872
        %v3914 = vmul.f32 %v3677, %v3873
        %v3915 = vmul.f32 %v3679, %v3873
        %v3916 = vmul.f32 %v3681, %v3874
        %v3917 = vmul.f32 %v3683, %v3874
        %v3918 = vmul.f32 %v3685, %v3875
        %v3919 = vmul.f32 %v3687, %v3875
        %v3920 = vmul.f32 %v3689, %v3876
        %v3921 = vmul.f32 %v3691, %v3876
        %v3922 = vmul.f32 %v3693, %v3877
        %v3923 = vmul.f32 %v3695, %v3877
        %v3924 = vmul.f32 %v3697, %v3878
        %v3925 = vmul.f32 %v3699, %v3878
        %v3926 = vmul.f32 %v3701, %v3879
        %v3927 = vmul.f32 %v3703, %v3879
        %v3928 = vmul.f32 %v3705, %v3880
        %v3929 = vmul.f32 %v3707, %v3880
        %v3930 = vmul.f32 %v3709, %v3881
        %v3931 = vmul.f32 %v3711, %v3881
        %v3932 = vmul.f32 %v3713, %v3882
        %v3933 = vmul.f32 %v3715, %v3882
        %v3934 = vmul.f32 %v3717, %v3883
        %v3935 = vmul.f32 %v3719, %v3883
        %v3936 = vmul.f32 %v3721, %v3884
        %v3937 = vmul.f32 %v3723, %v3884
        %v3938 = vmul.f32 %v3725, %v3885
        %v3939 = vmul.f32 %v3727, %v3885
        %v3940 = vmul.f32 %v3729, %v3886
        %v3941 = vmul.f32 %v3731, %v3886
        %v3942 = vmul.f32 %v3733, %v3887
        %v3943 = vmul.f32 %v3735, %v3887
        %v3944 = vmul.f32 %v3737, %v3888
        %v3945 = vmul.f32 %v3739, %v3888
        %v3946 = vmul.f32 %v3741, %v3889
        %v3947 = vmul.f32 %v3743, %v3889
        %v3948 = vmul.f32 %v3745, %v3890
        %v3949 = vmul.f32 %v3747, %v3890
        %v3950 = vmul.f32 %v3749, %v3891
        %v3951 = vmul.f32 %v3751, %v3891
        %v3952 = vmul.f32 %v3753, %v3892
        %v3953 = vmul.f32 %v3755, %v3892
        %v3954 = vmul.f32 %v3757, %v3893
        %v3955 = vmul.f32 %v3759, %v3893
        %v3956 = vmul.f32 %v3761, %v3894
        %v3957 = vmul.f32 %v3763, %v3894
        %v3958 = vmul.f32 %v3765, %v3895
        %v3959 = vmul.f32 %v3767, %v3895
        %v3960 = vpack.c.bf16 %v3898, %v3896
        %v3961 = vpack.c.bf16 %v3899, %v3897
        %v3962 = vpack.c.bf16 %v3902, %v3900
        %v3963 = vpack.c.bf16 %v3903, %v3901
        %v3964 = vpack.c.bf16 %v3906, %v3904
        %v3965 = vpack.c.bf16 %v3907, %v3905
        %v3966 = vpack.c.bf16 %v3910, %v3908
        %v3967 = vpack.c.bf16 %v3911, %v3909
        %v3968 = vpack.c.bf16 %v3914, %v3912
        %v3969 = vpack.c.bf16 %v3915, %v3913
        %v3970 = vpack.c.bf16 %v3918, %v3916
        %v3971 = vpack.c.bf16 %v3919, %v3917
        %v3972 = vpack.c.bf16 %v3922, %v3920
        %v3973 = vpack.c.bf16 %v3923, %v3921
        %v3974 = vpack.c.bf16 %v3926, %v3924
        %v3975 = vpack.c.bf16 %v3927, %v3925
        %v3976 = vpack.c.bf16 %v3930, %v3928
        %v3977 = vpack.c.bf16 %v3931, %v3929
        %v3978 = vpack.c.bf16 %v3934, %v3932
        %v3979 = vpack.c.bf16 %v3935, %v3933
        %v3980 = vpack.c.bf16 %v3938, %v3936
        %v3981 = vpack.c.bf16 %v3939, %v3937
        %v3982 = vpack.c.bf16 %v3942, %v3940
        %v3983 = vpack.c.bf16 %v3943, %v3941
        %v3984 = vpack.c.bf16 %v3946, %v3944
        %v3985 = vpack.c.bf16 %v3947, %v3945
        %v3986 = vpack.c.bf16 %v3950, %v3948
        %v3987 = vpack.c.bf16 %v3951, %v3949
        %v3988 = vpack.c.bf16 %v3954, %v3952
        %v3989 = vpack.c.bf16 %v3955, %v3953
        %v3990 = vpack.c.bf16 %v3958, %v3956
        %v3991 = vpack.c.bf16 %v3959, %v3957
        %3992 = vmatprep.subr.bf16.mxu0 0
        %3993 = vmatpush1.bf16.msra.mxu0 %v3181
        %3994 = vmatprep.subr.bf16.mxu0 0
        %3995 = vmatpush1.bf16.msra.mxu0 %v3180
        %3996 = vmatprep.subr.bf16.mxu0 0
        %3997 = vmatpush1.bf16.msra.mxu0 %v3179
        %3998 = vmatprep.subr.bf16.mxu0 0
        %3999 = vmatpush1.bf16.msra.mxu0 %v3178
        %4000 = vmatprep.subr.bf16.mxu0 0
        %4001 = vmatpush1.bf16.msra.mxu0 %v3177
        %4002 = vmatprep.subr.bf16.mxu0 0
        %4003 = vmatpush1.bf16.msra.mxu0 %v3176
        %4004 = vmatprep.subr.bf16.mxu0 0
        %4005 = vmatpush1.bf16.msra.mxu0 %v3175
        %4006 = vmatprep.subr.bf16.mxu0 0
        %4007 = vmatpush1.bf16.msra.mxu0 %v3174
        %4008 = vmatprep.subr.bf16.mxu0 0
        %4009 = vmatpush2.bf16.msra.mxu0 %v3189
        %4010 = vmatprep.subr.bf16.mxu0 0
        %4011 = vmatpush2.bf16.msra.mxu0 %v3188
        %4012 = vmatprep.subr.bf16.mxu0 0
        %4013 = vmatpush2.bf16.msra.mxu0 %v3187
        %4014 = vmatprep.subr.bf16.mxu0 0
        %4015 = vmatpush2.bf16.msra.mxu0 %v3186
        %4016 = vmatprep.subr.bf16.mxu0 0
        %4017 = vmatpush2.bf16.msra.mxu0 %v3185
        %4018 = vmatprep.subr.bf16.mxu0 0
        %4019 = vmatpush2.bf16.msra.mxu0 %v3184
        %4020 = vmatprep.subr.bf16.mxu0 0
        %4021 = vmatpush2.bf16.msra.mxu0 %v3183
        %4022 = vmatprep.subr.bf16.mxu0 0
        %4023 = vmatpush2.bf16.msra.mxu0 %v3182
        %4024 = vmatprep.mubr.bf16.mxu0 %v3961
        %4025 = vmatmul.mubr.bf16.gmra.mxu0 %v3960
        %v4026 = vpop.f32.mrf.mxu0
        %v4027 = vadd.f32 0.0, %v4026
        %v4028 = vpop.f32.mrf.mxu0
        %v4029 = vpop.f32.mrf.mxu0
        %v4030 = vadd.f32 0.0, %v4029
        %v4031 = vpop.f32.mrf.mxu0
        %4032 = vmatprep.mubr.bf16.mxu0 %v3963
        %4033 = vmatmul.mubr.bf16.gmra.mxu0 %v3962
        %v4034 = vpop.f32.mrf.mxu0
        %v4035 = vadd.f32 0.0, %v4034
        %v4036 = vpop.f32.mrf.mxu0
        %v4037 = vpop.f32.mrf.mxu0
        %v4038 = vadd.f32 0.0, %v4037
        %v4039 = vpop.f32.mrf.mxu0
        %4040 = vmatprep.mubr.bf16.mxu0 %v3965
        %4041 = vmatmul.mubr.bf16.gmra.mxu0 %v3964
        %v4042 = vpop.f32.mrf.mxu0
        %v4043 = vadd.f32 0.0, %v4042
        %v4044 = vpop.f32.mrf.mxu0
        %v4045 = vpop.f32.mrf.mxu0
        %v4046 = vadd.f32 0.0, %v4045
        %v4047 = vpop.f32.mrf.mxu0
        %4048 = vmatprep.mubr.bf16.mxu0 %v3967
        %4049 = vmatmul.mubr.bf16.gmra.mxu0 %v3966
        %v4050 = vpop.f32.mrf.mxu0
        %v4051 = vadd.f32 0.0, %v4050
        %v4052 = vpop.f32.mrf.mxu0
        %v4053 = vpop.f32.mrf.mxu0
        %v4054 = vadd.f32 0.0, %v4053
        %v4055 = vpop.f32.mrf.mxu0
        %4056 = vmatprep.mubr.bf16.mxu0 %v3969
        %4057 = vmatmul.mubr.bf16.gmra.mxu0 %v3968
        %v4058 = vpop.f32.mrf.mxu0
        %v4059 = vadd.f32 0.0, %v4058
        %v4060 = vpop.f32.mrf.mxu0
        %v4061 = vpop.f32.mrf.mxu0
        %v4062 = vadd.f32 0.0, %v4061
        %v4063 = vpop.f32.mrf.mxu0
        %4064 = vmatprep.mubr.bf16.mxu0 %v3971
        %4065 = vmatmul.mubr.bf16.gmra.mxu0 %v3970
        %v4066 = vpop.f32.mrf.mxu0
        %v4067 = vadd.f32 0.0, %v4066
        %v4068 = vpop.f32.mrf.mxu0
        %v4069 = vpop.f32.mrf.mxu0
        %v4070 = vadd.f32 0.0, %v4069
        %v4071 = vpop.f32.mrf.mxu0
        %4072 = vmatprep.mubr.bf16.mxu0 %v3973
        %4073 = vmatmul.mubr.bf16.gmra.mxu0 %v3972
        %v4074 = vpop.f32.mrf.mxu0
        %v4075 = vadd.f32 0.0, %v4074
        %v4076 = vpop.f32.mrf.mxu0
        %v4077 = vpop.f32.mrf.mxu0
        %v4078 = vadd.f32 0.0, %v4077
        %v4079 = vpop.f32.mrf.mxu0
        %4080 = vmatprep.mubr.bf16.mxu0 %v3975
        %4081 = vmatmul.mubr.bf16.gmra.mxu0 %v3974
        %v4082 = vpop.f32.mrf.mxu0
        %v4083 = vadd.f32 0.0, %v4082
        %v4084 = vpop.f32.mrf.mxu0
        %v4085 = vpop.f32.mrf.mxu0
        %v4086 = vadd.f32 0.0, %v4085
        %v4087 = vpop.f32.mrf.mxu0
        %4088 = vmatprep.mubr.bf16.mxu0 %v3977
        %4089 = vmatmul.mubr.bf16.gmra.mxu0 %v3976
        %v4090 = vpop.f32.mrf.mxu0
        %v4091 = vadd.f32 0.0, %v4090
        %v4092 = vpop.f32.mrf.mxu0
        %v4093 = vpop.f32.mrf.mxu0
        %v4094 = vadd.f32 0.0, %v4093
        %v4095 = vpop.f32.mrf.mxu0
        %4096 = vmatprep.mubr.bf16.mxu0 %v3979
        %4097 = vmatmul.mubr.bf16.gmra.mxu0 %v3978
        %v4098 = vpop.f32.mrf.mxu0
        %v4099 = vadd.f32 0.0, %v4098
        %v4100 = vpop.f32.mrf.mxu0
        %v4101 = vpop.f32.mrf.mxu0
        %v4102 = vadd.f32 0.0, %v4101
        %v4103 = vpop.f32.mrf.mxu0
        %4104 = vmatprep.mubr.bf16.mxu0 %v3981
        %4105 = vmatmul.mubr.bf16.gmra.mxu0 %v3980
        %v4106 = vpop.f32.mrf.mxu0
        %v4107 = vadd.f32 0.0, %v4106
        %v4108 = vpop.f32.mrf.mxu0
        %v4109 = vpop.f32.mrf.mxu0
        %v4110 = vadd.f32 0.0, %v4109
        %v4111 = vpop.f32.mrf.mxu0
        %4112 = vmatprep.mubr.bf16.mxu0 %v3983
        %4113 = vmatmul.mubr.bf16.gmra.mxu0 %v3982
        %v4114 = vpop.f32.mrf.mxu0
        %v4115 = vadd.f32 0.0, %v4114
        %v4116 = vpop.f32.mrf.mxu0
        %v4117 = vpop.f32.mrf.mxu0
        %v4118 = vadd.f32 0.0, %v4117
        %v4119 = vpop.f32.mrf.mxu0
        %4120 = vmatprep.mubr.bf16.mxu0 %v3985
        %4121 = vmatmul.mubr.bf16.gmra.mxu0 %v3984
        %v4122 = vpop.f32.mrf.mxu0
        %v4123 = vadd.f32 0.0, %v4122
        %v4124 = vpop.f32.mrf.mxu0
        %v4125 = vpop.f32.mrf.mxu0
        %v4126 = vadd.f32 0.0, %v4125
        %v4127 = vpop.f32.mrf.mxu0
        %4128 = vmatprep.mubr.bf16.mxu0 %v3987
        %4129 = vmatmul.mubr.bf16.gmra.mxu0 %v3986
        %v4130 = vpop.f32.mrf.mxu0
        %v4131 = vadd.f32 0.0, %v4130
        %v4132 = vpop.f32.mrf.mxu0
        %v4133 = vpop.f32.mrf.mxu0
        %v4134 = vadd.f32 0.0, %v4133
        %v4135 = vpop.f32.mrf.mxu0
        %4136 = vmatprep.mubr.bf16.mxu0 %v3989
        %4137 = vmatmul.mubr.bf16.gmra.mxu0 %v3988
        %v4138 = vpop.f32.mrf.mxu0
        %v4139 = vadd.f32 0.0, %v4138
        %v4140 = vpop.f32.mrf.mxu0
        %v4141 = vpop.f32.mrf.mxu0
        %v4142 = vadd.f32 0.0, %v4141
        %v4143 = vpop.f32.mrf.mxu0
        %4144 = vmatprep.mubr.bf16.mxu0 %v3991
        %4145 = vmatmul.mubr.bf16.gmra.mxu0 %v3990
        %v4146 = vpop.f32.mrf.mxu0
        %v4147 = vadd.f32 0.0, %v4146
        %v4148 = vpop.f32.mrf.mxu0
        %v4149 = vpop.f32.mrf.mxu0
        %v4150 = vadd.f32 0.0, %v4149
        %v4151 = vpop.f32.mrf.mxu0
        %4152 = vdwg.mxu0
        %v4153 = vpack.c.bf16 %v4030, %v4027
        %v4154 = vpack.c.bf16 %v4038, %v4035
        %v4155 = vpack.c.bf16 %v4046, %v4043
        %v4156 = vpack.c.bf16 %v4054, %v4051
        %v4157 = vpack.c.bf16 %v4062, %v4059
        %v4158 = vpack.c.bf16 %v4070, %v4067
        %v4159 = vpack.c.bf16 %v4078, %v4075
        %v4160 = vpack.c.bf16 %v4086, %v4083
        %v4161 = vpack.c.bf16 %v4094, %v4091
        %v4162 = vpack.c.bf16 %v4102, %v4099
        %v4163 = vpack.c.bf16 %v4110, %v4107
        %v4164 = vpack.c.bf16 %v4118, %v4115
        %v4165 = vpack.c.bf16 %v4126, %v4123
        %v4166 = vpack.c.bf16 %v4134, %v4131
        %v4167 = vpack.c.bf16 %v4142, %v4139
        %v4168 = vpack.c.bf16 %v4150, %v4147
        %v4177 = vunpack.c.l.b16 %v3070
        %v4178 = vunpack.c.l.b16 %v3071
        %v4179 = vunpack.c.l.b16 %v3072
        %v4180 = vunpack.c.l.b16 %v3073
        %v4181 = vunpack.c.l.b16 %v3074
        %v4182 = vunpack.c.l.b16 %v3075
        %v4183 = vunpack.c.l.b16 %v3076
        %v4184 = vunpack.c.l.b16 %v3077
        %v4185 = vpack.c.b16 %v4178, %v4177
        %v4186 = vpack.c.b16 %v4180, %v4179
        %v4187 = vpack.c.b16 %v4182, %v4181
        %v4188 = vpack.c.b16 %v4184, %v4183
        %v4194 = vsel %vm3190, %v4153, 0
        %v4197 = vsel %vm3190, %v4154, 0
        %v4200 = vsel %vm3190, %v4155, 0
        %v4203 = vsel %vm3190, %v4156, 0
        %v4206 = vsel %vm3190, %v4157, 0
        %v4209 = vsel %vm3190, %v4158, 0
        %v4212 = vsel %vm3190, %v4159, 0
        %v4215 = vsel %vm3190, %v4160, 0
        %v4218 = vsel %vm3190, %v4161, 0
        %v4221 = vsel %vm3190, %v4162, 0
        %v4224 = vsel %vm3190, %v4163, 0
        %v4227 = vsel %vm3190, %v4164, 0
        %v4230 = vsel %vm3190, %v4165, 0
        %v4233 = vsel %vm3190, %v4166, 0
        %v4236 = vsel %vm3190, %v4167, 0
        %v4239 = vsel %vm3190, %v4168, 0
        %4241 = vmatprep.subr.bf16.mxu0 0
        %4242 = vmatpush1.bf16.msra.mxu0 0
        %4243 = vmatprep.subr.bf16.mxu0 0
        %4244 = vmatpush1.bf16.msra.mxu0 0
        %4245 = vmatprep.subr.bf16.mxu0 0
        %4246 = vmatpush1.bf16.msra.mxu0 0
        %4247 = vmatprep.subr.bf16.mxu0 0
        %4248 = vmatpush1.bf16.msra.mxu0 0
        %4249 = vmatprep.subr.bf16.mxu0 0
        %4250 = vmatpush1.bf16.msra.mxu0 %v4188
        %4251 = vmatprep.subr.bf16.mxu0 0
        %4252 = vmatpush1.bf16.msra.mxu0 %v4187
        %4253 = vmatprep.subr.bf16.mxu0 0
        %4254 = vmatpush1.bf16.msra.mxu0 %v4186
        %4255 = vmatprep.subr.bf16.mxu0 0
        %4256 = vmatpush1.bf16.msra.mxu0 %v4185
        %4257 = vmatprep.subr.bf16.mxu0 0
        %4258 = vmatpush2.bf16.msra.mxu0 0
        %4259 = vmatprep.subr.bf16.mxu0 0
        %4260 = vmatpush2.bf16.msra.mxu0 0
        %4261 = vmatprep.subr.bf16.mxu0 0
        %4262 = vmatpush2.bf16.msra.mxu0 0
        %4263 = vmatprep.subr.bf16.mxu0 0
        %4264 = vmatpush2.bf16.msra.mxu0 0
        %4265 = vmatprep.subr.bf16.mxu0 0
        %4266 = vmatpush2.bf16.msra.mxu0 0
        %4267 = vmatprep.subr.bf16.mxu0 0
        %4268 = vmatpush2.bf16.msra.mxu0 0
        %4269 = vmatprep.subr.bf16.mxu0 0
        %4270 = vmatpush2.bf16.msra.mxu0 0
        %4271 = vmatprep.subr.bf16.mxu0 0
        %4272 = vmatpush2.bf16.msra.mxu0 0
        %4273 = vmatprep.mubr.bf16.mxu0 0
        %4274 = vmatmul.mubr.bf16.gmra.mxu0 %v4194
        %v4275 = vpop.f32.mrf.mxu0
        %v4276 = vadd.f32 0.0, %v4275
        %v4277 = vpop.f32.mrf.mxu0
        %v4278 = vpop.f32.mrf.mxu0
        %v4279 = vadd.f32 0.0, %v4278
        %v4280 = vpop.f32.mrf.mxu0
        %4281 = vmatprep.mubr.bf16.mxu0 0
        %4282 = vmatmul.mubr.bf16.gmra.mxu0 %v4197
        %v4283 = vpop.f32.mrf.mxu0
        %v4284 = vadd.f32 0.0, %v4283
        %v4285 = vpop.f32.mrf.mxu0
        %v4286 = vpop.f32.mrf.mxu0
        %v4287 = vadd.f32 0.0, %v4286
        %v4288 = vpop.f32.mrf.mxu0
        %4289 = vmatprep.mubr.bf16.mxu0 0
        %4290 = vmatmul.mubr.bf16.gmra.mxu0 %v4200
        %v4291 = vpop.f32.mrf.mxu0
        %v4292 = vadd.f32 0.0, %v4291
        %v4293 = vpop.f32.mrf.mxu0
        %v4294 = vpop.f32.mrf.mxu0
        %v4295 = vadd.f32 0.0, %v4294
        %v4296 = vpop.f32.mrf.mxu0
        %4297 = vmatprep.mubr.bf16.mxu0 0
        %4298 = vmatmul.mubr.bf16.gmra.mxu0 %v4203
        %v4299 = vpop.f32.mrf.mxu0
        %v4300 = vadd.f32 0.0, %v4299
        %v4301 = vpop.f32.mrf.mxu0
        %v4302 = vpop.f32.mrf.mxu0
        %v4303 = vadd.f32 0.0, %v4302
        %v4304 = vpop.f32.mrf.mxu0
        %4305 = vmatprep.mubr.bf16.mxu0 0
        %4306 = vmatmul.mubr.bf16.gmra.mxu0 %v4206
        %v4307 = vpop.f32.mrf.mxu0
        %v4308 = vadd.f32 0.0, %v4307
        %v4309 = vpop.f32.mrf.mxu0
        %v4310 = vpop.f32.mrf.mxu0
        %v4311 = vadd.f32 0.0, %v4310
        %v4312 = vpop.f32.mrf.mxu0
        %4313 = vmatprep.mubr.bf16.mxu0 0
        %4314 = vmatmul.mubr.bf16.gmra.mxu0 %v4209
        %v4315 = vpop.f32.mrf.mxu0
        %v4316 = vadd.f32 0.0, %v4315
        %v4317 = vpop.f32.mrf.mxu0
        %v4318 = vpop.f32.mrf.mxu0
        %v4319 = vadd.f32 0.0, %v4318
        %v4320 = vpop.f32.mrf.mxu0
        %4321 = vmatprep.mubr.bf16.mxu0 0
        %4322 = vmatmul.mubr.bf16.gmra.mxu0 %v4212
        %v4323 = vpop.f32.mrf.mxu0
        %v4324 = vadd.f32 0.0, %v4323
        %v4325 = vpop.f32.mrf.mxu0
        %v4326 = vpop.f32.mrf.mxu0
        %v4327 = vadd.f32 0.0, %v4326
        %v4328 = vpop.f32.mrf.mxu0
        %4329 = vmatprep.mubr.bf16.mxu0 0
        %4330 = vmatmul.mubr.bf16.gmra.mxu0 %v4215
        %v4331 = vpop.f32.mrf.mxu0
        %v4332 = vadd.f32 0.0, %v4331
        %v4333 = vpop.f32.mrf.mxu0
        %v4334 = vpop.f32.mrf.mxu0
        %v4335 = vadd.f32 0.0, %v4334
        %v4336 = vpop.f32.mrf.mxu0
        %4337 = vmatprep.mubr.bf16.mxu0 0
        %4338 = vmatmul.mubr.bf16.gmra.mxu0 %v4218
        %v4339 = vpop.f32.mrf.mxu0
        %v4340 = vadd.f32 0.0, %v4339
        %v4341 = vpop.f32.mrf.mxu0
        %v4342 = vpop.f32.mrf.mxu0
        %v4343 = vadd.f32 0.0, %v4342
        %v4344 = vpop.f32.mrf.mxu0
        %4345 = vmatprep.mubr.bf16.mxu0 0
        %4346 = vmatmul.mubr.bf16.gmra.mxu0 %v4221
        %v4347 = vpop.f32.mrf.mxu0
        %v4348 = vadd.f32 0.0, %v4347
        %v4349 = vpop.f32.mrf.mxu0
        %v4350 = vpop.f32.mrf.mxu0
        %v4351 = vadd.f32 0.0, %v4350
        %v4352 = vpop.f32.mrf.mxu0
        %4353 = vmatprep.mubr.bf16.mxu0 0
        %4354 = vmatmul.mubr.bf16.gmra.mxu0 %v4224
        %v4355 = vpop.f32.mrf.mxu0
        %v4356 = vadd.f32 0.0, %v4355
        %v4357 = vpop.f32.mrf.mxu0
        %v4358 = vpop.f32.mrf.mxu0
        %v4359 = vadd.f32 0.0, %v4358
        %v4360 = vpop.f32.mrf.mxu0
        %4361 = vmatprep.mubr.bf16.mxu0 0
        %4362 = vmatmul.mubr.bf16.gmra.mxu0 %v4227
        %v4363 = vpop.f32.mrf.mxu0
        %v4364 = vadd.f32 0.0, %v4363
        %v4365 = vpop.f32.mrf.mxu0
        %v4366 = vpop.f32.mrf.mxu0
        %v4367 = vadd.f32 0.0, %v4366
        %v4368 = vpop.f32.mrf.mxu0
        %4369 = vmatprep.mubr.bf16.mxu0 0
        %4370 = vmatmul.mubr.bf16.gmra.mxu0 %v4230
        %v4371 = vpop.f32.mrf.mxu0
        %v4372 = vadd.f32 0.0, %v4371
        %v4373 = vpop.f32.mrf.mxu0
        %v4374 = vpop.f32.mrf.mxu0
        %v4375 = vadd.f32 0.0, %v4374
        %v4376 = vpop.f32.mrf.mxu0
        %4377 = vmatprep.mubr.bf16.mxu0 0
        %4378 = vmatmul.mubr.bf16.gmra.mxu0 %v4233
        %v4379 = vpop.f32.mrf.mxu0
        %v4380 = vadd.f32 0.0, %v4379
        %v4381 = vpop.f32.mrf.mxu0
        %v4382 = vpop.f32.mrf.mxu0
        %v4383 = vadd.f32 0.0, %v4382
        %v4384 = vpop.f32.mrf.mxu0
        %4385 = vmatprep.mubr.bf16.mxu0 0
        %4386 = vmatmul.mubr.bf16.gmra.mxu0 %v4236
        %v4387 = vpop.f32.mrf.mxu0
        %v4388 = vadd.f32 0.0, %v4387
        %v4389 = vpop.f32.mrf.mxu0
        %v4390 = vpop.f32.mrf.mxu0
        %v4391 = vadd.f32 0.0, %v4390
        %v4392 = vpop.f32.mrf.mxu0
        %4393 = vmatprep.mubr.bf16.mxu0 0
        %4394 = vmatmul.mubr.bf16.gmra.mxu0 %v4239
        %v4395 = vpop.f32.mrf.mxu0
        %v4396 = vadd.f32 0.0, %v4395
        %v4397 = vpop.f32.mrf.mxu0
        %v4398 = vpop.f32.mrf.mxu0
        %v4399 = vadd.f32 0.0, %v4398
        %v4400 = vpop.f32.mrf.mxu0
        %4401 = vdwg.mxu0
        %v4402 = vadd.f32 %v1872, %v4276
        %v4403 = vadd.f32 %v1875, %v4279
        %v4404 = vadd.f32 %v1880, %v4284
        %v4405 = vadd.f32 %v1883, %v4287
        %v4406 = vadd.f32 %v1888, %v4292
        %v4407 = vadd.f32 %v1891, %v4295
        %v4408 = vadd.f32 %v1896, %v4300
        %v4409 = vadd.f32 %v1899, %v4303
        %v4410 = vadd.f32 %v1904, %v4308
        %v4411 = vadd.f32 %v1907, %v4311
        %v4412 = vadd.f32 %v1912, %v4316
        %v4413 = vadd.f32 %v1915, %v4319
        %v4414 = vadd.f32 %v1920, %v4324
        %v4415 = vadd.f32 %v1923, %v4327
        %v4416 = vadd.f32 %v1928, %v4332
        %v4417 = vadd.f32 %v1931, %v4335
        %v4418 = vadd.f32 %v1936, %v4340
        %v4419 = vadd.f32 %v1939, %v4343
        %v4420 = vadd.f32 %v1944, %v4348
        %v4421 = vadd.f32 %v1947, %v4351
        %v4422 = vadd.f32 %v1952, %v4356
        %v4423 = vadd.f32 %v1955, %v4359
        %v4424 = vadd.f32 %v1960, %v4364
        %v4425 = vadd.f32 %v1963, %v4367
        %v4426 = vadd.f32 %v1968, %v4372
        %v4427 = vadd.f32 %v1971, %v4375
        %v4428 = vadd.f32 %v1976, %v4380
        %v4429 = vadd.f32 %v1979, %v4383
        %v4430 = vadd.f32 %v1984, %v4388
        %v4431 = vadd.f32 %v1987, %v4391
        %v4432 = vadd.f32 %v1992, %v4396
        %v4433 = vadd.f32 %v1995, %v4399
        %v4434 = vld [vmem:[#allocation19] sm:$0x1]
        %v4436 = vlaneseq
        %v4437 = vshrl.u32 %v4436, 7
        %v4438 = vsub.s32 0, %v4437
        %v4439 = vrot.slane %v4434, %v4438
        %v4441 = vadd.f32 %v4402, %v4439
        %v4442 = vadd.f32 %v4403, %v4439
        %v4443 = vadd.f32 %v4404, %v4439
        %v4444 = vadd.f32 %v4405, %v4439
        %v4445 = vadd.f32 %v4406, %v4439
        %v4446 = vadd.f32 %v4407, %v4439
        %v4447 = vadd.f32 %v4408, %v4439
        %v4448 = vadd.f32 %v4409, %v4439
        %v4449 = vadd.f32 %v4410, %v4439
        %v4450 = vadd.f32 %v4411, %v4439
        %v4451 = vadd.f32 %v4412, %v4439
        %v4452 = vadd.f32 %v4413, %v4439
        %v4453 = vadd.f32 %v4414, %v4439
        %v4454 = vadd.f32 %v4415, %v4439
        %v4455 = vadd.f32 %v4416, %v4439
        %v4456 = vadd.f32 %v4417, %v4439
        %v4457 = vadd.f32 %v4418, %v4439
        %v4458 = vadd.f32 %v4419, %v4439
        %v4459 = vadd.f32 %v4420, %v4439
        %v4460 = vadd.f32 %v4421, %v4439
        %v4461 = vadd.f32 %v4422, %v4439
        %v4462 = vadd.f32 %v4423, %v4439
        %v4463 = vadd.f32 %v4424, %v4439
        %v4464 = vadd.f32 %v4425, %v4439
        %v4465 = vadd.f32 %v4426, %v4439
        %v4466 = vadd.f32 %v4427, %v4439
        %v4467 = vadd.f32 %v4428, %v4439
        %v4468 = vadd.f32 %v4429, %v4439
        %v4469 = vadd.f32 %v4430, %v4439
        %v4470 = vadd.f32 %v4431, %v4439
        %v4471 = vadd.f32 %v4432, %v4439
        %v4472 = vadd.f32 %v4433, %v4439
        %v4473 = vld [vmem:[%s27] sm:$0x7]
        %4474 = vadd.xlane.f32.xlu0 %v4441
        %v4475 = vpop.xlane.xlu0 %4474
        %4476 = vadd.xlane.f32.xlu0 %v4442
        %v4477 = vpop.xlane.xlu0 %4476
        %4478 = vadd.xlane.f32.xlu0 %v4443
        %v4479 = vpop.xlane.xlu0 %4478
        %4480 = vadd.xlane.f32.xlu0 %v4444
        %v4481 = vpop.xlane.xlu0 %4480
        %4482 = vadd.xlane.f32.xlu0 %v4445
        %v4483 = vpop.xlane.xlu0 %4482
        %4484 = vadd.xlane.f32.xlu0 %v4446
        %v4485 = vpop.xlane.xlu0 %4484
        %4486 = vadd.xlane.f32.xlu0 %v4447
        %v4487 = vpop.xlane.xlu0 %4486
        %4488 = vadd.xlane.f32.xlu0 %v4448
        %v4489 = vpop.xlane.xlu0 %4488
        %4490 = vadd.xlane.f32.xlu0 %v4449
        %v4491 = vpop.xlane.xlu0 %4490
        %4492 = vadd.xlane.f32.xlu0 %v4450
        %v4493 = vpop.xlane.xlu0 %4492
        %4494 = vadd.xlane.f32.xlu0 %v4451
        %v4495 = vpop.xlane.xlu0 %4494
        %4496 = vadd.xlane.f32.xlu0 %v4452
        %v4497 = vpop.xlane.xlu0 %4496
        %4498 = vadd.xlane.f32.xlu0 %v4453
        %v4499 = vpop.xlane.xlu0 %4498
        %4500 = vadd.xlane.f32.xlu0 %v4454
        %v4501 = vpop.xlane.xlu0 %4500
        %4502 = vadd.xlane.f32.xlu0 %v4455
        %v4503 = vpop.xlane.xlu0 %4502
        %4504 = vadd.xlane.f32.xlu0 %v4456
        %v4505 = vpop.xlane.xlu0 %4504
        %4506 = vadd.xlane.f32.xlu0 %v4457
        %v4507 = vpop.xlane.xlu0 %4506
        %4508 = vadd.xlane.f32.xlu0 %v4458
        %v4509 = vpop.xlane.xlu0 %4508
        %4510 = vadd.xlane.f32.xlu0 %v4459
        %v4511 = vpop.xlane.xlu0 %4510
        %4512 = vadd.xlane.f32.xlu0 %v4460
        %v4513 = vpop.xlane.xlu0 %4512
        %4514 = vadd.xlane.f32.xlu0 %v4461
        %v4515 = vpop.xlane.xlu0 %4514
        %4516 = vadd.xlane.f32.xlu0 %v4462
        %v4517 = vpop.xlane.xlu0 %4516
        %4518 = vadd.xlane.f32.xlu0 %v4463
        %v4519 = vpop.xlane.xlu0 %4518
        %4520 = vadd.xlane.f32.xlu0 %v4464
        %v4521 = vpop.xlane.xlu0 %4520
        %4522 = vadd.xlane.f32.xlu0 %v4465
        %v4523 = vpop.xlane.xlu0 %4522
        %4524 = vadd.xlane.f32.xlu0 %v4466
        %v4525 = vpop.xlane.xlu0 %4524
        %4526 = vadd.xlane.f32.xlu0 %v4467
        %v4527 = vpop.xlane.xlu0 %4526
        %4528 = vadd.xlane.f32.xlu0 %v4468
        %v4529 = vpop.xlane.xlu0 %4528
        %4530 = vadd.xlane.f32.xlu0 %v4469
        %v4531 = vpop.xlane.xlu0 %4530
        %4532 = vadd.xlane.f32.xlu0 %v4470
        %v4533 = vpop.xlane.xlu0 %4532
        %4534 = vadd.xlane.f32.xlu0 %v4471
        %v4535 = vpop.xlane.xlu0 %4534
        %4536 = vadd.xlane.f32.xlu0 %v4472
        %v4537 = vpop.xlane.xlu0 %4536
        %v4538 = vmul.f32 %v4475, 0.015625
        %v4539 = vmul.f32 %v4477, 0.015625
        %v4540 = vmul.f32 %v4479, 0.015625
        %v4541 = vmul.f32 %v4481, 0.015625
        %v4542 = vmul.f32 %v4483, 0.015625
        %v4543 = vmul.f32 %v4485, 0.015625
        %v4544 = vmul.f32 %v4487, 0.015625
        %v4545 = vmul.f32 %v4489, 0.015625
        %v4546 = vmul.f32 %v4491, 0.015625
        %v4547 = vmul.f32 %v4493, 0.015625
        %v4548 = vmul.f32 %v4495, 0.015625
        %v4549 = vmul.f32 %v4497, 0.015625
        %v4550 = vmul.f32 %v4499, 0.015625
        %v4551 = vmul.f32 %v4501, 0.015625
        %v4552 = vmul.f32 %v4503, 0.015625
        %v4553 = vmul.f32 %v4505, 0.015625
        %v4554 = vmul.f32 %v4507, 0.015625
        %v4555 = vmul.f32 %v4509, 0.015625
        %v4556 = vmul.f32 %v4511, 0.015625
        %v4557 = vmul.f32 %v4513, 0.015625
        %v4558 = vmul.f32 %v4515, 0.015625
        %v4559 = vmul.f32 %v4517, 0.015625
        %v4560 = vmul.f32 %v4519, 0.015625
        %v4561 = vmul.f32 %v4521, 0.015625
        %v4562 = vmul.f32 %v4523, 0.015625
        %v4563 = vmul.f32 %v4525, 0.015625
        %v4564 = vmul.f32 %v4527, 0.015625
        %v4565 = vmul.f32 %v4529, 0.015625
        %v4566 = vmul.f32 %v4531, 0.015625
        %v4567 = vmul.f32 %v4533, 0.015625
        %v4568 = vmul.f32 %v4535, 0.015625
        %v4569 = vmul.f32 %v4537, 0.015625
        %v4570 = vsub.f32 %v4441, %v4538
        %v4571 = vsub.f32 %v4442, %v4539
        %v4572 = vsub.f32 %v4443, %v4540
        %v4573 = vsub.f32 %v4444, %v4541
        %v4574 = vsub.f32 %v4445, %v4542
        %v4575 = vsub.f32 %v4446, %v4543
        %v4576 = vsub.f32 %v4447, %v4544
        %v4577 = vsub.f32 %v4448, %v4545
        %v4578 = vsub.f32 %v4449, %v4546
        %v4579 = vsub.f32 %v4450, %v4547
        %v4580 = vsub.f32 %v4451, %v4548
        %v4581 = vsub.f32 %v4452, %v4549
        %v4582 = vsub.f32 %v4453, %v4550
        %v4583 = vsub.f32 %v4454, %v4551
        %v4584 = vsub.f32 %v4455, %v4552
        %v4585 = vsub.f32 %v4456, %v4553
        %v4586 = vsub.f32 %v4457, %v4554
        %v4587 = vsub.f32 %v4458, %v4555
        %v4588 = vsub.f32 %v4459, %v4556
        %v4589 = vsub.f32 %v4460, %v4557
        %v4590 = vsub.f32 %v4461, %v4558
        %v4591 = vsub.f32 %v4462, %v4559
        %v4592 = vsub.f32 %v4463, %v4560
        %v4593 = vsub.f32 %v4464, %v4561
        %v4594 = vsub.f32 %v4465, %v4562
        %v4595 = vsub.f32 %v4466, %v4563
        %v4596 = vsub.f32 %v4467, %v4564
        %v4597 = vsub.f32 %v4468, %v4565
        %v4598 = vsub.f32 %v4469, %v4566
        %v4599 = vsub.f32 %v4470, %v4567
        %v4600 = vsub.f32 %v4471, %v4568
        %v4601 = vsub.f32 %v4472, %v4569
        %v4602 = vlaneseq
        %v4603 = vshrl.u32 %v4602, 7
        %v4604 = vsub.s32 2, %v4603
        %v4605 = vrot.slane %v4473, %v4604
        %v4606 = vmul.f32 %v4570, %v4605
        %v4607 = vmul.f32 %v4571, %v4605
        %v4608 = vmul.f32 %v4572, %v4605
        %v4609 = vmul.f32 %v4573, %v4605
        %v4610 = vmul.f32 %v4574, %v4605
        %v4611 = vmul.f32 %v4575, %v4605
        %v4612 = vmul.f32 %v4576, %v4605
        %v4613 = vmul.f32 %v4577, %v4605
        %v4614 = vmul.f32 %v4578, %v4605
        %v4615 = vmul.f32 %v4579, %v4605
        %v4616 = vmul.f32 %v4580, %v4605
        %v4617 = vmul.f32 %v4581, %v4605
        %v4618 = vmul.f32 %v4582, %v4605
        %v4619 = vmul.f32 %v4583, %v4605
        %v4620 = vmul.f32 %v4584, %v4605
        %v4621 = vmul.f32 %v4585, %v4605
        %v4622 = vmul.f32 %v4586, %v4605
        %v4623 = vmul.f32 %v4587, %v4605
        %v4624 = vmul.f32 %v4588, %v4605
        %v4625 = vmul.f32 %v4589, %v4605
        %v4626 = vmul.f32 %v4590, %v4605
        %v4627 = vmul.f32 %v4591, %v4605
        %v4628 = vmul.f32 %v4592, %v4605
        %v4629 = vmul.f32 %v4593, %v4605
        %v4630 = vmul.f32 %v4594, %v4605
        %v4631 = vmul.f32 %v4595, %v4605
        %v4632 = vmul.f32 %v4596, %v4605
        %v4633 = vmul.f32 %v4597, %v4605
        %v4634 = vmul.f32 %v4598, %v4605
        %v4635 = vmul.f32 %v4599, %v4605
        %v4636 = vmul.f32 %v4600, %v4605
        %v4637 = vmul.f32 %v4601, %v4605
        %v4638 = vmul.f32 %v4606, %v4606
        %v4639 = vmul.f32 %v4607, %v4607
        %v4640 = vmul.f32 %v4608, %v4608
        %v4641 = vmul.f32 %v4609, %v4609
        %v4642 = vmul.f32 %v4610, %v4610
        %v4643 = vmul.f32 %v4611, %v4611
        %v4644 = vmul.f32 %v4612, %v4612
        %v4645 = vmul.f32 %v4613, %v4613
        %v4646 = vmul.f32 %v4614, %v4614
        %v4647 = vmul.f32 %v4615, %v4615
        %v4648 = vmul.f32 %v4616, %v4616
        %v4649 = vmul.f32 %v4617, %v4617
        %v4650 = vmul.f32 %v4618, %v4618
        %v4651 = vmul.f32 %v4619, %v4619
        %v4652 = vmul.f32 %v4620, %v4620
        %v4653 = vmul.f32 %v4621, %v4621
        %v4654 = vmul.f32 %v4622, %v4622
        %v4655 = vmul.f32 %v4623, %v4623
        %v4656 = vmul.f32 %v4624, %v4624
        %v4657 = vmul.f32 %v4625, %v4625
        %v4658 = vmul.f32 %v4626, %v4626
        %v4659 = vmul.f32 %v4627, %v4627
        %v4660 = vmul.f32 %v4628, %v4628
        %v4661 = vmul.f32 %v4629, %v4629
        %v4662 = vmul.f32 %v4630, %v4630
        %v4663 = vmul.f32 %v4631, %v4631
        %v4664 = vmul.f32 %v4632, %v4632
        %v4665 = vmul.f32 %v4633, %v4633
        %v4666 = vmul.f32 %v4634, %v4634
        %v4667 = vmul.f32 %v4635, %v4635
        %v4668 = vmul.f32 %v4636, %v4636
        %v4669 = vmul.f32 %v4637, %v4637
        %4670 = vadd.xlane.f32.xlu0 %v4638
        %v4671 = vpop.xlane.xlu0 %4670
        %4672 = vadd.xlane.f32.xlu0 %v4639
        %v4673 = vpop.xlane.xlu0 %4672
        %4674 = vadd.xlane.f32.xlu0 %v4640
        %v4675 = vpop.xlane.xlu0 %4674
        %4676 = vadd.xlane.f32.xlu0 %v4641
        %v4677 = vpop.xlane.xlu0 %4676
        %4678 = vadd.xlane.f32.xlu0 %v4642
        %v4679 = vpop.xlane.xlu0 %4678
        %4680 = vadd.xlane.f32.xlu0 %v4643
        %v4681 = vpop.xlane.xlu0 %4680
        %4682 = vadd.xlane.f32.xlu0 %v4644
        %v4683 = vpop.xlane.xlu0 %4682
        %4684 = vadd.xlane.f32.xlu0 %v4645
        %v4685 = vpop.xlane.xlu0 %4684
        %4686 = vadd.xlane.f32.xlu0 %v4646
        %v4687 = vpop.xlane.xlu0 %4686
        %4688 = vadd.xlane.f32.xlu0 %v4647
        %v4689 = vpop.xlane.xlu0 %4688
        %4690 = vadd.xlane.f32.xlu0 %v4648
        %v4691 = vpop.xlane.xlu0 %4690
        %4692 = vadd.xlane.f32.xlu0 %v4649
        %v4693 = vpop.xlane.xlu0 %4692
        %4694 = vadd.xlane.f32.xlu0 %v4650
        %v4695 = vpop.xlane.xlu0 %4694
        %4696 = vadd.xlane.f32.xlu0 %v4651
        %v4697 = vpop.xlane.xlu0 %4696
        %4698 = vadd.xlane.f32.xlu0 %v4652
        %v4699 = vpop.xlane.xlu0 %4698
        %4700 = vadd.xlane.f32.xlu0 %v4653
        %v4701 = vpop.xlane.xlu0 %4700
        %4702 = vadd.xlane.f32.xlu0 %v4654
        %v4703 = vpop.xlane.xlu0 %4702
        %4704 = vadd.xlane.f32.xlu0 %v4655
        %v4705 = vpop.xlane.xlu0 %4704
        %4706 = vadd.xlane.f32.xlu0 %v4656
        %v4707 = vpop.xlane.xlu0 %4706
        %4708 = vadd.xlane.f32.xlu0 %v4657
        %v4709 = vpop.xlane.xlu0 %4708
        %4710 = vadd.xlane.f32.xlu0 %v4658
        %v4711 = vpop.xlane.xlu0 %4710
        %4712 = vadd.xlane.f32.xlu0 %v4659
        %v4713 = vpop.xlane.xlu0 %4712
        %4714 = vadd.xlane.f32.xlu0 %v4660
        %v4715 = vpop.xlane.xlu0 %4714
        %4716 = vadd.xlane.f32.xlu0 %v4661
        %v4717 = vpop.xlane.xlu0 %4716
        %4718 = vadd.xlane.f32.xlu0 %v4662
        %v4719 = vpop.xlane.xlu0 %4718
        %4720 = vadd.xlane.f32.xlu0 %v4663
        %v4721 = vpop.xlane.xlu0 %4720
        %4722 = vadd.xlane.f32.xlu0 %v4664
        %v4723 = vpop.xlane.xlu0 %4722
        %4724 = vadd.xlane.f32.xlu0 %v4665
        %v4725 = vpop.xlane.xlu0 %4724
        %4726 = vadd.xlane.f32.xlu0 %v4666
        %v4727 = vpop.xlane.xlu0 %4726
        %4728 = vadd.xlane.f32.xlu0 %v4667
        %v4729 = vpop.xlane.xlu0 %4728
        %4730 = vadd.xlane.f32.xlu0 %v4668
        %v4731 = vpop.xlane.xlu0 %4730
        %4732 = vadd.xlane.f32.xlu0 %v4669
        %v4733 = vpop.xlane.xlu0 %4732
        %v4734 = vmul.f32 %v4671, 0.015625
        %v4735 = vmul.f32 %v4673, 0.015625
        %v4736 = vmul.f32 %v4675, 0.015625
        %v4737 = vmul.f32 %v4677, 0.015625
        %v4738 = vmul.f32 %v4679, 0.015625
        %v4739 = vmul.f32 %v4681, 0.015625
        %v4740 = vmul.f32 %v4683, 0.015625
        %v4741 = vmul.f32 %v4685, 0.015625
        %v4742 = vmul.f32 %v4687, 0.015625
        %v4743 = vmul.f32 %v4689, 0.015625
        %v4744 = vmul.f32 %v4691, 0.015625
        %v4745 = vmul.f32 %v4693, 0.015625
        %v4746 = vmul.f32 %v4695, 0.015625
        %v4747 = vmul.f32 %v4697, 0.015625
        %v4748 = vmul.f32 %v4699, 0.015625
        %v4749 = vmul.f32 %v4701, 0.015625
        %v4750 = vmul.f32 %v4703, 0.015625
        %v4751 = vmul.f32 %v4705, 0.015625
        %v4752 = vmul.f32 %v4707, 0.015625
        %v4753 = vmul.f32 %v4709, 0.015625
        %v4754 = vmul.f32 %v4711, 0.015625
        %v4755 = vmul.f32 %v4713, 0.015625
        %v4756 = vmul.f32 %v4715, 0.015625
        %v4757 = vmul.f32 %v4717, 0.015625
        %v4758 = vmul.f32 %v4719, 0.015625
        %v4759 = vmul.f32 %v4721, 0.015625
        %v4760 = vmul.f32 %v4723, 0.015625
        %v4761 = vmul.f32 %v4725, 0.015625
        %v4762 = vmul.f32 %v4727, 0.015625
        %v4763 = vmul.f32 %v4729, 0.015625
        %v4764 = vmul.f32 %v4731, 0.015625
        %v4765 = vmul.f32 %v4733, 0.015625
        %v4766 = vadd.f32 %v4734, 1e-05
        %v4767 = vadd.f32 %v4735, 1e-05
        %v4768 = vadd.f32 %v4736, 1e-05
        %v4769 = vadd.f32 %v4737, 1e-05
        %v4770 = vadd.f32 %v4738, 1e-05
        %v4771 = vadd.f32 %v4739, 1e-05
        %v4772 = vadd.f32 %v4740, 1e-05
        %v4773 = vadd.f32 %v4741, 1e-05
        %v4774 = vadd.f32 %v4742, 1e-05
        %v4775 = vadd.f32 %v4743, 1e-05
        %v4776 = vadd.f32 %v4744, 1e-05
        %v4777 = vadd.f32 %v4745, 1e-05
        %v4778 = vadd.f32 %v4746, 1e-05
        %v4779 = vadd.f32 %v4747, 1e-05
        %v4780 = vadd.f32 %v4748, 1e-05
        %v4781 = vadd.f32 %v4749, 1e-05
        %v4782 = vadd.f32 %v4750, 1e-05
        %v4783 = vadd.f32 %v4751, 1e-05
        %v4784 = vadd.f32 %v4752, 1e-05
        %v4785 = vadd.f32 %v4753, 1e-05
        %v4786 = vadd.f32 %v4754, 1e-05
        %v4787 = vadd.f32 %v4755, 1e-05
        %v4788 = vadd.f32 %v4756, 1e-05
        %v4789 = vadd.f32 %v4757, 1e-05
        %v4790 = vadd.f32 %v4758, 1e-05
        %v4791 = vadd.f32 %v4759, 1e-05
        %v4792 = vadd.f32 %v4760, 1e-05
        %v4793 = vadd.f32 %v4761, 1e-05
        %v4794 = vadd.f32 %v4762, 1e-05
        %v4795 = vadd.f32 %v4763, 1e-05
        %v4796 = vadd.f32 %v4764, 1e-05
        %v4797 = vadd.f32 %v4765, 1e-05
        %v4798 = vrsqrt.pop %v4766
        %v4799 = vrsqrt.pop %v4767
        %v4800 = vrsqrt.pop %v4768
        %v4801 = vrsqrt.pop %v4769
        %v4802 = vrsqrt.pop %v4770
        %v4803 = vrsqrt.pop %v4771
        %v4804 = vrsqrt.pop %v4772
        %v4805 = vrsqrt.pop %v4773
        %v4806 = vrsqrt.pop %v4774
        %v4807 = vrsqrt.pop %v4775
        %v4808 = vrsqrt.pop %v4776
        %v4809 = vrsqrt.pop %v4777
        %v4810 = vrsqrt.pop %v4778
        %v4811 = vrsqrt.pop %v4779
        %v4812 = vrsqrt.pop %v4780
        %v4813 = vrsqrt.pop %v4781
        %v4814 = vrsqrt.pop %v4782
        %v4815 = vrsqrt.pop %v4783
        %v4816 = vrsqrt.pop %v4784
        %v4817 = vrsqrt.pop %v4785
        %v4818 = vrsqrt.pop %v4786
        %v4819 = vrsqrt.pop %v4787
        %v4820 = vrsqrt.pop %v4788
        %v4821 = vrsqrt.pop %v4789
        %v4822 = vrsqrt.pop %v4790
        %v4823 = vrsqrt.pop %v4791
        %v4824 = vrsqrt.pop %v4792
        %v4825 = vrsqrt.pop %v4793
        %v4826 = vrsqrt.pop %v4794
        %v4827 = vrsqrt.pop %v4795
        %v4828 = vrsqrt.pop %v4796
        %v4829 = vrsqrt.pop %v4797
        %v4830 = vmul.f32 %v4606, %v4798
        %v4831 = vmul.f32 %v4607, %v4799
        %v4832 = vmul.f32 %v4608, %v4800
        %v4833 = vmul.f32 %v4609, %v4801
        %v4834 = vmul.f32 %v4610, %v4802
        %v4835 = vmul.f32 %v4611, %v4803
        %v4836 = vmul.f32 %v4612, %v4804
        %v4837 = vmul.f32 %v4613, %v4805
        %v4838 = vmul.f32 %v4614, %v4806
        %v4839 = vmul.f32 %v4615, %v4807
        %v4840 = vmul.f32 %v4616, %v4808
        %v4841 = vmul.f32 %v4617, %v4809
        %v4842 = vmul.f32 %v4618, %v4810
        %v4843 = vmul.f32 %v4619, %v4811
        %v4844 = vmul.f32 %v4620, %v4812
        %v4845 = vmul.f32 %v4621, %v4813
        %v4846 = vmul.f32 %v4622, %v4814
        %v4847 = vmul.f32 %v4623, %v4815
        %v4848 = vmul.f32 %v4624, %v4816
        %v4849 = vmul.f32 %v4625, %v4817
        %v4850 = vmul.f32 %v4626, %v4818
        %v4851 = vmul.f32 %v4627, %v4819
        %v4852 = vmul.f32 %v4628, %v4820
        %v4853 = vmul.f32 %v4629, %v4821
        %v4854 = vmul.f32 %v4630, %v4822
        %v4855 = vmul.f32 %v4631, %v4823
        %v4856 = vmul.f32 %v4632, %v4824
        %v4857 = vmul.f32 %v4633, %v4825
        %v4858 = vmul.f32 %v4634, %v4826
        %v4859 = vmul.f32 %v4635, %v4827
        %v4860 = vmul.f32 %v4636, %v4828
        %v4861 = vmul.f32 %v4637, %v4829
        %v4862 = vlaneseq
        %v4863 = vshrl.u32 %v4862, 7
        %v4864 = vsub.s32 0, %v4863
        %v4865 = vrot.slane %v4473, %v4864
        %v4866 = vmul.f32 %v4830, %v4865
        %v4867 = vmul.f32 %v4831, %v4865
        %v4868 = vmul.f32 %v4832, %v4865
        %v4869 = vmul.f32 %v4833, %v4865
        %v4870 = vmul.f32 %v4834, %v4865
        %v4871 = vmul.f32 %v4835, %v4865
        %v4872 = vmul.f32 %v4836, %v4865
        %v4873 = vmul.f32 %v4837, %v4865
        %v4874 = vmul.f32 %v4838, %v4865
        %v4875 = vmul.f32 %v4839, %v4865
        %v4876 = vmul.f32 %v4840, %v4865
        %v4877 = vmul.f32 %v4841, %v4865
        %v4878 = vmul.f32 %v4842, %v4865
        %v4879 = vmul.f32 %v4843, %v4865
        %v4880 = vmul.f32 %v4844, %v4865
        %v4881 = vmul.f32 %v4845, %v4865
        %v4882 = vmul.f32 %v4846, %v4865
        %v4883 = vmul.f32 %v4847, %v4865
        %v4884 = vmul.f32 %v4848, %v4865
        %v4885 = vmul.f32 %v4849, %v4865
        %v4886 = vmul.f32 %v4850, %v4865
        %v4887 = vmul.f32 %v4851, %v4865
        %v4888 = vmul.f32 %v4852, %v4865
        %v4889 = vmul.f32 %v4853, %v4865
        %v4890 = vmul.f32 %v4854, %v4865
        %v4891 = vmul.f32 %v4855, %v4865
        %v4892 = vmul.f32 %v4856, %v4865
        %v4893 = vmul.f32 %v4857, %v4865
        %v4894 = vmul.f32 %v4858, %v4865
        %v4895 = vmul.f32 %v4859, %v4865
        %v4896 = vmul.f32 %v4860, %v4865
        %v4897 = vmul.f32 %v4861, %v4865
        %v4898 = vlaneseq
        %v4899 = vshrl.u32 %v4898, 7
        %v4900 = vsub.s32 1, %v4899
        %v4901 = vrot.slane %v4473, %v4900
        %v4902 = vadd.f32 %v4866, %v4901
        %v4903 = vadd.f32 %v4867, %v4901
        %v4904 = vadd.f32 %v4868, %v4901
        %v4905 = vadd.f32 %v4869, %v4901
        %v4906 = vadd.f32 %v4870, %v4901
        %v4907 = vadd.f32 %v4871, %v4901
        %v4908 = vadd.f32 %v4872, %v4901
        %v4909 = vadd.f32 %v4873, %v4901
        %v4910 = vadd.f32 %v4874, %v4901
        %v4911 = vadd.f32 %v4875, %v4901
        %v4912 = vadd.f32 %v4876, %v4901
        %v4913 = vadd.f32 %v4877, %v4901
        %v4914 = vadd.f32 %v4878, %v4901
        %v4915 = vadd.f32 %v4879, %v4901
        %v4916 = vadd.f32 %v4880, %v4901
        %v4917 = vadd.f32 %v4881, %v4901
        %v4918 = vadd.f32 %v4882, %v4901
        %v4919 = vadd.f32 %v4883, %v4901
        %v4920 = vadd.f32 %v4884, %v4901
        %v4921 = vadd.f32 %v4885, %v4901
        %v4922 = vadd.f32 %v4886, %v4901
        %v4923 = vadd.f32 %v4887, %v4901
        %v4924 = vadd.f32 %v4888, %v4901
        %v4925 = vadd.f32 %v4889, %v4901
        %v4926 = vadd.f32 %v4890, %v4901
        %v4927 = vadd.f32 %v4891, %v4901
        %v4928 = vadd.f32 %v4892, %v4901
        %v4929 = vadd.f32 %v4893, %v4901
        %v4930 = vadd.f32 %v4894, %v4901
        %v4931 = vadd.f32 %v4895, %v4901
        %v4932 = vadd.f32 %v4896, %v4901
        %v4933 = vadd.f32 %v4897, %v4901
        %v4934 = vpack.c.bf16 %v4903, %v4902
        %v4935 = vpack.c.bf16 %v4905, %v4904
        %v4936 = vpack.c.bf16 %v4907, %v4906
        %v4937 = vpack.c.bf16 %v4909, %v4908
        %v4938 = vpack.c.bf16 %v4911, %v4910
        %v4939 = vpack.c.bf16 %v4913, %v4912
        %v4940 = vpack.c.bf16 %v4915, %v4914
        %v4941 = vpack.c.bf16 %v4917, %v4916
        %v4942 = vpack.c.bf16 %v4919, %v4918
        %v4943 = vpack.c.bf16 %v4921, %v4920
        %v4944 = vpack.c.bf16 %v4923, %v4922
        %v4945 = vpack.c.bf16 %v4925, %v4924
        %v4946 = vpack.c.bf16 %v4927, %v4926
        %v4947 = vpack.c.bf16 %v4929, %v4928
        %v4948 = vpack.c.bf16 %v4931, %v4930
        %v4949 = vpack.c.bf16 %v4933, %v4932
        %v4950 = vld [vmem:[#allocation20] sm:$0xff]
        %v4951 = vld [vmem:[#allocation20 + $0x8] sm:$0xff]
        %v4952 = vld [vmem:[#allocation20 + $0x10] sm:$0xff]
        %v4953 = vld [vmem:[#allocation20 + $0x18] sm:$0xff]
        %v4954 = vld [vmem:[#allocation20 + $0x20] sm:$0xff]
        %v4955 = vld [vmem:[#allocation20 + $0x28] sm:$0xff]
        %v4956 = vld [vmem:[#allocation20 + $0x30] sm:$0xff]
        %v4957 = vld [vmem:[#allocation20 + $0x38] sm:$0xff]
        %v4958 = vld [vmem:[#allocation20 + $0x40] sm:$0xff]
        %v4959 = vld [vmem:[#allocation20 + $0x48] sm:$0xff]
        %v4960 = vld [vmem:[#allocation20 + $0x50] sm:$0xff]
        %v4961 = vld [vmem:[#allocation20 + $0x58] sm:$0xff]
        %v4962 = vld [vmem:[#allocation20 + $0x60] sm:$0xff]
        %v4963 = vld [vmem:[#allocation20 + $0x68] sm:$0xff]
        %v4964 = vld [vmem:[#allocation20 + $0x70] sm:$0xff]
        %v4965 = vld [vmem:[#allocation20 + $0x78] sm:$0xff]
        %v4966 = vld [vmem:[#allocation22] sm:$0x3]
        %v4968 = vlaneseq
        %v4969 = vshrl.u32 %v4968, 7
        %v4970 = vsub.s32 0, %v4969
        %v4971 = vrot.slane %v4966, %v4970
        %v4972 = vlaneseq
        %v4973 = vshrl.u32 %v4972, 7
        %v4974 = vsub.s32 1, %v4973
        %v4975 = vrot.slane %v4966, %v4974
        %v4994 = vunpack.c.l.b16 %v4950
        %v4995 = vunpack.c.h.b16 %v4950
        %v4996 = vunpack.c.l.b16 %v4951
        %v4997 = vunpack.c.h.b16 %v4951
        %v4998 = vunpack.c.l.b16 %v4952
        %v4999 = vunpack.c.h.b16 %v4952
        %v5000 = vunpack.c.l.b16 %v4953
        %v5001 = vunpack.c.h.b16 %v4953
        %v5002 = vunpack.c.l.b16 %v4954
        %v5003 = vunpack.c.h.b16 %v4954
        %v5004 = vunpack.c.l.b16 %v4955
        %v5005 = vunpack.c.h.b16 %v4955
        %v5006 = vunpack.c.l.b16 %v4956
        %v5007 = vunpack.c.h.b16 %v4956
        %v5008 = vunpack.c.l.b16 %v4957
        %v5009 = vunpack.c.h.b16 %v4957
        %v5010 = vunpack.c.l.b16 %v4958
        %v5011 = vunpack.c.h.b16 %v4958
        %v5012 = vunpack.c.l.b16 %v4959
        %v5013 = vunpack.c.h.b16 %v4959
        %v5014 = vunpack.c.l.b16 %v4960
        %v5015 = vunpack.c.h.b16 %v4960
        %v5016 = vunpack.c.l.b16 %v4961
        %v5017 = vunpack.c.h.b16 %v4961
        %v5018 = vunpack.c.l.b16 %v4962
        %v5019 = vunpack.c.h.b16 %v4962
        %v5020 = vunpack.c.l.b16 %v4963
        %v5021 = vunpack.c.h.b16 %v4963
        %v5022 = vunpack.c.l.b16 %v4964
        %v5023 = vunpack.c.h.b16 %v4964
        %v5024 = vunpack.c.l.b16 %v4965
        %v5025 = vunpack.c.h.b16 %v4965
        %v5026 = vpack.c.b16 %v4996, %v4994
        %v5027 = vpack.c.b16 %v4997, %v4995
        %v5028 = vpack.c.b16 %v5000, %v4998
        %v5029 = vpack.c.b16 %v5001, %v4999
        %v5030 = vpack.c.b16 %v5004, %v5002
        %v5031 = vpack.c.b16 %v5005, %v5003
        %v5032 = vpack.c.b16 %v5008, %v5006
        %v5033 = vpack.c.b16 %v5009, %v5007
        %v5034 = vpack.c.b16 %v5012, %v5010
        %v5035 = vpack.c.b16 %v5013, %v5011
        %v5036 = vpack.c.b16 %v5016, %v5014
        %v5037 = vpack.c.b16 %v5017, %v5015
        %v5038 = vpack.c.b16 %v5020, %v5018
        %v5039 = vpack.c.b16 %v5021, %v5019
        %v5040 = vpack.c.b16 %v5024, %v5022
        %v5041 = vpack.c.b16 %v5025, %v5023
        %5058 = vmatprep.subr.bf16.mxu0 %v5041
        %5059 = vmatpush1.bf16.msra.mxu0 %v5040
        %5060 = vmatprep.subr.bf16.mxu0 %v5039
        %5061 = vmatpush1.bf16.msra.mxu0 %v5038
        %5062 = vmatprep.subr.bf16.mxu0 %v5037
        %5063 = vmatpush1.bf16.msra.mxu0 %v5036
        %5064 = vmatprep.subr.bf16.mxu0 %v5035
        %5065 = vmatpush1.bf16.msra.mxu0 %v5034
        %5066 = vmatprep.subr.bf16.mxu0 %v5033
        %5067 = vmatpush1.bf16.msra.mxu0 %v5032
        %5068 = vmatprep.subr.bf16.mxu0 %v5031
        %5069 = vmatpush1.bf16.msra.mxu0 %v5030
        %5070 = vmatprep.subr.bf16.mxu0 %v5029
        %5071 = vmatpush1.bf16.msra.mxu0 %v5028
        %5072 = vmatprep.subr.bf16.mxu0 %v5027
        %5073 = vmatpush1.bf16.msra.mxu0 %v5026
        %5074 = vmatprep.subr.bf16.mxu0 0
        %5075 = vmatpush2.bf16.msra.mxu0 0
        %5076 = vmatprep.subr.bf16.mxu0 0
        %5077 = vmatpush2.bf16.msra.mxu0 0
        %5078 = vmatprep.subr.bf16.mxu0 0
        %5079 = vmatpush2.bf16.msra.mxu0 0
        %5080 = vmatprep.subr.bf16.mxu0 0
        %5081 = vmatpush2.bf16.msra.mxu0 0
        %5082 = vmatprep.subr.bf16.mxu0 0
        %5083 = vmatpush2.bf16.msra.mxu0 0
        %5084 = vmatprep.subr.bf16.mxu0 0
        %5085 = vmatpush2.bf16.msra.mxu0 0
        %5086 = vmatprep.subr.bf16.mxu0 0
        %5087 = vmatpush2.bf16.msra.mxu0 0
        %5088 = vmatprep.subr.bf16.mxu0 0
        %5089 = vmatpush2.bf16.msra.mxu0 0
        %5090 = vmatprep.mubr.bf16.mxu0 0
        %5091 = vmatmul.mubr.bf16.gmra.mxu0 %v4934
        %v5092 = vpop.f32.mrf.mxu0
        %v5093 = vadd.f32 %v4971, %v5092
        %v5094 = vpop.f32.mrf.mxu0
        %v5095 = vadd.f32 %v4975, %v5094
        %v5096 = vpop.f32.mrf.mxu0
        %v5097 = vadd.f32 %v4971, %v5096
        %v5098 = vpop.f32.mrf.mxu0
        %v5099 = vadd.f32 %v4975, %v5098
        %5100 = vmatprep.mubr.bf16.mxu0 0
        %5101 = vmatmul.mubr.bf16.gmra.mxu0 %v4935
        %v5102 = vpop.f32.mrf.mxu0
        %v5103 = vadd.f32 %v4971, %v5102
        %v5104 = vpop.f32.mrf.mxu0
        %v5105 = vadd.f32 %v4975, %v5104
        %v5106 = vpop.f32.mrf.mxu0
        %v5107 = vadd.f32 %v4971, %v5106
        %v5108 = vpop.f32.mrf.mxu0
        %v5109 = vadd.f32 %v4975, %v5108
        %5110 = vmatprep.mubr.bf16.mxu0 0
        %5111 = vmatmul.mubr.bf16.gmra.mxu0 %v4936
        %v5112 = vpop.f32.mrf.mxu0
        %v5113 = vadd.f32 %v4971, %v5112
        %v5114 = vpop.f32.mrf.mxu0
        %v5115 = vadd.f32 %v4975, %v5114
        %v5116 = vpop.f32.mrf.mxu0
        %v5117 = vadd.f32 %v4971, %v5116
        %v5118 = vpop.f32.mrf.mxu0
        %v5119 = vadd.f32 %v4975, %v5118
        %5120 = vmatprep.mubr.bf16.mxu0 0
        %5121 = vmatmul.mubr.bf16.gmra.mxu0 %v4937
        %v5122 = vpop.f32.mrf.mxu0
        %v5123 = vadd.f32 %v4971, %v5122
        %v5124 = vpop.f32.mrf.mxu0
        %v5125 = vadd.f32 %v4975, %v5124
        %v5126 = vpop.f32.mrf.mxu0
        %v5127 = vadd.f32 %v4971, %v5126
        %v5128 = vpop.f32.mrf.mxu0
        %v5129 = vadd.f32 %v4975, %v5128
        %5130 = vmatprep.mubr.bf16.mxu0 0
        %5131 = vmatmul.mubr.bf16.gmra.mxu0 %v4938
        %v5132 = vpop.f32.mrf.mxu0
        %v5133 = vadd.f32 %v4971, %v5132
        %v5134 = vpop.f32.mrf.mxu0
        %v5135 = vadd.f32 %v4975, %v5134
        %v5136 = vpop.f32.mrf.mxu0
        %v5137 = vadd.f32 %v4971, %v5136
        %v5138 = vpop.f32.mrf.mxu0
        %v5139 = vadd.f32 %v4975, %v5138
        %5140 = vmatprep.mubr.bf16.mxu0 0
        %5141 = vmatmul.mubr.bf16.gmra.mxu0 %v4939
        %v5142 = vpop.f32.mrf.mxu0
        %v5143 = vadd.f32 %v4971, %v5142
        %v5144 = vpop.f32.mrf.mxu0
        %v5145 = vadd.f32 %v4975, %v5144
        %v5146 = vpop.f32.mrf.mxu0
        %v5147 = vadd.f32 %v4971, %v5146
        %v5148 = vpop.f32.mrf.mxu0
        %v5149 = vadd.f32 %v4975, %v5148
        %5150 = vmatprep.mubr.bf16.mxu0 0
        %5151 = vmatmul.mubr.bf16.gmra.mxu0 %v4940
        %v5152 = vpop.f32.mrf.mxu0
        %v5153 = vadd.f32 %v4971, %v5152
        %v5154 = vpop.f32.mrf.mxu0
        %v5155 = vadd.f32 %v4975, %v5154
        %v5156 = vpop.f32.mrf.mxu0
        %v5157 = vadd.f32 %v4971, %v5156
        %v5158 = vpop.f32.mrf.mxu0
        %v5159 = vadd.f32 %v4975, %v5158
        %5160 = vmatprep.mubr.bf16.mxu0 0
        %5161 = vmatmul.mubr.bf16.gmra.mxu0 %v4941
        %v5162 = vpop.f32.mrf.mxu0
        %v5163 = vadd.f32 %v4971, %v5162
        %v5164 = vpop.f32.mrf.mxu0
        %v5165 = vadd.f32 %v4975, %v5164
        %v5166 = vpop.f32.mrf.mxu0
        %v5167 = vadd.f32 %v4971, %v5166
        %v5168 = vpop.f32.mrf.mxu0
        %v5169 = vadd.f32 %v4975, %v5168
        %5170 = vmatprep.mubr.bf16.mxu0 0
        %5171 = vmatmul.mubr.bf16.gmra.mxu0 %v4942
        %v5172 = vpop.f32.mrf.mxu0
        %v5173 = vadd.f32 %v4971, %v5172
        %v5174 = vpop.f32.mrf.mxu0
        %v5175 = vadd.f32 %v4975, %v5174
        %v5176 = vpop.f32.mrf.mxu0
        %v5177 = vadd.f32 %v4971, %v5176
        %v5178 = vpop.f32.mrf.mxu0
        %v5179 = vadd.f32 %v4975, %v5178
        %5180 = vmatprep.mubr.bf16.mxu0 0
        %5181 = vmatmul.mubr.bf16.gmra.mxu0 %v4943
        %v5182 = vpop.f32.mrf.mxu0
        %v5183 = vadd.f32 %v4971, %v5182
        %v5184 = vpop.f32.mrf.mxu0
        %v5185 = vadd.f32 %v4975, %v5184
        %v5186 = vpop.f32.mrf.mxu0
        %v5187 = vadd.f32 %v4971, %v5186
        %v5188 = vpop.f32.mrf.mxu0
        %v5189 = vadd.f32 %v4975, %v5188
        %5190 = vmatprep.mubr.bf16.mxu0 0
        %5191 = vmatmul.mubr.bf16.gmra.mxu0 %v4944
        %v5192 = vpop.f32.mrf.mxu0
        %v5193 = vadd.f32 %v4971, %v5192
        %v5194 = vpop.f32.mrf.mxu0
        %v5195 = vadd.f32 %v4975, %v5194
        %v5196 = vpop.f32.mrf.mxu0
        %v5197 = vadd.f32 %v4971, %v5196
        %v5198 = vpop.f32.mrf.mxu0
        %v5199 = vadd.f32 %v4975, %v5198
        %5200 = vmatprep.mubr.bf16.mxu0 0
        %5201 = vmatmul.mubr.bf16.gmra.mxu0 %v4945
        %v5202 = vpop.f32.mrf.mxu0
        %v5203 = vadd.f32 %v4971, %v5202
        %v5204 = vpop.f32.mrf.mxu0
        %v5205 = vadd.f32 %v4975, %v5204
        %v5206 = vpop.f32.mrf.mxu0
        %v5207 = vadd.f32 %v4971, %v5206
        %v5208 = vpop.f32.mrf.mxu0
        %v5209 = vadd.f32 %v4975, %v5208
        %5210 = vmatprep.mubr.bf16.mxu0 0
        %5211 = vmatmul.mubr.bf16.gmra.mxu0 %v4946
        %v5212 = vpop.f32.mrf.mxu0
        %v5213 = vadd.f32 %v4971, %v5212
        %v5214 = vpop.f32.mrf.mxu0
        %v5215 = vadd.f32 %v4975, %v5214
        %v5216 = vpop.f32.mrf.mxu0
        %v5217 = vadd.f32 %v4971, %v5216
        %v5218 = vpop.f32.mrf.mxu0
        %v5219 = vadd.f32 %v4975, %v5218
        %5220 = vmatprep.mubr.bf16.mxu0 0
        %5221 = vmatmul.mubr.bf16.gmra.mxu0 %v4947
        %v5222 = vpop.f32.mrf.mxu0
        %v5223 = vadd.f32 %v4971, %v5222
        %v5224 = vpop.f32.mrf.mxu0
        %v5225 = vadd.f32 %v4975, %v5224
        %v5226 = vpop.f32.mrf.mxu0
        %v5227 = vadd.f32 %v4971, %v5226
        %v5228 = vpop.f32.mrf.mxu0
        %v5229 = vadd.f32 %v4975, %v5228
        %5230 = vmatprep.mubr.bf16.mxu0 0
        %5231 = vmatmul.mubr.bf16.gmra.mxu0 %v4948
        %v5232 = vpop.f32.mrf.mxu0
        %v5233 = vadd.f32 %v4971, %v5232
        %v5234 = vpop.f32.mrf.mxu0
        %v5235 = vadd.f32 %v4975, %v5234
        %v5236 = vpop.f32.mrf.mxu0
        %v5237 = vadd.f32 %v4971, %v5236
        %v5238 = vpop.f32.mrf.mxu0
        %v5239 = vadd.f32 %v4975, %v5238
        %5240 = vmatprep.mubr.bf16.mxu0 0
        %5241 = vmatmul.mubr.bf16.gmra.mxu0 %v4949
        %v5242 = vpop.f32.mrf.mxu0
        %v5243 = vadd.f32 %v4971, %v5242
        %v5244 = vpop.f32.mrf.mxu0
        %v5245 = vadd.f32 %v4975, %v5244
        %v5246 = vpop.f32.mrf.mxu0
        %v5247 = vadd.f32 %v4971, %v5246
        %v5248 = vpop.f32.mrf.mxu0
        %v5249 = vadd.f32 %v4975, %v5248
        %5250 = vdwg.mxu0
        %v5251 = vmul.f32 %v5093, 0.5
        %v5252 = vmul.f32 %v5095, 0.5
        %v5253 = vmul.f32 %v5097, 0.5
        %v5254 = vmul.f32 %v5099, 0.5
        %v5255 = vmul.f32 %v5103, 0.5
        %v5256 = vmul.f32 %v5105, 0.5
        %v5257 = vmul.f32 %v5107, 0.5
        %v5258 = vmul.f32 %v5109, 0.5
        %v5259 = vmul.f32 %v5113, 0.5
        %v5260 = vmul.f32 %v5115, 0.5
        %v5261 = vmul.f32 %v5117, 0.5
        %v5262 = vmul.f32 %v5119, 0.5
        %v5263 = vmul.f32 %v5123, 0.5
        %v5264 = vmul.f32 %v5125, 0.5
        %v5265 = vmul.f32 %v5127, 0.5
        %v5266 = vmul.f32 %v5129, 0.5
        %v5267 = vmul.f32 %v5133, 0.5
        %v5268 = vmul.f32 %v5135, 0.5
        %v5269 = vmul.f32 %v5137, 0.5
        %v5270 = vmul.f32 %v5139, 0.5
        %v5271 = vmul.f32 %v5143, 0.5
        %v5272 = vmul.f32 %v5145, 0.5
        %v5273 = vmul.f32 %v5147, 0.5
        %v5274 = vmul.f32 %v5149, 0.5
        %v5275 = vmul.f32 %v5153, 0.5
        %v5276 = vmul.f32 %v5155, 0.5
        %v5277 = vmul.f32 %v5157, 0.5
        %v5278 = vmul.f32 %v5159, 0.5
        %v5279 = vmul.f32 %v5163, 0.5
        %v5280 = vmul.f32 %v5165, 0.5
        %v5281 = vmul.f32 %v5167, 0.5
        %v5282 = vmul.f32 %v5169, 0.5
        %v5283 = vmul.f32 %v5173, 0.5
        %v5284 = vmul.f32 %v5175, 0.5
        %v5285 = vmul.f32 %v5177, 0.5
        %v5286 = vmul.f32 %v5179, 0.5
        %v5287 = vmul.f32 %v5183, 0.5
        %v5288 = vmul.f32 %v5185, 0.5
        %v5289 = vmul.f32 %v5187, 0.5
        %v5290 = vmul.f32 %v5189, 0.5
        %v5291 = vmul.f32 %v5193, 0.5
        %v5292 = vmul.f32 %v5195, 0.5
        %v5293 = vmul.f32 %v5197, 0.5
        %v5294 = vmul.f32 %v5199, 0.5
        %v5295 = vmul.f32 %v5203, 0.5
        %v5296 = vmul.f32 %v5205, 0.5
        %v5297 = vmul.f32 %v5207, 0.5
        %v5298 = vmul.f32 %v5209, 0.5
        %v5299 = vmul.f32 %v5213, 0.5
        %v5300 = vmul.f32 %v5215, 0.5
        %v5301 = vmul.f32 %v5217, 0.5
        %v5302 = vmul.f32 %v5219, 0.5
        %v5303 = vmul.f32 %v5223, 0.5
        %v5304 = vmul.f32 %v5225, 0.5
        %v5305 = vmul.f32 %v5227, 0.5
        %v5306 = vmul.f32 %v5229, 0.5
        %v5307 = vmul.f32 %v5233, 0.5
        %v5308 = vmul.f32 %v5235, 0.5
        %v5309 = vmul.f32 %v5237, 0.5
        %v5310 = vmul.f32 %v5239, 0.5
        %v5311 = vmul.f32 %v5243, 0.5
        %v5312 = vmul.f32 %v5245, 0.5
        %v5313 = vmul.f32 %v5247, 0.5
        %v5314 = vmul.f32 %v5249, 0.5
        %v5315 = vmul.f32 %v5093, 0.70710677
        %v5316 = vmul.f32 %v5095, 0.70710677
        %v5317 = vmul.f32 %v5097, 0.70710677
        %v5318 = vmul.f32 %v5099, 0.70710677
        %v5319 = vmul.f32 %v5103, 0.70710677
        %v5320 = vmul.f32 %v5105, 0.70710677
        %v5321 = vmul.f32 %v5107, 0.70710677
        %v5322 = vmul.f32 %v5109, 0.70710677
        %v5323 = vmul.f32 %v5113, 0.70710677
        %v5324 = vmul.f32 %v5115, 0.70710677
        %v5325 = vmul.f32 %v5117, 0.70710677
        %v5326 = vmul.f32 %v5119, 0.70710677
        %v5327 = vmul.f32 %v5123, 0.70710677
        %v5328 = vmul.f32 %v5125, 0.70710677
        %v5329 = vmul.f32 %v5127, 0.70710677
        %v5330 = vmul.f32 %v5129, 0.70710677
        %v5331 = vmul.f32 %v5133, 0.70710677
        %v5332 = vmul.f32 %v5135, 0.70710677
        %v5333 = vmul.f32 %v5137, 0.70710677
        %v5334 = vmul.f32 %v5139, 0.70710677
        %v5335 = vmul.f32 %v5143, 0.70710677
        %v5336 = vmul.f32 %v5145, 0.70710677
        %v5337 = vmul.f32 %v5147, 0.70710677
        %v5338 = vmul.f32 %v5149, 0.70710677
        %v5339 = vmul.f32 %v5153, 0.70710677
        %v5340 = vmul.f32 %v5155, 0.70710677
        %v5341 = vmul.f32 %v5157, 0.70710677
        %v5342 = vmul.f32 %v5159, 0.70710677
        %v5343 = vmul.f32 %v5163, 0.70710677
        %v5344 = vmul.f32 %v5165, 0.70710677
        %v5345 = vmul.f32 %v5167, 0.70710677
        %v5346 = vmul.f32 %v5169, 0.70710677
        %v5347 = vmul.f32 %v5173, 0.70710677
        %v5348 = vmul.f32 %v5175, 0.70710677
        %v5349 = vmul.f32 %v5177, 0.70710677
        %v5350 = vmul.f32 %v5179, 0.70710677
        %v5351 = vmul.f32 %v5183, 0.70710677
        %v5352 = vmul.f32 %v5185, 0.70710677
        %v5353 = vmul.f32 %v5187, 0.70710677
        %v5354 = vmul.f32 %v5189, 0.70710677
        %v5355 = vmul.f32 %v5193, 0.70710677
        %v5356 = vmul.f32 %v5195, 0.70710677
        %v5357 = vmul.f32 %v5197, 0.70710677
        %v5358 = vmul.f32 %v5199, 0.70710677
        %v5359 = vmul.f32 %v5203, 0.70710677
        %v5360 = vmul.f32 %v5205, 0.70710677
        %v5361 = vmul.f32 %v5207, 0.70710677
        %v5362 = vmul.f32 %v5209, 0.70710677
        %v5363 = vmul.f32 %v5213, 0.70710677
        %v5364 = vmul.f32 %v5215, 0.70710677
        %v5365 = vmul.f32 %v5217, 0.70710677
        %v5366 = vmul.f32 %v5219, 0.70710677
        %v5367 = vmul.f32 %v5223, 0.70710677
        %v5368 = vmul.f32 %v5225, 0.70710677
        %v5369 = vmul.f32 %v5227, 0.70710677
        %v5370 = vmul.f32 %v5229, 0.70710677
        %v5371 = vmul.f32 %v5233, 0.70710677
        %v5372 = vmul.f32 %v5235, 0.70710677
        %v5373 = vmul.f32 %v5237, 0.70710677
        %v5374 = vmul.f32 %v5239, 0.70710677
        %v5375 = vmul.f32 %v5243, 0.70710677
        %v5376 = vmul.f32 %v5245, 0.70710677
        %v5377 = vmul.f32 %v5247, 0.70710677
        %v5378 = vmul.f32 %v5249, 0.70710677
        %v5379 = vand.u32 2147483647, %v5315
        %v5380 = vand.u32 2147483647, %v5316
        %v5381 = vand.u32 2147483647, %v5317
        %v5382 = vand.u32 2147483647, %v5318
        %v5383 = vand.u32 2147483647, %v5319
        %v5384 = vand.u32 2147483647, %v5320
        %v5385 = vand.u32 2147483647, %v5321
        %v5386 = vand.u32 2147483647, %v5322
        %v5387 = vand.u32 2147483647, %v5323
        %v5388 = vand.u32 2147483647, %v5324
        %v5389 = vand.u32 2147483647, %v5325
        %v5390 = vand.u32 2147483647, %v5326
        %v5391 = vand.u32 2147483647, %v5327
        %v5392 = vand.u32 2147483647, %v5328
        %v5393 = vand.u32 2147483647, %v5329
        %v5394 = vand.u32 2147483647, %v5330
        %v5395 = vand.u32 2147483647, %v5331
        %v5396 = vand.u32 2147483647, %v5332
        %v5397 = vand.u32 2147483647, %v5333
        %v5398 = vand.u32 2147483647, %v5334
        %v5399 = vand.u32 2147483647, %v5335
        %v5400 = vand.u32 2147483647, %v5336
        %v5401 = vand.u32 2147483647, %v5337
        %v5402 = vand.u32 2147483647, %v5338
        %v5403 = vand.u32 2147483647, %v5339
        %v5404 = vand.u32 2147483647, %v5340
        %v5405 = vand.u32 2147483647, %v5341
        %v5406 = vand.u32 2147483647, %v5342
        %v5407 = vand.u32 2147483647, %v5343
        %v5408 = vand.u32 2147483647, %v5344
        %v5409 = vand.u32 2147483647, %v5345
        %v5410 = vand.u32 2147483647, %v5346
        %v5411 = vand.u32 2147483647, %v5347
        %v5412 = vand.u32 2147483647, %v5348
        %v5413 = vand.u32 2147483647, %v5349
        %v5414 = vand.u32 2147483647, %v5350
        %v5415 = vand.u32 2147483647, %v5351
        %v5416 = vand.u32 2147483647, %v5352
        %v5417 = vand.u32 2147483647, %v5353
        %v5418 = vand.u32 2147483647, %v5354
        %v5419 = vand.u32 2147483647, %v5355
        %v5420 = vand.u32 2147483647, %v5356
        %v5421 = vand.u32 2147483647, %v5357
        %v5422 = vand.u32 2147483647, %v5358
        %v5423 = vand.u32 2147483647, %v5359
        %v5424 = vand.u32 2147483647, %v5360
        %v5425 = vand.u32 2147483647, %v5361
        %v5426 = vand.u32 2147483647, %v5362
        %v5427 = vand.u32 2147483647, %v5363
        %v5428 = vand.u32 2147483647, %v5364
        %v5429 = vand.u32 2147483647, %v5365
        %v5430 = vand.u32 2147483647, %v5366
        %v5431 = vand.u32 2147483647, %v5367
        %v5432 = vand.u32 2147483647, %v5368
        %v5433 = vand.u32 2147483647, %v5369
        %v5434 = vand.u32 2147483647, %v5370
        %v5435 = vand.u32 2147483647, %v5371
        %v5436 = vand.u32 2147483647, %v5372
        %v5437 = vand.u32 2147483647, %v5373
        %v5438 = vand.u32 2147483647, %v5374
        %v5439 = vand.u32 2147483647, %v5375
        %v5440 = vand.u32 2147483647, %v5376
        %v5441 = vand.u32 2147483647, %v5377
        %v5442 = vand.u32 2147483647, %v5378
        %v5443 = vmul.f32 %v5379, 0.3275911
        %v5444 = vmul.f32 %v5380, 0.3275911
        %v5445 = vmul.f32 %v5381, 0.3275911
        %v5446 = vmul.f32 %v5382, 0.3275911
        %v5447 = vmul.f32 %v5383, 0.3275911
        %v5448 = vmul.f32 %v5384, 0.3275911
        %v5449 = vmul.f32 %v5385, 0.3275911
        %v5450 = vmul.f32 %v5386, 0.3275911
        %v5451 = vmul.f32 %v5387, 0.3275911
        %v5452 = vmul.f32 %v5388, 0.3275911
        %v5453 = vmul.f32 %v5389, 0.3275911
        %v5454 = vmul.f32 %v5390, 0.3275911
        %v5455 = vmul.f32 %v5391, 0.3275911
        %v5456 = vmul.f32 %v5392, 0.3275911
        %v5457 = vmul.f32 %v5393, 0.3275911
        %v5458 = vmul.f32 %v5394, 0.3275911
        %v5459 = vmul.f32 %v5395, 0.3275911
        %v5460 = vmul.f32 %v5396, 0.3275911
        %v5461 = vmul.f32 %v5397, 0.3275911
        %v5462 = vmul.f32 %v5398, 0.3275911
        %v5463 = vmul.f32 %v5399, 0.3275911
        %v5464 = vmul.f32 %v5400, 0.3275911
        %v5465 = vmul.f32 %v5401, 0.3275911
        %v5466 = vmul.f32 %v5402, 0.3275911
        %v5467 = vmul.f32 %v5403, 0.3275911
        %v5468 = vmul.f32 %v5404, 0.3275911
        %v5469 = vmul.f32 %v5405, 0.3275911
        %v5470 = vmul.f32 %v5406, 0.3275911
        %v5471 = vmul.f32 %v5407, 0.3275911
        %v5472 = vmul.f32 %v5408, 0.3275911
        %v5473 = vmul.f32 %v5409, 0.3275911
        %v5474 = vmul.f32 %v5410, 0.3275911
        %v5475 = vmul.f32 %v5411, 0.3275911
        %v5476 = vmul.f32 %v5412, 0.3275911
        %v5477 = vmul.f32 %v5413, 0.3275911
        %v5478 = vmul.f32 %v5414, 0.3275911
        %v5479 = vmul.f32 %v5415, 0.3275911
        %v5480 = vmul.f32 %v5416, 0.3275911
        %v5481 = vmul.f32 %v5417, 0.3275911
        %v5482 = vmul.f32 %v5418, 0.3275911
        %v5483 = vmul.f32 %v5419, 0.3275911
        %v5484 = vmul.f32 %v5420, 0.3275911
        %v5485 = vmul.f32 %v5421, 0.3275911
        %v5486 = vmul.f32 %v5422, 0.3275911
        %v5487 = vmul.f32 %v5423, 0.3275911
        %v5488 = vmul.f32 %v5424, 0.3275911
        %v5489 = vmul.f32 %v5425, 0.3275911
        %v5490 = vmul.f32 %v5426, 0.3275911
        %v5491 = vmul.f32 %v5427, 0.3275911
        %v5492 = vmul.f32 %v5428, 0.3275911
        %v5493 = vmul.f32 %v5429, 0.3275911
        %v5494 = vmul.f32 %v5430, 0.3275911
        %v5495 = vmul.f32 %v5431, 0.3275911
        %v5496 = vmul.f32 %v5432, 0.3275911
        %v5497 = vmul.f32 %v5433, 0.3275911
        %v5498 = vmul.f32 %v5434, 0.3275911
        %v5499 = vmul.f32 %v5435, 0.3275911
        %v5500 = vmul.f32 %v5436, 0.3275911
        %v5501 = vmul.f32 %v5437, 0.3275911
        %v5502 = vmul.f32 %v5438, 0.3275911
        %v5503 = vmul.f32 %v5439, 0.3275911
        %v5504 = vmul.f32 %v5440, 0.3275911
        %v5505 = vmul.f32 %v5441, 0.3275911
        %v5506 = vmul.f32 %v5442, 0.3275911
        %v5507 = vadd.f32 %v5443, 1.0
        %v5508 = vadd.f32 %v5444, 1.0
        %v5509 = vadd.f32 %v5445, 1.0
        %v5510 = vadd.f32 %v5446, 1.0
        %v5511 = vadd.f32 %v5447, 1.0
        %v5512 = vadd.f32 %v5448, 1.0
        %v5513 = vadd.f32 %v5449, 1.0
        %v5514 = vadd.f32 %v5450, 1.0
        %v5515 = vadd.f32 %v5451, 1.0
        %v5516 = vadd.f32 %v5452, 1.0
        %v5517 = vadd.f32 %v5453, 1.0
        %v5518 = vadd.f32 %v5454, 1.0
        %v5519 = vadd.f32 %v5455, 1.0
        %v5520 = vadd.f32 %v5456, 1.0
        %v5521 = vadd.f32 %v5457, 1.0
        %v5522 = vadd.f32 %v5458, 1.0
        %v5523 = vadd.f32 %v5459, 1.0
        %v5524 = vadd.f32 %v5460, 1.0
        %v5525 = vadd.f32 %v5461, 1.0
        %v5526 = vadd.f32 %v5462, 1.0
        %v5527 = vadd.f32 %v5463, 1.0
        %v5528 = vadd.f32 %v5464, 1.0
        %v5529 = vadd.f32 %v5465, 1.0
        %v5530 = vadd.f32 %v5466, 1.0
        %v5531 = vadd.f32 %v5467, 1.0
        %v5532 = vadd.f32 %v5468, 1.0
        %v5533 = vadd.f32 %v5469, 1.0
        %v5534 = vadd.f32 %v5470, 1.0
        %v5535 = vadd.f32 %v5471, 1.0
        %v5536 = vadd.f32 %v5472, 1.0
        %v5537 = vadd.f32 %v5473, 1.0
        %v5538 = vadd.f32 %v5474, 1.0
        %v5539 = vadd.f32 %v5475, 1.0
        %v5540 = vadd.f32 %v5476, 1.0
        %v5541 = vadd.f32 %v5477, 1.0
        %v5542 = vadd.f32 %v5478, 1.0
        %v5543 = vadd.f32 %v5479, 1.0
        %v5544 = vadd.f32 %v5480, 1.0
        %v5545 = vadd.f32 %v5481, 1.0
        %v5546 = vadd.f32 %v5482, 1.0
        %v5547 = vadd.f32 %v5483, 1.0
        %v5548 = vadd.f32 %v5484, 1.0
        %v5549 = vadd.f32 %v5485, 1.0
        %v5550 = vadd.f32 %v5486, 1.0
        %v5551 = vadd.f32 %v5487, 1.0
        %v5552 = vadd.f32 %v5488, 1.0
        %v5553 = vadd.f32 %v5489, 1.0
        %v5554 = vadd.f32 %v5490, 1.0
        %v5555 = vadd.f32 %v5491, 1.0
        %v5556 = vadd.f32 %v5492, 1.0
        %v5557 = vadd.f32 %v5493, 1.0
        %v5558 = vadd.f32 %v5494, 1.0
        %v5559 = vadd.f32 %v5495, 1.0
        %v5560 = vadd.f32 %v5496, 1.0
        %v5561 = vadd.f32 %v5497, 1.0
        %v5562 = vadd.f32 %v5498, 1.0
        %v5563 = vadd.f32 %v5499, 1.0
        %v5564 = vadd.f32 %v5500, 1.0
        %v5565 = vadd.f32 %v5501, 1.0
        %v5566 = vadd.f32 %v5502, 1.0
        %v5567 = vadd.f32 %v5503, 1.0
        %v5568 = vadd.f32 %v5504, 1.0
        %v5569 = vadd.f32 %v5505, 1.0
        %v5570 = vadd.f32 %v5506, 1.0
        %v5571 = vrcp.pop %v5507
        %v5572 = vmul.f32 1.0, %v5571
        %v5573 = vrcp.pop %v5508
        %v5574 = vmul.f32 1.0, %v5573
        %v5575 = vrcp.pop %v5509
        %v5576 = vmul.f32 1.0, %v5575
        %v5577 = vrcp.pop %v5510
        %v5578 = vmul.f32 1.0, %v5577
        %v5579 = vrcp.pop %v5511
        %v5580 = vmul.f32 1.0, %v5579
        %v5581 = vrcp.pop %v5512
        %v5582 = vmul.f32 1.0, %v5581
        %v5583 = vrcp.pop %v5513
        %v5584 = vmul.f32 1.0, %v5583
        %v5585 = vrcp.pop %v5514
        %v5586 = vmul.f32 1.0, %v5585
        %v5587 = vrcp.pop %v5515
        %v5588 = vmul.f32 1.0, %v5587
        %v5589 = vrcp.pop %v5516
        %v5590 = vmul.f32 1.0, %v5589
        %v5591 = vrcp.pop %v5517
        %v5592 = vmul.f32 1.0, %v5591
        %v5593 = vrcp.pop %v5518
        %v5594 = vmul.f32 1.0, %v5593
        %v5595 = vrcp.pop %v5519
        %v5596 = vmul.f32 1.0, %v5595
        %v5597 = vrcp.pop %v5520
        %v5598 = vmul.f32 1.0, %v5597
        %v5599 = vrcp.pop %v5521
        %v5600 = vmul.f32 1.0, %v5599
        %v5601 = vrcp.pop %v5522
        %v5602 = vmul.f32 1.0, %v5601
        %v5603 = vrcp.pop %v5523
        %v5604 = vmul.f32 1.0, %v5603
        %v5605 = vrcp.pop %v5524
        %v5606 = vmul.f32 1.0, %v5605
        %v5607 = vrcp.pop %v5525
        %v5608 = vmul.f32 1.0, %v5607
        %v5609 = vrcp.pop %v5526
        %v5610 = vmul.f32 1.0, %v5609
        %v5611 = vrcp.pop %v5527
        %v5612 = vmul.f32 1.0, %v5611
        %v5613 = vrcp.pop %v5528
        %v5614 = vmul.f32 1.0, %v5613
        %v5615 = vrcp.pop %v5529
        %v5616 = vmul.f32 1.0, %v5615
        %v5617 = vrcp.pop %v5530
        %v5618 = vmul.f32 1.0, %v5617
        %v5619 = vrcp.pop %v5531
        %v5620 = vmul.f32 1.0, %v5619
        %v5621 = vrcp.pop %v5532
        %v5622 = vmul.f32 1.0, %v5621
        %v5623 = vrcp.pop %v5533
        %v5624 = vmul.f32 1.0, %v5623
        %v5625 = vrcp.pop %v5534
        %v5626 = vmul.f32 1.0, %v5625
        %v5627 = vrcp.pop %v5535
        %v5628 = vmul.f32 1.0, %v5627
        %v5629 = vrcp.pop %v5536
        %v5630 = vmul.f32 1.0, %v5629
        %v5631 = vrcp.pop %v5537
        %v5632 = vmul.f32 1.0, %v5631
        %v5633 = vrcp.pop %v5538
        %v5634 = vmul.f32 1.0, %v5633
        %v5635 = vrcp.pop %v5539
        %v5636 = vmul.f32 1.0, %v5635
        %v5637 = vrcp.pop %v5540
        %v5638 = vmul.f32 1.0, %v5637
        %v5639 = vrcp.pop %v5541
        %v5640 = vmul.f32 1.0, %v5639
        %v5641 = vrcp.pop %v5542
        %v5642 = vmul.f32 1.0, %v5641
        %v5643 = vrcp.pop %v5543
        %v5644 = vmul.f32 1.0, %v5643
        %v5645 = vrcp.pop %v5544
        %v5646 = vmul.f32 1.0, %v5645
        %v5647 = vrcp.pop %v5545
        %v5648 = vmul.f32 1.0, %v5647
        %v5649 = vrcp.pop %v5546
        %v5650 = vmul.f32 1.0, %v5649
        %v5651 = vrcp.pop %v5547
        %v5652 = vmul.f32 1.0, %v5651
        %v5653 = vrcp.pop %v5548
        %v5654 = vmul.f32 1.0, %v5653
        %v5655 = vrcp.pop %v5549
        %v5656 = vmul.f32 1.0, %v5655
        %v5657 = vrcp.pop %v5550
        %v5658 = vmul.f32 1.0, %v5657
        %v5659 = vrcp.pop %v5551
        %v5660 = vmul.f32 1.0, %v5659
        %v5661 = vrcp.pop %v5552
        %v5662 = vmul.f32 1.0, %v5661
        %v5663 = vrcp.pop %v5553
        %v5664 = vmul.f32 1.0, %v5663
        %v5665 = vrcp.pop %v5554
        %v5666 = vmul.f32 1.0, %v5665
        %v5667 = vrcp.pop %v5555
        %v5668 = vmul.f32 1.0, %v5667
        %v5669 = vrcp.pop %v5556
        %v5670 = vmul.f32 1.0, %v5669
        %v5671 = vrcp.pop %v5557
        %v5672 = vmul.f32 1.0, %v5671
        %v5673 = vrcp.pop %v5558
        %v5674 = vmul.f32 1.0, %v5673
        %v5675 = vrcp.pop %v5559
        %v5676 = vmul.f32 1.0, %v5675
        %v5677 = vrcp.pop %v5560
        %v5678 = vmul.f32 1.0, %v5677
        %v5679 = vrcp.pop %v5561
        %v5680 = vmul.f32 1.0, %v5679
        %v5681 = vrcp.pop %v5562
        %v5682 = vmul.f32 1.0, %v5681
        %v5683 = vrcp.pop %v5563
        %v5684 = vmul.f32 1.0, %v5683
        %v5685 = vrcp.pop %v5564
        %v5686 = vmul.f32 1.0, %v5685
        %v5687 = vrcp.pop %v5565
        %v5688 = vmul.f32 1.0, %v5687
        %v5689 = vrcp.pop %v5566
        %v5690 = vmul.f32 1.0, %v5689
        %v5691 = vrcp.pop %v5567
        %v5692 = vmul.f32 1.0, %v5691
        %v5693 = vrcp.pop %v5568
        %v5694 = vmul.f32 1.0, %v5693
        %v5695 = vrcp.pop %v5569
        %v5696 = vmul.f32 1.0, %v5695
        %v5697 = vrcp.pop %v5570
        %v5698 = vmul.f32 1.0, %v5697
        %v5699 = vmul.f32 %v5572, 1.0614054
        %v5700 = vmul.f32 %v5574, 1.0614054
        %v5701 = vmul.f32 %v5576, 1.0614054
        %v5702 = vmul.f32 %v5578, 1.0614054
        %v5703 = vmul.f32 %v5580, 1.0614054
        %v5704 = vmul.f32 %v5582, 1.0614054
        %v5705 = vmul.f32 %v5584, 1.0614054
        %v5706 = vmul.f32 %v5586, 1.0614054
        %v5707 = vmul.f32 %v5588, 1.0614054
        %v5708 = vmul.f32 %v5590, 1.0614054
        %v5709 = vmul.f32 %v5592, 1.0614054
        %v5710 = vmul.f32 %v5594, 1.0614054
        %v5711 = vmul.f32 %v5596, 1.0614054
        %v5712 = vmul.f32 %v5598, 1.0614054
        %v5713 = vmul.f32 %v5600, 1.0614054
        %v5714 = vmul.f32 %v5602, 1.0614054
        %v5715 = vmul.f32 %v5604, 1.0614054
        %v5716 = vmul.f32 %v5606, 1.0614054
        %v5717 = vmul.f32 %v5608, 1.0614054
        %v5718 = vmul.f32 %v5610, 1.0614054
        %v5719 = vmul.f32 %v5612, 1.0614054
        %v5720 = vmul.f32 %v5614, 1.0614054
        %v5721 = vmul.f32 %v5616, 1.0614054
        %v5722 = vmul.f32 %v5618, 1.0614054
        %v5723 = vmul.f32 %v5620, 1.0614054
        %v5724 = vmul.f32 %v5622, 1.0614054
        %v5725 = vmul.f32 %v5624, 1.0614054
        %v5726 = vmul.f32 %v5626, 1.0614054
        %v5727 = vmul.f32 %v5628, 1.0614054
        %v5728 = vmul.f32 %v5630, 1.0614054
        %v5729 = vmul.f32 %v5632, 1.0614054
        %v5730 = vmul.f32 %v5634, 1.0614054
        %v5731 = vmul.f32 %v5636, 1.0614054
        %v5732 = vmul.f32 %v5638, 1.0614054
        %v5733 = vmul.f32 %v5640, 1.0614054
        %v5734 = vmul.f32 %v5642, 1.0614054
        %v5735 = vmul.f32 %v5644, 1.0614054
        %v5736 = vmul.f32 %v5646, 1.0614054
        %v5737 = vmul.f32 %v5648, 1.0614054
        %v5738 = vmul.f32 %v5650, 1.0614054
        %v5739 = vmul.f32 %v5652, 1.0614054
        %v5740 = vmul.f32 %v5654, 1.0614054
        %v5741 = vmul.f32 %v5656, 1.0614054
        %v5742 = vmul.f32 %v5658, 1.0614054
        %v5743 = vmul.f32 %v5660, 1.0614054
        %v5744 = vmul.f32 %v5662, 1.0614054
        %v5745 = vmul.f32 %v5664, 1.0614054
        %v5746 = vmul.f32 %v5666, 1.0614054
        %v5747 = vmul.f32 %v5668, 1.0614054
        %v5748 = vmul.f32 %v5670, 1.0614054
        %v5749 = vmul.f32 %v5672, 1.0614054
        %v5750 = vmul.f32 %v5674, 1.0614054
        %v5751 = vmul.f32 %v5676, 1.0614054
        %v5752 = vmul.f32 %v5678, 1.0614054
        %v5753 = vmul.f32 %v5680, 1.0614054
        %v5754 = vmul.f32 %v5682, 1.0614054
        %v5755 = vmul.f32 %v5684, 1.0614054
        %v5756 = vmul.f32 %v5686, 1.0614054
        %v5757 = vmul.f32 %v5688, 1.0614054
        %v5758 = vmul.f32 %v5690, 1.0614054
        %v5759 = vmul.f32 %v5692, 1.0614054
        %v5760 = vmul.f32 %v5694, 1.0614054
        %v5761 = vmul.f32 %v5696, 1.0614054
        %v5762 = vmul.f32 %v5698, 1.0614054
        %v5763 = vsub.f32 %v5699, 1.4531521
        %v5764 = vsub.f32 %v5700, 1.4531521
        %v5765 = vsub.f32 %v5701, 1.4531521
        %v5766 = vsub.f32 %v5702, 1.4531521
        %v5767 = vsub.f32 %v5703, 1.4531521
        %v5768 = vsub.f32 %v5704, 1.4531521
        %v5769 = vsub.f32 %v5705, 1.4531521
        %v5770 = vsub.f32 %v5706, 1.4531521
        %v5771 = vsub.f32 %v5707, 1.4531521
        %v5772 = vsub.f32 %v5708, 1.4531521
        %v5773 = vsub.f32 %v5709, 1.4531521
        %v5774 = vsub.f32 %v5710, 1.4531521
        %v5775 = vsub.f32 %v5711, 1.4531521
        %v5776 = vsub.f32 %v5712, 1.4531521
        %v5777 = vsub.f32 %v5713, 1.4531521
        %v5778 = vsub.f32 %v5714, 1.4531521
        %v5779 = vsub.f32 %v5715, 1.4531521
        %v5780 = vsub.f32 %v5716, 1.4531521
        %v5781 = vsub.f32 %v5717, 1.4531521
        %v5782 = vsub.f32 %v5718, 1.4531521
        %v5783 = vsub.f32 %v5719, 1.4531521
        %v5784 = vsub.f32 %v5720, 1.4531521
        %v5785 = vsub.f32 %v5721, 1.4531521
        %v5786 = vsub.f32 %v5722, 1.4531521
        %v5787 = vsub.f32 %v5723, 1.4531521
        %v5788 = vsub.f32 %v5724, 1.4531521
        %v5789 = vsub.f32 %v5725, 1.4531521
        %v5790 = vsub.f32 %v5726, 1.4531521
        %v5791 = vsub.f32 %v5727, 1.4531521
        %v5792 = vsub.f32 %v5728, 1.4531521
        %v5793 = vsub.f32 %v5729, 1.4531521
        %v5794 = vsub.f32 %v5730, 1.4531521
        %v5795 = vsub.f32 %v5731, 1.4531521
        %v5796 = vsub.f32 %v5732, 1.4531521
        %v5797 = vsub.f32 %v5733, 1.4531521
        %v5798 = vsub.f32 %v5734, 1.4531521
        %v5799 = vsub.f32 %v5735, 1.4531521
        %v5800 = vsub.f32 %v5736, 1.4531521
        %v5801 = vsub.f32 %v5737, 1.4531521
        %v5802 = vsub.f32 %v5738, 1.4531521
        %v5803 = vsub.f32 %v5739, 1.4531521
        %v5804 = vsub.f32 %v5740, 1.4531521
        %v5805 = vsub.f32 %v5741, 1.4531521
        %v5806 = vsub.f32 %v5742, 1.4531521
        %v5807 = vsub.f32 %v5743, 1.4531521
        %v5808 = vsub.f32 %v5744, 1.4531521
        %v5809 = vsub.f32 %v5745, 1.4531521
        %v5810 = vsub.f32 %v5746, 1.4531521
        %v5811 = vsub.f32 %v5747, 1.4531521
        %v5812 = vsub.f32 %v5748, 1.4531521
        %v5813 = vsub.f32 %v5749, 1.4531521
        %v5814 = vsub.f32 %v5750, 1.4531521
        %v5815 = vsub.f32 %v5751, 1.4531521
        %v5816 = vsub.f32 %v5752, 1.4531521
        %v5817 = vsub.f32 %v5753, 1.4531521
        %v5818 = vsub.f32 %v5754, 1.4531521
        %v5819 = vsub.f32 %v5755, 1.4531521
        %v5820 = vsub.f32 %v5756, 1.4531521
        %v5821 = vsub.f32 %v5757, 1.4531521
        %v5822 = vsub.f32 %v5758, 1.4531521
        %v5823 = vsub.f32 %v5759, 1.4531521
        %v5824 = vsub.f32 %v5760, 1.4531521
        %v5825 = vsub.f32 %v5761, 1.4531521
        %v5826 = vsub.f32 %v5762, 1.4531521
        %v5827 = vmul.f32 %v5763, %v5572
        %v5828 = vmul.f32 %v5764, %v5574
        %v5829 = vmul.f32 %v5765, %v5576
        %v5830 = vmul.f32 %v5766, %v5578
        %v5831 = vmul.f32 %v5767, %v5580
        %v5832 = vmul.f32 %v5768, %v5582
        %v5833 = vmul.f32 %v5769, %v5584
        %v5834 = vmul.f32 %v5770, %v5586
        %v5835 = vmul.f32 %v5771, %v5588
        %v5836 = vmul.f32 %v5772, %v5590
        %v5837 = vmul.f32 %v5773, %v5592
        %v5838 = vmul.f32 %v5774, %v5594
        %v5839 = vmul.f32 %v5775, %v5596
        %v5840 = vmul.f32 %v5776, %v5598
        %v5841 = vmul.f32 %v5777, %v5600
        %v5842 = vmul.f32 %v5778, %v5602
        %v5843 = vmul.f32 %v5779, %v5604
        %v5844 = vmul.f32 %v5780, %v5606
        %v5845 = vmul.f32 %v5781, %v5608
        %v5846 = vmul.f32 %v5782, %v5610
        %v5847 = vmul.f32 %v5783, %v5612
        %v5848 = vmul.f32 %v5784, %v5614
        %v5849 = vmul.f32 %v5785, %v5616
        %v5850 = vmul.f32 %v5786, %v5618
        %v5851 = vmul.f32 %v5787, %v5620
        %v5852 = vmul.f32 %v5788, %v5622
        %v5853 = vmul.f32 %v5789, %v5624
        %v5854 = vmul.f32 %v5790, %v5626
        %v5855 = vmul.f32 %v5791, %v5628
        %v5856 = vmul.f32 %v5792, %v5630
        %v5857 = vmul.f32 %v5793, %v5632
        %v5858 = vmul.f32 %v5794, %v5634
        %v5859 = vmul.f32 %v5795, %v5636
        %v5860 = vmul.f32 %v5796, %v5638
        %v5861 = vmul.f32 %v5797, %v5640
        %v5862 = vmul.f32 %v5798, %v5642
        %v5863 = vmul.f32 %v5799, %v5644
        %v5864 = vmul.f32 %v5800, %v5646
        %v5865 = vmul.f32 %v5801, %v5648
        %v5866 = vmul.f32 %v5802, %v5650
        %v5867 = vmul.f32 %v5803, %v5652
        %v5868 = vmul.f32 %v5804, %v5654
        %v5869 = vmul.f32 %v5805, %v5656
        %v5870 = vmul.f32 %v5806, %v5658
        %v5871 = vmul.f32 %v5807, %v5660
        %v5872 = vmul.f32 %v5808, %v5662
        %v5873 = vmul.f32 %v5809, %v5664
        %v5874 = vmul.f32 %v5810, %v5666
        %v5875 = vmul.f32 %v5811, %v5668
        %v5876 = vmul.f32 %v5812, %v5670
        %v5877 = vmul.f32 %v5813, %v5672
        %v5878 = vmul.f32 %v5814, %v5674
        %v5879 = vmul.f32 %v5815, %v5676
        %v5880 = vmul.f32 %v5816, %v5678
        %v5881 = vmul.f32 %v5817, %v5680
        %v5882 = vmul.f32 %v5818, %v5682
        %v5883 = vmul.f32 %v5819, %v5684
        %v5884 = vmul.f32 %v5820, %v5686
        %v5885 = vmul.f32 %v5821, %v5688
        %v5886 = vmul.f32 %v5822, %v5690
        %v5887 = vmul.f32 %v5823, %v5692
        %v5888 = vmul.f32 %v5824, %v5694
        %v5889 = vmul.f32 %v5825, %v5696
        %v5890 = vmul.f32 %v5826, %v5698
        %v5891 = vadd.f32 %v5827, 1.4214138
        %v5892 = vadd.f32 %v5828, 1.4214138
        %v5893 = vadd.f32 %v5829, 1.4214138
        %v5894 = vadd.f32 %v5830, 1.4214138
        %v5895 = vadd.f32 %v5831, 1.4214138
        %v5896 = vadd.f32 %v5832, 1.4214138
        %v5897 = vadd.f32 %v5833, 1.4214138
        %v5898 = vadd.f32 %v5834, 1.4214138
        %v5899 = vadd.f32 %v5835, 1.4214138
        %v5900 = vadd.f32 %v5836, 1.4214138
        %v5901 = vadd.f32 %v5837, 1.4214138
        %v5902 = vadd.f32 %v5838, 1.4214138
        %v5903 = vadd.f32 %v5839, 1.4214138
        %v5904 = vadd.f32 %v5840, 1.4214138
        %v5905 = vadd.f32 %v5841, 1.4214138
        %v5906 = vadd.f32 %v5842, 1.4214138
        %v5907 = vadd.f32 %v5843, 1.4214138
        %v5908 = vadd.f32 %v5844, 1.4214138
        %v5909 = vadd.f32 %v5845, 1.4214138
        %v5910 = vadd.f32 %v5846, 1.4214138
        %v5911 = vadd.f32 %v5847, 1.4214138
        %v5912 = vadd.f32 %v5848, 1.4214138
        %v5913 = vadd.f32 %v5849, 1.4214138
        %v5914 = vadd.f32 %v5850, 1.4214138
        %v5915 = vadd.f32 %v5851, 1.4214138
        %v5916 = vadd.f32 %v5852, 1.4214138
        %v5917 = vadd.f32 %v5853, 1.4214138
        %v5918 = vadd.f32 %v5854, 1.4214138
        %v5919 = vadd.f32 %v5855, 1.4214138
        %v5920 = vadd.f32 %v5856, 1.4214138
        %v5921 = vadd.f32 %v5857, 1.4214138
        %v5922 = vadd.f32 %v5858, 1.4214138
        %v5923 = vadd.f32 %v5859, 1.4214138
        %v5924 = vadd.f32 %v5860, 1.4214138
        %v5925 = vadd.f32 %v5861, 1.4214138
        %v5926 = vadd.f32 %v5862, 1.4214138
        %v5927 = vadd.f32 %v5863, 1.4214138
        %v5928 = vadd.f32 %v5864, 1.4214138
        %v5929 = vadd.f32 %v5865, 1.4214138
        %v5930 = vadd.f32 %v5866, 1.4214138
        %v5931 = vadd.f32 %v5867, 1.4214138
        %v5932 = vadd.f32 %v5868, 1.4214138
        %v5933 = vadd.f32 %v5869, 1.4214138
        %v5934 = vadd.f32 %v5870, 1.4214138
        %v5935 = vadd.f32 %v5871, 1.4214138
        %v5936 = vadd.f32 %v5872, 1.4214138
        %v5937 = vadd.f32 %v5873, 1.4214138
        %v5938 = vadd.f32 %v5874, 1.4214138
        %v5939 = vadd.f32 %v5875, 1.4214138
        %v5940 = vadd.f32 %v5876, 1.4214138
        %v5941 = vadd.f32 %v5877, 1.4214138
        %v5942 = vadd.f32 %v5878, 1.4214138
        %v5943 = vadd.f32 %v5879, 1.4214138
        %v5944 = vadd.f32 %v5880, 1.4214138
        %v5945 = vadd.f32 %v5881, 1.4214138
        %v5946 = vadd.f32 %v5882, 1.4214138
        %v5947 = vadd.f32 %v5883, 1.4214138
        %v5948 = vadd.f32 %v5884, 1.4214138
        %v5949 = vadd.f32 %v5885, 1.4214138
        %v5950 = vadd.f32 %v5886, 1.4214138
        %v5951 = vadd.f32 %v5887, 1.4214138
        %v5952 = vadd.f32 %v5888, 1.4214138
        %v5953 = vadd.f32 %v5889, 1.4214138
        %v5954 = vadd.f32 %v5890, 1.4214138
        %v5955 = vmul.f32 %v5891, %v5572
        %v5956 = vmul.f32 %v5892, %v5574
        %v5957 = vmul.f32 %v5893, %v5576
        %v5958 = vmul.f32 %v5894, %v5578
        %v5959 = vmul.f32 %v5895, %v5580
        %v5960 = vmul.f32 %v5896, %v5582
        %v5961 = vmul.f32 %v5897, %v5584
        %v5962 = vmul.f32 %v5898, %v5586
        %v5963 = vmul.f32 %v5899, %v5588
        %v5964 = vmul.f32 %v5900, %v5590
        %v5965 = vmul.f32 %v5901, %v5592
        %v5966 = vmul.f32 %v5902, %v5594
        %v5967 = vmul.f32 %v5903, %v5596
        %v5968 = vmul.f32 %v5904, %v5598
        %v5969 = vmul.f32 %v5905, %v5600
        %v5970 = vmul.f32 %v5906, %v5602
        %v5971 = vmul.f32 %v5907, %v5604
        %v5972 = vmul.f32 %v5908, %v5606
        %v5973 = vmul.f32 %v5909, %v5608
        %v5974 = vmul.f32 %v5910, %v5610
        %v5975 = vmul.f32 %v5911, %v5612
        %v5976 = vmul.f32 %v5912, %v5614
        %v5977 = vmul.f32 %v5913, %v5616
        %v5978 = vmul.f32 %v5914, %v5618
        %v5979 = vmul.f32 %v5915, %v5620
        %v5980 = vmul.f32 %v5916, %v5622
        %v5981 = vmul.f32 %v5917, %v5624
        %v5982 = vmul.f32 %v5918, %v5626
        %v5983 = vmul.f32 %v5919, %v5628
        %v5984 = vmul.f32 %v5920, %v5630
        %v5985 = vmul.f32 %v5921, %v5632
        %v5986 = vmul.f32 %v5922, %v5634
        %v5987 = vmul.f32 %v5923, %v5636
        %v5988 = vmul.f32 %v5924, %v5638
        %v5989 = vmul.f32 %v5925, %v5640
        %v5990 = vmul.f32 %v5926, %v5642
        %v5991 = vmul.f32 %v5927, %v5644
        %v5992 = vmul.f32 %v5928, %v5646
        %v5993 = vmul.f32 %v5929, %v5648
        %v5994 = vmul.f32 %v5930, %v5650
        %v5995 = vmul.f32 %v5931, %v5652
        %v5996 = vmul.f32 %v5932, %v5654
        %v5997 = vmul.f32 %v5933, %v5656
        %v5998 = vmul.f32 %v5934, %v5658
        %v5999 = vmul.f32 %v5935, %v5660
        %v6000 = vmul.f32 %v5936, %v5662
        %v6001 = vmul.f32 %v5937, %v5664
        %v6002 = vmul.f32 %v5938, %v5666
        %v6003 = vmul.f32 %v5939, %v5668
        %v6004 = vmul.f32 %v5940, %v5670
        %v6005 = vmul.f32 %v5941, %v5672
        %v6006 = vmul.f32 %v5942, %v5674
        %v6007 = vmul.f32 %v5943, %v5676
        %v6008 = vmul.f32 %v5944, %v5678
        %v6009 = vmul.f32 %v5945, %v5680
        %v6010 = vmul.f32 %v5946, %v5682
        %v6011 = vmul.f32 %v5947, %v5684
        %v6012 = vmul.f32 %v5948, %v5686
        %v6013 = vmul.f32 %v5949, %v5688
        %v6014 = vmul.f32 %v5950, %v5690
        %v6015 = vmul.f32 %v5951, %v5692
        %v6016 = vmul.f32 %v5952, %v5694
        %v6017 = vmul.f32 %v5953, %v5696
        %v6018 = vmul.f32 %v5954, %v5698
        %v6019 = vsub.f32 %v5955, 0.28449672
        %v6020 = vsub.f32 %v5956, 0.28449672
        %v6021 = vsub.f32 %v5957, 0.28449672
        %v6022 = vsub.f32 %v5958, 0.28449672
        %v6023 = vsub.f32 %v5959, 0.28449672
        %v6024 = vsub.f32 %v5960, 0.28449672
        %v6025 = vsub.f32 %v5961, 0.28449672
        %v6026 = vsub.f32 %v5962, 0.28449672
        %v6027 = vsub.f32 %v5963, 0.28449672
        %v6028 = vsub.f32 %v5964, 0.28449672
        %v6029 = vsub.f32 %v5965, 0.28449672
        %v6030 = vsub.f32 %v5966, 0.28449672
        %v6031 = vsub.f32 %v5967, 0.28449672
        %v6032 = vsub.f32 %v5968, 0.28449672
        %v6033 = vsub.f32 %v5969, 0.28449672
        %v6034 = vsub.f32 %v5970, 0.28449672
        %v6035 = vsub.f32 %v5971, 0.28449672
        %v6036 = vsub.f32 %v5972, 0.28449672
        %v6037 = vsub.f32 %v5973, 0.28449672
        %v6038 = vsub.f32 %v5974, 0.28449672
        %v6039 = vsub.f32 %v5975, 0.28449672
        %v6040 = vsub.f32 %v5976, 0.28449672
        %v6041 = vsub.f32 %v5977, 0.28449672
        %v6042 = vsub.f32 %v5978, 0.28449672
        %v6043 = vsub.f32 %v5979, 0.28449672
        %v6044 = vsub.f32 %v5980, 0.28449672
        %v6045 = vsub.f32 %v5981, 0.28449672
        %v6046 = vsub.f32 %v5982, 0.28449672
        %v6047 = vsub.f32 %v5983, 0.28449672
        %v6048 = vsub.f32 %v5984, 0.28449672
        %v6049 = vsub.f32 %v5985, 0.28449672
        %v6050 = vsub.f32 %v5986, 0.28449672
        %v6051 = vsub.f32 %v5987, 0.28449672
        %v6052 = vsub.f32 %v5988, 0.28449672
        %v6053 = vsub.f32 %v5989, 0.28449672
        %v6054 = vsub.f32 %v5990, 0.28449672
        %v6055 = vsub.f32 %v5991, 0.28449672
        %v6056 = vsub.f32 %v5992, 0.28449672
        %v6057 = vsub.f32 %v5993, 0.28449672
        %v6058 = vsub.f32 %v5994, 0.28449672
        %v6059 = vsub.f32 %v5995, 0.28449672
        %v6060 = vsub.f32 %v5996, 0.28449672
        %v6061 = vsub.f32 %v5997, 0.28449672
        %v6062 = vsub.f32 %v5998, 0.28449672
        %v6063 = vsub.f32 %v5999, 0.28449672
        %v6064 = vsub.f32 %v6000, 0.28449672
        %v6065 = vsub.f32 %v6001, 0.28449672
        %v6066 = vsub.f32 %v6002, 0.28449672
        %v6067 = vsub.f32 %v6003, 0.28449672
        %v6068 = vsub.f32 %v6004, 0.28449672
        %v6069 = vsub.f32 %v6005, 0.28449672
        %v6070 = vsub.f32 %v6006, 0.28449672
        %v6071 = vsub.f32 %v6007, 0.28449672
        %v6072 = vsub.f32 %v6008, 0.28449672
        %v6073 = vsub.f32 %v6009, 0.28449672
        %v6074 = vsub.f32 %v6010, 0.28449672
        %v6075 = vsub.f32 %v6011, 0.28449672
        %v6076 = vsub.f32 %v6012, 0.28449672
        %v6077 = vsub.f32 %v6013, 0.28449672
        %v6078 = vsub.f32 %v6014, 0.28449672
        %v6079 = vsub.f32 %v6015, 0.28449672
        %v6080 = vsub.f32 %v6016, 0.28449672
        %v6081 = vsub.f32 %v6017, 0.28449672
        %v6082 = vsub.f32 %v6018, 0.28449672
        %v6083 = vmul.f32 %v6019, %v5572
        %v6084 = vmul.f32 %v6020, %v5574
        %v6085 = vmul.f32 %v6021, %v5576
        %v6086 = vmul.f32 %v6022, %v5578
        %v6087 = vmul.f32 %v6023, %v5580
        %v6088 = vmul.f32 %v6024, %v5582
        %v6089 = vmul.f32 %v6025, %v5584
        %v6090 = vmul.f32 %v6026, %v5586
        %v6091 = vmul.f32 %v6027, %v5588
        %v6092 = vmul.f32 %v6028, %v5590
        %v6093 = vmul.f32 %v6029, %v5592
        %v6094 = vmul.f32 %v6030, %v5594
        %v6095 = vmul.f32 %v6031, %v5596
        %v6096 = vmul.f32 %v6032, %v5598
        %v6097 = vmul.f32 %v6033, %v5600
        %v6098 = vmul.f32 %v6034, %v5602
        %v6099 = vmul.f32 %v6035, %v5604
        %v6100 = vmul.f32 %v6036, %v5606
        %v6101 = vmul.f32 %v6037, %v5608
        %v6102 = vmul.f32 %v6038, %v5610
        %v6103 = vmul.f32 %v6039, %v5612
        %v6104 = vmul.f32 %v6040, %v5614
        %v6105 = vmul.f32 %v6041, %v5616
        %v6106 = vmul.f32 %v6042, %v5618
        %v6107 = vmul.f32 %v6043, %v5620
        %v6108 = vmul.f32 %v6044, %v5622
        %v6109 = vmul.f32 %v6045, %v5624
        %v6110 = vmul.f32 %v6046, %v5626
        %v6111 = vmul.f32 %v6047, %v5628
        %v6112 = vmul.f32 %v6048, %v5630
        %v6113 = vmul.f32 %v6049, %v5632
        %v6114 = vmul.f32 %v6050, %v5634
        %v6115 = vmul.f32 %v6051, %v5636
        %v6116 = vmul.f32 %v6052, %v5638
        %v6117 = vmul.f32 %v6053, %v5640
        %v6118 = vmul.f32 %v6054, %v5642
        %v6119 = vmul.f32 %v6055, %v5644
        %v6120 = vmul.f32 %v6056, %v5646
        %v6121 = vmul.f32 %v6057, %v5648
        %v6122 = vmul.f32 %v6058, %v5650
        %v6123 = vmul.f32 %v6059, %v5652
        %v6124 = vmul.f32 %v6060, %v5654
        %v6125 = vmul.f32 %v6061, %v5656
        %v6126 = vmul.f32 %v6062, %v5658
        %v6127 = vmul.f32 %v6063, %v5660
        %v6128 = vmul.f32 %v6064, %v5662
        %v6129 = vmul.f32 %v6065, %v5664
        %v6130 = vmul.f32 %v6066, %v5666
        %v6131 = vmul.f32 %v6067, %v5668
        %v6132 = vmul.f32 %v6068, %v5670
        %v6133 = vmul.f32 %v6069, %v5672
        %v6134 = vmul.f32 %v6070, %v5674
        %v6135 = vmul.f32 %v6071, %v5676
        %v6136 = vmul.f32 %v6072, %v5678
        %v6137 = vmul.f32 %v6073, %v5680
        %v6138 = vmul.f32 %v6074, %v5682
        %v6139 = vmul.f32 %v6075, %v5684
        %v6140 = vmul.f32 %v6076, %v5686
        %v6141 = vmul.f32 %v6077, %v5688
        %v6142 = vmul.f32 %v6078, %v5690
        %v6143 = vmul.f32 %v6079, %v5692
        %v6144 = vmul.f32 %v6080, %v5694
        %v6145 = vmul.f32 %v6081, %v5696
        %v6146 = vmul.f32 %v6082, %v5698
        %v6147 = vadd.f32 %v6083, 0.2548296
        %v6148 = vadd.f32 %v6084, 0.2548296
        %v6149 = vadd.f32 %v6085, 0.2548296
        %v6150 = vadd.f32 %v6086, 0.2548296
        %v6151 = vadd.f32 %v6087, 0.2548296
        %v6152 = vadd.f32 %v6088, 0.2548296
        %v6153 = vadd.f32 %v6089, 0.2548296
        %v6154 = vadd.f32 %v6090, 0.2548296
        %v6155 = vadd.f32 %v6091, 0.2548296
        %v6156 = vadd.f32 %v6092, 0.2548296
        %v6157 = vadd.f32 %v6093, 0.2548296
        %v6158 = vadd.f32 %v6094, 0.2548296
        %v6159 = vadd.f32 %v6095, 0.2548296
        %v6160 = vadd.f32 %v6096, 0.2548296
        %v6161 = vadd.f32 %v6097, 0.2548296
        %v6162 = vadd.f32 %v6098, 0.2548296
        %v6163 = vadd.f32 %v6099, 0.2548296
        %v6164 = vadd.f32 %v6100, 0.2548296
        %v6165 = vadd.f32 %v6101, 0.2548296
        %v6166 = vadd.f32 %v6102, 0.2548296
        %v6167 = vadd.f32 %v6103, 0.2548296
        %v6168 = vadd.f32 %v6104, 0.2548296
        %v6169 = vadd.f32 %v6105, 0.2548296
        %v6170 = vadd.f32 %v6106, 0.2548296
        %v6171 = vadd.f32 %v6107, 0.2548296
        %v6172 = vadd.f32 %v6108, 0.2548296
        %v6173 = vadd.f32 %v6109, 0.2548296
        %v6174 = vadd.f32 %v6110, 0.2548296
        %v6175 = vadd.f32 %v6111, 0.2548296
        %v6176 = vadd.f32 %v6112, 0.2548296
        %v6177 = vadd.f32 %v6113, 0.2548296
        %v6178 = vadd.f32 %v6114, 0.2548296
        %v6179 = vadd.f32 %v6115, 0.2548296
        %v6180 = vadd.f32 %v6116, 0.2548296
        %v6181 = vadd.f32 %v6117, 0.2548296
        %v6182 = vadd.f32 %v6118, 0.2548296
        %v6183 = vadd.f32 %v6119, 0.2548296
        %v6184 = vadd.f32 %v6120, 0.2548296
        %v6185 = vadd.f32 %v6121, 0.2548296
        %v6186 = vadd.f32 %v6122, 0.2548296
        %v6187 = vadd.f32 %v6123, 0.2548296
        %v6188 = vadd.f32 %v6124, 0.2548296
        %v6189 = vadd.f32 %v6125, 0.2548296
        %v6190 = vadd.f32 %v6126, 0.2548296
        %v6191 = vadd.f32 %v6127, 0.2548296
        %v6192 = vadd.f32 %v6128, 0.2548296
        %v6193 = vadd.f32 %v6129, 0.2548296
        %v6194 = vadd.f32 %v6130, 0.2548296
        %v6195 = vadd.f32 %v6131, 0.2548296
        %v6196 = vadd.f32 %v6132, 0.2548296
        %v6197 = vadd.f32 %v6133, 0.2548296
        %v6198 = vadd.f32 %v6134, 0.2548296
        %v6199 = vadd.f32 %v6135, 0.2548296
        %v6200 = vadd.f32 %v6136, 0.2548296
        %v6201 = vadd.f32 %v6137, 0.2548296
        %v6202 = vadd.f32 %v6138, 0.2548296
        %v6203 = vadd.f32 %v6139, 0.2548296
        %v6204 = vadd.f32 %v6140, 0.2548296
        %v6205 = vadd.f32 %v6141, 0.2548296
        %v6206 = vadd.f32 %v6142, 0.2548296
        %v6207 = vadd.f32 %v6143, 0.2548296
        %v6208 = vadd.f32 %v6144, 0.2548296
        %v6209 = vadd.f32 %v6145, 0.2548296
        %v6210 = vadd.f32 %v6146, 0.2548296
        %v6211 = vmul.f32 %v6147, %v5572
        %v6212 = vmul.f32 %v6148, %v5574
        %v6213 = vmul.f32 %v6149, %v5576
        %v6214 = vmul.f32 %v6150, %v5578
        %v6215 = vmul.f32 %v6151, %v5580
        %v6216 = vmul.f32 %v6152, %v5582
        %v6217 = vmul.f32 %v6153, %v5584
        %v6218 = vmul.f32 %v6154, %v5586
        %v6219 = vmul.f32 %v6155, %v5588
        %v6220 = vmul.f32 %v6156, %v5590
        %v6221 = vmul.f32 %v6157, %v5592
        %v6222 = vmul.f32 %v6158, %v5594
        %v6223 = vmul.f32 %v6159, %v5596
        %v6224 = vmul.f32 %v6160, %v5598
        %v6225 = vmul.f32 %v6161, %v5600
        %v6226 = vmul.f32 %v6162, %v5602
        %v6227 = vmul.f32 %v6163, %v5604
        %v6228 = vmul.f32 %v6164, %v5606
        %v6229 = vmul.f32 %v6165, %v5608
        %v6230 = vmul.f32 %v6166, %v5610
        %v6231 = vmul.f32 %v6167, %v5612
        %v6232 = vmul.f32 %v6168, %v5614
        %v6233 = vmul.f32 %v6169, %v5616
        %v6234 = vmul.f32 %v6170, %v5618
        %v6235 = vmul.f32 %v6171, %v5620
        %v6236 = vmul.f32 %v6172, %v5622
        %v6237 = vmul.f32 %v6173, %v5624
        %v6238 = vmul.f32 %v6174, %v5626
        %v6239 = vmul.f32 %v6175, %v5628
        %v6240 = vmul.f32 %v6176, %v5630
        %v6241 = vmul.f32 %v6177, %v5632
        %v6242 = vmul.f32 %v6178, %v5634
        %v6243 = vmul.f32 %v6179, %v5636
        %v6244 = vmul.f32 %v6180, %v5638
        %v6245 = vmul.f32 %v6181, %v5640
        %v6246 = vmul.f32 %v6182, %v5642
        %v6247 = vmul.f32 %v6183, %v5644
        %v6248 = vmul.f32 %v6184, %v5646
        %v6249 = vmul.f32 %v6185, %v5648
        %v6250 = vmul.f32 %v6186, %v5650
        %v6251 = vmul.f32 %v6187, %v5652
        %v6252 = vmul.f32 %v6188, %v5654
        %v6253 = vmul.f32 %v6189, %v5656
        %v6254 = vmul.f32 %v6190, %v5658
        %v6255 = vmul.f32 %v6191, %v5660
        %v6256 = vmul.f32 %v6192, %v5662
        %v6257 = vmul.f32 %v6193, %v5664
        %v6258 = vmul.f32 %v6194, %v5666
        %v6259 = vmul.f32 %v6195, %v5668
        %v6260 = vmul.f32 %v6196, %v5670
        %v6261 = vmul.f32 %v6197, %v5672
        %v6262 = vmul.f32 %v6198, %v5674
        %v6263 = vmul.f32 %v6199, %v5676
        %v6264 = vmul.f32 %v6200, %v5678
        %v6265 = vmul.f32 %v6201, %v5680
        %v6266 = vmul.f32 %v6202, %v5682
        %v6267 = vmul.f32 %v6203, %v5684
        %v6268 = vmul.f32 %v6204, %v5686
        %v6269 = vmul.f32 %v6205, %v5688
        %v6270 = vmul.f32 %v6206, %v5690
        %v6271 = vmul.f32 %v6207, %v5692
        %v6272 = vmul.f32 %v6208, %v5694
        %v6273 = vmul.f32 %v6209, %v5696
        %v6274 = vmul.f32 %v6210, %v5698
        %v6275 = vsub.f32 0.0, %v5315
        %v6276 = vsub.f32 0.0, %v5316
        %v6277 = vsub.f32 0.0, %v5317
        %v6278 = vsub.f32 0.0, %v5318
        %v6279 = vsub.f32 0.0, %v5319
        %v6280 = vsub.f32 0.0, %v5320
        %v6281 = vsub.f32 0.0, %v5321
        %v6282 = vsub.f32 0.0, %v5322
        %v6283 = vsub.f32 0.0, %v5323
        %v6284 = vsub.f32 0.0, %v5324
        %v6285 = vsub.f32 0.0, %v5325
        %v6286 = vsub.f32 0.0, %v5326
        %v6287 = vsub.f32 0.0, %v5327
        %v6288 = vsub.f32 0.0, %v5328
        %v6289 = vsub.f32 0.0, %v5329
        %v6290 = vsub.f32 0.0, %v5330
        %v6291 = vsub.f32 0.0, %v5331
        %v6292 = vsub.f32 0.0, %v5332
        %v6293 = vsub.f32 0.0, %v5333
        %v6294 = vsub.f32 0.0, %v5334
        %v6295 = vsub.f32 0.0, %v5335
        %v6296 = vsub.f32 0.0, %v5336
        %v6297 = vsub.f32 0.0, %v5337
        %v6298 = vsub.f32 0.0, %v5338
        %v6299 = vsub.f32 0.0, %v5339
        %v6300 = vsub.f32 0.0, %v5340
        %v6301 = vsub.f32 0.0, %v5341
        %v6302 = vsub.f32 0.0, %v5342
        %v6303 = vsub.f32 0.0, %v5343
        %v6304 = vsub.f32 0.0, %v5344
        %v6305 = vsub.f32 0.0, %v5345
        %v6306 = vsub.f32 0.0, %v5346
        %v6307 = vsub.f32 0.0, %v5347
        %v6308 = vsub.f32 0.0, %v5348
        %v6309 = vsub.f32 0.0, %v5349
        %v6310 = vsub.f32 0.0, %v5350
        %v6311 = vsub.f32 0.0, %v5351
        %v6312 = vsub.f32 0.0, %v5352
        %v6313 = vsub.f32 0.0, %v5353
        %v6314 = vsub.f32 0.0, %v5354
        %v6315 = vsub.f32 0.0, %v5355
        %v6316 = vsub.f32 0.0, %v5356
        %v6317 = vsub.f32 0.0, %v5357
        %v6318 = vsub.f32 0.0, %v5358
        %v6319 = vsub.f32 0.0, %v5359
        %v6320 = vsub.f32 0.0, %v5360
        %v6321 = vsub.f32 0.0, %v5361
        %v6322 = vsub.f32 0.0, %v5362
        %v6323 = vsub.f32 0.0, %v5363
        %v6324 = vsub.f32 0.0, %v5364
        %v6325 = vsub.f32 0.0, %v5365
        %v6326 = vsub.f32 0.0, %v5366
        %v6327 = vsub.f32 0.0, %v5367
        %v6328 = vsub.f32 0.0, %v5368
        %v6329 = vsub.f32 0.0, %v5369
        %v6330 = vsub.f32 0.0, %v5370
        %v6331 = vsub.f32 0.0, %v5371
        %v6332 = vsub.f32 0.0, %v5372
        %v6333 = vsub.f32 0.0, %v5373
        %v6334 = vsub.f32 0.0, %v5374
        %v6335 = vsub.f32 0.0, %v5375
        %v6336 = vsub.f32 0.0, %v5376
        %v6337 = vsub.f32 0.0, %v5377
        %v6338 = vsub.f32 0.0, %v5378
        %v6339 = vmul.f32 %v6275, %v5315
        %v6340 = vmul.f32 %v6276, %v5316
        %v6341 = vmul.f32 %v6277, %v5317
        %v6342 = vmul.f32 %v6278, %v5318
        %v6343 = vmul.f32 %v6279, %v5319
        %v6344 = vmul.f32 %v6280, %v5320
        %v6345 = vmul.f32 %v6281, %v5321
        %v6346 = vmul.f32 %v6282, %v5322
        %v6347 = vmul.f32 %v6283, %v5323
        %v6348 = vmul.f32 %v6284, %v5324
        %v6349 = vmul.f32 %v6285, %v5325
        %v6350 = vmul.f32 %v6286, %v5326
        %v6351 = vmul.f32 %v6287, %v5327
        %v6352 = vmul.f32 %v6288, %v5328
        %v6353 = vmul.f32 %v6289, %v5329
        %v6354 = vmul.f32 %v6290, %v5330
        %v6355 = vmul.f32 %v6291, %v5331
        %v6356 = vmul.f32 %v6292, %v5332
        %v6357 = vmul.f32 %v6293, %v5333
        %v6358 = vmul.f32 %v6294, %v5334
        %v6359 = vmul.f32 %v6295, %v5335
        %v6360 = vmul.f32 %v6296, %v5336
        %v6361 = vmul.f32 %v6297, %v5337
        %v6362 = vmul.f32 %v6298, %v5338
        %v6363 = vmul.f32 %v6299, %v5339
        %v6364 = vmul.f32 %v6300, %v5340
        %v6365 = vmul.f32 %v6301, %v5341
        %v6366 = vmul.f32 %v6302, %v5342
        %v6367 = vmul.f32 %v6303, %v5343
        %v6368 = vmul.f32 %v6304, %v5344
        %v6369 = vmul.f32 %v6305, %v5345
        %v6370 = vmul.f32 %v6306, %v5346
        %v6371 = vmul.f32 %v6307, %v5347
        %v6372 = vmul.f32 %v6308, %v5348
        %v6373 = vmul.f32 %v6309, %v5349
        %v6374 = vmul.f32 %v6310, %v5350
        %v6375 = vmul.f32 %v6311, %v5351
        %v6376 = vmul.f32 %v6312, %v5352
        %v6377 = vmul.f32 %v6313, %v5353
        %v6378 = vmul.f32 %v6314, %v5354
        %v6379 = vmul.f32 %v6315, %v5355
        %v6380 = vmul.f32 %v6316, %v5356
        %v6381 = vmul.f32 %v6317, %v5357
        %v6382 = vmul.f32 %v6318, %v5358
        %v6383 = vmul.f32 %v6319, %v5359
        %v6384 = vmul.f32 %v6320, %v5360
        %v6385 = vmul.f32 %v6321, %v5361
        %v6386 = vmul.f32 %v6322, %v5362
        %v6387 = vmul.f32 %v6323, %v5363
        %v6388 = vmul.f32 %v6324, %v5364
        %v6389 = vmul.f32 %v6325, %v5365
        %v6390 = vmul.f32 %v6326, %v5366
        %v6391 = vmul.f32 %v6327, %v5367
        %v6392 = vmul.f32 %v6328, %v5368
        %v6393 = vmul.f32 %v6329, %v5369
        %v6394 = vmul.f32 %v6330, %v5370
        %v6395 = vmul.f32 %v6331, %v5371
        %v6396 = vmul.f32 %v6332, %v5372
        %v6397 = vmul.f32 %v6333, %v5373
        %v6398 = vmul.f32 %v6334, %v5374
        %v6399 = vmul.f32 %v6335, %v5375
        %v6400 = vmul.f32 %v6336, %v5376
        %v6401 = vmul.f32 %v6337, %v5377
        %v6402 = vmul.f32 %v6338, %v5378
        %v6403 = vmul.f32 %v6339, 1.442695
        %v6404 = vpow.pop %v6403
        %v6405 = vmul.f32 %v6340, 1.442695
        %v6406 = vpow.pop %v6405
        %v6407 = vmul.f32 %v6341, 1.442695
        %v6408 = vpow.pop %v6407
        %v6409 = vmul.f32 %v6342, 1.442695
        %v6410 = vpow.pop %v6409
        %v6411 = vmul.f32 %v6343, 1.442695
        %v6412 = vpow.pop %v6411
        %v6413 = vmul.f32 %v6344, 1.442695
        %v6414 = vpow.pop %v6413
        %v6415 = vmul.f32 %v6345, 1.442695
        %v6416 = vpow.pop %v6415
        %v6417 = vmul.f32 %v6346, 1.442695
        %v6418 = vpow.pop %v6417
        %v6419 = vmul.f32 %v6347, 1.442695
        %v6420 = vpow.pop %v6419
        %v6421 = vmul.f32 %v6348, 1.442695
        %v6422 = vpow.pop %v6421
        %v6423 = vmul.f32 %v6349, 1.442695
        %v6424 = vpow.pop %v6423
        %v6425 = vmul.f32 %v6350, 1.442695
        %v6426 = vpow.pop %v6425
        %v6427 = vmul.f32 %v6351, 1.442695
        %v6428 = vpow.pop %v6427
        %v6429 = vmul.f32 %v6352, 1.442695
        %v6430 = vpow.pop %v6429
        %v6431 = vmul.f32 %v6353, 1.442695
        %v6432 = vpow.pop %v6431
        %v6433 = vmul.f32 %v6354, 1.442695
        %v6434 = vpow.pop %v6433
        %v6435 = vmul.f32 %v6355, 1.442695
        %v6436 = vpow.pop %v6435
        %v6437 = vmul.f32 %v6356, 1.442695
        %v6438 = vpow.pop %v6437
        %v6439 = vmul.f32 %v6357, 1.442695
        %v6440 = vpow.pop %v6439
        %v6441 = vmul.f32 %v6358, 1.442695
        %v6442 = vpow.pop %v6441
        %v6443 = vmul.f32 %v6359, 1.442695
        %v6444 = vpow.pop %v6443
        %v6445 = vmul.f32 %v6360, 1.442695
        %v6446 = vpow.pop %v6445
        %v6447 = vmul.f32 %v6361, 1.442695
        %v6448 = vpow.pop %v6447
        %v6449 = vmul.f32 %v6362, 1.442695
        %v6450 = vpow.pop %v6449
        %v6451 = vmul.f32 %v6363, 1.442695
        %v6452 = vpow.pop %v6451
        %v6453 = vmul.f32 %v6364, 1.442695
        %v6454 = vpow.pop %v6453
        %v6455 = vmul.f32 %v6365, 1.442695
        %v6456 = vpow.pop %v6455
        %v6457 = vmul.f32 %v6366, 1.442695
        %v6458 = vpow.pop %v6457
        %v6459 = vmul.f32 %v6367, 1.442695
        %v6460 = vpow.pop %v6459
        %v6461 = vmul.f32 %v6368, 1.442695
        %v6462 = vpow.pop %v6461
        %v6463 = vmul.f32 %v6369, 1.442695
        %v6464 = vpow.pop %v6463
        %v6465 = vmul.f32 %v6370, 1.442695
        %v6466 = vpow.pop %v6465
        %v6467 = vmul.f32 %v6371, 1.442695
        %v6468 = vpow.pop %v6467
        %v6469 = vmul.f32 %v6372, 1.442695
        %v6470 = vpow.pop %v6469
        %v6471 = vmul.f32 %v6373, 1.442695
        %v6472 = vpow.pop %v6471
        %v6473 = vmul.f32 %v6374, 1.442695
        %v6474 = vpow.pop %v6473
        %v6475 = vmul.f32 %v6375, 1.442695
        %v6476 = vpow.pop %v6475
        %v6477 = vmul.f32 %v6376, 1.442695
        %v6478 = vpow.pop %v6477
        %v6479 = vmul.f32 %v6377, 1.442695
        %v6480 = vpow.pop %v6479
        %v6481 = vmul.f32 %v6378, 1.442695
        %v6482 = vpow.pop %v6481
        %v6483 = vmul.f32 %v6379, 1.442695
        %v6484 = vpow.pop %v6483
        %v6485 = vmul.f32 %v6380, 1.442695
        %v6486 = vpow.pop %v6485
        %v6487 = vmul.f32 %v6381, 1.442695
        %v6488 = vpow.pop %v6487
        %v6489 = vmul.f32 %v6382, 1.442695
        %v6490 = vpow.pop %v6489
        %v6491 = vmul.f32 %v6383, 1.442695
        %v6492 = vpow.pop %v6491
        %v6493 = vmul.f32 %v6384, 1.442695
        %v6494 = vpow.pop %v6493
        %v6495 = vmul.f32 %v6385, 1.442695
        %v6496 = vpow.pop %v6495
        %v6497 = vmul.f32 %v6386, 1.442695
        %v6498 = vpow.pop %v6497
        %v6499 = vmul.f32 %v6387, 1.442695
        %v6500 = vpow.pop %v6499
        %v6501 = vmul.f32 %v6388, 1.442695
        %v6502 = vpow.pop %v6501
        %v6503 = vmul.f32 %v6389, 1.442695
        %v6504 = vpow.pop %v6503
        %v6505 = vmul.f32 %v6390, 1.442695
        %v6506 = vpow.pop %v6505
        %v6507 = vmul.f32 %v6391, 1.442695
        %v6508 = vpow.pop %v6507
        %v6509 = vmul.f32 %v6392, 1.442695
        %v6510 = vpow.pop %v6509
        %v6511 = vmul.f32 %v6393, 1.442695
        %v6512 = vpow.pop %v6511
        %v6513 = vmul.f32 %v6394, 1.442695
        %v6514 = vpow.pop %v6513
        %v6515 = vmul.f32 %v6395, 1.442695
        %v6516 = vpow.pop %v6515
        %v6517 = vmul.f32 %v6396, 1.442695
        %v6518 = vpow.pop %v6517
        %v6519 = vmul.f32 %v6397, 1.442695
        %v6520 = vpow.pop %v6519
        %v6521 = vmul.f32 %v6398, 1.442695
        %v6522 = vpow.pop %v6521
        %v6523 = vmul.f32 %v6399, 1.442695
        %v6524 = vpow.pop %v6523
        %v6525 = vmul.f32 %v6400, 1.442695
        %v6526 = vpow.pop %v6525
        %v6527 = vmul.f32 %v6401, 1.442695
        %v6528 = vpow.pop %v6527
        %v6529 = vmul.f32 %v6402, 1.442695
        %v6530 = vpow.pop %v6529
        %v6531 = vmul.f32 %v6211, %v6404
        %v6532 = vmul.f32 %v6212, %v6406
        %v6533 = vmul.f32 %v6213, %v6408
        %v6534 = vmul.f32 %v6214, %v6410
        %v6535 = vmul.f32 %v6215, %v6412
        %v6536 = vmul.f32 %v6216, %v6414
        %v6537 = vmul.f32 %v6217, %v6416
        %v6538 = vmul.f32 %v6218, %v6418
        %v6539 = vmul.f32 %v6219, %v6420
        %v6540 = vmul.f32 %v6220, %v6422
        %v6541 = vmul.f32 %v6221, %v6424
        %v6542 = vmul.f32 %v6222, %v6426
        %v6543 = vmul.f32 %v6223, %v6428
        %v6544 = vmul.f32 %v6224, %v6430
        %v6545 = vmul.f32 %v6225, %v6432
        %v6546 = vmul.f32 %v6226, %v6434
        %v6547 = vmul.f32 %v6227, %v6436
        %v6548 = vmul.f32 %v6228, %v6438
        %v6549 = vmul.f32 %v6229, %v6440
        %v6550 = vmul.f32 %v6230, %v6442
        %v6551 = vmul.f32 %v6231, %v6444
        %v6552 = vmul.f32 %v6232, %v6446
        %v6553 = vmul.f32 %v6233, %v6448
        %v6554 = vmul.f32 %v6234, %v6450
        %v6555 = vmul.f32 %v6235, %v6452
        %v6556 = vmul.f32 %v6236, %v6454
        %v6557 = vmul.f32 %v6237, %v6456
        %v6558 = vmul.f32 %v6238, %v6458
        %v6559 = vmul.f32 %v6239, %v6460
        %v6560 = vmul.f32 %v6240, %v6462
        %v6561 = vmul.f32 %v6241, %v6464
        %v6562 = vmul.f32 %v6242, %v6466
        %v6563 = vmul.f32 %v6243, %v6468
        %v6564 = vmul.f32 %v6244, %v6470
        %v6565 = vmul.f32 %v6245, %v6472
        %v6566 = vmul.f32 %v6246, %v6474
        %v6567 = vmul.f32 %v6247, %v6476
        %v6568 = vmul.f32 %v6248, %v6478
        %v6569 = vmul.f32 %v6249, %v6480
        %v6570 = vmul.f32 %v6250, %v6482
        %v6571 = vmul.f32 %v6251, %v6484
        %v6572 = vmul.f32 %v6252, %v6486
        %v6573 = vmul.f32 %v6253, %v6488
        %v6574 = vmul.f32 %v6254, %v6490
        %v6575 = vmul.f32 %v6255, %v6492
        %v6576 = vmul.f32 %v6256, %v6494
        %v6577 = vmul.f32 %v6257, %v6496
        %v6578 = vmul.f32 %v6258, %v6498
        %v6579 = vmul.f32 %v6259, %v6500
        %v6580 = vmul.f32 %v6260, %v6502
        %v6581 = vmul.f32 %v6261, %v6504
        %v6582 = vmul.f32 %v6262, %v6506
        %v6583 = vmul.f32 %v6263, %v6508
        %v6584 = vmul.f32 %v6264, %v6510
        %v6585 = vmul.f32 %v6265, %v6512
        %v6586 = vmul.f32 %v6266, %v6514
        %v6587 = vmul.f32 %v6267, %v6516
        %v6588 = vmul.f32 %v6268, %v6518
        %v6589 = vmul.f32 %v6269, %v6520
        %v6590 = vmul.f32 %v6270, %v6522
        %v6591 = vmul.f32 %v6271, %v6524
        %v6592 = vmul.f32 %v6272, %v6526
        %v6593 = vmul.f32 %v6273, %v6528
        %v6594 = vmul.f32 %v6274, %v6530
        %v6595 = vsub.f32 1.0, %v6531
        %v6596 = vsub.f32 1.0, %v6532
        %v6597 = vsub.f32 1.0, %v6533
        %v6598 = vsub.f32 1.0, %v6534
        %v6599 = vsub.f32 1.0, %v6535
        %v6600 = vsub.f32 1.0, %v6536
        %v6601 = vsub.f32 1.0, %v6537
        %v6602 = vsub.f32 1.0, %v6538
        %v6603 = vsub.f32 1.0, %v6539
        %v6604 = vsub.f32 1.0, %v6540
        %v6605 = vsub.f32 1.0, %v6541
        %v6606 = vsub.f32 1.0, %v6542
        %v6607 = vsub.f32 1.0, %v6543
        %v6608 = vsub.f32 1.0, %v6544
        %v6609 = vsub.f32 1.0, %v6545
        %v6610 = vsub.f32 1.0, %v6546
        %v6611 = vsub.f32 1.0, %v6547
        %v6612 = vsub.f32 1.0, %v6548
        %v6613 = vsub.f32 1.0, %v6549
        %v6614 = vsub.f32 1.0, %v6550
        %v6615 = vsub.f32 1.0, %v6551
        %v6616 = vsub.f32 1.0, %v6552
        %v6617 = vsub.f32 1.0, %v6553
        %v6618 = vsub.f32 1.0, %v6554
        %v6619 = vsub.f32 1.0, %v6555
        %v6620 = vsub.f32 1.0, %v6556
        %v6621 = vsub.f32 1.0, %v6557
        %v6622 = vsub.f32 1.0, %v6558
        %v6623 = vsub.f32 1.0, %v6559
        %v6624 = vsub.f32 1.0, %v6560
        %v6625 = vsub.f32 1.0, %v6561
        %v6626 = vsub.f32 1.0, %v6562
        %v6627 = vsub.f32 1.0, %v6563
        %v6628 = vsub.f32 1.0, %v6564
        %v6629 = vsub.f32 1.0, %v6565
        %v6630 = vsub.f32 1.0, %v6566
        %v6631 = vsub.f32 1.0, %v6567
        %v6632 = vsub.f32 1.0, %v6568
        %v6633 = vsub.f32 1.0, %v6569
        %v6634 = vsub.f32 1.0, %v6570
        %v6635 = vsub.f32 1.0, %v6571
        %v6636 = vsub.f32 1.0, %v6572
        %v6637 = vsub.f32 1.0, %v6573
        %v6638 = vsub.f32 1.0, %v6574
        %v6639 = vsub.f32 1.0, %v6575
        %v6640 = vsub.f32 1.0, %v6576
        %v6641 = vsub.f32 1.0, %v6577
        %v6642 = vsub.f32 1.0, %v6578
        %v6643 = vsub.f32 1.0, %v6579
        %v6644 = vsub.f32 1.0, %v6580
        %v6645 = vsub.f32 1.0, %v6581
        %v6646 = vsub.f32 1.0, %v6582
        %v6647 = vsub.f32 1.0, %v6583
        %v6648 = vsub.f32 1.0, %v6584
        %v6649 = vsub.f32 1.0, %v6585
        %v6650 = vsub.f32 1.0, %v6586
        %v6651 = vsub.f32 1.0, %v6587
        %v6652 = vsub.f32 1.0, %v6588
        %v6653 = vsub.f32 1.0, %v6589
        %v6654 = vsub.f32 1.0, %v6590
        %v6655 = vsub.f32 1.0, %v6591
        %v6656 = vsub.f32 1.0, %v6592
        %v6657 = vsub.f32 1.0, %v6593
        %v6658 = vsub.f32 1.0, %v6594
        %vm6659 = vcmp.ge.f32.partialorder %v5315, 0.0
        %vm6660 = vcmp.ge.f32.partialorder %v5316, 0.0
        %vm6661 = vcmp.ge.f32.partialorder %v5317, 0.0
        %vm6662 = vcmp.ge.f32.partialorder %v5318, 0.0
        %vm6663 = vcmp.ge.f32.partialorder %v5319, 0.0
        %vm6664 = vcmp.ge.f32.partialorder %v5320, 0.0
        %vm6665 = vcmp.ge.f32.partialorder %v5321, 0.0
        %vm6666 = vcmp.ge.f32.partialorder %v5322, 0.0
        %vm6667 = vcmp.ge.f32.partialorder %v5323, 0.0
        %vm6668 = vcmp.ge.f32.partialorder %v5324, 0.0
        %vm6669 = vcmp.ge.f32.partialorder %v5325, 0.0
        %vm6670 = vcmp.ge.f32.partialorder %v5326, 0.0
        %vm6671 = vcmp.ge.f32.partialorder %v5327, 0.0
        %vm6672 = vcmp.ge.f32.partialorder %v5328, 0.0
        %vm6673 = vcmp.ge.f32.partialorder %v5329, 0.0
        %vm6674 = vcmp.ge.f32.partialorder %v5330, 0.0
        %vm6675 = vcmp.ge.f32.partialorder %v5331, 0.0
        %vm6676 = vcmp.ge.f32.partialorder %v5332, 0.0
        %vm6677 = vcmp.ge.f32.partialorder %v5333, 0.0
        %vm6678 = vcmp.ge.f32.partialorder %v5334, 0.0
        %vm6679 = vcmp.ge.f32.partialorder %v5335, 0.0
        %vm6680 = vcmp.ge.f32.partialorder %v5336, 0.0
        %vm6681 = vcmp.ge.f32.partialorder %v5337, 0.0
        %vm6682 = vcmp.ge.f32.partialorder %v5338, 0.0
        %vm6683 = vcmp.ge.f32.partialorder %v5339, 0.0
        %vm6684 = vcmp.ge.f32.partialorder %v5340, 0.0
        %vm6685 = vcmp.ge.f32.partialorder %v5341, 0.0
        %vm6686 = vcmp.ge.f32.partialorder %v5342, 0.0
        %vm6687 = vcmp.ge.f32.partialorder %v5343, 0.0
        %vm6688 = vcmp.ge.f32.partialorder %v5344, 0.0
        %vm6689 = vcmp.ge.f32.partialorder %v5345, 0.0
        %vm6690 = vcmp.ge.f32.partialorder %v5346, 0.0
        %vm6691 = vcmp.ge.f32.partialorder %v5347, 0.0
        %vm6692 = vcmp.ge.f32.partialorder %v5348, 0.0
        %vm6693 = vcmp.ge.f32.partialorder %v5349, 0.0
        %vm6694 = vcmp.ge.f32.partialorder %v5350, 0.0
        %vm6695 = vcmp.ge.f32.partialorder %v5351, 0.0
        %vm6696 = vcmp.ge.f32.partialorder %v5352, 0.0
        %vm6697 = vcmp.ge.f32.partialorder %v5353, 0.0
        %vm6698 = vcmp.ge.f32.partialorder %v5354, 0.0
        %vm6699 = vcmp.ge.f32.partialorder %v5355, 0.0
        %vm6700 = vcmp.ge.f32.partialorder %v5356, 0.0
        %vm6701 = vcmp.ge.f32.partialorder %v5357, 0.0
        %vm6702 = vcmp.ge.f32.partialorder %v5358, 0.0
        %vm6703 = vcmp.ge.f32.partialorder %v5359, 0.0
        %vm6704 = vcmp.ge.f32.partialorder %v5360, 0.0
        %vm6705 = vcmp.ge.f32.partialorder %v5361, 0.0
        %vm6706 = vcmp.ge.f32.partialorder %v5362, 0.0
        %vm6707 = vcmp.ge.f32.partialorder %v5363, 0.0
        %vm6708 = vcmp.ge.f32.partialorder %v5364, 0.0
        %vm6709 = vcmp.ge.f32.partialorder %v5365, 0.0
        %vm6710 = vcmp.ge.f32.partialorder %v5366, 0.0
        %vm6711 = vcmp.ge.f32.partialorder %v5367, 0.0
        %vm6712 = vcmp.ge.f32.partialorder %v5368, 0.0
        %vm6713 = vcmp.ge.f32.partialorder %v5369, 0.0
        %vm6714 = vcmp.ge.f32.partialorder %v5370, 0.0
        %vm6715 = vcmp.ge.f32.partialorder %v5371, 0.0
        %vm6716 = vcmp.ge.f32.partialorder %v5372, 0.0
        %vm6717 = vcmp.ge.f32.partialorder %v5373, 0.0
        %vm6718 = vcmp.ge.f32.partialorder %v5374, 0.0
        %vm6719 = vcmp.ge.f32.partialorder %v5375, 0.0
        %vm6720 = vcmp.ge.f32.partialorder %v5376, 0.0
        %vm6721 = vcmp.ge.f32.partialorder %v5377, 0.0
        %vm6722 = vcmp.ge.f32.partialorder %v5378, 0.0
        %v6723 = vsub.f32 0.0, %v6595
        %v6724 = vsub.f32 0.0, %v6596
        %v6725 = vsub.f32 0.0, %v6597
        %v6726 = vsub.f32 0.0, %v6598
        %v6727 = vsub.f32 0.0, %v6599
        %v6728 = vsub.f32 0.0, %v6600
        %v6729 = vsub.f32 0.0, %v6601
        %v6730 = vsub.f32 0.0, %v6602
        %v6731 = vsub.f32 0.0, %v6603
        %v6732 = vsub.f32 0.0, %v6604
        %v6733 = vsub.f32 0.0, %v6605
        %v6734 = vsub.f32 0.0, %v6606
        %v6735 = vsub.f32 0.0, %v6607
        %v6736 = vsub.f32 0.0, %v6608
        %v6737 = vsub.f32 0.0, %v6609
        %v6738 = vsub.f32 0.0, %v6610
        %v6739 = vsub.f32 0.0, %v6611
        %v6740 = vsub.f32 0.0, %v6612
        %v6741 = vsub.f32 0.0, %v6613
        %v6742 = vsub.f32 0.0, %v6614
        %v6743 = vsub.f32 0.0, %v6615
        %v6744 = vsub.f32 0.0, %v6616
        %v6745 = vsub.f32 0.0, %v6617
        %v6746 = vsub.f32 0.0, %v6618
        %v6747 = vsub.f32 0.0, %v6619
        %v6748 = vsub.f32 0.0, %v6620
        %v6749 = vsub.f32 0.0, %v6621
        %v6750 = vsub.f32 0.0, %v6622
        %v6751 = vsub.f32 0.0, %v6623
        %v6752 = vsub.f32 0.0, %v6624
        %v6753 = vsub.f32 0.0, %v6625
        %v6754 = vsub.f32 0.0, %v6626
        %v6755 = vsub.f32 0.0, %v6627
        %v6756 = vsub.f32 0.0, %v6628
        %v6757 = vsub.f32 0.0, %v6629
        %v6758 = vsub.f32 0.0, %v6630
        %v6759 = vsub.f32 0.0, %v6631
        %v6760 = vsub.f32 0.0, %v6632
        %v6761 = vsub.f32 0.0, %v6633
        %v6762 = vsub.f32 0.0, %v6634
        %v6763 = vsub.f32 0.0, %v6635
        %v6764 = vsub.f32 0.0, %v6636
        %v6765 = vsub.f32 0.0, %v6637
        %v6766 = vsub.f32 0.0, %v6638
        %v6767 = vsub.f32 0.0, %v6639
        %v6768 = vsub.f32 0.0, %v6640
        %v6769 = vsub.f32 0.0, %v6641
        %v6770 = vsub.f32 0.0, %v6642
        %v6771 = vsub.f32 0.0, %v6643
        %v6772 = vsub.f32 0.0, %v6644
        %v6773 = vsub.f32 0.0, %v6645
        %v6774 = vsub.f32 0.0, %v6646
        %v6775 = vsub.f32 0.0, %v6647
        %v6776 = vsub.f32 0.0, %v6648
        %v6777 = vsub.f32 0.0, %v6649
        %v6778 = vsub.f32 0.0, %v6650
        %v6779 = vsub.f32 0.0, %v6651
        %v6780 = vsub.f32 0.0, %v6652
        %v6781 = vsub.f32 0.0, %v6653
        %v6782 = vsub.f32 0.0, %v6654
        %v6783 = vsub.f32 0.0, %v6655
        %v6784 = vsub.f32 0.0, %v6656
        %v6785 = vsub.f32 0.0, %v6657
        %v6786 = vsub.f32 0.0, %v6658
        %v6787 = vsel %vm6659, %v6595, %v6723
        %v6788 = vsel %vm6660, %v6596, %v6724
        %v6789 = vsel %vm6661, %v6597, %v6725
        %v6790 = vsel %vm6662, %v6598, %v6726
        %v6791 = vsel %vm6663, %v6599, %v6727
        %v6792 = vsel %vm6664, %v6600, %v6728
        %v6793 = vsel %vm6665, %v6601, %v6729
        %v6794 = vsel %vm6666, %v6602, %v6730
        %v6795 = vsel %vm6667, %v6603, %v6731
        %v6796 = vsel %vm6668, %v6604, %v6732
        %v6797 = vsel %vm6669, %v6605, %v6733
        %v6798 = vsel %vm6670, %v6606, %v6734
        %v6799 = vsel %vm6671, %v6607, %v6735
        %v6800 = vsel %vm6672, %v6608, %v6736
        %v6801 = vsel %vm6673, %v6609, %v6737
        %v6802 = vsel %vm6674, %v6610, %v6738
        %v6803 = vsel %vm6675, %v6611, %v6739
        %v6804 = vsel %vm6676, %v6612, %v6740
        %v6805 = vsel %vm6677, %v6613, %v6741
        %v6806 = vsel %vm6678, %v6614, %v6742
        %v6807 = vsel %vm6679, %v6615, %v6743
        %v6808 = vsel %vm6680, %v6616, %v6744
        %v6809 = vsel %vm6681, %v6617, %v6745
        %v6810 = vsel %vm6682, %v6618, %v6746
        %v6811 = vsel %vm6683, %v6619, %v6747
        %v6812 = vsel %vm6684, %v6620, %v6748
        %v6813 = vsel %vm6685, %v6621, %v6749
        %v6814 = vsel %vm6686, %v6622, %v6750
        %v6815 = vsel %vm6687, %v6623, %v6751
        %v6816 = vsel %vm6688, %v6624, %v6752
        %v6817 = vsel %vm6689, %v6625, %v6753
        %v6818 = vsel %vm6690, %v6626, %v6754
        %v6819 = vsel %vm6691, %v6627, %v6755
        %v6820 = vsel %vm6692, %v6628, %v6756
        %v6821 = vsel %vm6693, %v6629, %v6757
        %v6822 = vsel %vm6694, %v6630, %v6758
        %v6823 = vsel %vm6695, %v6631, %v6759
        %v6824 = vsel %vm6696, %v6632, %v6760
        %v6825 = vsel %vm6697, %v6633, %v6761
        %v6826 = vsel %vm6698, %v6634, %v6762
        %v6827 = vsel %vm6699, %v6635, %v6763
        %v6828 = vsel %vm6700, %v6636, %v6764
        %v6829 = vsel %vm6701, %v6637, %v6765
        %v6830 = vsel %vm6702, %v6638, %v6766
        %v6831 = vsel %vm6703, %v6639, %v6767
        %v6832 = vsel %vm6704, %v6640, %v6768
        %v6833 = vsel %vm6705, %v6641, %v6769
        %v6834 = vsel %vm6706, %v6642, %v6770
        %v6835 = vsel %vm6707, %v6643, %v6771
        %v6836 = vsel %vm6708, %v6644, %v6772
        %v6837 = vsel %vm6709, %v6645, %v6773
        %v6838 = vsel %vm6710, %v6646, %v6774
        %v6839 = vsel %vm6711, %v6647, %v6775
        %v6840 = vsel %vm6712, %v6648, %v6776
        %v6841 = vsel %vm6713, %v6649, %v6777
        %v6842 = vsel %vm6714, %v6650, %v6778
        %v6843 = vsel %vm6715, %v6651, %v6779
        %v6844 = vsel %vm6716, %v6652, %v6780
        %v6845 = vsel %vm6717, %v6653, %v6781
        %v6846 = vsel %vm6718, %v6654, %v6782
        %v6847 = vsel %vm6719, %v6655, %v6783
        %v6848 = vsel %vm6720, %v6656, %v6784
        %v6849 = vsel %vm6721, %v6657, %v6785
        %v6850 = vsel %vm6722, %v6658, %v6786
        %v6851 = vadd.f32 %v6787, 1.0
        %v6852 = vadd.f32 %v6788, 1.0
        %v6853 = vadd.f32 %v6789, 1.0
        %v6854 = vadd.f32 %v6790, 1.0
        %v6855 = vadd.f32 %v6791, 1.0
        %v6856 = vadd.f32 %v6792, 1.0
        %v6857 = vadd.f32 %v6793, 1.0
        %v6858 = vadd.f32 %v6794, 1.0
        %v6859 = vadd.f32 %v6795, 1.0
        %v6860 = vadd.f32 %v6796, 1.0
        %v6861 = vadd.f32 %v6797, 1.0
        %v6862 = vadd.f32 %v6798, 1.0
        %v6863 = vadd.f32 %v6799, 1.0
        %v6864 = vadd.f32 %v6800, 1.0
        %v6865 = vadd.f32 %v6801, 1.0
        %v6866 = vadd.f32 %v6802, 1.0
        %v6867 = vadd.f32 %v6803, 1.0
        %v6868 = vadd.f32 %v6804, 1.0
        %v6869 = vadd.f32 %v6805, 1.0
        %v6870 = vadd.f32 %v6806, 1.0
        %v6871 = vadd.f32 %v6807, 1.0
        %v6872 = vadd.f32 %v6808, 1.0
        %v6873 = vadd.f32 %v6809, 1.0
        %v6874 = vadd.f32 %v6810, 1.0
        %v6875 = vadd.f32 %v6811, 1.0
        %v6876 = vadd.f32 %v6812, 1.0
        %v6877 = vadd.f32 %v6813, 1.0
        %v6878 = vadd.f32 %v6814, 1.0
        %v6879 = vadd.f32 %v6815, 1.0
        %v6880 = vadd.f32 %v6816, 1.0
        %v6881 = vadd.f32 %v6817, 1.0
        %v6882 = vadd.f32 %v6818, 1.0
        %v6883 = vadd.f32 %v6819, 1.0
        %v6884 = vadd.f32 %v6820, 1.0
        %v6885 = vadd.f32 %v6821, 1.0
        %v6886 = vadd.f32 %v6822, 1.0
        %v6887 = vadd.f32 %v6823, 1.0
        %v6888 = vadd.f32 %v6824, 1.0
        %v6889 = vadd.f32 %v6825, 1.0
        %v6890 = vadd.f32 %v6826, 1.0
        %v6891 = vadd.f32 %v6827, 1.0
        %v6892 = vadd.f32 %v6828, 1.0
        %v6893 = vadd.f32 %v6829, 1.0
        %v6894 = vadd.f32 %v6830, 1.0
        %v6895 = vadd.f32 %v6831, 1.0
        %v6896 = vadd.f32 %v6832, 1.0
        %v6897 = vadd.f32 %v6833, 1.0
        %v6898 = vadd.f32 %v6834, 1.0
        %v6899 = vadd.f32 %v6835, 1.0
        %v6900 = vadd.f32 %v6836, 1.0
        %v6901 = vadd.f32 %v6837, 1.0
        %v6902 = vadd.f32 %v6838, 1.0
        %v6903 = vadd.f32 %v6839, 1.0
        %v6904 = vadd.f32 %v6840, 1.0
        %v6905 = vadd.f32 %v6841, 1.0
        %v6906 = vadd.f32 %v6842, 1.0
        %v6907 = vadd.f32 %v6843, 1.0
        %v6908 = vadd.f32 %v6844, 1.0
        %v6909 = vadd.f32 %v6845, 1.0
        %v6910 = vadd.f32 %v6846, 1.0
        %v6911 = vadd.f32 %v6847, 1.0
        %v6912 = vadd.f32 %v6848, 1.0
        %v6913 = vadd.f32 %v6849, 1.0
        %v6914 = vadd.f32 %v6850, 1.0
        %v6915 = vmul.f32 %v5251, %v6851
        %v6916 = vmul.f32 %v5252, %v6852
        %v6917 = vmul.f32 %v5253, %v6853
        %v6918 = vmul.f32 %v5254, %v6854
        %v6919 = vmul.f32 %v5255, %v6855
        %v6920 = vmul.f32 %v5256, %v6856
        %v6921 = vmul.f32 %v5257, %v6857
        %v6922 = vmul.f32 %v5258, %v6858
        %v6923 = vmul.f32 %v5259, %v6859
        %v6924 = vmul.f32 %v5260, %v6860
        %v6925 = vmul.f32 %v5261, %v6861
        %v6926 = vmul.f32 %v5262, %v6862
        %v6927 = vmul.f32 %v5263, %v6863
        %v6928 = vmul.f32 %v5264, %v6864
        %v6929 = vmul.f32 %v5265, %v6865
        %v6930 = vmul.f32 %v5266, %v6866
        %v6931 = vmul.f32 %v5267, %v6867
        %v6932 = vmul.f32 %v5268, %v6868
        %v6933 = vmul.f32 %v5269, %v6869
        %v6934 = vmul.f32 %v5270, %v6870
        %v6935 = vmul.f32 %v5271, %v6871
        %v6936 = vmul.f32 %v5272, %v6872
        %v6937 = vmul.f32 %v5273, %v6873
        %v6938 = vmul.f32 %v5274, %v6874
        %v6939 = vmul.f32 %v5275, %v6875
        %v6940 = vmul.f32 %v5276, %v6876
        %v6941 = vmul.f32 %v5277, %v6877
        %v6942 = vmul.f32 %v5278, %v6878
        %v6943 = vmul.f32 %v5279, %v6879
        %v6944 = vmul.f32 %v5280, %v6880
        %v6945 = vmul.f32 %v5281, %v6881
        %v6946 = vmul.f32 %v5282, %v6882
        %v6947 = vmul.f32 %v5283, %v6883
        %v6948 = vmul.f32 %v5284, %v6884
        %v6949 = vmul.f32 %v5285, %v6885
        %v6950 = vmul.f32 %v5286, %v6886
        %v6951 = vmul.f32 %v5287, %v6887
        %v6952 = vmul.f32 %v5288, %v6888
        %v6953 = vmul.f32 %v5289, %v6889
        %v6954 = vmul.f32 %v5290, %v6890
        %v6955 = vmul.f32 %v5291, %v6891
        %v6956 = vmul.f32 %v5292, %v6892
        %v6957 = vmul.f32 %v5293, %v6893
        %v6958 = vmul.f32 %v5294, %v6894
        %v6959 = vmul.f32 %v5295, %v6895
        %v6960 = vmul.f32 %v5296, %v6896
        %v6961 = vmul.f32 %v5297, %v6897
        %v6962 = vmul.f32 %v5298, %v6898
        %v6963 = vmul.f32 %v5299, %v6899
        %v6964 = vmul.f32 %v5300, %v6900
        %v6965 = vmul.f32 %v5301, %v6901
        %v6966 = vmul.f32 %v5302, %v6902
        %v6967 = vmul.f32 %v5303, %v6903
        %v6968 = vmul.f32 %v5304, %v6904
        %v6969 = vmul.f32 %v5305, %v6905
        %v6970 = vmul.f32 %v5306, %v6906
        %v6971 = vmul.f32 %v5307, %v6907
        %v6972 = vmul.f32 %v5308, %v6908
        %v6973 = vmul.f32 %v5309, %v6909
        %v6974 = vmul.f32 %v5310, %v6910
        %v6975 = vmul.f32 %v5311, %v6911
        %v6976 = vmul.f32 %v5312, %v6912
        %v6977 = vmul.f32 %v5313, %v6913
        %v6978 = vmul.f32 %v5314, %v6914
        %v6979 = vpack.c.bf16 %v6917, %v6915
        %v6980 = vpack.c.bf16 %v6918, %v6916
        %v6981 = vpack.c.bf16 %v6921, %v6919
        %v6982 = vpack.c.bf16 %v6922, %v6920
        %v6983 = vpack.c.bf16 %v6925, %v6923
        %v6984 = vpack.c.bf16 %v6926, %v6924
        %v6985 = vpack.c.bf16 %v6929, %v6927
        %v6986 = vpack.c.bf16 %v6930, %v6928
        %v6987 = vpack.c.bf16 %v6933, %v6931
        %v6988 = vpack.c.bf16 %v6934, %v6932
        %v6989 = vpack.c.bf16 %v6937, %v6935
        %v6990 = vpack.c.bf16 %v6938, %v6936
        %v6991 = vpack.c.bf16 %v6941, %v6939
        %v6992 = vpack.c.bf16 %v6942, %v6940
        %v6993 = vpack.c.bf16 %v6945, %v6943
        %v6994 = vpack.c.bf16 %v6946, %v6944
        %v6995 = vpack.c.bf16 %v6949, %v6947
        %v6996 = vpack.c.bf16 %v6950, %v6948
        %v6997 = vpack.c.bf16 %v6953, %v6951
        %v6998 = vpack.c.bf16 %v6954, %v6952
        %v6999 = vpack.c.bf16 %v6957, %v6955
        %v7000 = vpack.c.bf16 %v6958, %v6956
        %v7001 = vpack.c.bf16 %v6961, %v6959
        %v7002 = vpack.c.bf16 %v6962, %v6960
        %v7003 = vpack.c.bf16 %v6965, %v6963
        %v7004 = vpack.c.bf16 %v6966, %v6964
        %v7005 = vpack.c.bf16 %v6969, %v6967
        %v7006 = vpack.c.bf16 %v6970, %v6968
        %v7007 = vpack.c.bf16 %v6973, %v6971
        %v7008 = vpack.c.bf16 %v6974, %v6972
        %v7009 = vpack.c.bf16 %v6977, %v6975
        %v7010 = vpack.c.bf16 %v6978, %v6976
        %v7011 = vld [vmem:[#allocation23] sm:$0xf]
        %v7012 = vld [vmem:[#allocation23 + $0x4] sm:$0xf]
        %v7013 = vld [vmem:[#allocation23 + $0x8] sm:$0xf]
        %v7014 = vld [vmem:[#allocation23 + $0xc] sm:$0xf]
        %v7015 = vld [vmem:[#allocation23 + $0x10] sm:$0xf]
        %v7016 = vld [vmem:[#allocation23 + $0x14] sm:$0xf]
        %v7017 = vld [vmem:[#allocation23 + $0x18] sm:$0xf]
        %v7018 = vld [vmem:[#allocation23 + $0x1c] sm:$0xf]
        %v7019 = vld [vmem:[#allocation23 + $0x20] sm:$0xf]
        %v7020 = vld [vmem:[#allocation23 + $0x24] sm:$0xf]
        %v7021 = vld [vmem:[#allocation23 + $0x28] sm:$0xf]
        %v7022 = vld [vmem:[#allocation23 + $0x2c] sm:$0xf]
        %v7023 = vld [vmem:[#allocation23 + $0x30] sm:$0xf]
        %v7024 = vld [vmem:[#allocation23 + $0x34] sm:$0xf]
        %v7025 = vld [vmem:[#allocation23 + $0x38] sm:$0xf]
        %v7026 = vld [vmem:[#allocation23 + $0x3c] sm:$0xf]
        %v7027 = vld [vmem:[#allocation23 + $0x40] sm:$0xf]
        %v7028 = vld [vmem:[#allocation23 + $0x44] sm:$0xf]
        %v7029 = vld [vmem:[#allocation23 + $0x48] sm:$0xf]
        %v7030 = vld [vmem:[#allocation23 + $0x4c] sm:$0xf]
        %v7031 = vld [vmem:[#allocation23 + $0x50] sm:$0xf]
        %v7032 = vld [vmem:[#allocation23 + $0x54] sm:$0xf]
        %v7033 = vld [vmem:[#allocation23 + $0x58] sm:$0xf]
        %v7034 = vld [vmem:[#allocation23 + $0x5c] sm:$0xf]
        %v7035 = vld [vmem:[#allocation23 + $0x60] sm:$0xf]
        %v7036 = vld [vmem:[#allocation23 + $0x64] sm:$0xf]
        %v7037 = vld [vmem:[#allocation23 + $0x68] sm:$0xf]
        %v7038 = vld [vmem:[#allocation23 + $0x6c] sm:$0xf]
        %v7039 = vld [vmem:[#allocation23 + $0x70] sm:$0xf]
        %v7040 = vld [vmem:[#allocation23 + $0x74] sm:$0xf]
        %v7041 = vld [vmem:[#allocation23 + $0x78] sm:$0xf]
        %v7042 = vld [vmem:[#allocation23 + $0x7c] sm:$0xf]
        %v7075 = vunpack.c.l.b16 %v7011
        %v7076 = vunpack.c.l.b16 %v7012
        %v7077 = vunpack.c.l.b16 %v7013
        %v7078 = vunpack.c.l.b16 %v7014
        %v7079 = vunpack.c.l.b16 %v7015
        %v7080 = vunpack.c.l.b16 %v7016
        %v7081 = vunpack.c.l.b16 %v7017
        %v7082 = vunpack.c.l.b16 %v7018
        %v7083 = vunpack.c.l.b16 %v7019
        %v7084 = vunpack.c.l.b16 %v7020
        %v7085 = vunpack.c.l.b16 %v7021
        %v7086 = vunpack.c.l.b16 %v7022
        %v7087 = vunpack.c.l.b16 %v7023
        %v7088 = vunpack.c.l.b16 %v7024
        %v7089 = vunpack.c.l.b16 %v7025
        %v7090 = vunpack.c.l.b16 %v7026
        %v7091 = vunpack.c.l.b16 %v7027
        %v7092 = vunpack.c.l.b16 %v7028
        %v7093 = vunpack.c.l.b16 %v7029
        %v7094 = vunpack.c.l.b16 %v7030
        %v7095 = vunpack.c.l.b16 %v7031
        %v7096 = vunpack.c.l.b16 %v7032
        %v7097 = vunpack.c.l.b16 %v7033
        %v7098 = vunpack.c.l.b16 %v7034
        %v7099 = vunpack.c.l.b16 %v7035
        %v7100 = vunpack.c.l.b16 %v7036
        %v7101 = vunpack.c.l.b16 %v7037
        %v7102 = vunpack.c.l.b16 %v7038
        %v7103 = vunpack.c.l.b16 %v7039
        %v7104 = vunpack.c.l.b16 %v7040
        %v7105 = vunpack.c.l.b16 %v7041
        %v7106 = vunpack.c.l.b16 %v7042
        %v7107 = vpack.c.b16 %v7076, %v7075
        %v7108 = vpack.c.b16 %v7078, %v7077
        %v7109 = vpack.c.b16 %v7080, %v7079
        %v7110 = vpack.c.b16 %v7082, %v7081
        %v7111 = vpack.c.b16 %v7084, %v7083
        %v7112 = vpack.c.b16 %v7086, %v7085
        %v7113 = vpack.c.b16 %v7088, %v7087
        %v7114 = vpack.c.b16 %v7090, %v7089
        %v7115 = vpack.c.b16 %v7092, %v7091
        %v7116 = vpack.c.b16 %v7094, %v7093
        %v7117 = vpack.c.b16 %v7096, %v7095
        %v7118 = vpack.c.b16 %v7098, %v7097
        %v7119 = vpack.c.b16 %v7100, %v7099
        %v7120 = vpack.c.b16 %v7102, %v7101
        %v7121 = vpack.c.b16 %v7104, %v7103
        %v7122 = vpack.c.b16 %v7106, %v7105
        %7139 = vmatprep.subr.bf16.mxu0 0
        %7140 = vmatpush1.bf16.msra.mxu0 %v7114
        %7141 = vmatprep.subr.bf16.mxu0 0
        %7142 = vmatpush1.bf16.msra.mxu0 %v7113
        %7143 = vmatprep.subr.bf16.mxu0 0
        %7144 = vmatpush1.bf16.msra.mxu0 %v7112
        %7145 = vmatprep.subr.bf16.mxu0 0
        %7146 = vmatpush1.bf16.msra.mxu0 %v7111
        %7147 = vmatprep.subr.bf16.mxu0 0
        %7148 = vmatpush1.bf16.msra.mxu0 %v7110
        %7149 = vmatprep.subr.bf16.mxu0 0
        %7150 = vmatpush1.bf16.msra.mxu0 %v7109
        %7151 = vmatprep.subr.bf16.mxu0 0
        %7152 = vmatpush1.bf16.msra.mxu0 %v7108
        %7153 = vmatprep.subr.bf16.mxu0 0
        %7154 = vmatpush1.bf16.msra.mxu0 %v7107
        %7155 = vmatprep.subr.bf16.mxu0 0
        %7156 = vmatpush2.bf16.msra.mxu0 %v7122
        %7157 = vmatprep.subr.bf16.mxu0 0
        %7158 = vmatpush2.bf16.msra.mxu0 %v7121
        %7159 = vmatprep.subr.bf16.mxu0 0
        %7160 = vmatpush2.bf16.msra.mxu0 %v7120
        %7161 = vmatprep.subr.bf16.mxu0 0
        %7162 = vmatpush2.bf16.msra.mxu0 %v7119
        %7163 = vmatprep.subr.bf16.mxu0 0
        %7164 = vmatpush2.bf16.msra.mxu0 %v7118
        %7165 = vmatprep.subr.bf16.mxu0 0
        %7166 = vmatpush2.bf16.msra.mxu0 %v7117
        %7167 = vmatprep.subr.bf16.mxu0 0
        %7168 = vmatpush2.bf16.msra.mxu0 %v7116
        %7169 = vmatprep.subr.bf16.mxu0 0
        %7170 = vmatpush2.bf16.msra.mxu0 %v7115
        %7171 = vmatprep.mubr.bf16.mxu0 %v6980
        %7172 = vmatmul.mubr.bf16.gmra.mxu0 %v6979
        %v7173 = vpop.f32.mrf.mxu0
        %v7174 = vadd.f32 0.0, %v7173
        %v7175 = vpop.f32.mrf.mxu0
        %v7176 = vpop.f32.mrf.mxu0
        %v7177 = vadd.f32 0.0, %v7176
        %v7178 = vpop.f32.mrf.mxu0
        %7179 = vmatprep.mubr.bf16.mxu0 %v6982
        %7180 = vmatmul.mubr.bf16.gmra.mxu0 %v6981
        %v7181 = vpop.f32.mrf.mxu0
        %v7182 = vadd.f32 0.0, %v7181
        %v7183 = vpop.f32.mrf.mxu0
        %v7184 = vpop.f32.mrf.mxu0
        %v7185 = vadd.f32 0.0, %v7184
        %v7186 = vpop.f32.mrf.mxu0
        %7187 = vmatprep.mubr.bf16.mxu0 %v6984
        %7188 = vmatmul.mubr.bf16.gmra.mxu0 %v6983
        %v7189 = vpop.f32.mrf.mxu0
        %v7190 = vadd.f32 0.0, %v7189
        %v7191 = vpop.f32.mrf.mxu0
        %v7192 = vpop.f32.mrf.mxu0
        %v7193 = vadd.f32 0.0, %v7192
        %v7194 = vpop.f32.mrf.mxu0
        %7195 = vmatprep.mubr.bf16.mxu0 %v6986
        %7196 = vmatmul.mubr.bf16.gmra.mxu0 %v6985
        %v7197 = vpop.f32.mrf.mxu0
        %v7198 = vadd.f32 0.0, %v7197
        %v7199 = vpop.f32.mrf.mxu0
        %v7200 = vpop.f32.mrf.mxu0
        %v7201 = vadd.f32 0.0, %v7200
        %v7202 = vpop.f32.mrf.mxu0
        %7203 = vmatprep.mubr.bf16.mxu0 %v6988
        %7204 = vmatmul.mubr.bf16.gmra.mxu0 %v6987
        %v7205 = vpop.f32.mrf.mxu0
        %v7206 = vadd.f32 0.0, %v7205
        %v7207 = vpop.f32.mrf.mxu0
        %v7208 = vpop.f32.mrf.mxu0
        %v7209 = vadd.f32 0.0, %v7208
        %v7210 = vpop.f32.mrf.mxu0
        %7211 = vmatprep.mubr.bf16.mxu0 %v6990
        %7212 = vmatmul.mubr.bf16.gmra.mxu0 %v6989
        %v7213 = vpop.f32.mrf.mxu0
        %v7214 = vadd.f32 0.0, %v7213
        %v7215 = vpop.f32.mrf.mxu0
        %v7216 = vpop.f32.mrf.mxu0
        %v7217 = vadd.f32 0.0, %v7216
        %v7218 = vpop.f32.mrf.mxu0
        %7219 = vmatprep.mubr.bf16.mxu0 %v6992
        %7220 = vmatmul.mubr.bf16.gmra.mxu0 %v6991
        %v7221 = vpop.f32.mrf.mxu0
        %v7222 = vadd.f32 0.0, %v7221
        %v7223 = vpop.f32.mrf.mxu0
        %v7224 = vpop.f32.mrf.mxu0
        %v7225 = vadd.f32 0.0, %v7224
        %v7226 = vpop.f32.mrf.mxu0
        %7227 = vmatprep.mubr.bf16.mxu0 %v6994
        %7228 = vmatmul.mubr.bf16.gmra.mxu0 %v6993
        %v7229 = vpop.f32.mrf.mxu0
        %v7230 = vadd.f32 0.0, %v7229
        %v7231 = vpop.f32.mrf.mxu0
        %v7232 = vpop.f32.mrf.mxu0
        %v7233 = vadd.f32 0.0, %v7232
        %v7234 = vpop.f32.mrf.mxu0
        %7235 = vmatprep.mubr.bf16.mxu0 %v6996
        %7236 = vmatmul.mubr.bf16.gmra.mxu0 %v6995
        %v7237 = vpop.f32.mrf.mxu0
        %v7238 = vadd.f32 0.0, %v7237
        %v7239 = vpop.f32.mrf.mxu0
        %v7240 = vpop.f32.mrf.mxu0
        %v7241 = vadd.f32 0.0, %v7240
        %v7242 = vpop.f32.mrf.mxu0
        %7243 = vmatprep.mubr.bf16.mxu0 %v6998
        %7244 = vmatmul.mubr.bf16.gmra.mxu0 %v6997
        %v7245 = vpop.f32.mrf.mxu0
        %v7246 = vadd.f32 0.0, %v7245
        %v7247 = vpop.f32.mrf.mxu0
        %v7248 = vpop.f32.mrf.mxu0
        %v7249 = vadd.f32 0.0, %v7248
        %v7250 = vpop.f32.mrf.mxu0
        %7251 = vmatprep.mubr.bf16.mxu0 %v7000
        %7252 = vmatmul.mubr.bf16.gmra.mxu0 %v6999
        %v7253 = vpop.f32.mrf.mxu0
        %v7254 = vadd.f32 0.0, %v7253
        %v7255 = vpop.f32.mrf.mxu0
        %v7256 = vpop.f32.mrf.mxu0
        %v7257 = vadd.f32 0.0, %v7256
        %v7258 = vpop.f32.mrf.mxu0
        %7259 = vmatprep.mubr.bf16.mxu0 %v7002
        %7260 = vmatmul.mubr.bf16.gmra.mxu0 %v7001
        %v7261 = vpop.f32.mrf.mxu0
        %v7262 = vadd.f32 0.0, %v7261
        %v7263 = vpop.f32.mrf.mxu0
        %v7264 = vpop.f32.mrf.mxu0
        %v7265 = vadd.f32 0.0, %v7264
        %v7266 = vpop.f32.mrf.mxu0
        %7267 = vmatprep.mubr.bf16.mxu0 %v7004
        %7268 = vmatmul.mubr.bf16.gmra.mxu0 %v7003
        %v7269 = vpop.f32.mrf.mxu0
        %v7270 = vadd.f32 0.0, %v7269
        %v7271 = vpop.f32.mrf.mxu0
        %v7272 = vpop.f32.mrf.mxu0
        %v7273 = vadd.f32 0.0, %v7272
        %v7274 = vpop.f32.mrf.mxu0
        %7275 = vmatprep.mubr.bf16.mxu0 %v7006
        %7276 = vmatmul.mubr.bf16.gmra.mxu0 %v7005
        %v7277 = vpop.f32.mrf.mxu0
        %v7278 = vadd.f32 0.0, %v7277
        %v7279 = vpop.f32.mrf.mxu0
        %v7280 = vpop.f32.mrf.mxu0
        %v7281 = vadd.f32 0.0, %v7280
        %v7282 = vpop.f32.mrf.mxu0
        %7283 = vmatprep.mubr.bf16.mxu0 %v7008
        %7284 = vmatmul.mubr.bf16.gmra.mxu0 %v7007
        %v7285 = vpop.f32.mrf.mxu0
        %v7286 = vadd.f32 0.0, %v7285
        %v7287 = vpop.f32.mrf.mxu0
        %v7288 = vpop.f32.mrf.mxu0
        %v7289 = vadd.f32 0.0, %v7288
        %v7290 = vpop.f32.mrf.mxu0
        %7291 = vmatprep.mubr.bf16.mxu0 %v7010
        %7292 = vmatmul.mubr.bf16.gmra.mxu0 %v7009
        %v7293 = vpop.f32.mrf.mxu0
        %v7294 = vadd.f32 0.0, %v7293
        %v7295 = vpop.f32.mrf.mxu0
        %v7296 = vpop.f32.mrf.mxu0
        %v7297 = vadd.f32 0.0, %v7296
        %v7298 = vpop.f32.mrf.mxu0
        %7299 = vdwg.mxu0
        %v7300 = vadd.f32 %v4441, %v7174
        %v7301 = vadd.f32 %v4442, %v7177
        %v7302 = vadd.f32 %v4443, %v7182
        %v7303 = vadd.f32 %v4444, %v7185
        %v7304 = vadd.f32 %v4445, %v7190
        %v7305 = vadd.f32 %v4446, %v7193
        %v7306 = vadd.f32 %v4447, %v7198
        %v7307 = vadd.f32 %v4448, %v7201
        %v7308 = vadd.f32 %v4449, %v7206
        %v7309 = vadd.f32 %v4450, %v7209
        %v7310 = vadd.f32 %v4451, %v7214
        %v7311 = vadd.f32 %v4452, %v7217
        %v7312 = vadd.f32 %v4453, %v7222
        %v7313 = vadd.f32 %v4454, %v7225
        %v7314 = vadd.f32 %v4455, %v7230
        %v7315 = vadd.f32 %v4456, %v7233
        %v7316 = vadd.f32 %v4457, %v7238
        %v7317 = vadd.f32 %v4458, %v7241
        %v7318 = vadd.f32 %v4459, %v7246
        %v7319 = vadd.f32 %v4460, %v7249
        %v7320 = vadd.f32 %v4461, %v7254
        %v7321 = vadd.f32 %v4462, %v7257
        %v7322 = vadd.f32 %v4463, %v7262
        %v7323 = vadd.f32 %v4464, %v7265
        %v7324 = vadd.f32 %v4465, %v7270
        %v7325 = vadd.f32 %v4466, %v7273
        %v7326 = vadd.f32 %v4467, %v7278
        %v7327 = vadd.f32 %v4468, %v7281
        %v7328 = vadd.f32 %v4469, %v7286
        %v7329 = vadd.f32 %v4470, %v7289
        %v7330 = vadd.f32 %v4471, %v7294
        %v7331 = vadd.f32 %v4472, %v7297
        %v7332 = vld [vmem:[%s35] sm:$0x1]
        %v7334 = vlaneseq
        %v7335 = vshrl.u32 %v7334, 7
        %v7336 = vsub.s32 0, %v7335
        %v7337 = vrot.slane %v7332, %v7336
        %v7339 = vadd.f32 %v7300, %v7337
        %v7340 = vadd.f32 %v7301, %v7337
        %v7341 = vadd.f32 %v7302, %v7337
        %v7342 = vadd.f32 %v7303, %v7337
        %v7343 = vadd.f32 %v7304, %v7337
        %v7344 = vadd.f32 %v7305, %v7337
        %v7345 = vadd.f32 %v7306, %v7337
        %v7346 = vadd.f32 %v7307, %v7337
        %v7347 = vadd.f32 %v7308, %v7337
        %v7348 = vadd.f32 %v7309, %v7337
        %v7349 = vadd.f32 %v7310, %v7337
        %v7350 = vadd.f32 %v7311, %v7337
        %v7351 = vadd.f32 %v7312, %v7337
        %v7352 = vadd.f32 %v7313, %v7337
        %v7353 = vadd.f32 %v7314, %v7337
        %v7354 = vadd.f32 %v7315, %v7337
        %v7355 = vadd.f32 %v7316, %v7337
        %v7356 = vadd.f32 %v7317, %v7337
        %v7357 = vadd.f32 %v7318, %v7337
        %v7358 = vadd.f32 %v7319, %v7337
        %v7359 = vadd.f32 %v7320, %v7337
        %v7360 = vadd.f32 %v7321, %v7337
        %v7361 = vadd.f32 %v7322, %v7337
        %v7362 = vadd.f32 %v7323, %v7337
        %v7363 = vadd.f32 %v7324, %v7337
        %v7364 = vadd.f32 %v7325, %v7337
        %v7365 = vadd.f32 %v7326, %v7337
        %v7366 = vadd.f32 %v7327, %v7337
        %v7367 = vadd.f32 %v7328, %v7337
        %v7368 = vadd.f32 %v7329, %v7337
        %v7369 = vadd.f32 %v7330, %v7337
        %v7370 = vadd.f32 %v7331, %v7337
        %v7371 = vld [vmem:[#allocation7] sm:$0xff]
        %v7372 = vld [vmem:[#allocation7 + $0x8] sm:$0xff]
        %7373 = vmatprep.subr.mxu0 0.0
        %7374 = vmatpush1.msra.mxu0 %v7354
        %7375 = vmatprep.subr.mxu0 0.0
        %7376 = vmatpush1.msra.mxu0 %v7353
        %7377 = vmatprep.subr.mxu0 0.0
        %7378 = vmatpush1.msra.mxu0 %v7352
        %7379 = vmatprep.subr.mxu0 0.0
        %7380 = vmatpush1.msra.mxu0 %v7351
        %7381 = vmatprep.subr.mxu0 0.0
        %7382 = vmatpush1.msra.mxu0 %v7350
        %7383 = vmatprep.subr.mxu0 0.0
        %7384 = vmatpush1.msra.mxu0 %v7349
        %7385 = vmatprep.subr.mxu0 0.0
        %7386 = vmatpush1.msra.mxu0 %v7348
        %7387 = vmatprep.subr.mxu0 0.0
        %7388 = vmatpush1.msra.mxu0 %v7347
        %7389 = vmatprep.subr.mxu0 0.0
        %7390 = vmatpush1.msra.mxu0 %v7346
        %7391 = vmatprep.subr.mxu0 0.0
        %7392 = vmatpush1.msra.mxu0 %v7345
        %7393 = vmatprep.subr.mxu0 0.0
        %7394 = vmatpush1.msra.mxu0 %v7344
        %7395 = vmatprep.subr.mxu0 0.0
        %7396 = vmatpush1.msra.mxu0 %v7343
        %7397 = vmatprep.subr.mxu0 0.0
        %7398 = vmatpush1.msra.mxu0 %v7342
        %7399 = vmatprep.subr.mxu0 0.0
        %7400 = vmatpush1.msra.mxu0 %v7341
        %7401 = vmatprep.subr.mxu0 0.0
        %7402 = vmatpush1.msra.mxu0 %v7340
        %7403 = vmatprep.subr.mxu0 0.0
        %7404 = vmatpush1.msra.mxu0 %v7339
        %7405 = vmatprep.subr.mxu0 0.0
        %7406 = vmatpush2.msra.mxu0 %v7370
        %7407 = vmatprep.subr.mxu0 0.0
        %7408 = vmatpush2.msra.mxu0 %v7369
        %7409 = vmatprep.subr.mxu0 0.0
        %7410 = vmatpush2.msra.mxu0 %v7368
        %7411 = vmatprep.subr.mxu0 0.0
        %7412 = vmatpush2.msra.mxu0 %v7367
        %7413 = vmatprep.subr.mxu0 0.0
        %7414 = vmatpush2.msra.mxu0 %v7366
        %7415 = vmatprep.subr.mxu0 0.0
        %7416 = vmatpush2.msra.mxu0 %v7365
        %7417 = vmatprep.subr.mxu0 0.0
        %7418 = vmatpush2.msra.mxu0 %v7364
        %7419 = vmatprep.subr.mxu0 0.0
        %7420 = vmatpush2.msra.mxu0 %v7363
        %7421 = vmatprep.subr.mxu0 0.0
        %7422 = vmatpush2.msra.mxu0 %v7362
        %7423 = vmatprep.subr.mxu0 0.0
        %7424 = vmatpush2.msra.mxu0 %v7361
        %7425 = vmatprep.subr.mxu0 0.0
        %7426 = vmatpush2.msra.mxu0 %v7360
        %7427 = vmatprep.subr.mxu0 0.0
        %7428 = vmatpush2.msra.mxu0 %v7359
        %7429 = vmatprep.subr.mxu0 0.0
        %7430 = vmatpush2.msra.mxu0 %v7358
        %7431 = vmatprep.subr.mxu0 0.0
        %7432 = vmatpush2.msra.mxu0 %v7357
        %7433 = vmatprep.subr.mxu0 0.0
        %7434 = vmatpush2.msra.mxu0 %v7356
        %7435 = vmatprep.subr.mxu0 0.0
        %7436 = vmatpush2.msra.mxu0 %v7355
        %7437 = vmatprep.mubr.f32.mxu0 %v7372
        %7438 = vmatmul.mubr.f32.gmra.mxu0 %v7371
        %v7439 = vpop.f32.mrf.mxu0
        %v7440 = vadd.f32 0.0, %v7439
        %v7441 = vpop.f32.mrf.mxu0
        %7442 = vdwg.mxu0
        %v7443 = vld [vmem:[#allocation8] sm:$0xff]
        %v7444 = vld [vmem:[%s37] sm:$0x7]
        %7445 = vadd.xlane.f32.xlu0 %v7440
        %v7446 = vpop.xlane.xlu0 %7445
        %v7447 = vmul.f32 %v7446, 0.015625
        %v7448 = vsub.f32 %v7440, %v7447
        %v7449 = vlaneseq
        %v7450 = vshrl.u32 %v7449, 7
        %v7451 = vsub.s32 2, %v7450
        %v7452 = vrot.slane %v7444, %v7451
        %v7453 = vmul.f32 %v7448, %v7452
        %v7454 = vmul.f32 %v7453, %v7453
        %7455 = vadd.xlane.f32.xlu0 %v7454
        %v7456 = vpop.xlane.xlu0 %7455
        %v7457 = vmul.f32 %v7456, 0.015625
        %v7458 = vadd.f32 %v7457, 1e-05
        %v7459 = vrsqrt.pop %v7458
        %v7460 = vmul.f32 %v7453, %v7459
        %v7461 = vlaneseq
        %v7462 = vshrl.u32 %v7461, 7
        %v7463 = vsub.s32 0, %v7462
        %v7464 = vrot.slane %v7444, %v7463
        %v7465 = vmul.f32 %v7460, %v7464
        %v7466 = vlaneseq
        %v7467 = vshrl.u32 %v7466, 7
        %v7468 = vsub.s32 1, %v7467
        %v7469 = vrot.slane %v7444, %v7468
        %v7470 = vadd.f32 %v7465, %v7469
        %v7471 = vpack.c.bf16 %v7470, %v7470
        %v7472 = vld [vmem:[#allocation25] sm:$0xff]
        %v7473 = vld [vmem:[#allocation25 + $0x8] sm:$0xf]
        %v7474 = vld [vmem:[#allocation25 + $0xc] sm:$0xff]
        %v7475 = vld [vmem:[#allocation25 + $0x14] sm:$0xf]
        %v7476 = vld [vmem:[#allocation25 + $0x18] sm:$0xff]
        %v7477 = vld [vmem:[#allocation25 + $0x20] sm:$0xf]
        %v7478 = vld [vmem:[#allocation25 + $0x24] sm:$0xff]
        %v7479 = vld [vmem:[#allocation25 + $0x2c] sm:$0xf]
        %v7480 = vld [vmem:[#allocation25 + $0x30] sm:$0xff]
        %v7481 = vld [vmem:[#allocation25 + $0x38] sm:$0xf]
        %v7482 = vld [vmem:[#allocation25 + $0x3c] sm:$0xff]
        %v7483 = vld [vmem:[#allocation25 + $0x44] sm:$0xf]
        %v7484 = vld [vmem:[#allocation25 + $0x48] sm:$0xff]
        %v7485 = vld [vmem:[#allocation25 + $0x50] sm:$0xf]
        %v7486 = vld [vmem:[#allocation25 + $0x54] sm:$0xff]
        %v7487 = vld [vmem:[#allocation25 + $0x5c] sm:$0xf]
        %v7488 = vld [vmem:[#allocation25 + $0x60] sm:$0xff]
        %v7489 = vld [vmem:[#allocation25 + $0x68] sm:$0xf]
        %v7490 = vld [vmem:[#allocation25 + $0x6c] sm:$0xff]
        %v7491 = vld [vmem:[#allocation25 + $0x74] sm:$0xf]
        %v7492 = vld [vmem:[#allocation25 + $0x78] sm:$0xff]
        %v7493 = vld [vmem:[#allocation25 + $0x80] sm:$0xf]
        %v7494 = vld [vmem:[#allocation25 + $0x84] sm:$0xff]
        %v7495 = vld [vmem:[#allocation25 + $0x8c] sm:$0xf]
        %v7496 = vld [vmem:[#allocation25 + $0x90] sm:$0xff]
        %v7497 = vld [vmem:[#allocation25 + $0x98] sm:$0xf]
        %v7498 = vld [vmem:[#allocation25 + $0x9c] sm:$0xff]
        %v7499 = vld [vmem:[#allocation25 + $0xa4] sm:$0xf]
        %v7500 = vld [vmem:[#allocation25 + $0xa8] sm:$0xff]
        %v7501 = vld [vmem:[#allocation25 + $0xb0] sm:$0xf]
        %v7502 = vld [vmem:[#allocation25 + $0xb4] sm:$0xff]
        %v7503 = vld [vmem:[#allocation25 + $0xbc] sm:$0xf]
        %v7504 = vld [vmem:[%s41] sm:$0x7]
        %v7506 = vlaneseq
        %v7507 = vshrl.u32 %v7506, 7
        %v7508 = vsub.s32 0, %v7507
        %v7509 = vrot.slane %v7504, %v7508
        %v7510 = vlaneseq
        %v7511 = vshrl.u32 %v7510, 7
        %v7512 = vsub.s32 1, %v7511
        %v7513 = vrot.slane %v7504, %v7512
        %v7514 = vlaneseq
        %v7515 = vshrl.u32 %v7514, 7
        %v7516 = vsub.s32 2, %v7515
        %v7517 = vrot.slane %v7504, %v7516
        %v7553 = vunpack.c.l.b16 %v7472
        %v7554 = vunpack.c.h.b16 %v7472
        %v7555 = vunpack.c.l.b16 %v7473
        %v7556 = vunpack.c.l.b16 %v7474
        %v7557 = vunpack.c.h.b16 %v7474
        %v7558 = vunpack.c.l.b16 %v7475
        %v7559 = vunpack.c.l.b16 %v7476
        %v7560 = vunpack.c.h.b16 %v7476
        %v7561 = vunpack.c.l.b16 %v7477
        %v7562 = vunpack.c.l.b16 %v7478
        %v7563 = vunpack.c.h.b16 %v7478
        %v7564 = vunpack.c.l.b16 %v7479
        %v7565 = vunpack.c.l.b16 %v7480
        %v7566 = vunpack.c.h.b16 %v7480
        %v7567 = vunpack.c.l.b16 %v7481
        %v7568 = vunpack.c.l.b16 %v7482
        %v7569 = vunpack.c.h.b16 %v7482
        %v7570 = vunpack.c.l.b16 %v7483
        %v7571 = vunpack.c.l.b16 %v7484
        %v7572 = vunpack.c.h.b16 %v7484
        %v7573 = vunpack.c.l.b16 %v7485
        %v7574 = vunpack.c.l.b16 %v7486
        %v7575 = vunpack.c.h.b16 %v7486
        %v7576 = vunpack.c.l.b16 %v7487
        %v7577 = vunpack.c.l.b16 %v7488
        %v7578 = vunpack.c.h.b16 %v7488
        %v7579 = vunpack.c.l.b16 %v7489
        %v7580 = vunpack.c.l.b16 %v7490
        %v7581 = vunpack.c.h.b16 %v7490
        %v7582 = vunpack.c.l.b16 %v7491
        %v7583 = vunpack.c.l.b16 %v7492
        %v7584 = vunpack.c.h.b16 %v7492
        %v7585 = vunpack.c.l.b16 %v7493
        %v7586 = vunpack.c.l.b16 %v7494
        %v7587 = vunpack.c.h.b16 %v7494
        %v7588 = vunpack.c.l.b16 %v7495
        %v7589 = vunpack.c.l.b16 %v7496
        %v7590 = vunpack.c.h.b16 %v7496
        %v7591 = vunpack.c.l.b16 %v7497
        %v7592 = vunpack.c.l.b16 %v7498
        %v7593 = vunpack.c.h.b16 %v7498
        %v7594 = vunpack.c.l.b16 %v7499
        %v7595 = vunpack.c.l.b16 %v7500
        %v7596 = vunpack.c.h.b16 %v7500
        %v7597 = vunpack.c.l.b16 %v7501
        %v7598 = vunpack.c.l.b16 %v7502
        %v7599 = vunpack.c.h.b16 %v7502
        %v7600 = vunpack.c.l.b16 %v7503
        %v7601 = vpack.c.b16 %v7556, %v7553
        %v7602 = vpack.c.b16 %v7557, %v7554
        %v7603 = vpack.c.b16 %v7558, %v7555
        %v7604 = vpack.c.b16 %v7562, %v7559
        %v7605 = vpack.c.b16 %v7563, %v7560
        %v7606 = vpack.c.b16 %v7564, %v7561
        %v7607 = vpack.c.b16 %v7568, %v7565
        %v7608 = vpack.c.b16 %v7569, %v7566
        %v7609 = vpack.c.b16 %v7570, %v7567
        %v7610 = vpack.c.b16 %v7574, %v7571
        %v7611 = vpack.c.b16 %v7575, %v7572
        %v7612 = vpack.c.b16 %v7576, %v7573
        %v7613 = vpack.c.b16 %v7580, %v7577
        %v7614 = vpack.c.b16 %v7581, %v7578
        %v7615 = vpack.c.b16 %v7582, %v7579
        %v7616 = vpack.c.b16 %v7586, %v7583
        %v7617 = vpack.c.b16 %v7587, %v7584
        %v7618 = vpack.c.b16 %v7588, %v7585
        %v7619 = vpack.c.b16 %v7592, %v7589
        %v7620 = vpack.c.b16 %v7593, %v7590
        %v7621 = vpack.c.b16 %v7594, %v7591
        %v7622 = vpack.c.b16 %v7598, %v7595
        %v7623 = vpack.c.b16 %v7599, %v7596
        %v7624 = vpack.c.b16 %v7600, %v7597
        %7649 = vmatprep.subr.bf16.mxu0 %v7623
        %7650 = vmatpush1.bf16.msra.mxu0 %v7622
        %7651 = vmatprep.subr.bf16.mxu0 %v7620
        %7652 = vmatpush1.bf16.msra.mxu0 %v7619
        %7653 = vmatprep.subr.bf16.mxu0 %v7617
        %7654 = vmatpush1.bf16.msra.mxu0 %v7616
        %7655 = vmatprep.subr.bf16.mxu0 %v7614
        %7656 = vmatpush1.bf16.msra.mxu0 %v7613
        %7657 = vmatprep.subr.bf16.mxu0 %v7611
        %7658 = vmatpush1.bf16.msra.mxu0 %v7610
        %7659 = vmatprep.subr.bf16.mxu0 %v7608
        %7660 = vmatpush1.bf16.msra.mxu0 %v7607
        %7661 = vmatprep.subr.bf16.mxu0 %v7605
        %7662 = vmatpush1.bf16.msra.mxu0 %v7604
        %7663 = vmatprep.subr.bf16.mxu0 %v7602
        %7664 = vmatpush1.bf16.msra.mxu0 %v7601
        %7665 = vmatprep.subr.bf16.mxu0 0
        %7666 = vmatpush2.bf16.msra.mxu0 0
        %7667 = vmatprep.subr.bf16.mxu0 0
        %7668 = vmatpush2.bf16.msra.mxu0 0
        %7669 = vmatprep.subr.bf16.mxu0 0
        %7670 = vmatpush2.bf16.msra.mxu0 0
        %7671 = vmatprep.subr.bf16.mxu0 0
        %7672 = vmatpush2.bf16.msra.mxu0 0
        %7673 = vmatprep.subr.bf16.mxu0 0
        %7674 = vmatpush2.bf16.msra.mxu0 0
        %7675 = vmatprep.subr.bf16.mxu0 0
        %7676 = vmatpush2.bf16.msra.mxu0 0
        %7677 = vmatprep.subr.bf16.mxu0 0
        %7678 = vmatpush2.bf16.msra.mxu0 0
        %7679 = vmatprep.subr.bf16.mxu0 0
        %7680 = vmatpush2.bf16.msra.mxu0 0
        %7681 = vmatprep.mubr.bf16.mxu0 0
        %7682 = vmatmul.mubr.bf16.gmra.mxu0 %v7471
        %v7683 = vpop.f32.mrf.mxu0
        %v7684 = vadd.f32 %v7509, %v7683
        %v7685 = vpop.f32.mrf.mxu0
        %v7686 = vadd.f32 %v7513, %v7685
        %v7687 = vpop.f32.mrf.mxu0
        %v7688 = vpop.f32.mrf.mxu0
        %7689 = vdwg.mxu0
        %7690 = vmatprep.subr.bf16.mxu0 0
        %7691 = vmatpush1.bf16.msra.mxu0 %v7624
        %7692 = vmatprep.subr.bf16.mxu0 0
        %7693 = vmatpush1.bf16.msra.mxu0 %v7621
        %7694 = vmatprep.subr.bf16.mxu0 0
        %7695 = vmatpush1.bf16.msra.mxu0 %v7618
        %7696 = vmatprep.subr.bf16.mxu0 0
        %7697 = vmatpush1.bf16.msra.mxu0 %v7615
        %7698 = vmatprep.subr.bf16.mxu0 0
        %7699 = vmatpush1.bf16.msra.mxu0 %v7612
        %7700 = vmatprep.subr.bf16.mxu0 0
        %7701 = vmatpush1.bf16.msra.mxu0 %v7609
        %7702 = vmatprep.subr.bf16.mxu0 0
        %7703 = vmatpush1.bf16.msra.mxu0 %v7606
        %7704 = vmatprep.subr.bf16.mxu0 0
        %7705 = vmatpush1.bf16.msra.mxu0 %v7603
        %7706 = vmatprep.subr.bf16.mxu0 0
        %7707 = vmatpush2.bf16.msra.mxu0 0
        %7708 = vmatprep.subr.bf16.mxu0 0
        %7709 = vmatpush2.bf16.msra.mxu0 0
        %7710 = vmatprep.subr.bf16.mxu0 0
        %7711 = vmatpush2.bf16.msra.mxu0 0
        %7712 = vmatprep.subr.bf16.mxu0 0
        %7713 = vmatpush2.bf16.msra.mxu0 0
        %7714 = vmatprep.subr.bf16.mxu0 0
        %7715 = vmatpush2.bf16.msra.mxu0 0
        %7716 = vmatprep.subr.bf16.mxu0 0
        %7717 = vmatpush2.bf16.msra.mxu0 0
        %7718 = vmatprep.subr.bf16.mxu0 0
        %7719 = vmatpush2.bf16.msra.mxu0 0
        %7720 = vmatprep.subr.bf16.mxu0 0
        %7721 = vmatpush2.bf16.msra.mxu0 0
        %7722 = vmatprep.mubr.bf16.mxu0 0
        %7723 = vmatmul.mubr.bf16.gmra.mxu0 %v7471
        %v7724 = vpop.f32.mrf.mxu0
        %v7725 = vadd.f32 %v7517, %v7724
        %v7726 = vpop.f32.mrf.mxu0
        %v7727 = vpop.f32.mrf.mxu0
        %v7728 = vpop.f32.mrf.mxu0
        %7729 = vdwg.mxu0
        %v7730 = vld [vmem:[#allocation26] sm:$0xf]
        %v7731 = vld [vmem:[#allocation26 + $0x4] sm:$0xf]
        %v7732 = vld [vmem:[#allocation26 + $0x8] sm:$0xf]
        %v7733 = vld [vmem:[#allocation26 + $0xc] sm:$0xf]
        %v7734 = vld [vmem:[#allocation26 + $0x10] sm:$0xf]
        %v7735 = vld [vmem:[#allocation26 + $0x14] sm:$0xf]
        %v7736 = vld [vmem:[#allocation26 + $0x18] sm:$0xf]
        %v7737 = vld [vmem:[#allocation26 + $0x1c] sm:$0xf]
        %v7738 = vmul.f32 %v7684, 0.5
        %v7739 = vpack.c.bf16 %v7738, %v7738
        %v7740 = vmul.f32 %v7686, 0.5
        %v7741 = vpack.c.bf16 %v7740, %v7740
        %v7742 = vpack.c.bf16 %v7725, %v7725
        %vm7743 = vcmask 130048
        %v7745 = vsel %vm7743, %v7739, 0
        %v7748 = vsel %vm7743, %v7741, 0
        %7750 = vmatprep.subr.bf16.mxu0 0
        %7751 = vmatpush1.bf16.xpose.msra.mxu0 0
        %7752 = vmatprep.subr.bf16.mxu0 0
        %7753 = vmatpush1.bf16.xpose.msra.mxu0 0
        %7754 = vmatprep.subr.bf16.mxu0 0
        %7755 = vmatpush1.bf16.xpose.msra.mxu0 0
        %7756 = vmatprep.subr.bf16.mxu0 0
        %7757 = vmatpush1.bf16.xpose.msra.mxu0 0
        %7758 = vmatprep.subr.bf16.mxu0 0
        %7759 = vmatpush1.bf16.xpose.msra.mxu0 0
        %7760 = vmatprep.subr.bf16.mxu0 0
        %7761 = vmatpush1.bf16.xpose.msra.mxu0 0
        %7762 = vmatprep.subr.bf16.mxu0 0
        %7763 = vmatpush1.bf16.xpose.msra.mxu0 0
        %7764 = vmatprep.subr.bf16.mxu0 0
        %7765 = vmatpush1.bf16.xpose.msra.mxu0 %v7748
        %7766 = vmatprep.subr.bf16.mxu0 0
        %7767 = vmatpush2.bf16.xpose.msra.mxu0 0
        %7768 = vmatprep.subr.bf16.mxu0 0
        %7769 = vmatpush2.bf16.xpose.msra.mxu0 0
        %7770 = vmatprep.subr.bf16.mxu0 0
        %7771 = vmatpush2.bf16.xpose.msra.mxu0 0
        %7772 = vmatprep.subr.bf16.mxu0 0
        %7773 = vmatpush2.bf16.xpose.msra.mxu0 0
        %7774 = vmatprep.subr.bf16.mxu0 0
        %7775 = vmatpush2.bf16.xpose.msra.mxu0 0
        %7776 = vmatprep.subr.bf16.mxu0 0
        %7777 = vmatpush2.bf16.xpose.msra.mxu0 0
        %7778 = vmatprep.subr.bf16.mxu0 0
        %7779 = vmatpush2.bf16.xpose.msra.mxu0 0
        %7780 = vmatprep.subr.bf16.mxu0 0
        %7781 = vmatpush2.bf16.xpose.msra.mxu0 0
        %7782 = vmatprep.mubr.bf16.mxu0 0
        %7783 = vmatmul.mubr.bf16.gmra.mxu0 %v7745
        %v7784 = vpop.f32.mrf.mxu0
        %v7785 = vadd.f32 %v7443, %v7784
        %v7786 = vpop.f32.mrf.mxu0
        %v7787 = vpop.f32.mrf.mxu0
        %v7788 = vpop.f32.mrf.mxu0
        %7789 = vdwg.mxu0
        %vm7790 = vcmask 64512
        %v7791 = vsel %vm7790, %v7785, -inf
        %7792 = vmax.xlane.f32.xlu0 %v7791
        %v7793 = vpop.xlane.xlu0 %7792
        %v7794 = vsub.f32 %v7785, %v7793
        %v7795 = vmul.f32 %v7794, 1.442695
        %v7796 = vpow.pop %v7795
        %v7797 = vsel %vm7790, %v7796, 0.0
        %7798 = vadd.xlane.f32.xlu0 %v7797
        %v7799 = vpop.xlane.xlu0 %7798
        %v7800 = vrcp.pop %v7799
        %v7801 = vmul.f32 %v7796, %v7800
        %v7802 = vpack.c.bf16 %v7801, %v7801
        %v7804 = vsel %vm7790, %v7802, 0
        %vm7806 = vcmask 1043456
        %v7808 = vsel %vm7806, %v7742, 0
        %7810 = vmatprep.subr.bf16.mxu0 0
        %7811 = vmatpush1.bf16.msra.mxu0 0
        %7812 = vmatprep.subr.bf16.mxu0 0
        %7813 = vmatpush1.bf16.msra.mxu0 0
        %7814 = vmatprep.subr.bf16.mxu0 0
        %7815 = vmatpush1.bf16.msra.mxu0 0
        %7816 = vmatprep.subr.bf16.mxu0 0
        %7817 = vmatpush1.bf16.msra.mxu0 0
        %7818 = vmatprep.subr.bf16.mxu0 0
        %7819 = vmatpush1.bf16.msra.mxu0 0
        %7820 = vmatprep.subr.bf16.mxu0 0
        %7821 = vmatpush1.bf16.msra.mxu0 0
        %7822 = vmatprep.subr.bf16.mxu0 0
        %7823 = vmatpush1.bf16.msra.mxu0 0
        %7824 = vmatprep.subr.bf16.mxu0 0
        %7825 = vmatpush1.bf16.msra.mxu0 %v7808
        %7826 = vmatprep.subr.bf16.mxu0 0
        %7827 = vmatpush2.bf16.msra.mxu0 0
        %7828 = vmatprep.subr.bf16.mxu0 0
        %7829 = vmatpush2.bf16.msra.mxu0 0
        %7830 = vmatprep.subr.bf16.mxu0 0
        %7831 = vmatpush2.bf16.msra.mxu0 0
        %7832 = vmatprep.subr.bf16.mxu0 0
        %7833 = vmatpush2.bf16.msra.mxu0 0
        %7834 = vmatprep.subr.bf16.mxu0 0
        %7835 = vmatpush2.bf16.msra.mxu0 0
        %7836 = vmatprep.subr.bf16.mxu0 0
        %7837 = vmatpush2.bf16.msra.mxu0 0
        %7838 = vmatprep.subr.bf16.mxu0 0
        %7839 = vmatpush2.bf16.msra.mxu0 0
        %7840 = vmatprep.subr.bf16.mxu0 0
        %7841 = vmatpush2.bf16.msra.mxu0 0
        %7842 = vmatprep.mubr.bf16.mxu0 0
        %7843 = vmatmul.mubr.bf16.gmra.mxu0 %v7804
        %v7844 = vpop.f32.mrf.mxu0
        %v7845 = vadd.f32 0.0, %v7844
        %v7846 = vpop.f32.mrf.mxu0
        %v7847 = vpop.f32.mrf.mxu0
        %v7848 = vpop.f32.mrf.mxu0
        %7849 = vdwg.mxu0
        %v7850 = vpack.c.bf16 %v7845, %v7845
        %7852 = vrot.lane.b32.xlu0 %v7739, 112
        %v7853 = vpop.permute.xlu0 %7852
        %7855 = vrot.lane.b32.xlu0 %v7741, 112
        %v7856 = vpop.permute.xlu0 %7855
        %v7858 = vsel %vm7743, %v7853, 0
        %v7861 = vsel %vm7743, %v7856, 0
        %7863 = vmatprep.subr.bf16.mxu0 0
        %7864 = vmatpush1.bf16.xpose.msra.mxu0 0
        %7865 = vmatprep.subr.bf16.mxu0 0
        %7866 = vmatpush1.bf16.xpose.msra.mxu0 0
        %7867 = vmatprep.subr.bf16.mxu0 0
        %7868 = vmatpush1.bf16.xpose.msra.mxu0 0
        %7869 = vmatprep.subr.bf16.mxu0 0
        %7870 = vmatpush1.bf16.xpose.msra.mxu0 0
        %7871 = vmatprep.subr.bf16.mxu0 0
        %7872 = vmatpush1.bf16.xpose.msra.mxu0 0
        %7873 = vmatprep.subr.bf16.mxu0 0
        %7874 = vmatpush1.bf16.xpose.msra.mxu0 0
        %7875 = vmatprep.subr.bf16.mxu0 0
        %7876 = vmatpush1.bf16.xpose.msra.mxu0 0
        %7877 = vmatprep.subr.bf16.mxu0 0
        %7878 = vmatpush1.bf16.xpose.msra.mxu0 %v7861
        %7879 = vmatprep.subr.bf16.mxu0 0
        %7880 = vmatpush2.bf16.xpose.msra.mxu0 0
        %7881 = vmatprep.subr.bf16.mxu0 0
        %7882 = vmatpush2.bf16.xpose.msra.mxu0 0
        %7883 = vmatprep.subr.bf16.mxu0 0
        %7884 = vmatpush2.bf16.xpose.msra.mxu0 0
        %7885 = vmatprep.subr.bf16.mxu0 0
        %7886 = vmatpush2.bf16.xpose.msra.mxu0 0
        %7887 = vmatprep.subr.bf16.mxu0 0
        %7888 = vmatpush2.bf16.xpose.msra.mxu0 0
        %7889 = vmatprep.subr.bf16.mxu0 0
        %7890 = vmatpush2.bf16.xpose.msra.mxu0 0
        %7891 = vmatprep.subr.bf16.mxu0 0
        %7892 = vmatpush2.bf16.xpose.msra.mxu0 0
        %7893 = vmatprep.subr.bf16.mxu0 0
        %7894 = vmatpush2.bf16.xpose.msra.mxu0 0
        %7895 = vmatprep.mubr.bf16.mxu0 0
        %7896 = vmatmul.mubr.bf16.gmra.mxu0 %v7858
        %v7897 = vpop.f32.mrf.mxu0
        %v7898 = vadd.f32 %v7443, %v7897
        %v7899 = vpop.f32.mrf.mxu0
        %v7900 = vpop.f32.mrf.mxu0
        %v7901 = vpop.f32.mrf.mxu0
        %7902 = vdwg.mxu0
        %v7903 = vsel %vm7790, %v7898, -inf
        %7904 = vmax.xlane.f32.xlu0 %v7903
        %v7905 = vpop.xlane.xlu0 %7904
        %v7906 = vsub.f32 %v7898, %v7905
        %v7907 = vmul.f32 %v7906, 1.442695
        %v7908 = vpow.pop %v7907
        %v7909 = vsel %vm7790, %v7908, 0.0
        %7910 = vadd.xlane.f32.xlu0 %v7909
        %v7911 = vpop.xlane.xlu0 %7910
        %v7912 = vrcp.pop %v7911
        %v7913 = vmul.f32 %v7908, %v7912
        %v7914 = vpack.c.bf16 %v7913, %v7913
        %7916 = vrot.lane.b32.xlu0 %v7742, 112
        %v7917 = vpop.permute.xlu0 %7916
        %v7919 = vsel %vm7790, %v7914, 0
        %v7922 = vsel %vm7806, %v7917, 0
        %7924 = vmatprep.subr.bf16.mxu0 0
        %7925 = vmatpush1.bf16.msra.mxu0 0
        %7926 = vmatprep.subr.bf16.mxu0 0
        %7927 = vmatpush1.bf16.msra.mxu0 0
        %7928 = vmatprep.subr.bf16.mxu0 0
        %7929 = vmatpush1.bf16.msra.mxu0 0
        %7930 = vmatprep.subr.bf16.mxu0 0
        %7931 = vmatpush1.bf16.msra.mxu0 0
        %7932 = vmatprep.subr.bf16.mxu0 0
        %7933 = vmatpush1.bf16.msra.mxu0 0
        %7934 = vmatprep.subr.bf16.mxu0 0
        %7935 = vmatpush1.bf16.msra.mxu0 0
        %7936 = vmatprep.subr.bf16.mxu0 0
        %7937 = vmatpush1.bf16.msra.mxu0 0
        %7938 = vmatprep.subr.bf16.mxu0 0
        %7939 = vmatpush1.bf16.msra.mxu0 %v7922
        %7940 = vmatprep.subr.bf16.mxu0 0
        %7941 = vmatpush2.bf16.msra.mxu0 0
        %7942 = vmatprep.subr.bf16.mxu0 0
        %7943 = vmatpush2.bf16.msra.mxu0 0
        %7944 = vmatprep.subr.bf16.mxu0 0
        %7945 = vmatpush2.bf16.msra.mxu0 0
        %7946 = vmatprep.subr.bf16.mxu0 0
        %7947 = vmatpush2.bf16.msra.mxu0 0
        %7948 = vmatprep.subr.bf16.mxu0 0
        %7949 = vmatpush2.bf16.msra.mxu0 0
        %7950 = vmatprep.subr.bf16.mxu0 0
        %7951 = vmatpush2.bf16.msra.mxu0 0
        %7952 = vmatprep.subr.bf16.mxu0 0
        %7953 = vmatpush2.bf16.msra.mxu0 0
        %7954 = vmatprep.subr.bf16.mxu0 0
        %7955 = vmatpush2.bf16.msra.mxu0 0
        %7956 = vmatprep.mubr.bf16.mxu0 0
        %7957 = vmatmul.mubr.bf16.gmra.mxu0 %v7919
        %v7958 = vpop.f32.mrf.mxu0
        %v7959 = vadd.f32 0.0, %v7958
        %v7960 = vpop.f32.mrf.mxu0
        %v7961 = vpop.f32.mrf.mxu0
        %v7962 = vpop.f32.mrf.mxu0
        %7963 = vdwg.mxu0
        %v7964 = vpack.c.bf16 %v7959, %v7959
        %v7967 = vunpack.c.l.b16 %v7732
        %v7968 = vunpack.c.l.b16 %v7733
        %v7969 = vpack.c.b16 %v7968, %v7967
        %v7972 = vsel %vm7743, %v7964, 0
        %7974 = vmatprep.subr.bf16.mxu0 0
        %7975 = vmatpush1.bf16.msra.mxu0 0
        %7976 = vmatprep.subr.bf16.mxu0 0
        %7977 = vmatpush1.bf16.msra.mxu0 0
        %7978 = vmatprep.subr.bf16.mxu0 0
        %7979 = vmatpush1.bf16.msra.mxu0 0
        %7980 = vmatprep.subr.bf16.mxu0 0
        %7981 = vmatpush1.bf16.msra.mxu0 0
        %7982 = vmatprep.subr.bf16.mxu0 0
        %7983 = vmatpush1.bf16.msra.mxu0 0
        %7984 = vmatprep.subr.bf16.mxu0 0
        %7985 = vmatpush1.bf16.msra.mxu0 0
        %7986 = vmatprep.subr.bf16.mxu0 0
        %7987 = vmatpush1.bf16.msra.mxu0 0
        %7988 = vmatprep.subr.bf16.mxu0 0
        %7989 = vmatpush1.bf16.msra.mxu0 %v7969
        %7990 = vmatprep.subr.bf16.mxu0 0
        %7991 = vmatpush2.bf16.msra.mxu0 0
        %7992 = vmatprep.subr.bf16.mxu0 0
        %7993 = vmatpush2.bf16.msra.mxu0 0
        %7994 = vmatprep.subr.bf16.mxu0 0
        %7995 = vmatpush2.bf16.msra.mxu0 0
        %7996 = vmatprep.subr.bf16.mxu0 0
        %7997 = vmatpush2.bf16.msra.mxu0 0
        %7998 = vmatprep.subr.bf16.mxu0 0
        %7999 = vmatpush2.bf16.msra.mxu0 0
        %8000 = vmatprep.subr.bf16.mxu0 0
        %8001 = vmatpush2.bf16.msra.mxu0 0
        %8002 = vmatprep.subr.bf16.mxu0 0
        %8003 = vmatpush2.bf16.msra.mxu0 0
        %8004 = vmatprep.subr.bf16.mxu0 0
        %8005 = vmatpush2.bf16.msra.mxu0 0
        %8006 = vmatprep.mubr.bf16.mxu0 0
        %8007 = vmatmul.mubr.bf16.gmra.mxu0 %v7972
        %v8008 = vpop.f32.mrf.mxu0
        %v8009 = vadd.f32 0.0, %v8008
        %v8010 = vpop.f32.mrf.mxu0
        %v8011 = vpop.f32.mrf.mxu0
        %v8012 = vpop.f32.mrf.mxu0
        %8013 = vdwg.mxu0
        %v8016 = vunpack.c.l.b16 %v7730
        %v8017 = vunpack.c.l.b16 %v7731
        %v8018 = vpack.c.b16 %v8017, %v8016
        %v8021 = vsel %vm7743, %v7850, 0
        %8023 = vmatprep.subr.bf16.mxu0 0
        %8024 = vmatpush1.bf16.msra.mxu0 0
        %8025 = vmatprep.subr.bf16.mxu0 0
        %8026 = vmatpush1.bf16.msra.mxu0 0
        %8027 = vmatprep.subr.bf16.mxu0 0
        %8028 = vmatpush1.bf16.msra.mxu0 0
        %8029 = vmatprep.subr.bf16.mxu0 0
        %8030 = vmatpush1.bf16.msra.mxu0 0
        %8031 = vmatprep.subr.bf16.mxu0 0
        %8032 = vmatpush1.bf16.msra.mxu0 0
        %8033 = vmatprep.subr.bf16.mxu0 0
        %8034 = vmatpush1.bf16.msra.mxu0 0
        %8035 = vmatprep.subr.bf16.mxu0 0
        %8036 = vmatpush1.bf16.msra.mxu0 0
        %8037 = vmatprep.subr.bf16.mxu0 0
        %8038 = vmatpush1.bf16.msra.mxu0 %v8018
        %8039 = vmatprep.subr.bf16.mxu0 0
        %8040 = vmatpush2.bf16.msra.mxu0 0
        %8041 = vmatprep.subr.bf16.mxu0 0
        %8042 = vmatpush2.bf16.msra.mxu0 0
        %8043 = vmatprep.subr.bf16.mxu0 0
        %8044 = vmatpush2.bf16.msra.mxu0 0
        %8045 = vmatprep.subr.bf16.mxu0 0
        %8046 = vmatpush2.bf16.msra.mxu0 0
        %8047 = vmatprep.subr.bf16.mxu0 0
        %8048 = vmatpush2.bf16.msra.mxu0 0
        %8049 = vmatprep.subr.bf16.mxu0 0
        %8050 = vmatpush2.bf16.msra.mxu0 0
        %8051 = vmatprep.subr.bf16.mxu0 0
        %8052 = vmatpush2.bf16.msra.mxu0 0
        %8053 = vmatprep.subr.bf16.mxu0 0
        %8054 = vmatpush2.bf16.msra.mxu0 0
        %8055 = vmatprep.mubr.bf16.mxu0 0
        %8056 = vmatmul.mubr.bf16.gmra.mxu0 %v8021
        %v8057 = vpop.f32.mrf.mxu0
        %v8058 = vadd.f32 %v8009, %v8057
        %v8059 = vpop.f32.mrf.mxu0
        %v8060 = vpop.f32.mrf.mxu0
        %v8061 = vpop.f32.mrf.mxu0
        %8062 = vdwg.mxu0
        %8063 = vrot.lane.b32.xlu0 %v7739, 96
        %v8064 = vpop.permute.xlu0 %8063
        %8065 = vrot.lane.b32.xlu0 %v7741, 96
        %v8066 = vpop.permute.xlu0 %8065
        %v8068 = vsel %vm7743, %v8064, 0
        %v8071 = vsel %vm7743, %v8066, 0
        %8073 = vmatprep.subr.bf16.mxu0 0
        %8074 = vmatpush1.bf16.xpose.msra.mxu0 0
        %8075 = vmatprep.subr.bf16.mxu0 0
        %8076 = vmatpush1.bf16.xpose.msra.mxu0 0
        %8077 = vmatprep.subr.bf16.mxu0 0
        %8078 = vmatpush1.bf16.xpose.msra.mxu0 0
        %8079 = vmatprep.subr.bf16.mxu0 0
        %8080 = vmatpush1.bf16.xpose.msra.mxu0 0
        %8081 = vmatprep.subr.bf16.mxu0 0
        %8082 = vmatpush1.bf16.xpose.msra.mxu0 0
        %8083 = vmatprep.subr.bf16.mxu0 0
        %8084 = vmatpush1.bf16.xpose.msra.mxu0 0
        %8085 = vmatprep.subr.bf16.mxu0 0
        %8086 = vmatpush1.bf16.xpose.msra.mxu0 0
        %8087 = vmatprep.subr.bf16.mxu0 0
        %8088 = vmatpush1.bf16.xpose.msra.mxu0 %v8071
        %8089 = vmatprep.subr.bf16.mxu0 0
        %8090 = vmatpush2.bf16.xpose.msra.mxu0 0
        %8091 = vmatprep.subr.bf16.mxu0 0
        %8092 = vmatpush2.bf16.xpose.msra.mxu0 0
        %8093 = vmatprep.subr.bf16.mxu0 0
        %8094 = vmatpush2.bf16.xpose.msra.mxu0 0
        %8095 = vmatprep.subr.bf16.mxu0 0
        %8096 = vmatpush2.bf16.xpose.msra.mxu0 0
        %8097 = vmatprep.subr.bf16.mxu0 0
        %8098 = vmatpush2.bf16.xpose.msra.mxu0 0
        %8099 = vmatprep.subr.bf16.mxu0 0
        %8100 = vmatpush2.bf16.xpose.msra.mxu0 0
        %8101 = vmatprep.subr.bf16.mxu0 0
        %8102 = vmatpush2.bf16.xpose.msra.mxu0 0
        %8103 = vmatprep.subr.bf16.mxu0 0
        %8104 = vmatpush2.bf16.xpose.msra.mxu0 0
        %8105 = vmatprep.mubr.bf16.mxu0 0
        %8106 = vmatmul.mubr.bf16.gmra.mxu0 %v8068
        %v8107 = vpop.f32.mrf.mxu0
        %v8108 = vadd.f32 %v7443, %v8107
        %v8109 = vpop.f32.mrf.mxu0
        %v8110 = vpop.f32.mrf.mxu0
        %v8111 = vpop.f32.mrf.mxu0
        %8112 = vdwg.mxu0
        %v8113 = vsel %vm7790, %v8108, -inf
        %8114 = vmax.xlane.f32.xlu0 %v8113
        %v8115 = vpop.xlane.xlu0 %8114
        %v8116 = vsub.f32 %v8108, %v8115
        %v8117 = vmul.f32 %v8116, 1.442695
        %v8118 = vpow.pop %v8117
        %v8119 = vsel %vm7790, %v8118, 0.0
        %8120 = vadd.xlane.f32.xlu0 %v8119
        %v8121 = vpop.xlane.xlu0 %8120
        %v8122 = vrcp.pop %v8121
        %v8123 = vmul.f32 %v8118, %v8122
        %v8124 = vpack.c.bf16 %v8123, %v8123
        %8125 = vrot.lane.b32.xlu0 %v7742, 96
        %v8126 = vpop.permute.xlu0 %8125
        %v8128 = vsel %vm7790, %v8124, 0
        %v8131 = vsel %vm7806, %v8126, 0
        %8133 = vmatprep.subr.bf16.mxu0 0
        %8134 = vmatpush1.bf16.msra.mxu0 0
        %8135 = vmatprep.subr.bf16.mxu0 0
        %8136 = vmatpush1.bf16.msra.mxu0 0
        %8137 = vmatprep.subr.bf16.mxu0 0
        %8138 = vmatpush1.bf16.msra.mxu0 0
        %8139 = vmatprep.subr.bf16.mxu0 0
        %8140 = vmatpush1.bf16.msra.mxu0 0
        %8141 = vmatprep.subr.bf16.mxu0 0
        %8142 = vmatpush1.bf16.msra.mxu0 0
        %8143 = vmatprep.subr.bf16.mxu0 0
        %8144 = vmatpush1.bf16.msra.mxu0 0
        %8145 = vmatprep.subr.bf16.mxu0 0
        %8146 = vmatpush1.bf16.msra.mxu0 0
        %8147 = vmatprep.subr.bf16.mxu0 0
        %8148 = vmatpush1.bf16.msra.mxu0 %v8131
        %8149 = vmatprep.subr.bf16.mxu0 0
        %8150 = vmatpush2.bf16.msra.mxu0 0
        %8151 = vmatprep.subr.bf16.mxu0 0
        %8152 = vmatpush2.bf16.msra.mxu0 0
        %8153 = vmatprep.subr.bf16.mxu0 0
        %8154 = vmatpush2.bf16.msra.mxu0 0
        %8155 = vmatprep.subr.bf16.mxu0 0
        %8156 = vmatpush2.bf16.msra.mxu0 0
        %8157 = vmatprep.subr.bf16.mxu0 0
        %8158 = vmatpush2.bf16.msra.mxu0 0
        %8159 = vmatprep.subr.bf16.mxu0 0
        %8160 = vmatpush2.bf16.msra.mxu0 0
        %8161 = vmatprep.subr.bf16.mxu0 0
        %8162 = vmatpush2.bf16.msra.mxu0 0
        %8163 = vmatprep.subr.bf16.mxu0 0
        %8164 = vmatpush2.bf16.msra.mxu0 0
        %8165 = vmatprep.mubr.bf16.mxu0 0
        %8166 = vmatmul.mubr.bf16.gmra.mxu0 %v8128
        %v8167 = vpop.f32.mrf.mxu0
        %v8168 = vadd.f32 0.0, %v8167
        %v8169 = vpop.f32.mrf.mxu0
        %v8170 = vpop.f32.mrf.mxu0
        %v8171 = vpop.f32.mrf.mxu0
        %8172 = vdwg.mxu0
        %v8173 = vpack.c.bf16 %v8168, %v8168
        %v8176 = vunpack.c.l.b16 %v7734
        %v8177 = vunpack.c.l.b16 %v7735
        %v8178 = vpack.c.b16 %v8177, %v8176
        %v8181 = vsel %vm7743, %v8173, 0
        %8183 = vmatprep.subr.bf16.mxu0 0
        %8184 = vmatpush1.bf16.msra.mxu0 0
        %8185 = vmatprep.subr.bf16.mxu0 0
        %8186 = vmatpush1.bf16.msra.mxu0 0
        %8187 = vmatprep.subr.bf16.mxu0 0
        %8188 = vmatpush1.bf16.msra.mxu0 0
        %8189 = vmatprep.subr.bf16.mxu0 0
        %8190 = vmatpush1.bf16.msra.mxu0 0
        %8191 = vmatprep.subr.bf16.mxu0 0
        %8192 = vmatpush1.bf16.msra.mxu0 0
        %8193 = vmatprep.subr.bf16.mxu0 0
        %8194 = vmatpush1.bf16.msra.mxu0 0
        %8195 = vmatprep.subr.bf16.mxu0 0
        %8196 = vmatpush1.bf16.msra.mxu0 0
        %8197 = vmatprep.subr.bf16.mxu0 0
        %8198 = vmatpush1.bf16.msra.mxu0 %v8178
        %8199 = vmatprep.subr.bf16.mxu0 0
        %8200 = vmatpush2.bf16.msra.mxu0 0
        %8201 = vmatprep.subr.bf16.mxu0 0
        %8202 = vmatpush2.bf16.msra.mxu0 0
        %8203 = vmatprep.subr.bf16.mxu0 0
        %8204 = vmatpush2.bf16.msra.mxu0 0
        %8205 = vmatprep.subr.bf16.mxu0 0
        %8206 = vmatpush2.bf16.msra.mxu0 0
        %8207 = vmatprep.subr.bf16.mxu0 0
        %8208 = vmatpush2.bf16.msra.mxu0 0
        %8209 = vmatprep.subr.bf16.mxu0 0
        %8210 = vmatpush2.bf16.msra.mxu0 0
        %8211 = vmatprep.subr.bf16.mxu0 0
        %8212 = vmatpush2.bf16.msra.mxu0 0
        %8213 = vmatprep.subr.bf16.mxu0 0
        %8214 = vmatpush2.bf16.msra.mxu0 0
        %8215 = vmatprep.mubr.bf16.mxu0 0
        %8216 = vmatmul.mubr.bf16.gmra.mxu0 %v8181
        %v8217 = vpop.f32.mrf.mxu0
        %v8218 = vadd.f32 0.0, %v8217
        %v8219 = vpop.f32.mrf.mxu0
        %v8220 = vpop.f32.mrf.mxu0
        %v8221 = vpop.f32.mrf.mxu0
        %8222 = vdwg.mxu0
        %v8223 = vadd.f32 %v8058, %v8218
        %8224 = vrot.lane.b32.xlu0 %v7739, 80
        %v8225 = vpop.permute.xlu0 %8224
        %8226 = vrot.lane.b32.xlu0 %v7741, 80
        %v8227 = vpop.permute.xlu0 %8226
        %v8229 = vsel %vm7743, %v8225, 0
        %v8232 = vsel %vm7743, %v8227, 0
        %8234 = vmatprep.subr.bf16.mxu0 0
        %8235 = vmatpush1.bf16.xpose.msra.mxu0 0
        %8236 = vmatprep.subr.bf16.mxu0 0
        %8237 = vmatpush1.bf16.xpose.msra.mxu0 0
        %8238 = vmatprep.subr.bf16.mxu0 0
        %8239 = vmatpush1.bf16.xpose.msra.mxu0 0
        %8240 = vmatprep.subr.bf16.mxu0 0
        %8241 = vmatpush1.bf16.xpose.msra.mxu0 0
        %8242 = vmatprep.subr.bf16.mxu0 0
        %8243 = vmatpush1.bf16.xpose.msra.mxu0 0
        %8244 = vmatprep.subr.bf16.mxu0 0
        %8245 = vmatpush1.bf16.xpose.msra.mxu0 0
        %8246 = vmatprep.subr.bf16.mxu0 0
        %8247 = vmatpush1.bf16.xpose.msra.mxu0 0
        %8248 = vmatprep.subr.bf16.mxu0 0
        %8249 = vmatpush1.bf16.xpose.msra.mxu0 %v8232
        %8250 = vmatprep.subr.bf16.mxu0 0
        %8251 = vmatpush2.bf16.xpose.msra.mxu0 0
        %8252 = vmatprep.subr.bf16.mxu0 0
        %8253 = vmatpush2.bf16.xpose.msra.mxu0 0
        %8254 = vmatprep.subr.bf16.mxu0 0
        %8255 = vmatpush2.bf16.xpose.msra.mxu0 0
        %8256 = vmatprep.subr.bf16.mxu0 0
        %8257 = vmatpush2.bf16.xpose.msra.mxu0 0
        %8258 = vmatprep.subr.bf16.mxu0 0
        %8259 = vmatpush2.bf16.xpose.msra.mxu0 0
        %8260 = vmatprep.subr.bf16.mxu0 0
        %8261 = vmatpush2.bf16.xpose.msra.mxu0 0
        %8262 = vmatprep.subr.bf16.mxu0 0
        %8263 = vmatpush2.bf16.xpose.msra.mxu0 0
        %8264 = vmatprep.subr.bf16.mxu0 0
        %8265 = vmatpush2.bf16.xpose.msra.mxu0 0
        %8266 = vmatprep.mubr.bf16.mxu0 0
        %8267 = vmatmul.mubr.bf16.gmra.mxu0 %v8229
        %v8268 = vpop.f32.mrf.mxu0
        %v8269 = vadd.f32 %v7443, %v8268
        %v8270 = vpop.f32.mrf.mxu0
        %v8271 = vpop.f32.mrf.mxu0
        %v8272 = vpop.f32.mrf.mxu0
        %8273 = vdwg.mxu0
        %v8274 = vsel %vm7790, %v8269, -inf
        %8275 = vmax.xlane.f32.xlu0 %v8274
        %v8276 = vpop.xlane.xlu0 %8275
        %v8277 = vsub.f32 %v8269, %v8276
        %v8278 = vmul.f32 %v8277, 1.442695
        %v8279 = vpow.pop %v8278
        %v8280 = vsel %vm7790, %v8279, 0.0
        %8281 = vadd.xlane.f32.xlu0 %v8280
        %v8282 = vpop.xlane.xlu0 %8281
        %v8283 = vrcp.pop %v8282
        %v8284 = vmul.f32 %v8279, %v8283
        %v8285 = vpack.c.bf16 %v8284, %v8284
        %8286 = vrot.lane.b32.xlu0 %v7742, 80
        %v8287 = vpop.permute.xlu0 %8286
        %v8289 = vsel %vm7790, %v8285, 0
        %v8292 = vsel %vm7806, %v8287, 0
        %8294 = vmatprep.subr.bf16.mxu0 0
        %8295 = vmatpush1.bf16.msra.mxu0 0
        %8296 = vmatprep.subr.bf16.mxu0 0
        %8297 = vmatpush1.bf16.msra.mxu0 0
        %8298 = vmatprep.subr.bf16.mxu0 0
        %8299 = vmatpush1.bf16.msra.mxu0 0
        %8300 = vmatprep.subr.bf16.mxu0 0
        %8301 = vmatpush1.bf16.msra.mxu0 0
        %8302 = vmatprep.subr.bf16.mxu0 0
        %8303 = vmatpush1.bf16.msra.mxu0 0
        %8304 = vmatprep.subr.bf16.mxu0 0
        %8305 = vmatpush1.bf16.msra.mxu0 0
        %8306 = vmatprep.subr.bf16.mxu0 0
        %8307 = vmatpush1.bf16.msra.mxu0 0
        %8308 = vmatprep.subr.bf16.mxu0 0
        %8309 = vmatpush1.bf16.msra.mxu0 %v8292
        %8310 = vmatprep.subr.bf16.mxu0 0
        %8311 = vmatpush2.bf16.msra.mxu0 0
        %8312 = vmatprep.subr.bf16.mxu0 0
        %8313 = vmatpush2.bf16.msra.mxu0 0
        %8314 = vmatprep.subr.bf16.mxu0 0
        %8315 = vmatpush2.bf16.msra.mxu0 0
        %8316 = vmatprep.subr.bf16.mxu0 0
        %8317 = vmatpush2.bf16.msra.mxu0 0
        %8318 = vmatprep.subr.bf16.mxu0 0
        %8319 = vmatpush2.bf16.msra.mxu0 0
        %8320 = vmatprep.subr.bf16.mxu0 0
        %8321 = vmatpush2.bf16.msra.mxu0 0
        %8322 = vmatprep.subr.bf16.mxu0 0
        %8323 = vmatpush2.bf16.msra.mxu0 0
        %8324 = vmatprep.subr.bf16.mxu0 0
        %8325 = vmatpush2.bf16.msra.mxu0 0
        %8326 = vmatprep.mubr.bf16.mxu0 0
        %8327 = vmatmul.mubr.bf16.gmra.mxu0 %v8289
        %v8328 = vpop.f32.mrf.mxu0
        %v8329 = vadd.f32 0.0, %v8328
        %v8330 = vpop.f32.mrf.mxu0
        %v8331 = vpop.f32.mrf.mxu0
        %v8332 = vpop.f32.mrf.mxu0
        %8333 = vdwg.mxu0
        %v8334 = vpack.c.bf16 %v8329, %v8329
        %v8337 = vunpack.c.l.b16 %v7736
        %v8338 = vunpack.c.l.b16 %v7737
        %v8339 = vpack.c.b16 %v8338, %v8337
        %v8342 = vsel %vm7743, %v8334, 0
        %8344 = vmatprep.subr.bf16.mxu0 0
        %8345 = vmatpush1.bf16.msra.mxu0 0
        %8346 = vmatprep.subr.bf16.mxu0 0
        %8347 = vmatpush1.bf16.msra.mxu0 0
        %8348 = vmatprep.subr.bf16.mxu0 0
        %8349 = vmatpush1.bf16.msra.mxu0 0
        %8350 = vmatprep.subr.bf16.mxu0 0
        %8351 = vmatpush1.bf16.msra.mxu0 0
        %8352 = vmatprep.subr.bf16.mxu0 0
        %8353 = vmatpush1.bf16.msra.mxu0 0
        %8354 = vmatprep.subr.bf16.mxu0 0
        %8355 = vmatpush1.bf16.msra.mxu0 0
        %8356 = vmatprep.subr.bf16.mxu0 0
        %8357 = vmatpush1.bf16.msra.mxu0 0
        %8358 = vmatprep.subr.bf16.mxu0 0
        %8359 = vmatpush1.bf16.msra.mxu0 %v8339
        %8360 = vmatprep.subr.bf16.mxu0 0
        %8361 = vmatpush2.bf16.msra.mxu0 0
        %8362 = vmatprep.subr.bf16.mxu0 0
        %8363 = vmatpush2.bf16.msra.mxu0 0
        %8364 = vmatprep.subr.bf16.mxu0 0
        %8365 = vmatpush2.bf16.msra.mxu0 0
        %8366 = vmatprep.subr.bf16.mxu0 0
        %8367 = vmatpush2.bf16.msra.mxu0 0
        %8368 = vmatprep.subr.bf16.mxu0 0
        %8369 = vmatpush2.bf16.msra.mxu0 0
        %8370 = vmatprep.subr.bf16.mxu0 0
        %8371 = vmatpush2.bf16.msra.mxu0 0
        %8372 = vmatprep.subr.bf16.mxu0 0
        %8373 = vmatpush2.bf16.msra.mxu0 0
        %8374 = vmatprep.subr.bf16.mxu0 0
        %8375 = vmatpush2.bf16.msra.mxu0 0
        %8376 = vmatprep.mubr.bf16.mxu0 0
        %8377 = vmatmul.mubr.bf16.gmra.mxu0 %v8342
        %v8378 = vpop.f32.mrf.mxu0
        %v8379 = vadd.f32 0.0, %v8378
        %v8380 = vpop.f32.mrf.mxu0
        %v8381 = vpop.f32.mrf.mxu0
        %v8382 = vpop.f32.mrf.mxu0
        %8383 = vdwg.mxu0
        %v8384 = vadd.f32 %v8223, %v8379
        %v8385 = vadd.f32 %v7440, %v8384
        %v8386 = vld [vmem:[%s45] sm:$0x1]
        %v8388 = vlaneseq
        %v8389 = vshrl.u32 %v8388, 7
        %v8390 = vsub.s32 0, %v8389
        %v8391 = vrot.slane %v8386, %v8390
        %v8393 = vadd.f32 %v8385, %v8391
        %v8394 = vld [vmem:[%s47] sm:$0x7]
        %8395 = vadd.xlane.f32.xlu0 %v8393
        %v8396 = vpop.xlane.xlu0 %8395
        %v8397 = vmul.f32 %v8396, 0.015625
        %v8398 = vsub.f32 %v8393, %v8397
        %v8399 = vlaneseq
        %v8400 = vshrl.u32 %v8399, 7
        %v8401 = vsub.s32 2, %v8400
        %v8402 = vrot.slane %v8394, %v8401
        %v8403 = vmul.f32 %v8398, %v8402
        %v8404 = vmul.f32 %v8403, %v8403
        %8405 = vadd.xlane.f32.xlu0 %v8404
        %v8406 = vpop.xlane.xlu0 %8405
        %v8407 = vmul.f32 %v8406, 0.015625
        %v8408 = vadd.f32 %v8407, 1e-05
        %v8409 = vrsqrt.pop %v8408
        %v8410 = vmul.f32 %v8403, %v8409
        %v8411 = vlaneseq
        %v8412 = vshrl.u32 %v8411, 7
        %v8413 = vsub.s32 0, %v8412
        %v8414 = vrot.slane %v8394, %v8413
        %v8415 = vmul.f32 %v8410, %v8414
        %v8416 = vlaneseq
        %v8417 = vshrl.u32 %v8416, 7
        %v8418 = vsub.s32 1, %v8417
        %v8419 = vrot.slane %v8394, %v8418
        %v8420 = vadd.f32 %v8415, %v8419
        %v8421 = vpack.c.bf16 %v8420, %v8420
        %v8422 = vld [vmem:[#allocation28] sm:$0xff]
        %v8423 = vld [vmem:[#allocation28 + $0x8] sm:$0xff]
        %v8424 = vld [vmem:[#allocation28 + $0x10] sm:$0xff]
        %v8425 = vld [vmem:[#allocation28 + $0x18] sm:$0xff]
        %v8426 = vld [vmem:[#allocation28 + $0x20] sm:$0xff]
        %v8427 = vld [vmem:[#allocation28 + $0x28] sm:$0xff]
        %v8428 = vld [vmem:[#allocation28 + $0x30] sm:$0xff]
        %v8429 = vld [vmem:[#allocation28 + $0x38] sm:$0xff]
        %v8430 = vld [vmem:[#allocation28 + $0x40] sm:$0xff]
        %v8431 = vld [vmem:[#allocation28 + $0x48] sm:$0xff]
        %v8432 = vld [vmem:[#allocation28 + $0x50] sm:$0xff]
        %v8433 = vld [vmem:[#allocation28 + $0x58] sm:$0xff]
        %v8434 = vld [vmem:[#allocation28 + $0x60] sm:$0xff]
        %v8435 = vld [vmem:[#allocation28 + $0x68] sm:$0xff]
        %v8436 = vld [vmem:[#allocation28 + $0x70] sm:$0xff]
        %v8437 = vld [vmem:[#allocation28 + $0x78] sm:$0xff]
        %v8438 = vld [vmem:[%s51] sm:$0x3]
        %v8440 = vlaneseq
        %v8441 = vshrl.u32 %v8440, 7
        %v8442 = vsub.s32 0, %v8441
        %v8443 = vrot.slane %v8438, %v8442
        %v8444 = vlaneseq
        %v8445 = vshrl.u32 %v8444, 7
        %v8446 = vsub.s32 1, %v8445
        %v8447 = vrot.slane %v8438, %v8446
        %v8466 = vunpack.c.l.b16 %v8422
        %v8467 = vunpack.c.h.b16 %v8422
        %v8468 = vunpack.c.l.b16 %v8423
        %v8469 = vunpack.c.h.b16 %v8423
        %v8470 = vunpack.c.l.b16 %v8424
        %v8471 = vunpack.c.h.b16 %v8424
        %v8472 = vunpack.c.l.b16 %v8425
        %v8473 = vunpack.c.h.b16 %v8425
        %v8474 = vunpack.c.l.b16 %v8426
        %v8475 = vunpack.c.h.b16 %v8426
        %v8476 = vunpack.c.l.b16 %v8427
        %v8477 = vunpack.c.h.b16 %v8427
        %v8478 = vunpack.c.l.b16 %v8428
        %v8479 = vunpack.c.h.b16 %v8428
        %v8480 = vunpack.c.l.b16 %v8429
        %v8481 = vunpack.c.h.b16 %v8429
        %v8482 = vunpack.c.l.b16 %v8430
        %v8483 = vunpack.c.h.b16 %v8430
        %v8484 = vunpack.c.l.b16 %v8431
        %v8485 = vunpack.c.h.b16 %v8431
        %v8486 = vunpack.c.l.b16 %v8432
        %v8487 = vunpack.c.h.b16 %v8432
        %v8488 = vunpack.c.l.b16 %v8433
        %v8489 = vunpack.c.h.b16 %v8433
        %v8490 = vunpack.c.l.b16 %v8434
        %v8491 = vunpack.c.h.b16 %v8434
        %v8492 = vunpack.c.l.b16 %v8435
        %v8493 = vunpack.c.h.b16 %v8435
        %v8494 = vunpack.c.l.b16 %v8436
        %v8495 = vunpack.c.h.b16 %v8436
        %v8496 = vunpack.c.l.b16 %v8437
        %v8497 = vunpack.c.h.b16 %v8437
        %v8498 = vpack.c.b16 %v8468, %v8466
        %v8499 = vpack.c.b16 %v8469, %v8467
        %v8500 = vpack.c.b16 %v8472, %v8470
        %v8501 = vpack.c.b16 %v8473, %v8471
        %v8502 = vpack.c.b16 %v8476, %v8474
        %v8503 = vpack.c.b16 %v8477, %v8475
        %v8504 = vpack.c.b16 %v8480, %v8478
        %v8505 = vpack.c.b16 %v8481, %v8479
        %v8506 = vpack.c.b16 %v8484, %v8482
        %v8507 = vpack.c.b16 %v8485, %v8483
        %v8508 = vpack.c.b16 %v8488, %v8486
        %v8509 = vpack.c.b16 %v8489, %v8487
        %v8510 = vpack.c.b16 %v8492, %v8490
        %v8511 = vpack.c.b16 %v8493, %v8491
        %v8512 = vpack.c.b16 %v8496, %v8494
        %v8513 = vpack.c.b16 %v8497, %v8495
        %8530 = vmatprep.subr.bf16.mxu0 %v8513
        %8531 = vmatpush1.bf16.msra.mxu0 %v8512
        %8532 = vmatprep.subr.bf16.mxu0 %v8511
        %8533 = vmatpush1.bf16.msra.mxu0 %v8510
        %8534 = vmatprep.subr.bf16.mxu0 %v8509
        %8535 = vmatpush1.bf16.msra.mxu0 %v8508
        %8536 = vmatprep.subr.bf16.mxu0 %v8507
        %8537 = vmatpush1.bf16.msra.mxu0 %v8506
        %8538 = vmatprep.subr.bf16.mxu0 %v8505
        %8539 = vmatpush1.bf16.msra.mxu0 %v8504
        %8540 = vmatprep.subr.bf16.mxu0 %v8503
        %8541 = vmatpush1.bf16.msra.mxu0 %v8502
        %8542 = vmatprep.subr.bf16.mxu0 %v8501
        %8543 = vmatpush1.bf16.msra.mxu0 %v8500
        %8544 = vmatprep.subr.bf16.mxu0 %v8499
        %8545 = vmatpush1.bf16.msra.mxu0 %v8498
        %8546 = vmatprep.subr.bf16.mxu0 0
        %8547 = vmatpush2.bf16.msra.mxu0 0
        %8548 = vmatprep.subr.bf16.mxu0 0
        %8549 = vmatpush2.bf16.msra.mxu0 0
        %8550 = vmatprep.subr.bf16.mxu0 0
        %8551 = vmatpush2.bf16.msra.mxu0 0
        %8552 = vmatprep.subr.bf16.mxu0 0
        %8553 = vmatpush2.bf16.msra.mxu0 0
        %8554 = vmatprep.subr.bf16.mxu0 0
        %8555 = vmatpush2.bf16.msra.mxu0 0
        %8556 = vmatprep.subr.bf16.mxu0 0
        %8557 = vmatpush2.bf16.msra.mxu0 0
        %8558 = vmatprep.subr.bf16.mxu0 0
        %8559 = vmatpush2.bf16.msra.mxu0 0
        %8560 = vmatprep.subr.bf16.mxu0 0
        %8561 = vmatpush2.bf16.msra.mxu0 0
        %8562 = vmatprep.mubr.bf16.mxu0 0
        %8563 = vmatmul.mubr.bf16.gmra.mxu0 %v8421
        %v8564 = vpop.f32.mrf.mxu0
        %v8565 = vadd.f32 %v8443, %v8564
        %v8566 = vpop.f32.mrf.mxu0
        %v8567 = vadd.f32 %v8447, %v8566
        %v8568 = vpop.f32.mrf.mxu0
        %v8569 = vpop.f32.mrf.mxu0
        %8570 = vdwg.mxu0
        %v8571 = vmul.f32 %v8565, 0.5
        %v8572 = vmul.f32 %v8567, 0.5
        %v8573 = vmul.f32 %v8565, 0.70710677
        %v8574 = vmul.f32 %v8567, 0.70710677
        %v8575 = vand.u32 2147483647, %v8573
        %v8576 = vand.u32 2147483647, %v8574
        %v8577 = vmul.f32 %v8575, 0.3275911
        %v8578 = vmul.f32 %v8576, 0.3275911
        %v8579 = vadd.f32 %v8577, 1.0
        %v8580 = vadd.f32 %v8578, 1.0
        %v8581 = vrcp.pop %v8579
        %v8582 = vmul.f32 1.0, %v8581
        %v8583 = vrcp.pop %v8580
        %v8584 = vmul.f32 1.0, %v8583
        %v8585 = vmul.f32 %v8582, 1.0614054
        %v8586 = vmul.f32 %v8584, 1.0614054
        %v8587 = vsub.f32 %v8585, 1.4531521
        %v8588 = vsub.f32 %v8586, 1.4531521
        %v8589 = vmul.f32 %v8587, %v8582
        %v8590 = vmul.f32 %v8588, %v8584
        %v8591 = vadd.f32 %v8589, 1.4214138
        %v8592 = vadd.f32 %v8590, 1.4214138
        %v8593 = vmul.f32 %v8591, %v8582
        %v8594 = vmul.f32 %v8592, %v8584
        %v8595 = vsub.f32 %v8593, 0.28449672
        %v8596 = vsub.f32 %v8594, 0.28449672
        %v8597 = vmul.f32 %v8595, %v8582
        %v8598 = vmul.f32 %v8596, %v8584
        %v8599 = vadd.f32 %v8597, 0.2548296
        %v8600 = vadd.f32 %v8598, 0.2548296
        %v8601 = vmul.f32 %v8599, %v8582
        %v8602 = vmul.f32 %v8600, %v8584
        %v8603 = vsub.f32 0.0, %v8573
        %v8604 = vsub.f32 0.0, %v8574
        %v8605 = vmul.f32 %v8603, %v8573
        %v8606 = vmul.f32 %v8604, %v8574
        %v8607 = vmul.f32 %v8605, 1.442695
        %v8608 = vpow.pop %v8607
        %v8609 = vmul.f32 %v8606, 1.442695
        %v8610 = vpow.pop %v8609
        %v8611 = vmul.f32 %v8601, %v8608
        %v8612 = vmul.f32 %v8602, %v8610
        %v8613 = vsub.f32 1.0, %v8611
        %v8614 = vsub.f32 1.0, %v8612
        %vm8615 = vcmp.ge.f32.partialorder %v8573, 0.0
        %vm8616 = vcmp.ge.f32.partialorder %v8574, 0.0
        %v8617 = vsub.f32 0.0, %v8613
        %v8618 = vsub.f32 0.0, %v8614
        %v8619 = vsel %vm8615, %v8613, %v8617
        %v8620 = vsel %vm8616, %v8614, %v8618
        %v8621 = vadd.f32 %v8619, 1.0
        %v8622 = vadd.f32 %v8620, 1.0
        %v8623 = vmul.f32 %v8571, %v8621
        %v8624 = vmul.f32 %v8572, %v8622
        %v8625 = vpack.c.bf16 %v8623, %v8623
        %v8626 = vpack.c.bf16 %v8624, %v8624
        %v8627 = vld [vmem:[#allocation29] sm:$0xf]
        %v8628 = vld [vmem:[#allocation29 + $0x4] sm:$0xf]
        %v8629 = vld [vmem:[#allocation29 + $0x8] sm:$0xf]
        %v8630 = vld [vmem:[#allocation29 + $0xc] sm:$0xf]
        %v8631 = vld [vmem:[#allocation29 + $0x10] sm:$0xf]
        %v8632 = vld [vmem:[#allocation29 + $0x14] sm:$0xf]
        %v8633 = vld [vmem:[#allocation29 + $0x18] sm:$0xf]
        %v8634 = vld [vmem:[#allocation29 + $0x1c] sm:$0xf]
        %v8635 = vld [vmem:[#allocation29 + $0x20] sm:$0xf]
        %v8636 = vld [vmem:[#allocation29 + $0x24] sm:$0xf]
        %v8637 = vld [vmem:[#allocation29 + $0x28] sm:$0xf]
        %v8638 = vld [vmem:[#allocation29 + $0x2c] sm:$0xf]
        %v8639 = vld [vmem:[#allocation29 + $0x30] sm:$0xf]
        %v8640 = vld [vmem:[#allocation29 + $0x34] sm:$0xf]
        %v8641 = vld [vmem:[#allocation29 + $0x38] sm:$0xf]
        %v8642 = vld [vmem:[#allocation29 + $0x3c] sm:$0xf]
        %v8643 = vld [vmem:[#allocation29 + $0x40] sm:$0xf]
        %v8644 = vld [vmem:[#allocation29 + $0x44] sm:$0xf]
        %v8645 = vld [vmem:[#allocation29 + $0x48] sm:$0xf]
        %v8646 = vld [vmem:[#allocation29 + $0x4c] sm:$0xf]
        %v8647 = vld [vmem:[#allocation29 + $0x50] sm:$0xf]
        %v8648 = vld [vmem:[#allocation29 + $0x54] sm:$0xf]
        %v8649 = vld [vmem:[#allocation29 + $0x58] sm:$0xf]
        %v8650 = vld [vmem:[#allocation29 + $0x5c] sm:$0xf]
        %v8651 = vld [vmem:[#allocation29 + $0x60] sm:$0xf]
        %v8652 = vld [vmem:[#allocation29 + $0x64] sm:$0xf]
        %v8653 = vld [vmem:[#allocation29 + $0x68] sm:$0xf]
        %v8654 = vld [vmem:[#allocation29 + $0x6c] sm:$0xf]
        %v8655 = vld [vmem:[#allocation29 + $0x70] sm:$0xf]
        %v8656 = vld [vmem:[#allocation29 + $0x74] sm:$0xf]
        %v8657 = vld [vmem:[#allocation29 + $0x78] sm:$0xf]
        %v8658 = vld [vmem:[#allocation29 + $0x7c] sm:$0xf]
        %v8691 = vunpack.c.l.b16 %v8627
        %v8692 = vunpack.c.l.b16 %v8628
        %v8693 = vunpack.c.l.b16 %v8629
        %v8694 = vunpack.c.l.b16 %v8630
        %v8695 = vunpack.c.l.b16 %v8631
        %v8696 = vunpack.c.l.b16 %v8632
        %v8697 = vunpack.c.l.b16 %v8633
        %v8698 = vunpack.c.l.b16 %v8634
        %v8699 = vunpack.c.l.b16 %v8635
        %v8700 = vunpack.c.l.b16 %v8636
        %v8701 = vunpack.c.l.b16 %v8637
        %v8702 = vunpack.c.l.b16 %v8638
        %v8703 = vunpack.c.l.b16 %v8639
        %v8704 = vunpack.c.l.b16 %v8640
        %v8705 = vunpack.c.l.b16 %v8641
        %v8706 = vunpack.c.l.b16 %v8642
        %v8707 = vunpack.c.l.b16 %v8643
        %v8708 = vunpack.c.l.b16 %v8644
        %v8709 = vunpack.c.l.b16 %v8645
        %v8710 = vunpack.c.l.b16 %v8646
        %v8711 = vunpack.c.l.b16 %v8647
        %v8712 = vunpack.c.l.b16 %v8648
        %v8713 = vunpack.c.l.b16 %v8649
        %v8714 = vunpack.c.l.b16 %v8650
        %v8715 = vunpack.c.l.b16 %v8651
        %v8716 = vunpack.c.l.b16 %v8652
        %v8717 = vunpack.c.l.b16 %v8653
        %v8718 = vunpack.c.l.b16 %v8654
        %v8719 = vunpack.c.l.b16 %v8655
        %v8720 = vunpack.c.l.b16 %v8656
        %v8721 = vunpack.c.l.b16 %v8657
        %v8722 = vunpack.c.l.b16 %v8658
        %v8723 = vpack.c.b16 %v8692, %v8691
        %v8724 = vpack.c.b16 %v8694, %v8693
        %v8725 = vpack.c.b16 %v8696, %v8695
        %v8726 = vpack.c.b16 %v8698, %v8697
        %v8727 = vpack.c.b16 %v8700, %v8699
        %v8728 = vpack.c.b16 %v8702, %v8701
        %v8729 = vpack.c.b16 %v8704, %v8703
        %v8730 = vpack.c.b16 %v8706, %v8705
        %v8731 = vpack.c.b16 %v8708, %v8707
        %v8732 = vpack.c.b16 %v8710, %v8709
        %v8733 = vpack.c.b16 %v8712, %v8711
        %v8734 = vpack.c.b16 %v8714, %v8713
        %v8735 = vpack.c.b16 %v8716, %v8715
        %v8736 = vpack.c.b16 %v8718, %v8717
        %v8737 = vpack.c.b16 %v8720, %v8719
        %v8738 = vpack.c.b16 %v8722, %v8721
        %8755 = vmatprep.subr.bf16.mxu0 0
        %8756 = vmatpush1.bf16.msra.mxu0 %v8730
        %8757 = vmatprep.subr.bf16.mxu0 0
        %8758 = vmatpush1.bf16.msra.mxu0 %v8729
        %8759 = vmatprep.subr.bf16.mxu0 0
        %8760 = vmatpush1.bf16.msra.mxu0 %v8728
        %8761 = vmatprep.subr.bf16.mxu0 0
        %8762 = vmatpush1.bf16.msra.mxu0 %v8727
        %8763 = vmatprep.subr.bf16.mxu0 0
        %8764 = vmatpush1.bf16.msra.mxu0 %v8726
        %8765 = vmatprep.subr.bf16.mxu0 0
        %8766 = vmatpush1.bf16.msra.mxu0 %v8725
        %8767 = vmatprep.subr.bf16.mxu0 0
        %8768 = vmatpush1.bf16.msra.mxu0 %v8724
        %8769 = vmatprep.subr.bf16.mxu0 0
        %8770 = vmatpush1.bf16.msra.mxu0 %v8723
        %8771 = vmatprep.subr.bf16.mxu0 0
        %8772 = vmatpush2.bf16.msra.mxu0 %v8738
        %8773 = vmatprep.subr.bf16.mxu0 0
        %8774 = vmatpush2.bf16.msra.mxu0 %v8737
        %8775 = vmatprep.subr.bf16.mxu0 0
        %8776 = vmatpush2.bf16.msra.mxu0 %v8736
        %8777 = vmatprep.subr.bf16.mxu0 0
        %8778 = vmatpush2.bf16.msra.mxu0 %v8735
        %8779 = vmatprep.subr.bf16.mxu0 0
        %8780 = vmatpush2.bf16.msra.mxu0 %v8734
        %8781 = vmatprep.subr.bf16.mxu0 0
        %8782 = vmatpush2.bf16.msra.mxu0 %v8733
        %8783 = vmatprep.subr.bf16.mxu0 0
        %8784 = vmatpush2.bf16.msra.mxu0 %v8732
        %8785 = vmatprep.subr.bf16.mxu0 0
        %8786 = vmatpush2.bf16.msra.mxu0 %v8731
        %8787 = vmatprep.mubr.bf16.mxu0 %v8626
        %8788 = vmatmul.mubr.bf16.gmra.mxu0 %v8625
        %v8789 = vpop.f32.mrf.mxu0
        %v8790 = vadd.f32 0.0, %v8789
        %v8791 = vpop.f32.mrf.mxu0
        %v8792 = vpop.f32.mrf.mxu0
        %v8793 = vpop.f32.mrf.mxu0
        %8794 = vdwg.mxu0
        %v8795 = vadd.f32 %v8393, %v8790
        %v8796 = vld [vmem:[%s55] sm:$0x1]
        %v8798 = vlaneseq
        %v8799 = vshrl.u32 %v8798, 7
        %v8800 = vsub.s32 0, %v8799
        %v8801 = vrot.slane %v8796, %v8800
        %v8803 = vadd.f32 %v8795, %v8801
        %v8804 = vld [vmem:[#allocation10] sm:$0x3]
        %v8806 = vsel %vm7790, %v8804, 0
        %8808 = vmatprep.subr.mxu0 0.0
        %8809 = vmatpush1.msra.mxu0 0.0
        %8810 = vmatprep.subr.mxu0 0.0
        %8811 = vmatpush1.msra.mxu0 0.0
        %8812 = vmatprep.subr.mxu0 0.0
        %8813 = vmatpush1.msra.mxu0 0.0
        %8814 = vmatprep.subr.mxu0 0.0
        %8815 = vmatpush1.msra.mxu0 0.0
        %8816 = vmatprep.subr.mxu0 0.0
        %8817 = vmatpush1.msra.mxu0 0.0
        %8818 = vmatprep.subr.mxu0 0.0
        %8819 = vmatpush1.msra.mxu0 0.0
        %8820 = vmatprep.subr.mxu0 0.0
        %8821 = vmatpush1.msra.mxu0 0.0
        %8822 = vmatprep.subr.mxu0 0.0
        %8823 = vmatpush1.msra.mxu0 0.0
        %8824 = vmatprep.subr.mxu0 0.0
        %8825 = vmatpush1.msra.mxu0 0.0
        %8826 = vmatprep.subr.mxu0 0.0
        %8827 = vmatpush1.msra.mxu0 0.0
        %8828 = vmatprep.subr.mxu0 0.0
        %8829 = vmatpush1.msra.mxu0 0.0
        %8830 = vmatprep.subr.mxu0 0.0
        %8831 = vmatpush1.msra.mxu0 0.0
        %8832 = vmatprep.subr.mxu0 0.0
        %8833 = vmatpush1.msra.mxu0 0.0
        %8834 = vmatprep.subr.mxu0 0.0
        %8835 = vmatpush1.msra.mxu0 0.0
        %8836 = vmatprep.subr.mxu0 0.0
        %8837 = vmatpush1.msra.mxu0 0.0
        %8838 = vmatprep.subr.mxu0 0.0
        %8839 = vmatpush1.msra.mxu0 %v8803
        %8840 = vmatprep.subr.mxu0 0.0
        %8841 = vmatpush2.msra.mxu0 0.0
        %8842 = vmatprep.subr.mxu0 0.0
        %8843 = vmatpush2.msra.mxu0 0.0
        %8844 = vmatprep.subr.mxu0 0.0
        %8845 = vmatpush2.msra.mxu0 0.0
        %8846 = vmatprep.subr.mxu0 0.0
        %8847 = vmatpush2.msra.mxu0 0.0
        %8848 = vmatprep.subr.mxu0 0.0
        %8849 = vmatpush2.msra.mxu0 0.0
        %8850 = vmatprep.subr.mxu0 0.0
        %8851 = vmatpush2.msra.mxu0 0.0
        %8852 = vmatprep.subr.mxu0 0.0
        %8853 = vmatpush2.msra.mxu0 0.0
        %8854 = vmatprep.subr.mxu0 0.0
        %8855 = vmatpush2.msra.mxu0 0.0
        %8856 = vmatprep.subr.mxu0 0.0
        %8857 = vmatpush2.msra.mxu0 0.0
        %8858 = vmatprep.subr.mxu0 0.0
        %8859 = vmatpush2.msra.mxu0 0.0
        %8860 = vmatprep.subr.mxu0 0.0
        %8861 = vmatpush2.msra.mxu0 0.0
        %8862 = vmatprep.subr.mxu0 0.0
        %8863 = vmatpush2.msra.mxu0 0.0
        %8864 = vmatprep.subr.mxu0 0.0
        %8865 = vmatpush2.msra.mxu0 0.0
        %8866 = vmatprep.subr.mxu0 0.0
        %8867 = vmatpush2.msra.mxu0 0.0
        %8868 = vmatprep.subr.mxu0 0.0
        %8869 = vmatpush2.msra.mxu0 0.0
        %8870 = vmatprep.subr.mxu0 0.0
        %8871 = vmatpush2.msra.mxu0 0.0
        %8872 = vmatprep.mubr.f32.mxu0 0.0
        %8873 = vmatmul.mubr.f32.gmra.mxu0 %v8806
        %v8874 = vpop.f32.mrf.mxu0
        %v8875 = vadd.f32 0.0, %v8874
        %v8876 = vpop.f32.mrf.mxu0
        %8877 = vdwg.mxu0
        %v8878 = vld [vmem:[%s57] sm:$0x7]
        %vm8879 = vcmask 1041408
        %v8880 = vsel %vm8879, %v8875, 0.0
        %8881 = vadd.xlane.f32.xlu0 %v8880
        %v8882 = vpop.xlane.xlu0 %8881
        %v8883 = vmul.f32 %v8882, 0.015625
        %v8884 = vsub.f32 %v8875, %v8883
        %v8885 = vlaneseq
        %v8886 = vshrl.u32 %v8885, 7
        %v8887 = vsub.s32 2, %v8886
        %v8888 = vrot.slane %v8878, %v8887
        %v8889 = vmul.f32 %v8884, %v8888
        %v8890 = vmul.f32 %v8889, %v8889
        %v8891 = vsel %vm8879, %v8890, 0.0
        %8892 = vadd.xlane.f32.xlu0 %v8891
        %v8893 = vpop.xlane.xlu0 %8892
        %v8894 = vmul.f32 %v8893, 0.015625
        %v8895 = vadd.f32 %v8894, 1e-05
        %v8896 = vrsqrt.pop %v8895
        %v8897 = vmul.f32 %v8889, %v8896
        %v8898 = vlaneseq
        %v8899 = vshrl.u32 %v8898, 7
        %v8900 = vsub.s32 0, %v8899
        %v8901 = vrot.slane %v8878, %v8900
        %v8902 = vmul.f32 %v8897, %v8901
        %v8903 = vlaneseq
        %v8904 = vshrl.u32 %v8903, 7
        %v8905 = vsub.s32 1, %v8904
        %v8906 = vrot.slane %v8878, %v8905
        %v8907 = vadd.f32 %v8902, %v8906
        %v8908 = vpack.c.bf16 %v8907, %v8907
        %v8909 = vld [vmem:[#allocation31] sm:$0xf]
        %v8910 = vld [vmem:[#allocation31 + $0x4] sm:$0xf]
        %v8911 = vld [vmem:[#allocation31 + $0x8] sm:$0xf]
        %v8912 = vld [vmem:[#allocation31 + $0xc] sm:$0xf]
        %v8913 = vld [vmem:[#allocation31 + $0x10] sm:$0xf]
        %v8914 = vld [vmem:[#allocation31 + $0x14] sm:$0xf]
        %v8915 = vld [vmem:[#allocation31 + $0x18] sm:$0xf]
        %v8916 = vld [vmem:[#allocation31 + $0x1c] sm:$0xf]
        %v8917 = vld [vmem:[#allocation31 + $0x20] sm:$0xf]
        %v8918 = vld [vmem:[#allocation31 + $0x24] sm:$0xf]
        %v8919 = vld [vmem:[#allocation31 + $0x28] sm:$0xf]
        %v8920 = vld [vmem:[#allocation31 + $0x2c] sm:$0xf]
        %v8921 = vld [vmem:[#allocation31 + $0x30] sm:$0xf]
        %v8922 = vld [vmem:[#allocation31 + $0x34] sm:$0xf]
        %v8923 = vld [vmem:[#allocation31 + $0x38] sm:$0xf]
        %v8924 = vld [vmem:[#allocation31 + $0x3c] sm:$0xf]
        %v8925 = vld [vmem:[%s61] sm:$0x1]
        %v8927 = vlaneseq
        %v8928 = vshrl.u32 %v8927, 7
        %v8929 = vsub.s32 0, %v8928
        %v8930 = vrot.slane %v8925, %v8929
        %v8948 = vunpack.c.l.b16 %v8909
        %v8949 = vunpack.c.l.b16 %v8910
        %v8950 = vunpack.c.l.b16 %v8911
        %v8951 = vunpack.c.l.b16 %v8912
        %v8952 = vunpack.c.l.b16 %v8913
        %v8953 = vunpack.c.l.b16 %v8914
        %v8954 = vunpack.c.l.b16 %v8915
        %v8955 = vunpack.c.l.b16 %v8916
        %v8956 = vunpack.c.l.b16 %v8917
        %v8957 = vunpack.c.l.b16 %v8918
        %v8958 = vunpack.c.l.b16 %v8919
        %v8959 = vunpack.c.l.b16 %v8920
        %v8960 = vunpack.c.l.b16 %v8921
        %v8961 = vunpack.c.l.b16 %v8922
        %v8962 = vunpack.c.l.b16 %v8923
        %v8963 = vunpack.c.l.b16 %v8924
        %v8964 = vpack.c.b16 %v8949, %v8948
        %v8965 = vpack.c.b16 %v8951, %v8950
        %v8966 = vpack.c.b16 %v8953, %v8952
        %v8967 = vpack.c.b16 %v8955, %v8954
        %v8968 = vpack.c.b16 %v8957, %v8956
        %v8969 = vpack.c.b16 %v8959, %v8958
        %v8970 = vpack.c.b16 %v8961, %v8960
        %v8971 = vpack.c.b16 %v8963, %v8962
        %8980 = vmatprep.subr.bf16.mxu0 0
        %8981 = vmatpush1.bf16.msra.mxu0 %v8971
        %8982 = vmatprep.subr.bf16.mxu0 0
        %8983 = vmatpush1.bf16.msra.mxu0 %v8970
        %8984 = vmatprep.subr.bf16.mxu0 0
        %8985 = vmatpush1.bf16.msra.mxu0 %v8969
        %8986 = vmatprep.subr.bf16.mxu0 0
        %8987 = vmatpush1.bf16.msra.mxu0 %v8968
        %8988 = vmatprep.subr.bf16.mxu0 0
        %8989 = vmatpush1.bf16.msra.mxu0 %v8967
        %8990 = vmatprep.subr.bf16.mxu0 0
        %8991 = vmatpush1.bf16.msra.mxu0 %v8966
        %8992 = vmatprep.subr.bf16.mxu0 0
        %8993 = vmatpush1.bf16.msra.mxu0 %v8965
        %8994 = vmatprep.subr.bf16.mxu0 0
        %8995 = vmatpush1.bf16.msra.mxu0 %v8964
        %8996 = vmatprep.subr.bf16.mxu0 0
        %8997 = vmatpush2.bf16.msra.mxu0 0
        %8998 = vmatprep.subr.bf16.mxu0 0
        %8999 = vmatpush2.bf16.msra.mxu0 0
        %9000 = vmatprep.subr.bf16.mxu0 0
        %9001 = vmatpush2.bf16.msra.mxu0 0
        %9002 = vmatprep.subr.bf16.mxu0 0
        %9003 = vmatpush2.bf16.msra.mxu0 0
        %9004 = vmatprep.subr.bf16.mxu0 0
        %9005 = vmatpush2.bf16.msra.mxu0 0
        %9006 = vmatprep.subr.bf16.mxu0 0
        %9007 = vmatpush2.bf16.msra.mxu0 0
        %9008 = vmatprep.subr.bf16.mxu0 0
        %9009 = vmatpush2.bf16.msra.mxu0 0
        %9010 = vmatprep.subr.bf16.mxu0 0
        %9011 = vmatpush2.bf16.msra.mxu0 0
        %9012 = vmatprep.mubr.bf16.mxu0 0
        %9013 = vmatmul.mubr.bf16.gmra.mxu0 %v8908
        %v9014 = vpop.f32.mrf.mxu0
        %v9015 = vadd.f32 %v8930, %v9014
        %v9016 = vpop.f32.mrf.mxu0
        %v9017 = vpop.f32.mrf.mxu0
        %v9018 = vpop.f32.mrf.mxu0
        %9019 = vdwg.mxu0
        %9020 = vst [vmem:[%s1223] sm:$0x3] %v9015
        %s9021 = sand.u32 %s753, 1
        %s9022 = scalar_lea.sflag [#allocation4], %s9021
        %s9023 = sand.u32 %s753, 1
        %s9024 = smul.addr %s9023, 2
        %s9025 = scalar_lea.vmem [#allocation32], %s9024
        // Predicated region
        $region221: #{tpu_custom_call.1} parent=143 // pred_check
          %p9026 = pneg %p763
        $region222: #{tpu_custom_call.1} parent=143 // pred_check_branch
          %9028 = sbr.rel (%p9026) target = $region224
        $region223: #{tpu_custom_call.1} parent=143 // pred_region
          %s9030 = ssub.s32 32, 32
          %9031 = vsyncadd %s9022, %s9030
          %s9032 = smul.addr %s89, 32
          %s9033 = scalar_lea.hbm %s63, %s9032
          %s9035 = sshll.u32 %s9025, 4
          %s9036 = int_to_ptr.vmem [resolvable:$true] %s9035
          %9038 = dma.vmem_to_hbm [thread:$0]  %s9036, 32, %s9033, %s9022
        $region224: #{tpu_custom_call.1} parent=143 // pred_fallthru
          _
      $region144: #{tpu_custom_call.1} parent=5 // pred_fallthru
        _
      %p9039 = scmp.le.s32.totalorder 2, %s84
      // Predicated region
      $region225: #{tpu_custom_call.1} parent=5 // pred_check
        %p9040 = pneg %p9039
      $region226: #{tpu_custom_call.1} parent=5 // pred_check_branch
        %9042 = sbr.rel (%p9040) target = $region228
      $region227: #{tpu_custom_call.1} parent=5 // pred_region
        %s9043 = ssub.s32 %s84, 2
        // Predicated region
        $region229: #{tpu_custom_call.1} parent=227 // pred_check
          %p9044 = pneg %p769
        $region230: #{tpu_custom_call.1} parent=227 // pred_check_branch
          %9046 = sbr.rel (%p9044) target = $region232
        $region231: #{tpu_custom_call.1} parent=227 // pred_region
          %s9047 = sand.u32 %s754, 1
          %s9048 = scalar_lea.sflag [#allocation4], %s9047
          %s9049 = sand.u32 %s754, 1
          %s9050 = smul.addr %s9049, 2
          %s9051 = scalar_lea.vmem [#allocation32], %s9050
          %9052 = dma.done %s9048, 32
        $region232: #{tpu_custom_call.1} parent=227 // pred_fallthru
          _
      $region228: #{tpu_custom_call.1} parent=5 // pred_fallthru
        _
    $region6: #{tpu_custom_call.1} parent=1 // loop_footer
      %s88 = sadd.s32 1, %s84
    $region7: #{tpu_custom_call.1} parent=1 // loop_footer_branch
      %83 = sbr.rel target = $region3
    $region8: #{tpu_custom_call.1} parent=1 // loop_exit
      _
    %9053 = vsyncpa [#allocation3], 1
    %s9054 = scalar_lea.sflag [#allocation3], 1
    %9055 = vsyncpa %s9054, 1
    %9056 = vsyncpa [#allocation6], 1
    %9057 = vsyncpa [#allocation9], 1
    %9058 = vsyncpa [#allocation12], 1
    %9059 = vsyncpa [#allocation15], 1
    %9060 = vsyncpa [#allocation18], 1
    %9061 = vsyncpa [#allocation21], 1
    %9062 = vsyncpa [#allocation24], 1
    %9063 = vsyncpa [#allocation27], 1
    %9064 = vsyncpa [#allocation30], 1
    %9065 = vsyncpa [#allocation4], 1
    %s9066 = scalar_lea.sflag [#allocation4], 1
    %9067 = vsyncpa %s9066, 1

</llo_original>
